<compile_context>
chip_gen: v6e
topology: v6e:2x2x1
jax: 0.10.0
libtpu: 0.0.40
codegen_flags: <defaults>
</compile_context>

<pallas_src>
import functools

import jax
import jax.numpy as jnp
from jax.experimental import pallas as pl
from jax.experimental.pallas import tpu as pltpu


# ----------------------------------------------------------------------------
# Fused kernel: BN1+conv1d(1x1)+ReLU+BN2  ->  temporal conv+ReLU  ->  TD1 -> TD2
# ----------------------------------------------------------------------------
def _eeg_fused_kernel(x_ref, w1_ref, b1_ref, s2_ref, t2_ref,
                      kc_ref, b2_ref, w3_ref, b3_ref, w4_ref, b4_ref,
                      o_ref, *, t_out):
    xr = x_ref[0]                                               # (t_out+2, 3*64)

    # Stage 1: folded BN1 + 1x1 channel mix + ReLU + folded BN2.
    # Three consecutive time steps per row -> block-diagonal weight (192, 96).
    h = jnp.dot(xr, w1_ref[...], preferred_element_type=jnp.float32) + b1_ref[...]
    z = jnp.maximum(h, 0.0) * s2_ref[...] + t2_ref[...]         # (t_out+2, 96)

    # Stage 2: temporal conv (kernel 9, stride 3) + flatten(f*S + w) + ReLU,
    # expressed as 3 dense (t_out, 96) @ (96, F*S) matmuls (no strided access).
    acc = jnp.dot(z[0:t_out], kc_ref[0], preferred_element_type=jnp.float32)
    for a in (1, 2):                                            # static unroll
        acc = acc + jnp.dot(z[a:a + t_out], kc_ref[a],
                            preferred_element_type=jnp.float32)
    conv = jnp.maximum(acc + b2_ref[...], 0.0)                  # (t_out, F*S)

    # Stage 3: time-distributed dense layers.
    h1 = jnp.maximum(
        jnp.dot(conv, w3_ref[...], preferred_element_type=jnp.float32)
        + b3_ref[...], 0.0)                                     # (t_out, H)
    o_ref[0] = jnp.maximum(
        jnp.dot(h1, w4_ref[...], preferred_element_type=jnp.float32)
        + b4_ref[...], 0.0)                                     # (t_out, U)


# ----------------------------------------------------------------------------
# Parameter folding (BN fusion + conv re-layout), done once in the wrapper.
# ----------------------------------------------------------------------------
def _fold_params(p, eps=1e-5):
    s_eeg = p["w_conv1"].shape[0]          # spatial_filters_eeg (32)
    f_cnn = p["w_conv2"].shape[0]          # filters_cnn_eeg (16)

    # BN1 folded into the 1x1 conv: xbn = x*s1 + t1
    s1 = p["bn1_g"] * jax.lax.rsqrt(p["bn1_v"] + eps)
    t1 = p["bn1_b"] - p["bn1_m"] * s1
    w1 = (p["w_conv1"] * s1[None, :]).T                     # (64, S)
    b1 = p["b_conv1"] + p["w_conv1"] @ t1                   # (S,)

    # BN2 as a per-channel affine
    s2 = p["bn2_g"] * jax.lax.rsqrt(p["bn2_v"] + eps)
    t2 = p["bn2_b"] - p["bn2_m"] * s2

    # "3 time steps per row" layout: block-diagonal channel mix (192 -> 96)
    eye3 = jnp.eye(3, dtype=w1.dtype)
    w1big = jnp.kron(eye3, w1)                              # (3*64, 3*S)
    b1big = jnp.tile(b1, 3)[None, :]
    s2big = jnp.tile(s2, 3)[None, :]
    t2big = jnp.tile(t2, 3)[None, :]

    # Temporal conv (kernel 9, stride 3) as 3 dense (3*S, F*S) matrices:
    # kbig[a, r*S+u, f*S+v] = K[f, 3a+r] * (u == v)
    k3 = p["w_conv2"].reshape(f_cnn, 3, 3)
    eye_s = jnp.eye(s_eeg, dtype=jnp.float32)
    kbig = jnp.einsum("far,uv->arufv", k3, eye_s).reshape(3, 3 * s_eeg,
                                                          f_cnn * s_eeg)
    b2big = jnp.repeat(p["b_conv2"], s_eeg)[None, :]        # index f*S + v

    return dict(
        w1=w1big, b1=b1big, s2=s2big, t2=t2big,
        kc=kbig, b2=b2big,
        w3=p["w_td1"].T, b3=p["b_td1"][None, :],
        w4=p["w_td2"].T, b4=p["b_td2"][None, :],
    )


def eeg_extended_forward(x, params):
    """x: (B, T, 64) -> (B, T_out, units_lstm), matching EEGExtended.forward."""
    B, T, c_in = x.shape
    t_out = (T - 9) // 3 + 1
    t_rows = t_out + 2                      # 3*t_rows = last time index used + 1
    x = x[:, : 3 * t_rows, :]
    # Free (metadata-only) reshape: pack 3 consecutive time steps per row.
    xr = x.reshape(B, t_rows, 3 * c_in)

    fp = _fold_params(params)
    d_out = fp["w4"].shape[1]

    def _full(a):
        return pl.BlockSpec(a.shape, lambda b, _nd=a.ndim: (0,) * _nd)

    weight_order = ("w1", "b1", "s2", "t2", "kc", "b2", "w3", "b3", "w4", "b4")
    weights = [fp[k] for k in weight_order]

    return pl.pallas_call(
        functools.partial(_eeg_fused_kernel, t_out=t_out),
        out_shape=jax.ShapeDtypeStruct((B, t_out, d_out), jnp.float32),
        grid=(B,),
        in_specs=[pl.BlockSpec((1, t_rows, 3 * c_in), lambda b: (b, 0, 0))]
        + [_full(w) for w in weights],
        out_specs=pl.BlockSpec((1, t_out, d_out), lambda b: (b, 0, 0)),
        compiler_params=pltpu.CompilerParams(
            dimension_semantics=("parallel",),
            vmem_limit_bytes=32 * 1024 * 1024,
        ),
    )(xr, *weights)


# ----------------------------------------------------------------------------
# Pure-JAX reference (mirrors the PyTorch ops 1:1, inference-mode BN)
# ----------------------------------------------------------------------------
def _reference(x, p, eps=1e-5):
    B, T, _ = x.shape
    s_eeg, f_cnn = p["w_conv1"].shape[0], p["w_conv2"].shape[0]
    hi = jax.lax.Precision.HIGHEST

    xt = jnp.transpose(x, (0, 2, 1))                                  # (B, 64, T)
    s1 = p["bn1_g"] * jax.lax.rsqrt(p["bn1_v"] + eps)
    xbn = (xt - p["bn1_m"][None, :, None]) * s1[None, :, None] \
        + p["bn1_b"][None, :, None]
    h = jnp.einsum("oc,bct->bot", p["w_conv1"], xbn, precision=hi) \
        + p["b_conv1"][None, :, None]
    h = jnp.maximum(h, 0.0)                                           # (B, S, T)
    s2 = p["bn2_g"] * jax.lax.rsqrt(p["bn2_v"] + eps)
    z = (h - p["bn2_m"][None, :, None]) * s2[None, :, None] \
        + p["bn2_b"][None, :, None]
    zp = jnp.transpose(z, (0, 2, 1))                                  # (B, T, S)

    t_out = (T - 9) // 3 + 1
    conv = jnp.zeros((B, t_out, f_cnn, s_eeg), jnp.float32)
    for k in range(9):
        conv = conv + p["w_conv2"][None, None, :, k, None] \
            * zp[:, k:k + 3 * t_out:3, None, :]
    conv = jnp.maximum(conv + p["b_conv2"][None, None, :, None], 0.0)
    feat = conv.reshape(B, t_out, f_cnn * s_eeg)                      # f*S + w

    h1 = jnp.maximum(
        jnp.einsum("btd,ud->btu", feat, p["w_td1"], precision=hi) + p["b_td1"],
        0.0)
    return jnp.maximum(
        jnp.einsum("btu,vu->btv", h1, p["w_td2"], precision=hi) + p["b_td2"],
        0.0)


# ----------------------------------------------------------------------------
if __name__ == "__main__":
    jax.config.update("jax_default_matmul_precision", "highest")

    key = jax.random.PRNGKey(0)
    ks = jax.random.split(key, 17)

    B, T, C_IN = 2, 30, 64            # T_out = (30 - 9)//3 + 1 = 8
    S_EEG, F_CNN = 32, 16             # spatial_filters_eeg, filters_cnn_eeg
    H, U = 128, 32                    # units_hidden, units_lstm

    x = jax.random.normal(ks[0], (B, T, C_IN), dtype=jnp.float32)

    def uni(k, shape, scale):
        return jax.random.uniform(k, shape, jnp.float32, -scale, scale)

    params = {
        # BatchNorm1d(64), inference-mode running stats
        "bn1_g": 1.0 + 0.1 * jax.random.normal(ks[1], (C_IN,), jnp.float32),
        "bn1_b": 0.1 * jax.random.normal(ks[2], (C_IN,), jnp.float32),
        "bn1_m": 0.1 * jax.random.normal(ks[3], (C_IN,), jnp.float32),
        "bn1_v": 1.0 + 0.1 * jnp.abs(jax.random.normal(ks[4], (C_IN,), jnp.float32)),
        # Conv1d(64 -> S_EEG, kernel_size=1)
        "w_conv1": uni(ks[5], (S_EEG, C_IN), 1.0 / C_IN ** 0.5),
        "b_conv1": uni(ks[6], (S_EEG,), 1.0 / C_IN ** 0.5),
        # BatchNorm1d(S_EEG)
        "bn2_g": 1.0 + 0.1 * jax.random.normal(ks[7], (S_EEG,), jnp.float32),
        "bn2_b": 0.1 * jax.random.normal(ks[8], (S_EEG,), jnp.float32),
        "bn2_m": 0.1 * jax.random.normal(ks[9], (S_EEG,), jnp.float32),
        "bn2_v": 1.0 + 0.1 * jnp.abs(jax.random.normal(ks[10], (S_EEG,), jnp.float32)),
        # Conv2d(1 -> F_CNN, kernel=(9,1), stride=(3,1)) weight squeezed to (F,9)
        "w_conv2": uni(ks[11], (F_CNN, 9), 1.0 / 3.0),
        "b_conv2": uni(ks[12], (F_CNN,), 1.0 / 3.0),
        # Linear(S*F -> H), Linear(H -> U) in torch (out, in) layout
        "w_td1": uni(ks[13], (H, S_EEG * F_CNN), 1.0 / (S_EEG * F_CNN) ** 0.5),
        "b_td1": uni(ks[14], (H,), 1.0 / (S_EEG * F_CNN) ** 0.5),
        "w_td2": uni(ks[15], (U, H), 1.0 / H ** 0.5),
        "b_td2": uni(ks[16], (U,), 1.0 / H ** 0.5),
    }

    out = jax.jit(eeg_extended_forward)(x, params)
    jax.block_until_ready(out)

    ref = _reference(x, params)
    assert out.shape == (B, (T - 9) // 3 + 1, U), out.shape
    assert jnp.allclose(out, ref, atol=1e-3, rtol=1e-3), \
        float(jnp.max(jnp.abs(out - ref)))

    print("KERNEL_OK")
</pallas_src>

<mosaic_0001>
module attributes {stable_mosaic.version = 11 : i64} {
  func.func @_eeg_fused_kernel(%arg0: i32, %arg1: memref<1x10x192xf32, #tpu.memory_space<vmem>>, %arg2: memref<192x96xf32, #tpu.memory_space<vmem>>, %arg3: memref<1x96xf32, #tpu.memory_space<vmem>>, %arg4: memref<1x96xf32, #tpu.memory_space<vmem>>, %arg5: memref<1x96xf32, #tpu.memory_space<vmem>>, %arg6: memref<3x96x512xf32, #tpu.memory_space<vmem>>, %arg7: memref<1x512xf32, #tpu.memory_space<vmem>>, %arg8: memref<512x128xf32, #tpu.memory_space<vmem>>, %arg9: memref<1x128xf32, #tpu.memory_space<vmem>>, %arg10: memref<128x32xf32, #tpu.memory_space<vmem>>, %arg11: memref<1x32xf32, #tpu.memory_space<vmem>>, %arg12: memref<1x8x32xf32, #tpu.memory_space<vmem>>) attributes {dimension_semantics = [#tpu.dimension_semantics<parallel>], iteration_bounds = array<i64: 2>, scalar_prefetch = 0 : i64, scratch_operands = 0 : i64, tpu.core_type = #tpu.core_type<tc>, window_params = [{transform_indices = @transform_0, window_bounds = array<i64: 1, 10, 192>}, {pipeline_mode = #tpu.pipeline_mode<synchronous>, transform_indices = @transform_1, window_bounds = array<i64: 192, 96>}, {pipeline_mode = #tpu.pipeline_mode<synchronous>, transform_indices = @transform_2, window_bounds = array<i64: 1, 96>}, {pipeline_mode = #tpu.pipeline_mode<synchronous>, transform_indices = @transform_3, window_bounds = array<i64: 1, 96>}, {pipeline_mode = #tpu.pipeline_mode<synchronous>, transform_indices = @transform_4, window_bounds = array<i64: 1, 96>}, {pipeline_mode = #tpu.pipeline_mode<synchronous>, transform_indices = @transform_5, window_bounds = array<i64: 3, 96, 512>}, {pipeline_mode = #tpu.pipeline_mode<synchronous>, transform_indices = @transform_6, window_bounds = array<i64: 1, 512>}, {pipeline_mode = #tpu.pipeline_mode<synchronous>, transform_indices = @transform_7, window_bounds = array<i64: 512, 128>}, {pipeline_mode = #tpu.pipeline_mode<synchronous>, transform_indices = @transform_8, window_bounds = array<i64: 1, 128>}, {pipeline_mode = #tpu.pipeline_mode<synchronous>, transform_indices = @transform_9, window_bounds = array<i64: 128, 32>}, {pipeline_mode = #tpu.pipeline_mode<synchronous>, transform_indices = @transform_10, window_bounds = array<i64: 1, 32>}, {transform_indices = @transform_11, window_bounds = array<i64: 1, 8, 32>}]} {
    %c0 = arith.constant 0 : index
    %c0_0 = arith.constant 0 : index
    %c0_1 = arith.constant 0 : index
    %0 = vector.load %arg1[%c0, %c0_0, %c0_1] : memref<1x10x192xf32, #tpu.memory_space<vmem>>, vector<1x10x192xf32>
    %1 = vector.shape_cast %0 : vector<1x10x192xf32> to vector<10x192xf32>
    %c0_2 = arith.constant 0 : index
    %c0_3 = arith.constant 0 : index
    %2 = vector.load %arg2[%c0_2, %c0_3] : memref<192x96xf32, #tpu.memory_space<vmem>>, vector<192x96xf32>
    %cst = arith.constant dense<0.000000e+00> : vector<10x96xf32>
    %3 = tpu.matmul %1, %2, %cst {dimension_numbers = #tpu.dot_dimension_numbers<[1], [0], [0], [1], [0, 0, 1, 1], [], []>, precision = #tpu.contract_precision<fp32>} : vector<10x192xf32>, vector<192x96xf32>, vector<10x96xf32> -> vector<10x96xf32>
    %c0_4 = arith.constant 0 : index
    %c0_5 = arith.constant 0 : index
    %4 = vector.load %arg3[%c0_4, %c0_5] : memref<1x96xf32, #tpu.memory_space<vmem>>, vector<1x96xf32>
    %5 = vector.broadcast %4 : vector<1x96xf32> to vector<10x96xf32>
    %6 = arith.addf %3, %5 : vector<10x96xf32>
    %cst_6 = arith.constant 0.000000e+00 : f32
    %7 = vector.broadcast %cst_6 : f32 to vector<10x96xf32>
    %8 = arith.maximumf %6, %7 : vector<10x96xf32>
    %c0_7 = arith.constant 0 : index
    %c0_8 = arith.constant 0 : index
    %9 = vector.load %arg4[%c0_7, %c0_8] : memref<1x96xf32, #tpu.memory_space<vmem>>, vector<1x96xf32>
    %10 = vector.broadcast %9 : vector<1x96xf32> to vector<10x96xf32>
    %11 = arith.mulf %8, %10 : vector<10x96xf32>
    %c0_9 = arith.constant 0 : index
    %c0_10 = arith.constant 0 : index
    %12 = vector.load %arg5[%c0_9, %c0_10] : memref<1x96xf32, #tpu.memory_space<vmem>>, vector<1x96xf32>
    %13 = vector.broadcast %12 : vector<1x96xf32> to vector<10x96xf32>
    %14 = arith.addf %11, %13 : vector<10x96xf32>
    %15 = vector.extract_strided_slice %14 {offsets = [0, 0], sizes = [8, 96], strides = [1, 1]} : vector<10x96xf32> to vector<8x96xf32>
    %c0_11 = arith.constant 0 : index
    %c0_12 = arith.constant 0 : index
    %c0_13 = arith.constant 0 : index
    %16 = vector.load %arg6[%c0_11, %c0_12, %c0_13] : memref<3x96x512xf32, #tpu.memory_space<vmem>>, vector<1x96x512xf32>
    %17 = vector.shape_cast %16 : vector<1x96x512xf32> to vector<96x512xf32>
    %cst_14 = arith.constant dense<0.000000e+00> : vector<8x512xf32>
    %18 = tpu.matmul %15, %17, %cst_14 {dimension_numbers = #tpu.dot_dimension_numbers<[1], [0], [0], [1], [0, 0, 1, 1], [], []>, precision = #tpu.contract_precision<fp32>} : vector<8x96xf32>, vector<96x512xf32>, vector<8x512xf32> -> vector<8x512xf32>
    %19 = vector.extract_strided_slice %14 {offsets = [1, 0], sizes = [8, 96], strides = [1, 1]} : vector<10x96xf32> to vector<8x96xf32>
    %c1 = arith.constant 1 : index
    %c0_15 = arith.constant 0 : index
    %c0_16 = arith.constant 0 : index
    %20 = vector.load %arg6[%c1, %c0_15, %c0_16] : memref<3x96x512xf32, #tpu.memory_space<vmem>>, vector<1x96x512xf32>
    %21 = vector.shape_cast %20 : vector<1x96x512xf32> to vector<96x512xf32>
    %cst_17 = arith.constant dense<0.000000e+00> : vector<8x512xf32>
    %22 = tpu.matmul %19, %21, %cst_17 {dimension_numbers = #tpu.dot_dimension_numbers<[1], [0], [0], [1], [0, 0, 1, 1], [], []>, precision = #tpu.contract_precision<fp32>} : vector<8x96xf32>, vector<96x512xf32>, vector<8x512xf32> -> vector<8x512xf32>
    %23 = arith.addf %18, %22 : vector<8x512xf32>
    %24 = vector.extract_strided_slice %14 {offsets = [2, 0], sizes = [8, 96], strides = [1, 1]} : vector<10x96xf32> to vector<8x96xf32>
    %c2 = arith.constant 2 : index
    %c0_18 = arith.constant 0 : index
    %c0_19 = arith.constant 0 : index
    %25 = vector.load %arg6[%c2, %c0_18, %c0_19] : memref<3x96x512xf32, #tpu.memory_space<vmem>>, vector<1x96x512xf32>
    %26 = vector.shape_cast %25 : vector<1x96x512xf32> to vector<96x512xf32>
    %cst_20 = arith.constant dense<0.000000e+00> : vector<8x512xf32>
    %27 = tpu.matmul %24, %26, %cst_20 {dimension_numbers = #tpu.dot_dimension_numbers<[1], [0], [0], [1], [0, 0, 1, 1], [], []>, precision = #tpu.contract_precision<fp32>} : vector<8x96xf32>, vector<96x512xf32>, vector<8x512xf32> -> vector<8x512xf32>
    %28 = arith.addf %23, %27 : vector<8x512xf32>
    %c0_21 = arith.constant 0 : index
    %c0_22 = arith.constant 0 : index
    %29 = vector.load %arg7[%c0_21, %c0_22] : memref<1x512xf32, #tpu.memory_space<vmem>>, vector<1x512xf32>
    %30 = vector.broadcast %29 : vector<1x512xf32> to vector<8x512xf32>
    %31 = arith.addf %28, %30 : vector<8x512xf32>
    %cst_23 = arith.constant 0.000000e+00 : f32
    %32 = vector.broadcast %cst_23 : f32 to vector<8x512xf32>
    %33 = arith.maximumf %31, %32 : vector<8x512xf32>
    %c0_24 = arith.constant 0 : index
    %c0_25 = arith.constant 0 : index
    %34 = vector.load %arg8[%c0_24, %c0_25] : memref<512x128xf32, #tpu.memory_space<vmem>>, vector<512x128xf32>
    %cst_26 = arith.constant dense<0.000000e+00> : vector<8x128xf32>
    %35 = tpu.matmul %33, %34, %cst_26 {dimension_numbers = #tpu.dot_dimension_numbers<[1], [0], [0], [1], [0, 0, 1, 1], [], []>, precision = #tpu.contract_precision<fp32>} : vector<8x512xf32>, vector<512x128xf32>, vector<8x128xf32> -> vector<8x128xf32>
    %c0_27 = arith.constant 0 : index
    %c0_28 = arith.constant 0 : index
    %36 = vector.load %arg9[%c0_27, %c0_28] : memref<1x128xf32, #tpu.memory_space<vmem>>, vector<1x128xf32>
    %37 = vector.broadcast %36 : vector<1x128xf32> to vector<8x128xf32>
    %38 = arith.addf %35, %37 : vector<8x128xf32>
    %cst_29 = arith.constant 0.000000e+00 : f32
    %39 = vector.broadcast %cst_29 : f32 to vector<8x128xf32>
    %40 = arith.maximumf %38, %39 : vector<8x128xf32>
    %c0_30 = arith.constant 0 : index
    %c0_31 = arith.constant 0 : index
    %41 = vector.load %arg10[%c0_30, %c0_31] : memref<128x32xf32, #tpu.memory_space<vmem>>, vector<128x32xf32>
    %cst_32 = arith.constant dense<0.000000e+00> : vector<8x32xf32>
    %42 = tpu.matmul %40, %41, %cst_32 {dimension_numbers = #tpu.dot_dimension_numbers<[1], [0], [0], [1], [0, 0, 1, 1], [], []>, precision = #tpu.contract_precision<fp32>} : vector<8x128xf32>, vector<128x32xf32>, vector<8x32xf32> -> vector<8x32xf32>
    %c0_33 = arith.constant 0 : index
    %c0_34 = arith.constant 0 : index
    %43 = vector.load %arg11[%c0_33, %c0_34] : memref<1x32xf32, #tpu.memory_space<vmem>>, vector<1x32xf32>
    %44 = vector.broadcast %43 : vector<1x32xf32> to vector<8x32xf32>
    %45 = arith.addf %42, %44 : vector<8x32xf32>
    %cst_35 = arith.constant 0.000000e+00 : f32
    %46 = vector.broadcast %cst_35 : f32 to vector<8x32xf32>
    %47 = arith.maximumf %45, %46 : vector<8x32xf32>
    %c0_36 = arith.constant 0 : index
    %c0_37 = arith.constant 0 : index
    %c0_38 = arith.constant 0 : index
    %48 = vector.load %arg12[%c0_36, %c0_37, %c0_38] : memref<1x8x32xf32, #tpu.memory_space<vmem>>, vector<1x8x32xf32>
    %49 = vector.shape_cast %48 : vector<1x8x32xf32> to vector<8x32xf32>
    %50 = vector.shape_cast %47 : vector<8x32xf32> to vector<1x8x32xf32>
    tpu.vector_store %arg12[%c0_36, %c0_37, %c0_38], %50 {strides = array<i32>} : memref<1x8x32xf32, #tpu.memory_space<vmem>>, vector<1x8x32xf32>,
    return
  }
  func.func @transform_0(%arg0: i32) -> (i32, i32, i32) {
    %c0_i32 = arith.constant 0 : i32
    %c0_i32_0 = arith.constant 0 : i32
    %c0_i32_1 = arith.constant 0 : i32
    return %arg0, %c0_i32, %c0_i32_0 : i32, i32, i32
  }
  func.func @transform_1(%arg0: i32) -> (i32, i32) {
    %c0_i32 = arith.constant 0 : i32
    %c0_i32_0 = arith.constant 0 : i32
    %c0_i32_1 = arith.constant 0 : i32
    return %c0_i32, %c0_i32_0 : i32, i32
  }
  func.func @transform_2(%arg0: i32) -> (i32, i32) {
    %c0_i32 = arith.constant 0 : i32
    %c0_i32_0 = arith.constant 0 : i32
    %c0_i32_1 = arith.constant 0 : i32
    return %c0_i32, %c0_i32_0 : i32, i32
  }
  func.func @transform_3(%arg0: i32) -> (i32, i32) {
    %c0_i32 = arith.constant 0 : i32
    %c0_i32_0 = arith.constant 0 : i32
    %c0_i32_1 = arith.constant 0 : i32
    return %c0_i32, %c0_i32_0 : i32, i32
  }
  func.func @transform_4(%arg0: i32) -> (i32, i32) {
    %c0_i32 = arith.constant 0 : i32
    %c0_i32_0 = arith.constant 0 : i32
    %c0_i32_1 = arith.constant 0 : i32
    return %c0_i32, %c0_i32_0 : i32, i32
  }
  func.func @transform_5(%arg0: i32) -> (i32, i32, i32) {
    %c0_i32 = arith.constant 0 : i32
    %c0_i32_0 = arith.constant 0 : i32
    %c0_i32_1 = arith.constant 0 : i32
    %c0_i32_2 = arith.constant 0 : i32
    return %c0_i32, %c0_i32_0, %c0_i32_1 : i32, i32, i32
  }
  func.func @transform_6(%arg0: i32) -> (i32, i32) {
    %c0_i32 = arith.constant 0 : i32
    %c0_i32_0 = arith.constant 0 : i32
    %c0_i32_1 = arith.constant 0 : i32
    return %c0_i32, %c0_i32_0 : i32, i32
  }
  func.func @transform_7(%arg0: i32) -> (i32, i32) {
    %c0_i32 = arith.constant 0 : i32
    %c0_i32_0 = arith.constant 0 : i32
    %c0_i32_1 = arith.constant 0 : i32
    return %c0_i32, %c0_i32_0 : i32, i32
  }
  func.func @transform_8(%arg0: i32) -> (i32, i32) {
    %c0_i32 = arith.constant 0 : i32
    %c0_i32_0 = arith.constant 0 : i32
    %c0_i32_1 = arith.constant 0 : i32
    return %c0_i32, %c0_i32_0 : i32, i32
  }
  func.func @transform_9(%arg0: i32) -> (i32, i32) {
    %c0_i32 = arith.constant 0 : i32
    %c0_i32_0 = arith.constant 0 : i32
    %c0_i32_1 = arith.constant 0 : i32
    return %c0_i32, %c0_i32_0 : i32, i32
  }
  func.func @transform_10(%arg0: i32) -> (i32, i32) {
    %c0_i32 = arith.constant 0 : i32
    %c0_i32_0 = arith.constant 0 : i32
    %c0_i32_1 = arith.constant 0 : i32
    return %c0_i32, %c0_i32_0 : i32, i32
  }
  func.func @transform_11(%arg0: i32) -> (i32, i32, i32) {
    %c0_i32 = arith.constant 0 : i32
    %c0_i32_0 = arith.constant 0 : i32
    %c0_i32_1 = arith.constant 0 : i32
    return %arg0, %c0_i32, %c0_i32_0 : i32, i32, i32
  }
}

</mosaic_0001>

<llo_original>
// kernel: tile.18
$region0: #{tile.18}
  #allocation0 [shape = 's32[1]{0}', space=sflag, size = 0x4, scoped, tag = 'scoped memory for tile.18']
  %s0 = inlined_call_operand.vmem [shape: f32[32], index: 0, kind: input, shape index: {}]
  %s1 = inlined_call_operand.vmem [shape: f32[3,32], index: 1, kind: output, shape index: {}]
  // Predicated region
  $region2: #{tile.18} parent=0 // pred_check
    _
  $region3: #{tile.18} parent=0 // pred_check_branch
    %3 = sbr.rel (0) target = $region5
  $region4: #{tile.18} parent=0 // pred_region
    _
  $region5: #{tile.18} parent=0 // pred_fallthru
    _
  %v4 = vld [vmem:[%s0] ss:$0 sm:$0xff]
  %5 = vst [vmem:[%s1] sm:$0xf] %v4

// kernel: tile.19
$region0: #{tile.19}
  %s0 = inlined_call_operand.vmem [shape: f32[3,32], index: 0, kind: input, shape index: {}]
  %s1 = inlined_call_operand.vmem [shape: f32[1,96], index: 1, kind: output, shape index: {}]
  $region1: #{tile.19} parent=0
    #allocation0 [shape = 'u8[4096]{0}', space=vmem, size = 0x1000, scoped, tag = 'scoped mem for output reshape']
    #allocation1 [shape = 'u8[4096]{0}', space=vmem, size = 0x1000, scoped, tag = 'scoped mem for input reshape']
    %s3 = sshll.u32 1, 4
    %s4 = ssub.s32 %s3, 1
    %v5 = vld [vmem:[%s0] sm:%s4]
    %6 = vst [vmem:[#allocation1] sm:%s4] %v5
    %v7 = vld [vmem:[#allocation1] sm:$0x1]
    %vm8 = vcmask 261120
    %9 = vst.msk [vmem:[#allocation0] sm:$0x1] %vm8, %v7
    %s10 = scalar_lea.vmem [#allocation1], 2
    %v11 = vld [vmem:[%s10] sm:$0x1]
    %12 = vrot.lane.b32.xlu0 %v11, 64
    %v13 = vpop.permute.xlu0 %12
    %vm14 = vcmask 785920
    %15 = vst.msk [vmem:[#allocation0] sm:$0x1] %vm14, %v13
    %s16 = scalar_lea.vmem [#allocation1], 1
    %v17 = vld [vmem:[%s16] sm:$0x1]
    %18 = vrot.lane.b32.xlu0 %v17, 32
    %v19 = vpop.permute.xlu0 %18
    %vm20 = vcmask 523520
    %21 = vst.msk [vmem:[#allocation0] sm:$0x1] %vm20, %v19
    %s23 = sshll.u32 1, 1
    %s24 = ssub.s32 %s23, 1
    %v26 = vld [vmem:[#allocation0] sm:%s24]
    %s27 = sshll.u32 1, 1
    %s28 = ssub.s32 %s27, 1
    %29 = vst [vmem:[%s1] sm:%s28] %v26

// kernel: eeg_extended_forward.1
$region0: #{eeg_extended_forward.1}
  #allocation0 [shape = 'u32[]', space=smem, size = 0x4, offset = 0x4, fixed_abs, tag = 'smem constant byte address 0x4 - core index']
  #allocation1 [shape = 'u32[144,128]{1,0:T(1,128)}', space=vmem, size = 0x12000, scoped, tag = 'internal scratch']
  %s0 = inlined_call_operand.vmem [shape: f32[2,10,192], index: 0, kind: input, shape index: {}]
  %s1 = inlined_call_operand.vmem [shape: f32[192,96], index: 1, kind: input, shape index: {}]
  %s2 = inlined_call_operand.vmem [shape: f32[1,96], index: 2, kind: input, shape index: {}]
  %s3 = inlined_call_operand.vmem [shape: f32[1,96], index: 3, kind: input, shape index: {}]
  %s4 = inlined_call_operand.vmem [shape: f32[1,96], index: 4, kind: input, shape index: {}]
  %s5 = inlined_call_operand.vmem [shape: f32[3,96,512], index: 5, kind: input, shape index: {}]
  %s6 = inlined_call_operand.vmem [shape: f32[1,512], index: 6, kind: input, shape index: {}]
  %s7 = inlined_call_operand.vmem [shape: f32[512,128], index: 7, kind: input, shape index: {}]
  %s8 = inlined_call_operand.vmem [shape: f32[1,128], index: 8, kind: input, shape index: {}]
  %s9 = inlined_call_operand.vmem [shape: f32[128,32], index: 9, kind: input, shape index: {}]
  %s10 = inlined_call_operand.vmem [shape: f32[1,32], index: 10, kind: input, shape index: {}]
  %s11 = inlined_call_operand.hbm [shape: f32[2,8,32], index: 11, kind: output, shape index: {}]
  %s12 = sld [smem:[#allocation0]]
  $region77: #{eeg_extended_forward.1} parent=0
    _
  %s14 = ssub.s32 1, %s12
  %s15 = scalar_select 0, %s14, %s12
  $region1: #{eeg_extended_forward.1} parent=0
    #allocation2 [shape = 'u8[8192]{0}', space=vmem, size = 0x2000, scoped, tag = 'output window, operand 0']
    #allocation3 [shape = 's32[2]{0}', space=sflag, size = 0x8, scoped, tag = 'scoped memory for eeg_extended_forward.1']
    %16 = vsyncpa [#allocation3], 0
    %s17 = scalar_lea.sflag [#allocation3], 1
    %18 = vsyncpa %s17, 0
    loop: start=0, step=1, limit=4
    $region2: #{eeg_extended_forward.1} parent=1 // loop_pre_header
      _
    $region3: #{eeg_extended_forward.1} parent=1 // loop_header
      %s20 = sphi 0, %s24
      %p21 = scmp.ge.s32.totalorder %s20, 4
      %s30 = sphi 0, %s32
      %s33 = sphi 0, %s30
      %s34 = sphi 0, %s33
      %s50 = sphi 0, %s34
      %s54 = sphi 0, %s54
      %s56 = sphi 0, %s54
      %s57 = sphi 0, %s56
      %s71 = sphi 0, %s57
      %s75 = sphi 0, %s75
      %s77 = sphi 0, %s75
      %s78 = sphi 0, %s77
      %s92 = sphi 0, %s78
      %s96 = sphi 0, %s96
      %s98 = sphi 0, %s96
      %s99 = sphi 0, %s98
      %s113 = sphi 0, %s99
      %s117 = sphi 0, %s117
      %s119 = sphi 0, %s117
      %s120 = sphi 0, %s119
      %s134 = sphi 0, %s120
      %s138 = sphi 0, %s138
      %s140 = sphi 0, %s138
      %s141 = sphi 0, %s140
      %s155 = sphi 0, %s141
      %s159 = sphi 0, %s159
      %s161 = sphi 0, %s159
      %s162 = sphi 0, %s161
      %s176 = sphi 0, %s162
      %s180 = sphi 0, %s180
      %s182 = sphi 0, %s180
      %s183 = sphi 0, %s182
      %s197 = sphi 0, %s183
      %s201 = sphi 0, %s201
      %s203 = sphi 0, %s201
      %s204 = sphi 0, %s203
      %s218 = sphi 0, %s204
      %s222 = sphi 0, %s222
      %s224 = sphi 0, %s222
      %s225 = sphi 0, %s224
      %s239 = sphi 0, %s225
      %s243 = sphi 0, %s243
      %s245 = sphi 0, %s243
      %s246 = sphi 0, %s245
      %s260 = sphi 0, %s246
      %s266 = sphi 0, %s268
      %s269 = sphi 0, %s266
      %s270 = sphi 0, %s269
      %s286 = sphi 0, %s270
    $region4: #{eeg_extended_forward.1} parent=1 // loop_header_branch
      %23 = sbr.rel (%p21) target = $region8
    $region5: #{eeg_extended_forward.1} parent=1 // loop_body
      %s25 = ssub.s32 %s20, 1
      %s26 = ssub.s32 %s20, 2
      %s27 = sadd.s32 %s20, 1
      %s28 = ssub.s32 %s20, %s27
      %p29 = scmp.eq.s32.totalorder %s28, 0
      %s31 = sadd.s32 %s30, 1
      %s32 = scalar_select %p29, %s30, %s31
      %p35 = pneg %p29
      %p36 = scmp.eq.s32.totalorder %s20, 1
      %p37 = por %p35, %p36
      %p38 = scmp.ne.s32.totalorder %s30, %s33
      %p39 = scmp.eq.s32.totalorder %s20, 0
      %p40 = por %p38, %p39
      %p41 = scmp.ne.s32.totalorder %s30, %s33
      %p42 = scmp.eq.s32.totalorder %s25, 1
      %p43 = por %p41, %p42
      %p44 = scmp.ne.s32.totalorder %s33, %s34
      %p45 = scmp.eq.s32.totalorder %s25, 0
      %p46 = por %p44, %p45
      %p47 = scmp.ne.s32.totalorder %s33, %s34
      %p48 = scmp.eq.s32.totalorder %s26, 1
      %p49 = por %p47, %p48
      %p51 = scmp.ne.s32.totalorder %s34, %s50
      %p52 = scmp.eq.s32.totalorder %s26, 0
      %p53 = por %p51, %p52
      %s55 = sadd.s32 %s54, 1
      %p58 = scmp.eq.s32.totalorder %s20, 1
      %p59 = scmp.ne.s32.totalorder %s54, %s56
      %p60 = scmp.eq.s32.totalorder %s20, 0
      %p61 = por %p59, %p60
      %p62 = scmp.ne.s32.totalorder %s54, %s56
      %p63 = scmp.eq.s32.totalorder %s25, 1
      %p64 = por %p62, %p63
      %p65 = scmp.ne.s32.totalorder %s56, %s57
      %p66 = scmp.eq.s32.totalorder %s25, 0
      %p67 = por %p65, %p66
      %p68 = scmp.ne.s32.totalorder %s56, %s57
      %p69 = scmp.eq.s32.totalorder %s26, 1
      %p70 = por %p68, %p69
      %p72 = scmp.ne.s32.totalorder %s57, %s71
      %p73 = scmp.eq.s32.totalorder %s26, 0
      %p74 = por %p72, %p73
      %s76 = sadd.s32 %s75, 1
      %p79 = scmp.eq.s32.totalorder %s20, 1
      %p80 = scmp.ne.s32.totalorder %s75, %s77
      %p81 = scmp.eq.s32.totalorder %s20, 0
      %p82 = por %p80, %p81
      %p83 = scmp.ne.s32.totalorder %s75, %s77
      %p84 = scmp.eq.s32.totalorder %s25, 1
      %p85 = por %p83, %p84
      %p86 = scmp.ne.s32.totalorder %s77, %s78
      %p87 = scmp.eq.s32.totalorder %s25, 0
      %p88 = por %p86, %p87
      %p89 = scmp.ne.s32.totalorder %s77, %s78
      %p90 = scmp.eq.s32.totalorder %s26, 1
      %p91 = por %p89, %p90
      %p93 = scmp.ne.s32.totalorder %s78, %s92
      %p94 = scmp.eq.s32.totalorder %s26, 0
      %p95 = por %p93, %p94
      %s97 = sadd.s32 %s96, 1
      %p100 = scmp.eq.s32.totalorder %s20, 1
      %p101 = scmp.ne.s32.totalorder %s96, %s98
      %p102 = scmp.eq.s32.totalorder %s20, 0
      %p103 = por %p101, %p102
      %p104 = scmp.ne.s32.totalorder %s96, %s98
      %p105 = scmp.eq.s32.totalorder %s25, 1
      %p106 = por %p104, %p105
      %p107 = scmp.ne.s32.totalorder %s98, %s99
      %p108 = scmp.eq.s32.totalorder %s25, 0
      %p109 = por %p107, %p108
      %p110 = scmp.ne.s32.totalorder %s98, %s99
      %p111 = scmp.eq.s32.totalorder %s26, 1
      %p112 = por %p110, %p111
      %p114 = scmp.ne.s32.totalorder %s99, %s113
      %p115 = scmp.eq.s32.totalorder %s26, 0
      %p116 = por %p114, %p115
      %s118 = sadd.s32 %s117, 1
      %p121 = scmp.eq.s32.totalorder %s20, 1
      %p122 = scmp.ne.s32.totalorder %s117, %s119
      %p123 = scmp.eq.s32.totalorder %s20, 0
      %p124 = por %p122, %p123
      %p125 = scmp.ne.s32.totalorder %s117, %s119
      %p126 = scmp.eq.s32.totalorder %s25, 1
      %p127 = por %p125, %p126
      %p128 = scmp.ne.s32.totalorder %s119, %s120
      %p129 = scmp.eq.s32.totalorder %s25, 0
      %p130 = por %p128, %p129
      %p131 = scmp.ne.s32.totalorder %s119, %s120
      %p132 = scmp.eq.s32.totalorder %s26, 1
      %p133 = por %p131, %p132
      %p135 = scmp.ne.s32.totalorder %s120, %s134
      %p136 = scmp.eq.s32.totalorder %s26, 0
      %p137 = por %p135, %p136
      %s139 = sadd.s32 %s138, 1
      %p142 = scmp.eq.s32.totalorder %s20, 1
      %p143 = scmp.ne.s32.totalorder %s138, %s140
      %p144 = scmp.eq.s32.totalorder %s20, 0
      %p145 = por %p143, %p144
      %p146 = scmp.ne.s32.totalorder %s138, %s140
      %p147 = scmp.eq.s32.totalorder %s25, 1
      %p148 = por %p146, %p147
      %p149 = scmp.ne.s32.totalorder %s140, %s141
      %p150 = scmp.eq.s32.totalorder %s25, 0
      %p151 = por %p149, %p150
      %p152 = scmp.ne.s32.totalorder %s140, %s141
      %p153 = scmp.eq.s32.totalorder %s26, 1
      %p154 = por %p152, %p153
      %p156 = scmp.ne.s32.totalorder %s141, %s155
      %p157 = scmp.eq.s32.totalorder %s26, 0
      %p158 = por %p156, %p157
      %s160 = sadd.s32 %s159, 1
      %p163 = scmp.eq.s32.totalorder %s20, 1
      %p164 = scmp.ne.s32.totalorder %s159, %s161
      %p165 = scmp.eq.s32.totalorder %s20, 0
      %p166 = por %p164, %p165
      %p167 = scmp.ne.s32.totalorder %s159, %s161
      %p168 = scmp.eq.s32.totalorder %s25, 1
      %p169 = por %p167, %p168
      %p170 = scmp.ne.s32.totalorder %s161, %s162
      %p171 = scmp.eq.s32.totalorder %s25, 0
      %p172 = por %p170, %p171
      %p173 = scmp.ne.s32.totalorder %s161, %s162
      %p174 = scmp.eq.s32.totalorder %s26, 1
      %p175 = por %p173, %p174
      %p177 = scmp.ne.s32.totalorder %s162, %s176
      %p178 = scmp.eq.s32.totalorder %s26, 0
      %p179 = por %p177, %p178
      %s181 = sadd.s32 %s180, 1
      %p184 = scmp.eq.s32.totalorder %s20, 1
      %p185 = scmp.ne.s32.totalorder %s180, %s182
      %p186 = scmp.eq.s32.totalorder %s20, 0
      %p187 = por %p185, %p186
      %p188 = scmp.ne.s32.totalorder %s180, %s182
      %p189 = scmp.eq.s32.totalorder %s25, 1
      %p190 = por %p188, %p189
      %p191 = scmp.ne.s32.totalorder %s182, %s183
      %p192 = scmp.eq.s32.totalorder %s25, 0
      %p193 = por %p191, %p192
      %p194 = scmp.ne.s32.totalorder %s182, %s183
      %p195 = scmp.eq.s32.totalorder %s26, 1
      %p196 = por %p194, %p195
      %p198 = scmp.ne.s32.totalorder %s183, %s197
      %p199 = scmp.eq.s32.totalorder %s26, 0
      %p200 = por %p198, %p199
      %s202 = sadd.s32 %s201, 1
      %p205 = scmp.eq.s32.totalorder %s20, 1
      %p206 = scmp.ne.s32.totalorder %s201, %s203
      %p207 = scmp.eq.s32.totalorder %s20, 0
      %p208 = por %p206, %p207
      %p209 = scmp.ne.s32.totalorder %s201, %s203
      %p210 = scmp.eq.s32.totalorder %s25, 1
      %p211 = por %p209, %p210
      %p212 = scmp.ne.s32.totalorder %s203, %s204
      %p213 = scmp.eq.s32.totalorder %s25, 0
      %p214 = por %p212, %p213
      %p215 = scmp.ne.s32.totalorder %s203, %s204
      %p216 = scmp.eq.s32.totalorder %s26, 1
      %p217 = por %p215, %p216
      %p219 = scmp.ne.s32.totalorder %s204, %s218
      %p220 = scmp.eq.s32.totalorder %s26, 0
      %p221 = por %p219, %p220
      %s223 = sadd.s32 %s222, 1
      %p226 = scmp.eq.s32.totalorder %s20, 1
      %p227 = scmp.ne.s32.totalorder %s222, %s224
      %p228 = scmp.eq.s32.totalorder %s20, 0
      %p229 = por %p227, %p228
      %p230 = scmp.ne.s32.totalorder %s222, %s224
      %p231 = scmp.eq.s32.totalorder %s25, 1
      %p232 = por %p230, %p231
      %p233 = scmp.ne.s32.totalorder %s224, %s225
      %p234 = scmp.eq.s32.totalorder %s25, 0
      %p235 = por %p233, %p234
      %p236 = scmp.ne.s32.totalorder %s224, %s225
      %p237 = scmp.eq.s32.totalorder %s26, 1
      %p238 = por %p236, %p237
      %p240 = scmp.ne.s32.totalorder %s225, %s239
      %p241 = scmp.eq.s32.totalorder %s26, 0
      %p242 = por %p240, %p241
      %s244 = sadd.s32 %s243, 1
      %p247 = scmp.eq.s32.totalorder %s20, 1
      %p248 = scmp.ne.s32.totalorder %s243, %s245
      %p249 = scmp.eq.s32.totalorder %s20, 0
      %p250 = por %p248, %p249
      %p251 = scmp.ne.s32.totalorder %s243, %s245
      %p252 = scmp.eq.s32.totalorder %s25, 1
      %p253 = por %p251, %p252
      %p254 = scmp.ne.s32.totalorder %s245, %s246
      %p255 = scmp.eq.s32.totalorder %s25, 0
      %p256 = por %p254, %p255
      %p257 = scmp.ne.s32.totalorder %s245, %s246
      %p258 = scmp.eq.s32.totalorder %s26, 1
      %p259 = por %p257, %p258
      %p261 = scmp.ne.s32.totalorder %s246, %s260
      %p262 = scmp.eq.s32.totalorder %s26, 0
      %p263 = por %p261, %p262
      %s264 = ssub.s32 %s20, %s27
      %p265 = scmp.eq.s32.totalorder %s264, 0
      %s267 = sadd.s32 %s266, 1
      %s268 = scalar_select %p265, %s266, %s267
      %p271 = pneg %p265
      %p272 = scmp.eq.s32.totalorder %s20, 1
      %p273 = por %p271, %p272
      %p274 = scmp.ne.s32.totalorder %s266, %s269
      %p275 = scmp.eq.s32.totalorder %s20, 0
      %p276 = por %p274, %p275
      %p277 = scmp.ne.s32.totalorder %s266, %s269
      %p278 = scmp.eq.s32.totalorder %s25, 1
      %p279 = por %p277, %p278
      %p280 = scmp.ne.s32.totalorder %s269, %s270
      %p281 = scmp.eq.s32.totalorder %s25, 0
      %p282 = por %p280, %p281
      %p283 = scmp.ne.s32.totalorder %s269, %s270
      %p284 = scmp.eq.s32.totalorder %s26, 1
      %p285 = por %p283, %p284
      %p287 = scmp.ne.s32.totalorder %s270, %s286
      %p288 = scmp.eq.s32.totalorder %s26, 0
      %p289 = por %p287, %p288
      %p290 = scmp.le.s32.totalorder 1, %s20
      %p291 = scmp.lt.s32.totalorder %s20, 3
      %p292 = pnand %p290, %p291
      %p293 = pneg %p292
      // Predicated region
      $region9: #{eeg_extended_forward.1} parent=5 // pred_check
        _
      $region10: #{eeg_extended_forward.1} parent=5 // pred_check_branch
        %295 = sbr.rel (%p292) target = $region12
      $region11: #{eeg_extended_forward.1} parent=5 // pred_region
        %s296 = ssub.s32 %s20, 1
        // Predicated region
        $region13: #{eeg_extended_forward.1} parent=11 // pred_check
          %p297 = pneg %p67
        $region14: #{eeg_extended_forward.1} parent=11 // pred_check_branch
          %299 = sbr.rel (%p297) target = $region16
        $region15: #{eeg_extended_forward.1} parent=11 // pred_region
          _
        $region16: #{eeg_extended_forward.1} parent=11 // pred_fallthru
          _
        // Predicated region
        $region17: #{eeg_extended_forward.1} parent=11 // pred_check
          %p300 = pneg %p88
        $region18: #{eeg_extended_forward.1} parent=11 // pred_check_branch
          %302 = sbr.rel (%p300) target = $region20
        $region19: #{eeg_extended_forward.1} parent=11 // pred_region
          _
        $region20: #{eeg_extended_forward.1} parent=11 // pred_fallthru
          _
        // Predicated region
        $region21: #{eeg_extended_forward.1} parent=11 // pred_check
          %p303 = pneg %p109
        $region22: #{eeg_extended_forward.1} parent=11 // pred_check_branch
          %305 = sbr.rel (%p303) target = $region24
        $region23: #{eeg_extended_forward.1} parent=11 // pred_region
          _
        $region24: #{eeg_extended_forward.1} parent=11 // pred_fallthru
          _
        // Predicated region
        $region25: #{eeg_extended_forward.1} parent=11 // pred_check
          %p306 = pneg %p130
        $region26: #{eeg_extended_forward.1} parent=11 // pred_check_branch
          %308 = sbr.rel (%p306) target = $region28
        $region27: #{eeg_extended_forward.1} parent=11 // pred_region
          _
        $region28: #{eeg_extended_forward.1} parent=11 // pred_fallthru
          _
        // Predicated region
        $region29: #{eeg_extended_forward.1} parent=11 // pred_check
          %p309 = pneg %p151
        $region30: #{eeg_extended_forward.1} parent=11 // pred_check_branch
          %311 = sbr.rel (%p309) target = $region32
        $region31: #{eeg_extended_forward.1} parent=11 // pred_region
          _
        $region32: #{eeg_extended_forward.1} parent=11 // pred_fallthru
          _
        // Predicated region
        $region33: #{eeg_extended_forward.1} parent=11 // pred_check
          %p312 = pneg %p172
        $region34: #{eeg_extended_forward.1} parent=11 // pred_check_branch
          %314 = sbr.rel (%p312) target = $region36
        $region35: #{eeg_extended_forward.1} parent=11 // pred_region
          _
        $region36: #{eeg_extended_forward.1} parent=11 // pred_fallthru
          _
        // Predicated region
        $region37: #{eeg_extended_forward.1} parent=11 // pred_check
          %p315 = pneg %p193
        $region38: #{eeg_extended_forward.1} parent=11 // pred_check_branch
          %317 = sbr.rel (%p315) target = $region40
        $region39: #{eeg_extended_forward.1} parent=11 // pred_region
          _
        $region40: #{eeg_extended_forward.1} parent=11 // pred_fallthru
          _
        // Predicated region
        $region41: #{eeg_extended_forward.1} parent=11 // pred_check
          %p318 = pneg %p214
        $region42: #{eeg_extended_forward.1} parent=11 // pred_check_branch
          %320 = sbr.rel (%p318) target = $region44
        $region43: #{eeg_extended_forward.1} parent=11 // pred_region
          _
        $region44: #{eeg_extended_forward.1} parent=11 // pred_fallthru
          _
        // Predicated region
        $region45: #{eeg_extended_forward.1} parent=11 // pred_check
          %p321 = pneg %p235
        $region46: #{eeg_extended_forward.1} parent=11 // pred_check_branch
          %323 = sbr.rel (%p321) target = $region48
        $region47: #{eeg_extended_forward.1} parent=11 // pred_region
          _
        $region48: #{eeg_extended_forward.1} parent=11 // pred_fallthru
          _
        // Predicated region
        $region49: #{eeg_extended_forward.1} parent=11 // pred_check
          %p324 = pneg %p256
        $region50: #{eeg_extended_forward.1} parent=11 // pred_check_branch
          %326 = sbr.rel (%p324) target = $region52
        $region51: #{eeg_extended_forward.1} parent=11 // pred_region
          _
        $region52: #{eeg_extended_forward.1} parent=11 // pred_fallthru
          _
      $region12: #{eeg_extended_forward.1} parent=5 // pred_fallthru
        _
      %p327 = scmp.lt.s32.totalorder %s20, 2
      // Predicated region
      $region53: #{eeg_extended_forward.1} parent=5 // pred_check
        %p328 = pneg %p327
      $region54: #{eeg_extended_forward.1} parent=5 // pred_check_branch
        %330 = sbr.rel (%p328) target = $region56
      $region55: #{eeg_extended_forward.1} parent=5 // pred_region
        // Predicated region
        $region57: #{eeg_extended_forward.1} parent=55 // pred_check
          %p331 = pneg %p40
        $region58: #{eeg_extended_forward.1} parent=55 // pred_check_branch
          %333 = sbr.rel (%p331) target = $region60
        $region59: #{eeg_extended_forward.1} parent=55 // pred_region
          %p334 = scmp.lt.s32.totalorder %s20, 1
          %s335 = scalar_select %p334, %s20, 1
          %s336 = smul.addr %s335, 4
          %s337 = smul.addr %s336, 8
          %s338 = scalar_lea.vmem %s0, %s337
        $region60: #{eeg_extended_forward.1} parent=55 // pred_fallthru
          _
      $region56: #{eeg_extended_forward.1} parent=5 // pred_fallthru
        _
      %p339 = scmp.le.s32.totalorder 1, %s20
      %p340 = scmp.lt.s32.totalorder %s20, 3
      %p341 = pnand %p339, %p340
      %p342 = pneg %p341
      // Predicated region
      $region61: #{eeg_extended_forward.1} parent=5 // pred_check
        _
      $region62: #{eeg_extended_forward.1} parent=5 // pred_check_branch
        %344 = sbr.rel (%p341) target = $region64
      $region63: #{eeg_extended_forward.1} parent=5 // pred_region
        %s345 = ssub.s32 %s20, 1
        %p346 = scmp.lt.s32.totalorder %s25, 1
        %s347 = scalar_select %p346, %s25, 1
        %s348 = smul.addr %s347, 4
        %s349 = smul.addr %s348, 8
        %s350 = scalar_lea.vmem %s0, %s349
        %p351 = pneg %p46
        %p352 = pneg %p43
        %p353 = pneg %p67
        %p354 = pneg %p64
        %p355 = pneg %p88
        %p356 = pneg %p85
        %p357 = pneg %p109
        %p358 = pneg %p106
        %p359 = pneg %p130
        %p360 = pneg %p127
        %p361 = pneg %p151
        %p362 = pneg %p148
        %p363 = pneg %p172
        %p364 = pneg %p169
        %p365 = pneg %p193
        %p366 = pneg %p190
        %p367 = pneg %p214
        %p368 = pneg %p211
        %p369 = pneg %p235
        %p370 = pneg %p232
        %p371 = pneg %p256
        %p372 = pneg %p253
        %p373 = pneg %p282
        %p374 = pneg %p279
        %s375 = sand.u32 %s269, 1
        %s376 = scalar_lea.sflag [#allocation3], %s375
        %s377 = sand.u32 %s269, 1
        %s378 = smul.addr %s377, 8
        %s379 = scalar_lea.vmem [#allocation2], %s378
        %p380 = scmp.lt.s32.totalorder %s25, 1
        %s381 = scalar_select %p380, %s25, 1
        %s382 = smul.addr %s381, 4
        %s383 = smul.addr %s382, 8
        %s384 = scalar_lea.vmem %s0, %s383
        %v385 = vld [vmem:[%s384] sm:$0xff]
        %v386 = vld [vmem:[%s384 + $0x8] sm:$0xff]
        %v387 = vld [vmem:[%s384 + $0x10] sm:$0x3]
        %v388 = vld [vmem:[%s384 + $0x18] sm:$0x3]
        %v389 = vld [vmem:[%s1] sm:$0xff]
        %v390 = vld [vmem:[%s1 + $0x8] sm:$0xff]
        %v391 = vld [vmem:[%s1 + $0x10] sm:$0xff]
        %v392 = vld [vmem:[%s1 + $0x18] sm:$0xff]
        %v393 = vld [vmem:[%s1 + $0x20] sm:$0xff]
        %v394 = vld [vmem:[%s1 + $0x28] sm:$0xff]
        %v395 = vld [vmem:[%s1 + $0x30] sm:$0xff]
        %v396 = vld [vmem:[%s1 + $0x38] sm:$0xff]
        %v397 = vld [vmem:[%s1 + $0x40] sm:$0xff]
        %v398 = vld [vmem:[%s1 + $0x48] sm:$0xff]
        %v399 = vld [vmem:[%s1 + $0x50] sm:$0xff]
        %v400 = vld [vmem:[%s1 + $0x58] sm:$0xff]
        %v401 = vld [vmem:[%s1 + $0x60] sm:$0xff]
        %v402 = vld [vmem:[%s1 + $0x68] sm:$0xff]
        %v403 = vld [vmem:[%s1 + $0x70] sm:$0xff]
        %v404 = vld [vmem:[%s1 + $0x78] sm:$0xff]
        %v405 = vld [vmem:[%s1 + $0x80] sm:$0xff]
        %v406 = vld [vmem:[%s1 + $0x88] sm:$0xff]
        %v407 = vld [vmem:[%s1 + $0x90] sm:$0xff]
        %v408 = vld [vmem:[%s1 + $0x98] sm:$0xff]
        %v409 = vld [vmem:[%s1 + $0xa0] sm:$0xff]
        %v410 = vld [vmem:[%s1 + $0xa8] sm:$0xff]
        %v411 = vld [vmem:[%s1 + $0xb0] sm:$0xff]
        %v412 = vld [vmem:[%s1 + $0xb8] sm:$0xff]
        %v413 = vld [vmem:[%s2] sm:$0x1]
        %v415 = vlaneseq
        %v416 = vshrl.u32 %v415, 7
        %v417 = vsub.s32 0, %v416
        %v418 = vrot.slane %v413, %v417
        %vm420 = vcmask 523264
        %v422 = vsel %vm420, %v386, 0
        %v425 = vsel %vm420, %v388, 0
        %427 = vmatprep.subr.mxu0 0.0
        %v428 = vand.u32 %v404, 4294901760
        %429 = vmatpush1.msra.mxu0 %v428
        %430 = vmatprep.subr.mxu0 0.0
        %v431 = vand.u32 %v403, 4294901760
        %432 = vmatpush1.msra.mxu0 %v431
        %433 = vmatprep.subr.mxu0 0.0
        %v434 = vand.u32 %v402, 4294901760
        %435 = vmatpush1.msra.mxu0 %v434
        %436 = vmatprep.subr.mxu0 0.0
        %v437 = vand.u32 %v401, 4294901760
        %438 = vmatpush1.msra.mxu0 %v437
        %439 = vmatprep.subr.mxu0 0.0
        %v440 = vand.u32 %v400, 4294901760
        %441 = vmatpush1.msra.mxu0 %v440
        %442 = vmatprep.subr.mxu0 0.0
        %v443 = vand.u32 %v399, 4294901760
        %444 = vmatpush1.msra.mxu0 %v443
        %445 = vmatprep.subr.mxu0 0.0
        %v446 = vand.u32 %v398, 4294901760
        %447 = vmatpush1.msra.mxu0 %v446
        %448 = vmatprep.subr.mxu0 0.0
        %v449 = vand.u32 %v397, 4294901760
        %450 = vmatpush1.msra.mxu0 %v449
        %451 = vmatprep.subr.mxu0 0.0
        %v452 = vand.u32 %v396, 4294901760
        %453 = vmatpush1.msra.mxu0 %v452
        %454 = vmatprep.subr.mxu0 0.0
        %v455 = vand.u32 %v395, 4294901760
        %456 = vmatpush1.msra.mxu0 %v455
        %457 = vmatprep.subr.mxu0 0.0
        %v458 = vand.u32 %v394, 4294901760
        %459 = vmatpush1.msra.mxu0 %v458
        %460 = vmatprep.subr.mxu0 0.0
        %v461 = vand.u32 %v393, 4294901760
        %462 = vmatpush1.msra.mxu0 %v461
        %463 = vmatprep.subr.mxu0 0.0
        %v464 = vand.u32 %v392, 4294901760
        %465 = vmatpush1.msra.mxu0 %v464
        %466 = vmatprep.subr.mxu0 0.0
        %v467 = vand.u32 %v391, 4294901760
        %468 = vmatpush1.msra.mxu0 %v467
        %469 = vmatprep.subr.mxu0 0.0
        %v470 = vand.u32 %v390, 4294901760
        %471 = vmatpush1.msra.mxu0 %v470
        %472 = vmatprep.subr.mxu0 0.0
        %v473 = vand.u32 %v389, 4294901760
        %474 = vmatpush1.msra.mxu0 %v473
        %475 = vmatprep.subr.mxu0 0.0
        %476 = vmatpush2.msra.mxu0 0.0
        %477 = vmatprep.subr.mxu0 0.0
        %478 = vmatpush2.msra.mxu0 0.0
        %479 = vmatprep.subr.mxu0 0.0
        %480 = vmatpush2.msra.mxu0 0.0
        %481 = vmatprep.subr.mxu0 0.0
        %482 = vmatpush2.msra.mxu0 0.0
        %483 = vmatprep.subr.mxu0 0.0
        %484 = vmatpush2.msra.mxu0 0.0
        %485 = vmatprep.subr.mxu0 0.0
        %486 = vmatpush2.msra.mxu0 0.0
        %487 = vmatprep.subr.mxu0 0.0
        %488 = vmatpush2.msra.mxu0 0.0
        %489 = vmatprep.subr.mxu0 0.0
        %490 = vmatpush2.msra.mxu0 0.0
        %491 = vmatprep.subr.mxu0 0.0
        %v492 = vand.u32 %v412, 4294901760
        %493 = vmatpush2.msra.mxu0 %v492
        %494 = vmatprep.subr.mxu0 0.0
        %v495 = vand.u32 %v411, 4294901760
        %496 = vmatpush2.msra.mxu0 %v495
        %497 = vmatprep.subr.mxu0 0.0
        %v498 = vand.u32 %v410, 4294901760
        %499 = vmatpush2.msra.mxu0 %v498
        %500 = vmatprep.subr.mxu0 0.0
        %v501 = vand.u32 %v409, 4294901760
        %502 = vmatpush2.msra.mxu0 %v501
        %503 = vmatprep.subr.mxu0 0.0
        %v504 = vand.u32 %v408, 4294901760
        %505 = vmatpush2.msra.mxu0 %v504
        %506 = vmatprep.subr.mxu0 0.0
        %v507 = vand.u32 %v407, 4294901760
        %508 = vmatpush2.msra.mxu0 %v507
        %509 = vmatprep.subr.mxu0 0.0
        %v510 = vand.u32 %v406, 4294901760
        %511 = vmatpush2.msra.mxu0 %v510
        %512 = vmatprep.subr.mxu0 0.0
        %v513 = vand.u32 %v405, 4294901760
        %514 = vmatpush2.msra.mxu0 %v513
        %v515 = vand.u32 %v422, 4294901760
        %v516 = vsub.f32 %v422, %v515
        %v517 = vand.u32 %v516, 4294901760
        %v518 = vsub.f32 %v516, %v517
        %v519 = vand.u32 %v518, 4294901760
        %520 = vmatprep.mubr.f32.mxu0 %v519
        %v521 = vand.u32 %v385, 4294901760
        %v522 = vsub.f32 %v385, %v521
        %v523 = vand.u32 %v522, 4294901760
        %v524 = vsub.f32 %v522, %v523
        %v525 = vand.u32 %v524, 4294901760
        %526 = vmatmul.mubr.f32.gmra.mxu0 %v525
        %v527 = vpop.f32.mrf.mxu0
        %v528 = vadd.f32 %v418, %v527
        %v529 = vpop.f32.mrf.mxu0
        %v530 = vand.u32 %v425, 4294901760
        %v531 = vsub.f32 %v425, %v530
        %v532 = vand.u32 %v531, 4294901760
        %v533 = vsub.f32 %v531, %v532
        %v534 = vand.u32 %v533, 4294901760
        %535 = vmatprep.mubr.f32.mxu0 %v534
        %v536 = vand.u32 %v387, 4294901760
        %v537 = vsub.f32 %v387, %v536
        %v538 = vand.u32 %v537, 4294901760
        %v539 = vsub.f32 %v537, %v538
        %v540 = vand.u32 %v539, 4294901760
        %541 = vmatmul.mubr.f32.gmra.mxu0 %v540
        %v542 = vpop.f32.mrf.mxu0
        %v543 = vadd.f32 %v418, %v542
        %v544 = vpop.f32.mrf.mxu0
        %545 = vdwg.mxu0
        %546 = vmatprep.subr.mxu0 0.0
        %v547 = vand.u32 %v404, 4294901760
        %v548 = vsub.f32 %v404, %v547
        %v549 = vand.u32 %v548, 4294901760
        %v550 = vsub.f32 %v548, %v549
        %v551 = vand.u32 %v550, 4294901760
        %552 = vmatpush1.msra.mxu0 %v551
        %553 = vmatprep.subr.mxu0 0.0
        %v554 = vand.u32 %v403, 4294901760
        %v555 = vsub.f32 %v403, %v554
        %v556 = vand.u32 %v555, 4294901760
        %v557 = vsub.f32 %v555, %v556
        %v558 = vand.u32 %v557, 4294901760
        %559 = vmatpush1.msra.mxu0 %v558
        %560 = vmatprep.subr.mxu0 0.0
        %v561 = vand.u32 %v402, 4294901760
        %v562 = vsub.f32 %v402, %v561
        %v563 = vand.u32 %v562, 4294901760
        %v564 = vsub.f32 %v562, %v563
        %v565 = vand.u32 %v564, 4294901760
        %566 = vmatpush1.msra.mxu0 %v565
        %567 = vmatprep.subr.mxu0 0.0
        %v568 = vand.u32 %v401, 4294901760
        %v569 = vsub.f32 %v401, %v568
        %v570 = vand.u32 %v569, 4294901760
        %v571 = vsub.f32 %v569, %v570
        %v572 = vand.u32 %v571, 4294901760
        %573 = vmatpush1.msra.mxu0 %v572
        %574 = vmatprep.subr.mxu0 0.0
        %v575 = vand.u32 %v400, 4294901760
        %v576 = vsub.f32 %v400, %v575
        %v577 = vand.u32 %v576, 4294901760
        %v578 = vsub.f32 %v576, %v577
        %v579 = vand.u32 %v578, 4294901760
        %580 = vmatpush1.msra.mxu0 %v579
        %581 = vmatprep.subr.mxu0 0.0
        %v582 = vand.u32 %v399, 4294901760
        %v583 = vsub.f32 %v399, %v582
        %v584 = vand.u32 %v583, 4294901760
        %v585 = vsub.f32 %v583, %v584
        %v586 = vand.u32 %v585, 4294901760
        %587 = vmatpush1.msra.mxu0 %v586
        %588 = vmatprep.subr.mxu0 0.0
        %v589 = vand.u32 %v398, 4294901760
        %v590 = vsub.f32 %v398, %v589
        %v591 = vand.u32 %v590, 4294901760
        %v592 = vsub.f32 %v590, %v591
        %v593 = vand.u32 %v592, 4294901760
        %594 = vmatpush1.msra.mxu0 %v593
        %595 = vmatprep.subr.mxu0 0.0
        %v596 = vand.u32 %v397, 4294901760
        %v597 = vsub.f32 %v397, %v596
        %v598 = vand.u32 %v597, 4294901760
        %v599 = vsub.f32 %v597, %v598
        %v600 = vand.u32 %v599, 4294901760
        %601 = vmatpush1.msra.mxu0 %v600
        %602 = vmatprep.subr.mxu0 0.0
        %v603 = vand.u32 %v396, 4294901760
        %v604 = vsub.f32 %v396, %v603
        %v605 = vand.u32 %v604, 4294901760
        %v606 = vsub.f32 %v604, %v605
        %v607 = vand.u32 %v606, 4294901760
        %608 = vmatpush1.msra.mxu0 %v607
        %609 = vmatprep.subr.mxu0 0.0
        %v610 = vand.u32 %v395, 4294901760
        %v611 = vsub.f32 %v395, %v610
        %v612 = vand.u32 %v611, 4294901760
        %v613 = vsub.f32 %v611, %v612
        %v614 = vand.u32 %v613, 4294901760
        %615 = vmatpush1.msra.mxu0 %v614
        %616 = vmatprep.subr.mxu0 0.0
        %v617 = vand.u32 %v394, 4294901760
        %v618 = vsub.f32 %v394, %v617
        %v619 = vand.u32 %v618, 4294901760
        %v620 = vsub.f32 %v618, %v619
        %v621 = vand.u32 %v620, 4294901760
        %622 = vmatpush1.msra.mxu0 %v621
        %623 = vmatprep.subr.mxu0 0.0
        %v624 = vand.u32 %v393, 4294901760
        %v625 = vsub.f32 %v393, %v624
        %v626 = vand.u32 %v625, 4294901760
        %v627 = vsub.f32 %v625, %v626
        %v628 = vand.u32 %v627, 4294901760
        %629 = vmatpush1.msra.mxu0 %v628
        %630 = vmatprep.subr.mxu0 0.0
        %v631 = vand.u32 %v392, 4294901760
        %v632 = vsub.f32 %v392, %v631
        %v633 = vand.u32 %v632, 4294901760
        %v634 = vsub.f32 %v632, %v633
        %v635 = vand.u32 %v634, 4294901760
        %636 = vmatpush1.msra.mxu0 %v635
        %637 = vmatprep.subr.mxu0 0.0
        %v638 = vand.u32 %v391, 4294901760
        %v639 = vsub.f32 %v391, %v638
        %v640 = vand.u32 %v639, 4294901760
        %v641 = vsub.f32 %v639, %v640
        %v642 = vand.u32 %v641, 4294901760
        %643 = vmatpush1.msra.mxu0 %v642
        %644 = vmatprep.subr.mxu0 0.0
        %v645 = vand.u32 %v390, 4294901760
        %v646 = vsub.f32 %v390, %v645
        %v647 = vand.u32 %v646, 4294901760
        %v648 = vsub.f32 %v646, %v647
        %v649 = vand.u32 %v648, 4294901760
        %650 = vmatpush1.msra.mxu0 %v649
        %651 = vmatprep.subr.mxu0 0.0
        %v652 = vand.u32 %v389, 4294901760
        %v653 = vsub.f32 %v389, %v652
        %v654 = vand.u32 %v653, 4294901760
        %v655 = vsub.f32 %v653, %v654
        %v656 = vand.u32 %v655, 4294901760
        %657 = vmatpush1.msra.mxu0 %v656
        %658 = vmatprep.subr.mxu0 0.0
        %659 = vmatpush2.msra.mxu0 0.0
        %660 = vmatprep.subr.mxu0 0.0
        %661 = vmatpush2.msra.mxu0 0.0
        %662 = vmatprep.subr.mxu0 0.0
        %663 = vmatpush2.msra.mxu0 0.0
        %664 = vmatprep.subr.mxu0 0.0
        %665 = vmatpush2.msra.mxu0 0.0
        %666 = vmatprep.subr.mxu0 0.0
        %667 = vmatpush2.msra.mxu0 0.0
        %668 = vmatprep.subr.mxu0 0.0
        %669 = vmatpush2.msra.mxu0 0.0
        %670 = vmatprep.subr.mxu0 0.0
        %671 = vmatpush2.msra.mxu0 0.0
        %672 = vmatprep.subr.mxu0 0.0
        %673 = vmatpush2.msra.mxu0 0.0
        %674 = vmatprep.subr.mxu0 0.0
        %v675 = vand.u32 %v412, 4294901760
        %v676 = vsub.f32 %v412, %v675
        %v677 = vand.u32 %v676, 4294901760
        %v678 = vsub.f32 %v676, %v677
        %v679 = vand.u32 %v678, 4294901760
        %680 = vmatpush2.msra.mxu0 %v679
        %681 = vmatprep.subr.mxu0 0.0
        %v682 = vand.u32 %v411, 4294901760
        %v683 = vsub.f32 %v411, %v682
        %v684 = vand.u32 %v683, 4294901760
        %v685 = vsub.f32 %v683, %v684
        %v686 = vand.u32 %v685, 4294901760
        %687 = vmatpush2.msra.mxu0 %v686
        %688 = vmatprep.subr.mxu0 0.0
        %v689 = vand.u32 %v410, 4294901760
        %v690 = vsub.f32 %v410, %v689
        %v691 = vand.u32 %v690, 4294901760
        %v692 = vsub.f32 %v690, %v691
        %v693 = vand.u32 %v692, 4294901760
        %694 = vmatpush2.msra.mxu0 %v693
        %695 = vmatprep.subr.mxu0 0.0
        %v696 = vand.u32 %v409, 4294901760
        %v697 = vsub.f32 %v409, %v696
        %v698 = vand.u32 %v697, 4294901760
        %v699 = vsub.f32 %v697, %v698
        %v700 = vand.u32 %v699, 4294901760
        %701 = vmatpush2.msra.mxu0 %v700
        %702 = vmatprep.subr.mxu0 0.0
        %v703 = vand.u32 %v408, 4294901760
        %v704 = vsub.f32 %v408, %v703
        %v705 = vand.u32 %v704, 4294901760
        %v706 = vsub.f32 %v704, %v705
        %v707 = vand.u32 %v706, 4294901760
        %708 = vmatpush2.msra.mxu0 %v707
        %709 = vmatprep.subr.mxu0 0.0
        %v710 = vand.u32 %v407, 4294901760
        %v711 = vsub.f32 %v407, %v710
        %v712 = vand.u32 %v711, 4294901760
        %v713 = vsub.f32 %v711, %v712
        %v714 = vand.u32 %v713, 4294901760
        %715 = vmatpush2.msra.mxu0 %v714
        %716 = vmatprep.subr.mxu0 0.0
        %v717 = vand.u32 %v406, 4294901760
        %v718 = vsub.f32 %v406, %v717
        %v719 = vand.u32 %v718, 4294901760
        %v720 = vsub.f32 %v718, %v719
        %v721 = vand.u32 %v720, 4294901760
        %722 = vmatpush2.msra.mxu0 %v721
        %723 = vmatprep.subr.mxu0 0.0
        %v724 = vand.u32 %v405, 4294901760
        %v725 = vsub.f32 %v405, %v724
        %v726 = vand.u32 %v725, 4294901760
        %v727 = vsub.f32 %v725, %v726
        %v728 = vand.u32 %v727, 4294901760
        %729 = vmatpush2.msra.mxu0 %v728
        %v730 = vand.u32 %v422, 4294901760
        %731 = vmatprep.mubr.f32.mxu0 %v730
        %v732 = vand.u32 %v385, 4294901760
        %733 = vmatmul.mubr.f32.gmra.mxu0 %v732
        %v734 = vpop.f32.mrf.mxu0
        %v735 = vadd.f32 %v528, %v734
        %v736 = vpop.f32.mrf.mxu0
        %v737 = vand.u32 %v425, 4294901760
        %738 = vmatprep.mubr.f32.mxu0 %v737
        %v739 = vand.u32 %v387, 4294901760
        %740 = vmatmul.mubr.f32.gmra.mxu0 %v739
        %v741 = vpop.f32.mrf.mxu0
        %v742 = vadd.f32 %v543, %v741
        %v743 = vpop.f32.mrf.mxu0
        %744 = vdwg.mxu0
        %745 = vmatprep.subr.mxu0 0.0
        %v746 = vand.u32 %v404, 4294901760
        %v747 = vsub.f32 %v404, %v746
        %748 = vmatpush1.msra.mxu0 %v747
        %749 = vmatprep.subr.mxu0 0.0
        %v750 = vand.u32 %v403, 4294901760
        %v751 = vsub.f32 %v403, %v750
        %752 = vmatpush1.msra.mxu0 %v751
        %753 = vmatprep.subr.mxu0 0.0
        %v754 = vand.u32 %v402, 4294901760
        %v755 = vsub.f32 %v402, %v754
        %756 = vmatpush1.msra.mxu0 %v755
        %757 = vmatprep.subr.mxu0 0.0
        %v758 = vand.u32 %v401, 4294901760
        %v759 = vsub.f32 %v401, %v758
        %760 = vmatpush1.msra.mxu0 %v759
        %761 = vmatprep.subr.mxu0 0.0
        %v762 = vand.u32 %v400, 4294901760
        %v763 = vsub.f32 %v400, %v762
        %764 = vmatpush1.msra.mxu0 %v763
        %765 = vmatprep.subr.mxu0 0.0
        %v766 = vand.u32 %v399, 4294901760
        %v767 = vsub.f32 %v399, %v766
        %768 = vmatpush1.msra.mxu0 %v767
        %769 = vmatprep.subr.mxu0 0.0
        %v770 = vand.u32 %v398, 4294901760
        %v771 = vsub.f32 %v398, %v770
        %772 = vmatpush1.msra.mxu0 %v771
        %773 = vmatprep.subr.mxu0 0.0
        %v774 = vand.u32 %v397, 4294901760
        %v775 = vsub.f32 %v397, %v774
        %776 = vmatpush1.msra.mxu0 %v775
        %777 = vmatprep.subr.mxu0 0.0
        %v778 = vand.u32 %v396, 4294901760
        %v779 = vsub.f32 %v396, %v778
        %780 = vmatpush1.msra.mxu0 %v779
        %781 = vmatprep.subr.mxu0 0.0
        %v782 = vand.u32 %v395, 4294901760
        %v783 = vsub.f32 %v395, %v782
        %784 = vmatpush1.msra.mxu0 %v783
        %785 = vmatprep.subr.mxu0 0.0
        %v786 = vand.u32 %v394, 4294901760
        %v787 = vsub.f32 %v394, %v786
        %788 = vmatpush1.msra.mxu0 %v787
        %789 = vmatprep.subr.mxu0 0.0
        %v790 = vand.u32 %v393, 4294901760
        %v791 = vsub.f32 %v393, %v790
        %792 = vmatpush1.msra.mxu0 %v791
        %793 = vmatprep.subr.mxu0 0.0
        %v794 = vand.u32 %v392, 4294901760
        %v795 = vsub.f32 %v392, %v794
        %796 = vmatpush1.msra.mxu0 %v795
        %797 = vmatprep.subr.mxu0 0.0
        %v798 = vand.u32 %v391, 4294901760
        %v799 = vsub.f32 %v391, %v798
        %800 = vmatpush1.msra.mxu0 %v799
        %801 = vmatprep.subr.mxu0 0.0
        %v802 = vand.u32 %v390, 4294901760
        %v803 = vsub.f32 %v390, %v802
        %804 = vmatpush1.msra.mxu0 %v803
        %805 = vmatprep.subr.mxu0 0.0
        %v806 = vand.u32 %v389, 4294901760
        %v807 = vsub.f32 %v389, %v806
        %808 = vmatpush1.msra.mxu0 %v807
        %809 = vmatprep.subr.mxu0 0.0
        %810 = vmatpush2.msra.mxu0 0.0
        %811 = vmatprep.subr.mxu0 0.0
        %812 = vmatpush2.msra.mxu0 0.0
        %813 = vmatprep.subr.mxu0 0.0
        %814 = vmatpush2.msra.mxu0 0.0
        %815 = vmatprep.subr.mxu0 0.0
        %816 = vmatpush2.msra.mxu0 0.0
        %817 = vmatprep.subr.mxu0 0.0
        %818 = vmatpush2.msra.mxu0 0.0
        %819 = vmatprep.subr.mxu0 0.0
        %820 = vmatpush2.msra.mxu0 0.0
        %821 = vmatprep.subr.mxu0 0.0
        %822 = vmatpush2.msra.mxu0 0.0
        %823 = vmatprep.subr.mxu0 0.0
        %824 = vmatpush2.msra.mxu0 0.0
        %825 = vmatprep.subr.mxu0 0.0
        %v826 = vand.u32 %v412, 4294901760
        %v827 = vsub.f32 %v412, %v826
        %828 = vmatpush2.msra.mxu0 %v827
        %829 = vmatprep.subr.mxu0 0.0
        %v830 = vand.u32 %v411, 4294901760
        %v831 = vsub.f32 %v411, %v830
        %832 = vmatpush2.msra.mxu0 %v831
        %833 = vmatprep.subr.mxu0 0.0
        %v834 = vand.u32 %v410, 4294901760
        %v835 = vsub.f32 %v410, %v834
        %836 = vmatpush2.msra.mxu0 %v835
        %837 = vmatprep.subr.mxu0 0.0
        %v838 = vand.u32 %v409, 4294901760
        %v839 = vsub.f32 %v409, %v838
        %840 = vmatpush2.msra.mxu0 %v839
        %841 = vmatprep.subr.mxu0 0.0
        %v842 = vand.u32 %v408, 4294901760
        %v843 = vsub.f32 %v408, %v842
        %844 = vmatpush2.msra.mxu0 %v843
        %845 = vmatprep.subr.mxu0 0.0
        %v846 = vand.u32 %v407, 4294901760
        %v847 = vsub.f32 %v407, %v846
        %848 = vmatpush2.msra.mxu0 %v847
        %849 = vmatprep.subr.mxu0 0.0
        %v850 = vand.u32 %v406, 4294901760
        %v851 = vsub.f32 %v406, %v850
        %852 = vmatpush2.msra.mxu0 %v851
        %853 = vmatprep.subr.mxu0 0.0
        %v854 = vand.u32 %v405, 4294901760
        %v855 = vsub.f32 %v405, %v854
        %856 = vmatpush2.msra.mxu0 %v855
        %v857 = vand.u32 %v422, 4294901760
        %v858 = vsub.f32 %v422, %v857
        %859 = vmatprep.mubr.f32.mxu0 %v858
        %v860 = vand.u32 %v385, 4294901760
        %v861 = vsub.f32 %v385, %v860
        %862 = vmatmul.mubr.f32.gmra.mxu0 %v861
        %v863 = vpop.f32.mrf.mxu0
        %v864 = vadd.f32 %v735, %v863
        %v865 = vpop.f32.mrf.mxu0
        %v866 = vand.u32 %v425, 4294901760
        %v867 = vsub.f32 %v425, %v866
        %868 = vmatprep.mubr.f32.mxu0 %v867
        %v869 = vand.u32 %v387, 4294901760
        %v870 = vsub.f32 %v387, %v869
        %871 = vmatmul.mubr.f32.gmra.mxu0 %v870
        %v872 = vpop.f32.mrf.mxu0
        %v873 = vadd.f32 %v742, %v872
        %v874 = vpop.f32.mrf.mxu0
        %875 = vdwg.mxu0
        %876 = vmatprep.subr.mxu0 0.0
        %v877 = vand.u32 %v404, 4294901760
        %878 = vmatpush1.msra.mxu0 %v877
        %879 = vmatprep.subr.mxu0 0.0
        %v880 = vand.u32 %v403, 4294901760
        %881 = vmatpush1.msra.mxu0 %v880
        %882 = vmatprep.subr.mxu0 0.0
        %v883 = vand.u32 %v402, 4294901760
        %884 = vmatpush1.msra.mxu0 %v883
        %885 = vmatprep.subr.mxu0 0.0
        %v886 = vand.u32 %v401, 4294901760
        %887 = vmatpush1.msra.mxu0 %v886
        %888 = vmatprep.subr.mxu0 0.0
        %v889 = vand.u32 %v400, 4294901760
        %890 = vmatpush1.msra.mxu0 %v889
        %891 = vmatprep.subr.mxu0 0.0
        %v892 = vand.u32 %v399, 4294901760
        %893 = vmatpush1.msra.mxu0 %v892
        %894 = vmatprep.subr.mxu0 0.0
        %v895 = vand.u32 %v398, 4294901760
        %896 = vmatpush1.msra.mxu0 %v895
        %897 = vmatprep.subr.mxu0 0.0
        %v898 = vand.u32 %v397, 4294901760
        %899 = vmatpush1.msra.mxu0 %v898
        %900 = vmatprep.subr.mxu0 0.0
        %v901 = vand.u32 %v396, 4294901760
        %902 = vmatpush1.msra.mxu0 %v901
        %903 = vmatprep.subr.mxu0 0.0
        %v904 = vand.u32 %v395, 4294901760
        %905 = vmatpush1.msra.mxu0 %v904
        %906 = vmatprep.subr.mxu0 0.0
        %v907 = vand.u32 %v394, 4294901760
        %908 = vmatpush1.msra.mxu0 %v907
        %909 = vmatprep.subr.mxu0 0.0
        %v910 = vand.u32 %v393, 4294901760
        %911 = vmatpush1.msra.mxu0 %v910
        %912 = vmatprep.subr.mxu0 0.0
        %v913 = vand.u32 %v392, 4294901760
        %914 = vmatpush1.msra.mxu0 %v913
        %915 = vmatprep.subr.mxu0 0.0
        %v916 = vand.u32 %v391, 4294901760
        %917 = vmatpush1.msra.mxu0 %v916
        %918 = vmatprep.subr.mxu0 0.0
        %v919 = vand.u32 %v390, 4294901760
        %920 = vmatpush1.msra.mxu0 %v919
        %921 = vmatprep.subr.mxu0 0.0
        %v922 = vand.u32 %v389, 4294901760
        %923 = vmatpush1.msra.mxu0 %v922
        %924 = vmatprep.subr.mxu0 0.0
        %925 = vmatpush2.msra.mxu0 0.0
        %926 = vmatprep.subr.mxu0 0.0
        %927 = vmatpush2.msra.mxu0 0.0
        %928 = vmatprep.subr.mxu0 0.0
        %929 = vmatpush2.msra.mxu0 0.0
        %930 = vmatprep.subr.mxu0 0.0
        %931 = vmatpush2.msra.mxu0 0.0
        %932 = vmatprep.subr.mxu0 0.0
        %933 = vmatpush2.msra.mxu0 0.0
        %934 = vmatprep.subr.mxu0 0.0
        %935 = vmatpush2.msra.mxu0 0.0
        %936 = vmatprep.subr.mxu0 0.0
        %937 = vmatpush2.msra.mxu0 0.0
        %938 = vmatprep.subr.mxu0 0.0
        %939 = vmatpush2.msra.mxu0 0.0
        %940 = vmatprep.subr.mxu0 0.0
        %v941 = vand.u32 %v412, 4294901760
        %942 = vmatpush2.msra.mxu0 %v941
        %943 = vmatprep.subr.mxu0 0.0
        %v944 = vand.u32 %v411, 4294901760
        %945 = vmatpush2.msra.mxu0 %v944
        %946 = vmatprep.subr.mxu0 0.0
        %v947 = vand.u32 %v410, 4294901760
        %948 = vmatpush2.msra.mxu0 %v947
        %949 = vmatprep.subr.mxu0 0.0
        %v950 = vand.u32 %v409, 4294901760
        %951 = vmatpush2.msra.mxu0 %v950
        %952 = vmatprep.subr.mxu0 0.0
        %v953 = vand.u32 %v408, 4294901760
        %954 = vmatpush2.msra.mxu0 %v953
        %955 = vmatprep.subr.mxu0 0.0
        %v956 = vand.u32 %v407, 4294901760
        %957 = vmatpush2.msra.mxu0 %v956
        %958 = vmatprep.subr.mxu0 0.0
        %v959 = vand.u32 %v406, 4294901760
        %960 = vmatpush2.msra.mxu0 %v959
        %961 = vmatprep.subr.mxu0 0.0
        %v962 = vand.u32 %v405, 4294901760
        %963 = vmatpush2.msra.mxu0 %v962
        %v964 = vand.u32 %v422, 4294901760
        %v965 = vsub.f32 %v422, %v964
        %v966 = vand.u32 %v965, 4294901760
        %967 = vmatprep.mubr.f32.mxu0 %v966
        %v968 = vand.u32 %v385, 4294901760
        %v969 = vsub.f32 %v385, %v968
        %v970 = vand.u32 %v969, 4294901760
        %971 = vmatmul.mubr.f32.gmra.mxu0 %v970
        %v972 = vpop.f32.mrf.mxu0
        %v973 = vadd.f32 %v864, %v972
        %v974 = vpop.f32.mrf.mxu0
        %v975 = vand.u32 %v425, 4294901760
        %v976 = vsub.f32 %v425, %v975
        %v977 = vand.u32 %v976, 4294901760
        %978 = vmatprep.mubr.f32.mxu0 %v977
        %v979 = vand.u32 %v387, 4294901760
        %v980 = vsub.f32 %v387, %v979
        %v981 = vand.u32 %v980, 4294901760
        %982 = vmatmul.mubr.f32.gmra.mxu0 %v981
        %v983 = vpop.f32.mrf.mxu0
        %v984 = vadd.f32 %v873, %v983
        %v985 = vpop.f32.mrf.mxu0
        %986 = vdwg.mxu0
        %987 = vmatprep.subr.mxu0 0.0
        %v988 = vand.u32 %v404, 4294901760
        %v989 = vsub.f32 %v404, %v988
        %v990 = vand.u32 %v989, 4294901760
        %991 = vmatpush1.msra.mxu0 %v990
        %992 = vmatprep.subr.mxu0 0.0
        %v993 = vand.u32 %v403, 4294901760
        %v994 = vsub.f32 %v403, %v993
        %v995 = vand.u32 %v994, 4294901760
        %996 = vmatpush1.msra.mxu0 %v995
        %997 = vmatprep.subr.mxu0 0.0
        %v998 = vand.u32 %v402, 4294901760
        %v999 = vsub.f32 %v402, %v998
        %v1000 = vand.u32 %v999, 4294901760
        %1001 = vmatpush1.msra.mxu0 %v1000
        %1002 = vmatprep.subr.mxu0 0.0
        %v1003 = vand.u32 %v401, 4294901760
        %v1004 = vsub.f32 %v401, %v1003
        %v1005 = vand.u32 %v1004, 4294901760
        %1006 = vmatpush1.msra.mxu0 %v1005
        %1007 = vmatprep.subr.mxu0 0.0
        %v1008 = vand.u32 %v400, 4294901760
        %v1009 = vsub.f32 %v400, %v1008
        %v1010 = vand.u32 %v1009, 4294901760
        %1011 = vmatpush1.msra.mxu0 %v1010
        %1012 = vmatprep.subr.mxu0 0.0
        %v1013 = vand.u32 %v399, 4294901760
        %v1014 = vsub.f32 %v399, %v1013
        %v1015 = vand.u32 %v1014, 4294901760
        %1016 = vmatpush1.msra.mxu0 %v1015
        %1017 = vmatprep.subr.mxu0 0.0
        %v1018 = vand.u32 %v398, 4294901760
        %v1019 = vsub.f32 %v398, %v1018
        %v1020 = vand.u32 %v1019, 4294901760
        %1021 = vmatpush1.msra.mxu0 %v1020
        %1022 = vmatprep.subr.mxu0 0.0
        %v1023 = vand.u32 %v397, 4294901760
        %v1024 = vsub.f32 %v397, %v1023
        %v1025 = vand.u32 %v1024, 4294901760
        %1026 = vmatpush1.msra.mxu0 %v1025
        %1027 = vmatprep.subr.mxu0 0.0
        %v1028 = vand.u32 %v396, 4294901760
        %v1029 = vsub.f32 %v396, %v1028
        %v1030 = vand.u32 %v1029, 4294901760
        %1031 = vmatpush1.msra.mxu0 %v1030
        %1032 = vmatprep.subr.mxu0 0.0
        %v1033 = vand.u32 %v395, 4294901760
        %v1034 = vsub.f32 %v395, %v1033
        %v1035 = vand.u32 %v1034, 4294901760
        %1036 = vmatpush1.msra.mxu0 %v1035
        %1037 = vmatprep.subr.mxu0 0.0
        %v1038 = vand.u32 %v394, 4294901760
        %v1039 = vsub.f32 %v394, %v1038
        %v1040 = vand.u32 %v1039, 4294901760
        %1041 = vmatpush1.msra.mxu0 %v1040
        %1042 = vmatprep.subr.mxu0 0.0
        %v1043 = vand.u32 %v393, 4294901760
        %v1044 = vsub.f32 %v393, %v1043
        %v1045 = vand.u32 %v1044, 4294901760
        %1046 = vmatpush1.msra.mxu0 %v1045
        %1047 = vmatprep.subr.mxu0 0.0
        %v1048 = vand.u32 %v392, 4294901760
        %v1049 = vsub.f32 %v392, %v1048
        %v1050 = vand.u32 %v1049, 4294901760
        %1051 = vmatpush1.msra.mxu0 %v1050
        %1052 = vmatprep.subr.mxu0 0.0
        %v1053 = vand.u32 %v391, 4294901760
        %v1054 = vsub.f32 %v391, %v1053
        %v1055 = vand.u32 %v1054, 4294901760
        %1056 = vmatpush1.msra.mxu0 %v1055
        %1057 = vmatprep.subr.mxu0 0.0
        %v1058 = vand.u32 %v390, 4294901760
        %v1059 = vsub.f32 %v390, %v1058
        %v1060 = vand.u32 %v1059, 4294901760
        %1061 = vmatpush1.msra.mxu0 %v1060
        %1062 = vmatprep.subr.mxu0 0.0
        %v1063 = vand.u32 %v389, 4294901760
        %v1064 = vsub.f32 %v389, %v1063
        %v1065 = vand.u32 %v1064, 4294901760
        %1066 = vmatpush1.msra.mxu0 %v1065
        %1067 = vmatprep.subr.mxu0 0.0
        %1068 = vmatpush2.msra.mxu0 0.0
        %1069 = vmatprep.subr.mxu0 0.0
        %1070 = vmatpush2.msra.mxu0 0.0
        %1071 = vmatprep.subr.mxu0 0.0
        %1072 = vmatpush2.msra.mxu0 0.0
        %1073 = vmatprep.subr.mxu0 0.0
        %1074 = vmatpush2.msra.mxu0 0.0
        %1075 = vmatprep.subr.mxu0 0.0
        %1076 = vmatpush2.msra.mxu0 0.0
        %1077 = vmatprep.subr.mxu0 0.0
        %1078 = vmatpush2.msra.mxu0 0.0
        %1079 = vmatprep.subr.mxu0 0.0
        %1080 = vmatpush2.msra.mxu0 0.0
        %1081 = vmatprep.subr.mxu0 0.0
        %1082 = vmatpush2.msra.mxu0 0.0
        %1083 = vmatprep.subr.mxu0 0.0
        %v1084 = vand.u32 %v412, 4294901760
        %v1085 = vsub.f32 %v412, %v1084
        %v1086 = vand.u32 %v1085, 4294901760
        %1087 = vmatpush2.msra.mxu0 %v1086
        %1088 = vmatprep.subr.mxu0 0.0
        %v1089 = vand.u32 %v411, 4294901760
        %v1090 = vsub.f32 %v411, %v1089
        %v1091 = vand.u32 %v1090, 4294901760
        %1092 = vmatpush2.msra.mxu0 %v1091
        %1093 = vmatprep.subr.mxu0 0.0
        %v1094 = vand.u32 %v410, 4294901760
        %v1095 = vsub.f32 %v410, %v1094
        %v1096 = vand.u32 %v1095, 4294901760
        %1097 = vmatpush2.msra.mxu0 %v1096
        %1098 = vmatprep.subr.mxu0 0.0
        %v1099 = vand.u32 %v409, 4294901760
        %v1100 = vsub.f32 %v409, %v1099
        %v1101 = vand.u32 %v1100, 4294901760
        %1102 = vmatpush2.msra.mxu0 %v1101
        %1103 = vmatprep.subr.mxu0 0.0
        %v1104 = vand.u32 %v408, 4294901760
        %v1105 = vsub.f32 %v408, %v1104
        %v1106 = vand.u32 %v1105, 4294901760
        %1107 = vmatpush2.msra.mxu0 %v1106
        %1108 = vmatprep.subr.mxu0 0.0
        %v1109 = vand.u32 %v407, 4294901760
        %v1110 = vsub.f32 %v407, %v1109
        %v1111 = vand.u32 %v1110, 4294901760
        %1112 = vmatpush2.msra.mxu0 %v1111
        %1113 = vmatprep.subr.mxu0 0.0
        %v1114 = vand.u32 %v406, 4294901760
        %v1115 = vsub.f32 %v406, %v1114
        %v1116 = vand.u32 %v1115, 4294901760
        %1117 = vmatpush2.msra.mxu0 %v1116
        %1118 = vmatprep.subr.mxu0 0.0
        %v1119 = vand.u32 %v405, 4294901760
        %v1120 = vsub.f32 %v405, %v1119
        %v1121 = vand.u32 %v1120, 4294901760
        %1122 = vmatpush2.msra.mxu0 %v1121
        %v1123 = vand.u32 %v422, 4294901760
        %1124 = vmatprep.mubr.f32.mxu0 %v1123
        %v1125 = vand.u32 %v385, 4294901760
        %1126 = vmatmul.mubr.f32.gmra.mxu0 %v1125
        %v1127 = vpop.f32.mrf.mxu0
        %v1128 = vadd.f32 %v973, %v1127
        %v1129 = vpop.f32.mrf.mxu0
        %v1130 = vand.u32 %v425, 4294901760
        %1131 = vmatprep.mubr.f32.mxu0 %v1130
        %v1132 = vand.u32 %v387, 4294901760
        %1133 = vmatmul.mubr.f32.gmra.mxu0 %v1132
        %v1134 = vpop.f32.mrf.mxu0
        %v1135 = vadd.f32 %v984, %v1134
        %v1136 = vpop.f32.mrf.mxu0
        %1137 = vdwg.mxu0
        %1138 = vmatprep.subr.mxu0 0.0
        %v1139 = vand.u32 %v404, 4294901760
        %1140 = vmatpush1.msra.mxu0 %v1139
        %1141 = vmatprep.subr.mxu0 0.0
        %v1142 = vand.u32 %v403, 4294901760
        %1143 = vmatpush1.msra.mxu0 %v1142
        %1144 = vmatprep.subr.mxu0 0.0
        %v1145 = vand.u32 %v402, 4294901760
        %1146 = vmatpush1.msra.mxu0 %v1145
        %1147 = vmatprep.subr.mxu0 0.0
        %v1148 = vand.u32 %v401, 4294901760
        %1149 = vmatpush1.msra.mxu0 %v1148
        %1150 = vmatprep.subr.mxu0 0.0
        %v1151 = vand.u32 %v400, 4294901760
        %1152 = vmatpush1.msra.mxu0 %v1151
        %1153 = vmatprep.subr.mxu0 0.0
        %v1154 = vand.u32 %v399, 4294901760
        %1155 = vmatpush1.msra.mxu0 %v1154
        %1156 = vmatprep.subr.mxu0 0.0
        %v1157 = vand.u32 %v398, 4294901760
        %1158 = vmatpush1.msra.mxu0 %v1157
        %1159 = vmatprep.subr.mxu0 0.0
        %v1160 = vand.u32 %v397, 4294901760
        %1161 = vmatpush1.msra.mxu0 %v1160
        %1162 = vmatprep.subr.mxu0 0.0
        %v1163 = vand.u32 %v396, 4294901760
        %1164 = vmatpush1.msra.mxu0 %v1163
        %1165 = vmatprep.subr.mxu0 0.0
        %v1166 = vand.u32 %v395, 4294901760
        %1167 = vmatpush1.msra.mxu0 %v1166
        %1168 = vmatprep.subr.mxu0 0.0
        %v1169 = vand.u32 %v394, 4294901760
        %1170 = vmatpush1.msra.mxu0 %v1169
        %1171 = vmatprep.subr.mxu0 0.0
        %v1172 = vand.u32 %v393, 4294901760
        %1173 = vmatpush1.msra.mxu0 %v1172
        %1174 = vmatprep.subr.mxu0 0.0
        %v1175 = vand.u32 %v392, 4294901760
        %1176 = vmatpush1.msra.mxu0 %v1175
        %1177 = vmatprep.subr.mxu0 0.0
        %v1178 = vand.u32 %v391, 4294901760
        %1179 = vmatpush1.msra.mxu0 %v1178
        %1180 = vmatprep.subr.mxu0 0.0
        %v1181 = vand.u32 %v390, 4294901760
        %1182 = vmatpush1.msra.mxu0 %v1181
        %1183 = vmatprep.subr.mxu0 0.0
        %v1184 = vand.u32 %v389, 4294901760
        %1185 = vmatpush1.msra.mxu0 %v1184
        %1186 = vmatprep.subr.mxu0 0.0
        %1187 = vmatpush2.msra.mxu0 0.0
        %1188 = vmatprep.subr.mxu0 0.0
        %1189 = vmatpush2.msra.mxu0 0.0
        %1190 = vmatprep.subr.mxu0 0.0
        %1191 = vmatpush2.msra.mxu0 0.0
        %1192 = vmatprep.subr.mxu0 0.0
        %1193 = vmatpush2.msra.mxu0 0.0
        %1194 = vmatprep.subr.mxu0 0.0
        %1195 = vmatpush2.msra.mxu0 0.0
        %1196 = vmatprep.subr.mxu0 0.0
        %1197 = vmatpush2.msra.mxu0 0.0
        %1198 = vmatprep.subr.mxu0 0.0
        %1199 = vmatpush2.msra.mxu0 0.0
        %1200 = vmatprep.subr.mxu0 0.0
        %1201 = vmatpush2.msra.mxu0 0.0
        %1202 = vmatprep.subr.mxu0 0.0
        %v1203 = vand.u32 %v412, 4294901760
        %1204 = vmatpush2.msra.mxu0 %v1203
        %1205 = vmatprep.subr.mxu0 0.0
        %v1206 = vand.u32 %v411, 4294901760
        %1207 = vmatpush2.msra.mxu0 %v1206
        %1208 = vmatprep.subr.mxu0 0.0
        %v1209 = vand.u32 %v410, 4294901760
        %1210 = vmatpush2.msra.mxu0 %v1209
        %1211 = vmatprep.subr.mxu0 0.0
        %v1212 = vand.u32 %v409, 4294901760
        %1213 = vmatpush2.msra.mxu0 %v1212
        %1214 = vmatprep.subr.mxu0 0.0
        %v1215 = vand.u32 %v408, 4294901760
        %1216 = vmatpush2.msra.mxu0 %v1215
        %1217 = vmatprep.subr.mxu0 0.0
        %v1218 = vand.u32 %v407, 4294901760
        %1219 = vmatpush2.msra.mxu0 %v1218
        %1220 = vmatprep.subr.mxu0 0.0
        %v1221 = vand.u32 %v406, 4294901760
        %1222 = vmatpush2.msra.mxu0 %v1221
        %1223 = vmatprep.subr.mxu0 0.0
        %v1224 = vand.u32 %v405, 4294901760
        %1225 = vmatpush2.msra.mxu0 %v1224
        %v1226 = vand.u32 %v422, 4294901760
        %1227 = vmatprep.mubr.f32.mxu0 %v1226
        %v1228 = vand.u32 %v385, 4294901760
        %1229 = vmatmul.mubr.f32.gmra.mxu0 %v1228
        %v1230 = vpop.f32.mrf.mxu0
        %v1231 = vadd.f32 %v1128, %v1230
        %v1232 = vpop.f32.mrf.mxu0
        %v1233 = vand.u32 %v425, 4294901760
        %1234 = vmatprep.mubr.f32.mxu0 %v1233
        %v1235 = vand.u32 %v387, 4294901760
        %1236 = vmatmul.mubr.f32.gmra.mxu0 %v1235
        %v1237 = vpop.f32.mrf.mxu0
        %v1238 = vadd.f32 %v1135, %v1237
        %v1239 = vpop.f32.mrf.mxu0
        %1240 = vdwg.mxu0
        %v1241 = vmax.f32 %v1231, 0.0
        %v1242 = vmax.f32 %v1238, 0.0
        %v1243 = vld [vmem:[%s3] sm:$0x1]
        %v1245 = vlaneseq
        %v1246 = vshrl.u32 %v1245, 7
        %v1247 = vsub.s32 0, %v1246
        %v1248 = vrot.slane %v1243, %v1247
        %v1250 = vmul.f32 %v1241, %v1248
        %v1251 = vmul.f32 %v1242, %v1248
        %v1252 = vld [vmem:[%s4] sm:$0x1]
        %v1254 = vlaneseq
        %v1255 = vshrl.u32 %v1254, 7
        %v1256 = vsub.s32 0, %v1255
        %v1257 = vrot.slane %v1252, %v1256
        %v1259 = vadd.f32 %v1250, %v1257
        %v1260 = vadd.f32 %v1251, %v1257
        %v1261 = vld [vmem:[%s5] sm:$0xff]
        %v1262 = vld [vmem:[%s5 + $0x8] sm:$0xff]
        %v1263 = vld [vmem:[%s5 + $0x10] sm:$0xff]
        %v1264 = vld [vmem:[%s5 + $0x18] sm:$0xff]
        %v1265 = vld [vmem:[%s5 + $0x20] sm:$0xff]
        %v1266 = vld [vmem:[%s5 + $0x28] sm:$0xff]
        %v1267 = vld [vmem:[%s5 + $0x30] sm:$0xff]
        %v1268 = vld [vmem:[%s5 + $0x38] sm:$0xff]
        %v1269 = vld [vmem:[%s5 + $0x40] sm:$0xff]
        %v1270 = vld [vmem:[%s5 + $0x48] sm:$0xff]
        %v1271 = vld [vmem:[%s5 + $0x50] sm:$0xff]
        %v1272 = vld [vmem:[%s5 + $0x58] sm:$0xff]
        %v1273 = vld [vmem:[%s5 + $0x60] sm:$0xff]
        %v1274 = vld [vmem:[%s5 + $0x68] sm:$0xff]
        %v1275 = vld [vmem:[%s5 + $0x70] sm:$0xff]
        %v1276 = vld [vmem:[%s5 + $0x78] sm:$0xff]
        %v1277 = vld [vmem:[%s5 + $0x80] sm:$0xff]
        %v1278 = vld [vmem:[%s5 + $0x88] sm:$0xff]
        %v1279 = vld [vmem:[%s5 + $0x90] sm:$0xff]
        %v1280 = vld [vmem:[%s5 + $0x98] sm:$0xff]
        %v1281 = vld [vmem:[%s5 + $0xa0] sm:$0xff]
        %v1282 = vld [vmem:[%s5 + $0xa8] sm:$0xff]
        %v1283 = vld [vmem:[%s5 + $0xb0] sm:$0xff]
        %v1284 = vld [vmem:[%s5 + $0xb8] sm:$0xff]
        %v1285 = vld [vmem:[%s5 + $0xc0] sm:$0xff]
        %v1286 = vld [vmem:[%s5 + $0xc8] sm:$0xff]
        %v1287 = vld [vmem:[%s5 + $0xd0] sm:$0xff]
        %v1288 = vld [vmem:[%s5 + $0xd8] sm:$0xff]
        %v1289 = vld [vmem:[%s5 + $0xe0] sm:$0xff]
        %v1290 = vld [vmem:[%s5 + $0xe8] sm:$0xff]
        %v1291 = vld [vmem:[%s5 + $0xf0] sm:$0xff]
        %v1292 = vld [vmem:[%s5 + $0xf8] sm:$0xff]
        %v1293 = vld [vmem:[%s5 + $0x100] sm:$0xff]
        %v1294 = vld [vmem:[%s5 + $0x108] sm:$0xff]
        %v1295 = vld [vmem:[%s5 + $0x110] sm:$0xff]
        %v1296 = vld [vmem:[%s5 + $0x118] sm:$0xff]
        %v1297 = vld [vmem:[%s5 + $0x120] sm:$0xff]
        %v1298 = vld [vmem:[%s5 + $0x128] sm:$0xff]
        %v1299 = vld [vmem:[%s5 + $0x130] sm:$0xff]
        %v1300 = vld [vmem:[%s5 + $0x138] sm:$0xff]
        %v1301 = vld [vmem:[%s5 + $0x140] sm:$0xff]
        %v1302 = vld [vmem:[%s5 + $0x148] sm:$0xff]
        %v1303 = vld [vmem:[%s5 + $0x150] sm:$0xff]
        %v1304 = vld [vmem:[%s5 + $0x158] sm:$0xff]
        %v1305 = vld [vmem:[%s5 + $0x160] sm:$0xff]
        %v1306 = vld [vmem:[%s5 + $0x168] sm:$0xff]
        %v1307 = vld [vmem:[%s5 + $0x170] sm:$0xff]
        %v1308 = vld [vmem:[%s5 + $0x178] sm:$0xff]
        %s1309 = scalar_lea.vmem %s5, 384
        %v1310 = vld [vmem:[%s1309] sm:$0xff]
        %v1311 = vld [vmem:[%s1309 + $0x8] sm:$0xff]
        %v1312 = vld [vmem:[%s1309 + $0x10] sm:$0xff]
        %v1313 = vld [vmem:[%s1309 + $0x18] sm:$0xff]
        %v1314 = vld [vmem:[%s1309 + $0x20] sm:$0xff]
        %v1315 = vld [vmem:[%s1309 + $0x28] sm:$0xff]
        %v1316 = vld [vmem:[%s1309 + $0x30] sm:$0xff]
        %v1317 = vld [vmem:[%s1309 + $0x38] sm:$0xff]
        %v1318 = vld [vmem:[%s1309 + $0x40] sm:$0xff]
        %v1319 = vld [vmem:[%s1309 + $0x48] sm:$0xff]
        %v1320 = vld [vmem:[%s1309 + $0x50] sm:$0xff]
        %v1321 = vld [vmem:[%s1309 + $0x58] sm:$0xff]
        %v1322 = vld [vmem:[%s1309 + $0x60] sm:$0xff]
        %v1323 = vld [vmem:[%s1309 + $0x68] sm:$0xff]
        %v1324 = vld [vmem:[%s1309 + $0x70] sm:$0xff]
        %v1325 = vld [vmem:[%s1309 + $0x78] sm:$0xff]
        %v1326 = vld [vmem:[%s1309 + $0x80] sm:$0xff]
        %v1327 = vld [vmem:[%s1309 + $0x88] sm:$0xff]
        %v1328 = vld [vmem:[%s1309 + $0x90] sm:$0xff]
        %v1329 = vld [vmem:[%s1309 + $0x98] sm:$0xff]
        %v1330 = vld [vmem:[%s1309 + $0xa0] sm:$0xff]
        %v1331 = vld [vmem:[%s1309 + $0xa8] sm:$0xff]
        %v1332 = vld [vmem:[%s1309 + $0xb0] sm:$0xff]
        %v1333 = vld [vmem:[%s1309 + $0xb8] sm:$0xff]
        %v1334 = vld [vmem:[%s1309 + $0xc0] sm:$0xff]
        %v1335 = vld [vmem:[%s1309 + $0xc8] sm:$0xff]
        %v1336 = vld [vmem:[%s1309 + $0xd0] sm:$0xff]
        %v1337 = vld [vmem:[%s1309 + $0xd8] sm:$0xff]
        %v1338 = vld [vmem:[%s1309 + $0xe0] sm:$0xff]
        %v1339 = vld [vmem:[%s1309 + $0xe8] sm:$0xff]
        %v1340 = vld [vmem:[%s1309 + $0xf0] sm:$0xff]
        %v1341 = vld [vmem:[%s1309 + $0xf8] sm:$0xff]
        %v1342 = vld [vmem:[%s1309 + $0x100] sm:$0xff]
        %v1343 = vld [vmem:[%s1309 + $0x108] sm:$0xff]
        %v1344 = vld [vmem:[%s1309 + $0x110] sm:$0xff]
        %v1345 = vld [vmem:[%s1309 + $0x118] sm:$0xff]
        %v1346 = vld [vmem:[%s1309 + $0x120] sm:$0xff]
        %v1347 = vld [vmem:[%s1309 + $0x128] sm:$0xff]
        %v1348 = vld [vmem:[%s1309 + $0x130] sm:$0xff]
        %v1349 = vld [vmem:[%s1309 + $0x138] sm:$0xff]
        %v1350 = vld [vmem:[%s1309 + $0x140] sm:$0xff]
        %v1351 = vld [vmem:[%s1309 + $0x148] sm:$0xff]
        %v1352 = vld [vmem:[%s1309 + $0x150] sm:$0xff]
        %v1353 = vld [vmem:[%s1309 + $0x158] sm:$0xff]
        %v1354 = vld [vmem:[%s1309 + $0x160] sm:$0xff]
        %v1355 = vld [vmem:[%s1309 + $0x168] sm:$0xff]
        %v1356 = vld [vmem:[%s1309 + $0x170] sm:$0xff]
        %v1357 = vld [vmem:[%s1309 + $0x178] sm:$0xff]
        %vm1360 = vcmask 1046528
        %v1361 = vrot.slane %v1259, 1
        %v1362 = vrot.slane %v1260, 1
        %v1363 = vsel %vm1360, %v1361, %v1362
        %vm1364 = vcmask 785408
        %v1365 = vsel %vm1364, %v1363, 0
        %1367 = vmatprep.subr.mxu0 0.0
        %1368 = vmatpush1.msra.mxu0 0.0
        %1369 = vmatprep.subr.mxu0 0.0
        %1370 = vmatpush1.msra.mxu0 0.0
        %1371 = vmatprep.subr.mxu0 0.0
        %1372 = vmatpush1.msra.mxu0 0.0
        %1373 = vmatprep.subr.mxu0 0.0
        %1374 = vmatpush1.msra.mxu0 0.0
        %v1375 = vand.u32 %v1355, 4294901760
        %1376 = vmatprep.subr.mxu0 %v1375
        %v1377 = vand.u32 %v1354, 4294901760
        %1378 = vmatpush1.msra.mxu0 %v1377
        %v1379 = vand.u32 %v1351, 4294901760
        %1380 = vmatprep.subr.mxu0 %v1379
        %v1381 = vand.u32 %v1350, 4294901760
        %1382 = vmatpush1.msra.mxu0 %v1381
        %v1383 = vand.u32 %v1347, 4294901760
        %1384 = vmatprep.subr.mxu0 %v1383
        %v1385 = vand.u32 %v1346, 4294901760
        %1386 = vmatpush1.msra.mxu0 %v1385
        %v1387 = vand.u32 %v1343, 4294901760
        %1388 = vmatprep.subr.mxu0 %v1387
        %v1389 = vand.u32 %v1342, 4294901760
        %1390 = vmatpush1.msra.mxu0 %v1389
        %v1391 = vand.u32 %v1339, 4294901760
        %1392 = vmatprep.subr.mxu0 %v1391
        %v1393 = vand.u32 %v1338, 4294901760
        %1394 = vmatpush1.msra.mxu0 %v1393
        %v1395 = vand.u32 %v1335, 4294901760
        %1396 = vmatprep.subr.mxu0 %v1395
        %v1397 = vand.u32 %v1334, 4294901760
        %1398 = vmatpush1.msra.mxu0 %v1397
        %v1399 = vand.u32 %v1331, 4294901760
        %1400 = vmatprep.subr.mxu0 %v1399
        %v1401 = vand.u32 %v1330, 4294901760
        %1402 = vmatpush1.msra.mxu0 %v1401
        %v1403 = vand.u32 %v1327, 4294901760
        %1404 = vmatprep.subr.mxu0 %v1403
        %v1405 = vand.u32 %v1326, 4294901760
        %1406 = vmatpush1.msra.mxu0 %v1405
        %v1407 = vand.u32 %v1323, 4294901760
        %1408 = vmatprep.subr.mxu0 %v1407
        %v1409 = vand.u32 %v1322, 4294901760
        %1410 = vmatpush1.msra.mxu0 %v1409
        %v1411 = vand.u32 %v1319, 4294901760
        %1412 = vmatprep.subr.mxu0 %v1411
        %v1413 = vand.u32 %v1318, 4294901760
        %1414 = vmatpush1.msra.mxu0 %v1413
        %v1415 = vand.u32 %v1315, 4294901760
        %1416 = vmatprep.subr.mxu0 %v1415
        %v1417 = vand.u32 %v1314, 4294901760
        %1418 = vmatpush1.msra.mxu0 %v1417
        %v1419 = vand.u32 %v1311, 4294901760
        %1420 = vmatprep.subr.mxu0 %v1419
        %v1421 = vand.u32 %v1310, 4294901760
        %1422 = vmatpush1.msra.mxu0 %v1421
        %1423 = vmatprep.subr.mxu0 0.0
        %1424 = vmatpush2.msra.mxu0 0.0
        %1425 = vmatprep.subr.mxu0 0.0
        %1426 = vmatpush2.msra.mxu0 0.0
        %1427 = vmatprep.subr.mxu0 0.0
        %1428 = vmatpush2.msra.mxu0 0.0
        %1429 = vmatprep.subr.mxu0 0.0
        %1430 = vmatpush2.msra.mxu0 0.0
        %1431 = vmatprep.subr.mxu0 0.0
        %1432 = vmatpush2.msra.mxu0 0.0
        %1433 = vmatprep.subr.mxu0 0.0
        %1434 = vmatpush2.msra.mxu0 0.0
        %1435 = vmatprep.subr.mxu0 0.0
        %1436 = vmatpush2.msra.mxu0 0.0
        %1437 = vmatprep.subr.mxu0 0.0
        %1438 = vmatpush2.msra.mxu0 0.0
        %1439 = vmatprep.subr.mxu0 0.0
        %1440 = vmatpush2.msra.mxu0 0.0
        %1441 = vmatprep.subr.mxu0 0.0
        %1442 = vmatpush2.msra.mxu0 0.0
        %1443 = vmatprep.subr.mxu0 0.0
        %1444 = vmatpush2.msra.mxu0 0.0
        %1445 = vmatprep.subr.mxu0 0.0
        %1446 = vmatpush2.msra.mxu0 0.0
        %1447 = vmatprep.subr.mxu0 0.0
        %1448 = vmatpush2.msra.mxu0 0.0
        %1449 = vmatprep.subr.mxu0 0.0
        %1450 = vmatpush2.msra.mxu0 0.0
        %1451 = vmatprep.subr.mxu0 0.0
        %1452 = vmatpush2.msra.mxu0 0.0
        %1453 = vmatprep.subr.mxu0 0.0
        %1454 = vmatpush2.msra.mxu0 0.0
        %1455 = vmatprep.mubr.f32.mxu0 0.0
        %v1456 = vand.u32 %v1365, 4294901760
        %v1457 = vsub.f32 %v1365, %v1456
        %v1458 = vand.u32 %v1457, 4294901760
        %v1459 = vsub.f32 %v1457, %v1458
        %v1460 = vand.u32 %v1459, 4294901760
        %1461 = vmatmul.mubr.f32.gmra.mxu0 %v1460
        %v1462 = vpop.f32.mrf.mxu0
        %v1463 = vadd.f32 0.0, %v1462
        %v1464 = vpop.f32.mrf.mxu0
        %v1465 = vadd.f32 0.0, %v1464
        %1466 = vdwg.mxu0
        %1467 = vmatprep.subr.mxu0 0.0
        %1468 = vmatpush1.msra.mxu0 0.0
        %1469 = vmatprep.subr.mxu0 0.0
        %1470 = vmatpush1.msra.mxu0 0.0
        %1471 = vmatprep.subr.mxu0 0.0
        %1472 = vmatpush1.msra.mxu0 0.0
        %1473 = vmatprep.subr.mxu0 0.0
        %1474 = vmatpush1.msra.mxu0 0.0
        %v1475 = vand.u32 %v1355, 4294901760
        %v1476 = vsub.f32 %v1355, %v1475
        %v1477 = vand.u32 %v1476, 4294901760
        %v1478 = vsub.f32 %v1476, %v1477
        %v1479 = vand.u32 %v1478, 4294901760
        %1480 = vmatprep.subr.mxu0 %v1479
        %v1481 = vand.u32 %v1354, 4294901760
        %v1482 = vsub.f32 %v1354, %v1481
        %v1483 = vand.u32 %v1482, 4294901760
        %v1484 = vsub.f32 %v1482, %v1483
        %v1485 = vand.u32 %v1484, 4294901760
        %1486 = vmatpush1.msra.mxu0 %v1485
        %v1487 = vand.u32 %v1351, 4294901760
        %v1488 = vsub.f32 %v1351, %v1487
        %v1489 = vand.u32 %v1488, 4294901760
        %v1490 = vsub.f32 %v1488, %v1489
        %v1491 = vand.u32 %v1490, 4294901760
        %1492 = vmatprep.subr.mxu0 %v1491
        %v1493 = vand.u32 %v1350, 4294901760
        %v1494 = vsub.f32 %v1350, %v1493
        %v1495 = vand.u32 %v1494, 4294901760
        %v1496 = vsub.f32 %v1494, %v1495
        %v1497 = vand.u32 %v1496, 4294901760
        %1498 = vmatpush1.msra.mxu0 %v1497
        %v1499 = vand.u32 %v1347, 4294901760
        %v1500 = vsub.f32 %v1347, %v1499
        %v1501 = vand.u32 %v1500, 4294901760
        %v1502 = vsub.f32 %v1500, %v1501
        %v1503 = vand.u32 %v1502, 4294901760
        %1504 = vmatprep.subr.mxu0 %v1503
        %v1505 = vand.u32 %v1346, 4294901760
        %v1506 = vsub.f32 %v1346, %v1505
        %v1507 = vand.u32 %v1506, 4294901760
        %v1508 = vsub.f32 %v1506, %v1507
        %v1509 = vand.u32 %v1508, 4294901760
        %1510 = vmatpush1.msra.mxu0 %v1509
        %v1511 = vand.u32 %v1343, 4294901760
        %v1512 = vsub.f32 %v1343, %v1511
        %v1513 = vand.u32 %v1512, 4294901760
        %v1514 = vsub.f32 %v1512, %v1513
        %v1515 = vand.u32 %v1514, 4294901760
        %1516 = vmatprep.subr.mxu0 %v1515
        %v1517 = vand.u32 %v1342, 4294901760
        %v1518 = vsub.f32 %v1342, %v1517
        %v1519 = vand.u32 %v1518, 4294901760
        %v1520 = vsub.f32 %v1518, %v1519
        %v1521 = vand.u32 %v1520, 4294901760
        %1522 = vmatpush1.msra.mxu0 %v1521
        %v1523 = vand.u32 %v1339, 4294901760
        %v1524 = vsub.f32 %v1339, %v1523
        %v1525 = vand.u32 %v1524, 4294901760
        %v1526 = vsub.f32 %v1524, %v1525
        %v1527 = vand.u32 %v1526, 4294901760
        %1528 = vmatprep.subr.mxu0 %v1527
        %v1529 = vand.u32 %v1338, 4294901760
        %v1530 = vsub.f32 %v1338, %v1529
        %v1531 = vand.u32 %v1530, 4294901760
        %v1532 = vsub.f32 %v1530, %v1531
        %v1533 = vand.u32 %v1532, 4294901760
        %1534 = vmatpush1.msra.mxu0 %v1533
        %v1535 = vand.u32 %v1335, 4294901760
        %v1536 = vsub.f32 %v1335, %v1535
        %v1537 = vand.u32 %v1536, 4294901760
        %v1538 = vsub.f32 %v1536, %v1537
        %v1539 = vand.u32 %v1538, 4294901760
        %1540 = vmatprep.subr.mxu0 %v1539
        %v1541 = vand.u32 %v1334, 4294901760
        %v1542 = vsub.f32 %v1334, %v1541
        %v1543 = vand.u32 %v1542, 4294901760
        %v1544 = vsub.f32 %v1542, %v1543
        %v1545 = vand.u32 %v1544, 4294901760
        %1546 = vmatpush1.msra.mxu0 %v1545
        %v1547 = vand.u32 %v1331, 4294901760
        %v1548 = vsub.f32 %v1331, %v1547
        %v1549 = vand.u32 %v1548, 4294901760
        %v1550 = vsub.f32 %v1548, %v1549
        %v1551 = vand.u32 %v1550, 4294901760
        %1552 = vmatprep.subr.mxu0 %v1551
        %v1553 = vand.u32 %v1330, 4294901760
        %v1554 = vsub.f32 %v1330, %v1553
        %v1555 = vand.u32 %v1554, 4294901760
        %v1556 = vsub.f32 %v1554, %v1555
        %v1557 = vand.u32 %v1556, 4294901760
        %1558 = vmatpush1.msra.mxu0 %v1557
        %v1559 = vand.u32 %v1327, 4294901760
        %v1560 = vsub.f32 %v1327, %v1559
        %v1561 = vand.u32 %v1560, 4294901760
        %v1562 = vsub.f32 %v1560, %v1561
        %v1563 = vand.u32 %v1562, 4294901760
        %1564 = vmatprep.subr.mxu0 %v1563
        %v1565 = vand.u32 %v1326, 4294901760
        %v1566 = vsub.f32 %v1326, %v1565
        %v1567 = vand.u32 %v1566, 4294901760
        %v1568 = vsub.f32 %v1566, %v1567
        %v1569 = vand.u32 %v1568, 4294901760
        %1570 = vmatpush1.msra.mxu0 %v1569
        %v1571 = vand.u32 %v1323, 4294901760
        %v1572 = vsub.f32 %v1323, %v1571
        %v1573 = vand.u32 %v1572, 4294901760
        %v1574 = vsub.f32 %v1572, %v1573
        %v1575 = vand.u32 %v1574, 4294901760
        %1576 = vmatprep.subr.mxu0 %v1575
        %v1577 = vand.u32 %v1322, 4294901760
        %v1578 = vsub.f32 %v1322, %v1577
        %v1579 = vand.u32 %v1578, 4294901760
        %v1580 = vsub.f32 %v1578, %v1579
        %v1581 = vand.u32 %v1580, 4294901760
        %1582 = vmatpush1.msra.mxu0 %v1581
        %v1583 = vand.u32 %v1319, 4294901760
        %v1584 = vsub.f32 %v1319, %v1583
        %v1585 = vand.u32 %v1584, 4294901760
        %v1586 = vsub.f32 %v1584, %v1585
        %v1587 = vand.u32 %v1586, 4294901760
        %1588 = vmatprep.subr.mxu0 %v1587
        %v1589 = vand.u32 %v1318, 4294901760
        %v1590 = vsub.f32 %v1318, %v1589
        %v1591 = vand.u32 %v1590, 4294901760
        %v1592 = vsub.f32 %v1590, %v1591
        %v1593 = vand.u32 %v1592, 4294901760
        %1594 = vmatpush1.msra.mxu0 %v1593
        %v1595 = vand.u32 %v1315, 4294901760
        %v1596 = vsub.f32 %v1315, %v1595
        %v1597 = vand.u32 %v1596, 4294901760
        %v1598 = vsub.f32 %v1596, %v1597
        %v1599 = vand.u32 %v1598, 4294901760
        %1600 = vmatprep.subr.mxu0 %v1599
        %v1601 = vand.u32 %v1314, 4294901760
        %v1602 = vsub.f32 %v1314, %v1601
        %v1603 = vand.u32 %v1602, 4294901760
        %v1604 = vsub.f32 %v1602, %v1603
        %v1605 = vand.u32 %v1604, 4294901760
        %1606 = vmatpush1.msra.mxu0 %v1605
        %v1607 = vand.u32 %v1311, 4294901760
        %v1608 = vsub.f32 %v1311, %v1607
        %v1609 = vand.u32 %v1608, 4294901760
        %v1610 = vsub.f32 %v1608, %v1609
        %v1611 = vand.u32 %v1610, 4294901760
        %1612 = vmatprep.subr.mxu0 %v1611
        %v1613 = vand.u32 %v1310, 4294901760
        %v1614 = vsub.f32 %v1310, %v1613
        %v1615 = vand.u32 %v1614, 4294901760
        %v1616 = vsub.f32 %v1614, %v1615
        %v1617 = vand.u32 %v1616, 4294901760
        %1618 = vmatpush1.msra.mxu0 %v1617
        %1619 = vmatprep.subr.mxu0 0.0
        %1620 = vmatpush2.msra.mxu0 0.0
        %1621 = vmatprep.subr.mxu0 0.0
        %1622 = vmatpush2.msra.mxu0 0.0
        %1623 = vmatprep.subr.mxu0 0.0
        %1624 = vmatpush2.msra.mxu0 0.0
        %1625 = vmatprep.subr.mxu0 0.0
        %1626 = vmatpush2.msra.mxu0 0.0
        %1627 = vmatprep.subr.mxu0 0.0
        %1628 = vmatpush2.msra.mxu0 0.0
        %1629 = vmatprep.subr.mxu0 0.0
        %1630 = vmatpush2.msra.mxu0 0.0
        %1631 = vmatprep.subr.mxu0 0.0
        %1632 = vmatpush2.msra.mxu0 0.0
        %1633 = vmatprep.subr.mxu0 0.0
        %1634 = vmatpush2.msra.mxu0 0.0
        %1635 = vmatprep.subr.mxu0 0.0
        %1636 = vmatpush2.msra.mxu0 0.0
        %1637 = vmatprep.subr.mxu0 0.0
        %1638 = vmatpush2.msra.mxu0 0.0
        %1639 = vmatprep.subr.mxu0 0.0
        %1640 = vmatpush2.msra.mxu0 0.0
        %1641 = vmatprep.subr.mxu0 0.0
        %1642 = vmatpush2.msra.mxu0 0.0
        %1643 = vmatprep.subr.mxu0 0.0
        %1644 = vmatpush2.msra.mxu0 0.0
        %1645 = vmatprep.subr.mxu0 0.0
        %1646 = vmatpush2.msra.mxu0 0.0
        %1647 = vmatprep.subr.mxu0 0.0
        %1648 = vmatpush2.msra.mxu0 0.0
        %1649 = vmatprep.subr.mxu0 0.0
        %1650 = vmatpush2.msra.mxu0 0.0
        %1651 = vmatprep.mubr.f32.mxu0 0.0
        %v1652 = vand.u32 %v1365, 4294901760
        %1653 = vmatmul.mubr.f32.gmra.mxu0 %v1652
        %v1654 = vpop.f32.mrf.mxu0
        %v1655 = vadd.f32 %v1463, %v1654
        %v1656 = vpop.f32.mrf.mxu0
        %v1657 = vadd.f32 %v1465, %v1656
        %1658 = vdwg.mxu0
        %1659 = vmatprep.subr.mxu0 0.0
        %1660 = vmatpush1.msra.mxu0 0.0
        %1661 = vmatprep.subr.mxu0 0.0
        %1662 = vmatpush1.msra.mxu0 0.0
        %1663 = vmatprep.subr.mxu0 0.0
        %1664 = vmatpush1.msra.mxu0 0.0
        %1665 = vmatprep.subr.mxu0 0.0
        %1666 = vmatpush1.msra.mxu0 0.0
        %v1667 = vand.u32 %v1355, 4294901760
        %v1668 = vsub.f32 %v1355, %v1667
        %1669 = vmatprep.subr.mxu0 %v1668
        %v1670 = vand.u32 %v1354, 4294901760
        %v1671 = vsub.f32 %v1354, %v1670
        %1672 = vmatpush1.msra.mxu0 %v1671
        %v1673 = vand.u32 %v1351, 4294901760
        %v1674 = vsub.f32 %v1351, %v1673
        %1675 = vmatprep.subr.mxu0 %v1674
        %v1676 = vand.u32 %v1350, 4294901760
        %v1677 = vsub.f32 %v1350, %v1676
        %1678 = vmatpush1.msra.mxu0 %v1677
        %v1679 = vand.u32 %v1347, 4294901760
        %v1680 = vsub.f32 %v1347, %v1679
        %1681 = vmatprep.subr.mxu0 %v1680
        %v1682 = vand.u32 %v1346, 4294901760
        %v1683 = vsub.f32 %v1346, %v1682
        %1684 = vmatpush1.msra.mxu0 %v1683
        %v1685 = vand.u32 %v1343, 4294901760
        %v1686 = vsub.f32 %v1343, %v1685
        %1687 = vmatprep.subr.mxu0 %v1686
        %v1688 = vand.u32 %v1342, 4294901760
        %v1689 = vsub.f32 %v1342, %v1688
        %1690 = vmatpush1.msra.mxu0 %v1689
        %v1691 = vand.u32 %v1339, 4294901760
        %v1692 = vsub.f32 %v1339, %v1691
        %1693 = vmatprep.subr.mxu0 %v1692
        %v1694 = vand.u32 %v1338, 4294901760
        %v1695 = vsub.f32 %v1338, %v1694
        %1696 = vmatpush1.msra.mxu0 %v1695
        %v1697 = vand.u32 %v1335, 4294901760
        %v1698 = vsub.f32 %v1335, %v1697
        %1699 = vmatprep.subr.mxu0 %v1698
        %v1700 = vand.u32 %v1334, 4294901760
        %v1701 = vsub.f32 %v1334, %v1700
        %1702 = vmatpush1.msra.mxu0 %v1701
        %v1703 = vand.u32 %v1331, 4294901760
        %v1704 = vsub.f32 %v1331, %v1703
        %1705 = vmatprep.subr.mxu0 %v1704
        %v1706 = vand.u32 %v1330, 4294901760
        %v1707 = vsub.f32 %v1330, %v1706
        %1708 = vmatpush1.msra.mxu0 %v1707
        %v1709 = vand.u32 %v1327, 4294901760
        %v1710 = vsub.f32 %v1327, %v1709
        %1711 = vmatprep.subr.mxu0 %v1710
        %v1712 = vand.u32 %v1326, 4294901760
        %v1713 = vsub.f32 %v1326, %v1712
        %1714 = vmatpush1.msra.mxu0 %v1713
        %v1715 = vand.u32 %v1323, 4294901760
        %v1716 = vsub.f32 %v1323, %v1715
        %1717 = vmatprep.subr.mxu0 %v1716
        %v1718 = vand.u32 %v1322, 4294901760
        %v1719 = vsub.f32 %v1322, %v1718
        %1720 = vmatpush1.msra.mxu0 %v1719
        %v1721 = vand.u32 %v1319, 4294901760
        %v1722 = vsub.f32 %v1319, %v1721
        %1723 = vmatprep.subr.mxu0 %v1722
        %v1724 = vand.u32 %v1318, 4294901760
        %v1725 = vsub.f32 %v1318, %v1724
        %1726 = vmatpush1.msra.mxu0 %v1725
        %v1727 = vand.u32 %v1315, 4294901760
        %v1728 = vsub.f32 %v1315, %v1727
        %1729 = vmatprep.subr.mxu0 %v1728
        %v1730 = vand.u32 %v1314, 4294901760
        %v1731 = vsub.f32 %v1314, %v1730
        %1732 = vmatpush1.msra.mxu0 %v1731
        %v1733 = vand.u32 %v1311, 4294901760
        %v1734 = vsub.f32 %v1311, %v1733
        %1735 = vmatprep.subr.mxu0 %v1734
        %v1736 = vand.u32 %v1310, 4294901760
        %v1737 = vsub.f32 %v1310, %v1736
        %1738 = vmatpush1.msra.mxu0 %v1737
        %1739 = vmatprep.subr.mxu0 0.0
        %1740 = vmatpush2.msra.mxu0 0.0
        %1741 = vmatprep.subr.mxu0 0.0
        %1742 = vmatpush2.msra.mxu0 0.0
        %1743 = vmatprep.subr.mxu0 0.0
        %1744 = vmatpush2.msra.mxu0 0.0
        %1745 = vmatprep.subr.mxu0 0.0
        %1746 = vmatpush2.msra.mxu0 0.0
        %1747 = vmatprep.subr.mxu0 0.0
        %1748 = vmatpush2.msra.mxu0 0.0
        %1749 = vmatprep.subr.mxu0 0.0
        %1750 = vmatpush2.msra.mxu0 0.0
        %1751 = vmatprep.subr.mxu0 0.0
        %1752 = vmatpush2.msra.mxu0 0.0
        %1753 = vmatprep.subr.mxu0 0.0
        %1754 = vmatpush2.msra.mxu0 0.0
        %1755 = vmatprep.subr.mxu0 0.0
        %1756 = vmatpush2.msra.mxu0 0.0
        %1757 = vmatprep.subr.mxu0 0.0
        %1758 = vmatpush2.msra.mxu0 0.0
        %1759 = vmatprep.subr.mxu0 0.0
        %1760 = vmatpush2.msra.mxu0 0.0
        %1761 = vmatprep.subr.mxu0 0.0
        %1762 = vmatpush2.msra.mxu0 0.0
        %1763 = vmatprep.subr.mxu0 0.0
        %1764 = vmatpush2.msra.mxu0 0.0
        %1765 = vmatprep.subr.mxu0 0.0
        %1766 = vmatpush2.msra.mxu0 0.0
        %1767 = vmatprep.subr.mxu0 0.0
        %1768 = vmatpush2.msra.mxu0 0.0
        %1769 = vmatprep.subr.mxu0 0.0
        %1770 = vmatpush2.msra.mxu0 0.0
        %1771 = vmatprep.mubr.f32.mxu0 0.0
        %v1772 = vand.u32 %v1365, 4294901760
        %v1773 = vsub.f32 %v1365, %v1772
        %1774 = vmatmul.mubr.f32.gmra.mxu0 %v1773
        %v1775 = vpop.f32.mrf.mxu0
        %v1776 = vadd.f32 %v1655, %v1775
        %v1777 = vpop.f32.mrf.mxu0
        %v1778 = vadd.f32 %v1657, %v1777
        %1779 = vdwg.mxu0
        %1780 = vmatprep.subr.mxu0 0.0
        %1781 = vmatpush1.msra.mxu0 0.0
        %1782 = vmatprep.subr.mxu0 0.0
        %1783 = vmatpush1.msra.mxu0 0.0
        %1784 = vmatprep.subr.mxu0 0.0
        %1785 = vmatpush1.msra.mxu0 0.0
        %1786 = vmatprep.subr.mxu0 0.0
        %1787 = vmatpush1.msra.mxu0 0.0
        %v1788 = vand.u32 %v1355, 4294901760
        %1789 = vmatprep.subr.mxu0 %v1788
        %v1790 = vand.u32 %v1354, 4294901760
        %1791 = vmatpush1.msra.mxu0 %v1790
        %v1792 = vand.u32 %v1351, 4294901760
        %1793 = vmatprep.subr.mxu0 %v1792
        %v1794 = vand.u32 %v1350, 4294901760
        %1795 = vmatpush1.msra.mxu0 %v1794
        %v1796 = vand.u32 %v1347, 4294901760
        %1797 = vmatprep.subr.mxu0 %v1796
        %v1798 = vand.u32 %v1346, 4294901760
        %1799 = vmatpush1.msra.mxu0 %v1798
        %v1800 = vand.u32 %v1343, 4294901760
        %1801 = vmatprep.subr.mxu0 %v1800
        %v1802 = vand.u32 %v1342, 4294901760
        %1803 = vmatpush1.msra.mxu0 %v1802
        %v1804 = vand.u32 %v1339, 4294901760
        %1805 = vmatprep.subr.mxu0 %v1804
        %v1806 = vand.u32 %v1338, 4294901760
        %1807 = vmatpush1.msra.mxu0 %v1806
        %v1808 = vand.u32 %v1335, 4294901760
        %1809 = vmatprep.subr.mxu0 %v1808
        %v1810 = vand.u32 %v1334, 4294901760
        %1811 = vmatpush1.msra.mxu0 %v1810
        %v1812 = vand.u32 %v1331, 4294901760
        %1813 = vmatprep.subr.mxu0 %v1812
        %v1814 = vand.u32 %v1330, 4294901760
        %1815 = vmatpush1.msra.mxu0 %v1814
        %v1816 = vand.u32 %v1327, 4294901760
        %1817 = vmatprep.subr.mxu0 %v1816
        %v1818 = vand.u32 %v1326, 4294901760
        %1819 = vmatpush1.msra.mxu0 %v1818
        %v1820 = vand.u32 %v1323, 4294901760
        %1821 = vmatprep.subr.mxu0 %v1820
        %v1822 = vand.u32 %v1322, 4294901760
        %1823 = vmatpush1.msra.mxu0 %v1822
        %v1824 = vand.u32 %v1319, 4294901760
        %1825 = vmatprep.subr.mxu0 %v1824
        %v1826 = vand.u32 %v1318, 4294901760
        %1827 = vmatpush1.msra.mxu0 %v1826
        %v1828 = vand.u32 %v1315, 4294901760
        %1829 = vmatprep.subr.mxu0 %v1828
        %v1830 = vand.u32 %v1314, 4294901760
        %1831 = vmatpush1.msra.mxu0 %v1830
        %v1832 = vand.u32 %v1311, 4294901760
        %1833 = vmatprep.subr.mxu0 %v1832
        %v1834 = vand.u32 %v1310, 4294901760
        %1835 = vmatpush1.msra.mxu0 %v1834
        %1836 = vmatprep.subr.mxu0 0.0
        %1837 = vmatpush2.msra.mxu0 0.0
        %1838 = vmatprep.subr.mxu0 0.0
        %1839 = vmatpush2.msra.mxu0 0.0
        %1840 = vmatprep.subr.mxu0 0.0
        %1841 = vmatpush2.msra.mxu0 0.0
        %1842 = vmatprep.subr.mxu0 0.0
        %1843 = vmatpush2.msra.mxu0 0.0
        %1844 = vmatprep.subr.mxu0 0.0
        %1845 = vmatpush2.msra.mxu0 0.0
        %1846 = vmatprep.subr.mxu0 0.0
        %1847 = vmatpush2.msra.mxu0 0.0
        %1848 = vmatprep.subr.mxu0 0.0
        %1849 = vmatpush2.msra.mxu0 0.0
        %1850 = vmatprep.subr.mxu0 0.0
        %1851 = vmatpush2.msra.mxu0 0.0
        %1852 = vmatprep.subr.mxu0 0.0
        %1853 = vmatpush2.msra.mxu0 0.0
        %1854 = vmatprep.subr.mxu0 0.0
        %1855 = vmatpush2.msra.mxu0 0.0
        %1856 = vmatprep.subr.mxu0 0.0
        %1857 = vmatpush2.msra.mxu0 0.0
        %1858 = vmatprep.subr.mxu0 0.0
        %1859 = vmatpush2.msra.mxu0 0.0
        %1860 = vmatprep.subr.mxu0 0.0
        %1861 = vmatpush2.msra.mxu0 0.0
        %1862 = vmatprep.subr.mxu0 0.0
        %1863 = vmatpush2.msra.mxu0 0.0
        %1864 = vmatprep.subr.mxu0 0.0
        %1865 = vmatpush2.msra.mxu0 0.0
        %1866 = vmatprep.subr.mxu0 0.0
        %1867 = vmatpush2.msra.mxu0 0.0
        %1868 = vmatprep.mubr.f32.mxu0 0.0
        %v1869 = vand.u32 %v1365, 4294901760
        %v1870 = vsub.f32 %v1365, %v1869
        %v1871 = vand.u32 %v1870, 4294901760
        %1872 = vmatmul.mubr.f32.gmra.mxu0 %v1871
        %v1873 = vpop.f32.mrf.mxu0
        %v1874 = vadd.f32 %v1776, %v1873
        %v1875 = vpop.f32.mrf.mxu0
        %v1876 = vadd.f32 %v1778, %v1875
        %1877 = vdwg.mxu0
        %1878 = vmatprep.subr.mxu0 0.0
        %1879 = vmatpush1.msra.mxu0 0.0
        %1880 = vmatprep.subr.mxu0 0.0
        %1881 = vmatpush1.msra.mxu0 0.0
        %1882 = vmatprep.subr.mxu0 0.0
        %1883 = vmatpush1.msra.mxu0 0.0
        %1884 = vmatprep.subr.mxu0 0.0
        %1885 = vmatpush1.msra.mxu0 0.0
        %v1886 = vand.u32 %v1355, 4294901760
        %v1887 = vsub.f32 %v1355, %v1886
        %v1888 = vand.u32 %v1887, 4294901760
        %1889 = vmatprep.subr.mxu0 %v1888
        %v1890 = vand.u32 %v1354, 4294901760
        %v1891 = vsub.f32 %v1354, %v1890
        %v1892 = vand.u32 %v1891, 4294901760
        %1893 = vmatpush1.msra.mxu0 %v1892
        %v1894 = vand.u32 %v1351, 4294901760
        %v1895 = vsub.f32 %v1351, %v1894
        %v1896 = vand.u32 %v1895, 4294901760
        %1897 = vmatprep.subr.mxu0 %v1896
        %v1898 = vand.u32 %v1350, 4294901760
        %v1899 = vsub.f32 %v1350, %v1898
        %v1900 = vand.u32 %v1899, 4294901760
        %1901 = vmatpush1.msra.mxu0 %v1900
        %v1902 = vand.u32 %v1347, 4294901760
        %v1903 = vsub.f32 %v1347, %v1902
        %v1904 = vand.u32 %v1903, 4294901760
        %1905 = vmatprep.subr.mxu0 %v1904
        %v1906 = vand.u32 %v1346, 4294901760
        %v1907 = vsub.f32 %v1346, %v1906
        %v1908 = vand.u32 %v1907, 4294901760
        %1909 = vmatpush1.msra.mxu0 %v1908
        %v1910 = vand.u32 %v1343, 4294901760
        %v1911 = vsub.f32 %v1343, %v1910
        %v1912 = vand.u32 %v1911, 4294901760
        %1913 = vmatprep.subr.mxu0 %v1912
        %v1914 = vand.u32 %v1342, 4294901760
        %v1915 = vsub.f32 %v1342, %v1914
        %v1916 = vand.u32 %v1915, 4294901760
        %1917 = vmatpush1.msra.mxu0 %v1916
        %v1918 = vand.u32 %v1339, 4294901760
        %v1919 = vsub.f32 %v1339, %v1918
        %v1920 = vand.u32 %v1919, 4294901760
        %1921 = vmatprep.subr.mxu0 %v1920
        %v1922 = vand.u32 %v1338, 4294901760
        %v1923 = vsub.f32 %v1338, %v1922
        %v1924 = vand.u32 %v1923, 4294901760
        %1925 = vmatpush1.msra.mxu0 %v1924
        %v1926 = vand.u32 %v1335, 4294901760
        %v1927 = vsub.f32 %v1335, %v1926
        %v1928 = vand.u32 %v1927, 4294901760
        %1929 = vmatprep.subr.mxu0 %v1928
        %v1930 = vand.u32 %v1334, 4294901760
        %v1931 = vsub.f32 %v1334, %v1930
        %v1932 = vand.u32 %v1931, 4294901760
        %1933 = vmatpush1.msra.mxu0 %v1932
        %v1934 = vand.u32 %v1331, 4294901760
        %v1935 = vsub.f32 %v1331, %v1934
        %v1936 = vand.u32 %v1935, 4294901760
        %1937 = vmatprep.subr.mxu0 %v1936
        %v1938 = vand.u32 %v1330, 4294901760
        %v1939 = vsub.f32 %v1330, %v1938
        %v1940 = vand.u32 %v1939, 4294901760
        %1941 = vmatpush1.msra.mxu0 %v1940
        %v1942 = vand.u32 %v1327, 4294901760
        %v1943 = vsub.f32 %v1327, %v1942
        %v1944 = vand.u32 %v1943, 4294901760
        %1945 = vmatprep.subr.mxu0 %v1944
        %v1946 = vand.u32 %v1326, 4294901760
        %v1947 = vsub.f32 %v1326, %v1946
        %v1948 = vand.u32 %v1947, 4294901760
        %1949 = vmatpush1.msra.mxu0 %v1948
        %v1950 = vand.u32 %v1323, 4294901760
        %v1951 = vsub.f32 %v1323, %v1950
        %v1952 = vand.u32 %v1951, 4294901760
        %1953 = vmatprep.subr.mxu0 %v1952
        %v1954 = vand.u32 %v1322, 4294901760
        %v1955 = vsub.f32 %v1322, %v1954
        %v1956 = vand.u32 %v1955, 4294901760
        %1957 = vmatpush1.msra.mxu0 %v1956
        %v1958 = vand.u32 %v1319, 4294901760
        %v1959 = vsub.f32 %v1319, %v1958
        %v1960 = vand.u32 %v1959, 4294901760
        %1961 = vmatprep.subr.mxu0 %v1960
        %v1962 = vand.u32 %v1318, 4294901760
        %v1963 = vsub.f32 %v1318, %v1962
        %v1964 = vand.u32 %v1963, 4294901760
        %1965 = vmatpush1.msra.mxu0 %v1964
        %v1966 = vand.u32 %v1315, 4294901760
        %v1967 = vsub.f32 %v1315, %v1966
        %v1968 = vand.u32 %v1967, 4294901760
        %1969 = vmatprep.subr.mxu0 %v1968
        %v1970 = vand.u32 %v1314, 4294901760
        %v1971 = vsub.f32 %v1314, %v1970
        %v1972 = vand.u32 %v1971, 4294901760
        %1973 = vmatpush1.msra.mxu0 %v1972
        %v1974 = vand.u32 %v1311, 4294901760
        %v1975 = vsub.f32 %v1311, %v1974
        %v1976 = vand.u32 %v1975, 4294901760
        %1977 = vmatprep.subr.mxu0 %v1976
        %v1978 = vand.u32 %v1310, 4294901760
        %v1979 = vsub.f32 %v1310, %v1978
        %v1980 = vand.u32 %v1979, 4294901760
        %1981 = vmatpush1.msra.mxu0 %v1980
        %1982 = vmatprep.subr.mxu0 0.0
        %1983 = vmatpush2.msra.mxu0 0.0
        %1984 = vmatprep.subr.mxu0 0.0
        %1985 = vmatpush2.msra.mxu0 0.0
        %1986 = vmatprep.subr.mxu0 0.0
        %1987 = vmatpush2.msra.mxu0 0.0
        %1988 = vmatprep.subr.mxu0 0.0
        %1989 = vmatpush2.msra.mxu0 0.0
        %1990 = vmatprep.subr.mxu0 0.0
        %1991 = vmatpush2.msra.mxu0 0.0
        %1992 = vmatprep.subr.mxu0 0.0
        %1993 = vmatpush2.msra.mxu0 0.0
        %1994 = vmatprep.subr.mxu0 0.0
        %1995 = vmatpush2.msra.mxu0 0.0
        %1996 = vmatprep.subr.mxu0 0.0
        %1997 = vmatpush2.msra.mxu0 0.0
        %1998 = vmatprep.subr.mxu0 0.0
        %1999 = vmatpush2.msra.mxu0 0.0
        %2000 = vmatprep.subr.mxu0 0.0
        %2001 = vmatpush2.msra.mxu0 0.0
        %2002 = vmatprep.subr.mxu0 0.0
        %2003 = vmatpush2.msra.mxu0 0.0
        %2004 = vmatprep.subr.mxu0 0.0
        %2005 = vmatpush2.msra.mxu0 0.0
        %2006 = vmatprep.subr.mxu0 0.0
        %2007 = vmatpush2.msra.mxu0 0.0
        %2008 = vmatprep.subr.mxu0 0.0
        %2009 = vmatpush2.msra.mxu0 0.0
        %2010 = vmatprep.subr.mxu0 0.0
        %2011 = vmatpush2.msra.mxu0 0.0
        %2012 = vmatprep.subr.mxu0 0.0
        %2013 = vmatpush2.msra.mxu0 0.0
        %2014 = vmatprep.mubr.f32.mxu0 0.0
        %v2015 = vand.u32 %v1365, 4294901760
        %2016 = vmatmul.mubr.f32.gmra.mxu0 %v2015
        %v2017 = vpop.f32.mrf.mxu0
        %v2018 = vadd.f32 %v1874, %v2017
        %v2019 = vpop.f32.mrf.mxu0
        %v2020 = vadd.f32 %v1876, %v2019
        %2021 = vdwg.mxu0
        %2022 = vmatprep.subr.mxu0 0.0
        %2023 = vmatpush1.msra.mxu0 0.0
        %2024 = vmatprep.subr.mxu0 0.0
        %2025 = vmatpush1.msra.mxu0 0.0
        %2026 = vmatprep.subr.mxu0 0.0
        %2027 = vmatpush1.msra.mxu0 0.0
        %2028 = vmatprep.subr.mxu0 0.0
        %2029 = vmatpush1.msra.mxu0 0.0
        %v2030 = vand.u32 %v1355, 4294901760
        %2031 = vmatprep.subr.mxu0 %v2030
        %v2032 = vand.u32 %v1354, 4294901760
        %2033 = vmatpush1.msra.mxu0 %v2032
        %v2034 = vand.u32 %v1351, 4294901760
        %2035 = vmatprep.subr.mxu0 %v2034
        %v2036 = vand.u32 %v1350, 4294901760
        %2037 = vmatpush1.msra.mxu0 %v2036
        %v2038 = vand.u32 %v1347, 4294901760
        %2039 = vmatprep.subr.mxu0 %v2038
        %v2040 = vand.u32 %v1346, 4294901760
        %2041 = vmatpush1.msra.mxu0 %v2040
        %v2042 = vand.u32 %v1343, 4294901760
        %2043 = vmatprep.subr.mxu0 %v2042
        %v2044 = vand.u32 %v1342, 4294901760
        %2045 = vmatpush1.msra.mxu0 %v2044
        %v2046 = vand.u32 %v1339, 4294901760
        %2047 = vmatprep.subr.mxu0 %v2046
        %v2048 = vand.u32 %v1338, 4294901760
        %2049 = vmatpush1.msra.mxu0 %v2048
        %v2050 = vand.u32 %v1335, 4294901760
        %2051 = vmatprep.subr.mxu0 %v2050
        %v2052 = vand.u32 %v1334, 4294901760
        %2053 = vmatpush1.msra.mxu0 %v2052
        %v2054 = vand.u32 %v1331, 4294901760
        %2055 = vmatprep.subr.mxu0 %v2054
        %v2056 = vand.u32 %v1330, 4294901760
        %2057 = vmatpush1.msra.mxu0 %v2056
        %v2058 = vand.u32 %v1327, 4294901760
        %2059 = vmatprep.subr.mxu0 %v2058
        %v2060 = vand.u32 %v1326, 4294901760
        %2061 = vmatpush1.msra.mxu0 %v2060
        %v2062 = vand.u32 %v1323, 4294901760
        %2063 = vmatprep.subr.mxu0 %v2062
        %v2064 = vand.u32 %v1322, 4294901760
        %2065 = vmatpush1.msra.mxu0 %v2064
        %v2066 = vand.u32 %v1319, 4294901760
        %2067 = vmatprep.subr.mxu0 %v2066
        %v2068 = vand.u32 %v1318, 4294901760
        %2069 = vmatpush1.msra.mxu0 %v2068
        %v2070 = vand.u32 %v1315, 4294901760
        %2071 = vmatprep.subr.mxu0 %v2070
        %v2072 = vand.u32 %v1314, 4294901760
        %2073 = vmatpush1.msra.mxu0 %v2072
        %v2074 = vand.u32 %v1311, 4294901760
        %2075 = vmatprep.subr.mxu0 %v2074
        %v2076 = vand.u32 %v1310, 4294901760
        %2077 = vmatpush1.msra.mxu0 %v2076
        %2078 = vmatprep.subr.mxu0 0.0
        %2079 = vmatpush2.msra.mxu0 0.0
        %2080 = vmatprep.subr.mxu0 0.0
        %2081 = vmatpush2.msra.mxu0 0.0
        %2082 = vmatprep.subr.mxu0 0.0
        %2083 = vmatpush2.msra.mxu0 0.0
        %2084 = vmatprep.subr.mxu0 0.0
        %2085 = vmatpush2.msra.mxu0 0.0
        %2086 = vmatprep.subr.mxu0 0.0
        %2087 = vmatpush2.msra.mxu0 0.0
        %2088 = vmatprep.subr.mxu0 0.0
        %2089 = vmatpush2.msra.mxu0 0.0
        %2090 = vmatprep.subr.mxu0 0.0
        %2091 = vmatpush2.msra.mxu0 0.0
        %2092 = vmatprep.subr.mxu0 0.0
        %2093 = vmatpush2.msra.mxu0 0.0
        %2094 = vmatprep.subr.mxu0 0.0
        %2095 = vmatpush2.msra.mxu0 0.0
        %2096 = vmatprep.subr.mxu0 0.0
        %2097 = vmatpush2.msra.mxu0 0.0
        %2098 = vmatprep.subr.mxu0 0.0
        %2099 = vmatpush2.msra.mxu0 0.0
        %2100 = vmatprep.subr.mxu0 0.0
        %2101 = vmatpush2.msra.mxu0 0.0
        %2102 = vmatprep.subr.mxu0 0.0
        %2103 = vmatpush2.msra.mxu0 0.0
        %2104 = vmatprep.subr.mxu0 0.0
        %2105 = vmatpush2.msra.mxu0 0.0
        %2106 = vmatprep.subr.mxu0 0.0
        %2107 = vmatpush2.msra.mxu0 0.0
        %2108 = vmatprep.subr.mxu0 0.0
        %2109 = vmatpush2.msra.mxu0 0.0
        %2110 = vmatprep.mubr.f32.mxu0 0.0
        %v2111 = vand.u32 %v1365, 4294901760
        %2112 = vmatmul.mubr.f32.gmra.mxu0 %v2111
        %v2113 = vpop.f32.mrf.mxu0
        %v2114 = vadd.f32 %v2018, %v2113
        %v2115 = vpop.f32.mrf.mxu0
        %v2116 = vadd.f32 %v2020, %v2115
        %2117 = vdwg.mxu0
        %2118 = vmatprep.subr.mxu0 0.0
        %2119 = vmatpush1.msra.mxu0 0.0
        %2120 = vmatprep.subr.mxu0 0.0
        %2121 = vmatpush1.msra.mxu0 0.0
        %2122 = vmatprep.subr.mxu0 0.0
        %2123 = vmatpush1.msra.mxu0 0.0
        %2124 = vmatprep.subr.mxu0 0.0
        %2125 = vmatpush1.msra.mxu0 0.0
        %v2126 = vand.u32 %v1357, 4294901760
        %2127 = vmatprep.subr.mxu0 %v2126
        %v2128 = vand.u32 %v1356, 4294901760
        %2129 = vmatpush1.msra.mxu0 %v2128
        %v2130 = vand.u32 %v1353, 4294901760
        %2131 = vmatprep.subr.mxu0 %v2130
        %v2132 = vand.u32 %v1352, 4294901760
        %2133 = vmatpush1.msra.mxu0 %v2132
        %v2134 = vand.u32 %v1349, 4294901760
        %2135 = vmatprep.subr.mxu0 %v2134
        %v2136 = vand.u32 %v1348, 4294901760
        %2137 = vmatpush1.msra.mxu0 %v2136
        %v2138 = vand.u32 %v1345, 4294901760
        %2139 = vmatprep.subr.mxu0 %v2138
        %v2140 = vand.u32 %v1344, 4294901760
        %2141 = vmatpush1.msra.mxu0 %v2140
        %v2142 = vand.u32 %v1341, 4294901760
        %2143 = vmatprep.subr.mxu0 %v2142
        %v2144 = vand.u32 %v1340, 4294901760
        %2145 = vmatpush1.msra.mxu0 %v2144
        %v2146 = vand.u32 %v1337, 4294901760
        %2147 = vmatprep.subr.mxu0 %v2146
        %v2148 = vand.u32 %v1336, 4294901760
        %2149 = vmatpush1.msra.mxu0 %v2148
        %v2150 = vand.u32 %v1333, 4294901760
        %2151 = vmatprep.subr.mxu0 %v2150
        %v2152 = vand.u32 %v1332, 4294901760
        %2153 = vmatpush1.msra.mxu0 %v2152
        %v2154 = vand.u32 %v1329, 4294901760
        %2155 = vmatprep.subr.mxu0 %v2154
        %v2156 = vand.u32 %v1328, 4294901760
        %2157 = vmatpush1.msra.mxu0 %v2156
        %v2158 = vand.u32 %v1325, 4294901760
        %2159 = vmatprep.subr.mxu0 %v2158
        %v2160 = vand.u32 %v1324, 4294901760
        %2161 = vmatpush1.msra.mxu0 %v2160
        %v2162 = vand.u32 %v1321, 4294901760
        %2163 = vmatprep.subr.mxu0 %v2162
        %v2164 = vand.u32 %v1320, 4294901760
        %2165 = vmatpush1.msra.mxu0 %v2164
        %v2166 = vand.u32 %v1317, 4294901760
        %2167 = vmatprep.subr.mxu0 %v2166
        %v2168 = vand.u32 %v1316, 4294901760
        %2169 = vmatpush1.msra.mxu0 %v2168
        %v2170 = vand.u32 %v1313, 4294901760
        %2171 = vmatprep.subr.mxu0 %v2170
        %v2172 = vand.u32 %v1312, 4294901760
        %2173 = vmatpush1.msra.mxu0 %v2172
        %2174 = vmatprep.subr.mxu0 0.0
        %2175 = vmatpush2.msra.mxu0 0.0
        %2176 = vmatprep.subr.mxu0 0.0
        %2177 = vmatpush2.msra.mxu0 0.0
        %2178 = vmatprep.subr.mxu0 0.0
        %2179 = vmatpush2.msra.mxu0 0.0
        %2180 = vmatprep.subr.mxu0 0.0
        %2181 = vmatpush2.msra.mxu0 0.0
        %2182 = vmatprep.subr.mxu0 0.0
        %2183 = vmatpush2.msra.mxu0 0.0
        %2184 = vmatprep.subr.mxu0 0.0
        %2185 = vmatpush2.msra.mxu0 0.0
        %2186 = vmatprep.subr.mxu0 0.0
        %2187 = vmatpush2.msra.mxu0 0.0
        %2188 = vmatprep.subr.mxu0 0.0
        %2189 = vmatpush2.msra.mxu0 0.0
        %2190 = vmatprep.subr.mxu0 0.0
        %2191 = vmatpush2.msra.mxu0 0.0
        %2192 = vmatprep.subr.mxu0 0.0
        %2193 = vmatpush2.msra.mxu0 0.0
        %2194 = vmatprep.subr.mxu0 0.0
        %2195 = vmatpush2.msra.mxu0 0.0
        %2196 = vmatprep.subr.mxu0 0.0
        %2197 = vmatpush2.msra.mxu0 0.0
        %2198 = vmatprep.subr.mxu0 0.0
        %2199 = vmatpush2.msra.mxu0 0.0
        %2200 = vmatprep.subr.mxu0 0.0
        %2201 = vmatpush2.msra.mxu0 0.0
        %2202 = vmatprep.subr.mxu0 0.0
        %2203 = vmatpush2.msra.mxu0 0.0
        %2204 = vmatprep.subr.mxu0 0.0
        %2205 = vmatpush2.msra.mxu0 0.0
        %2206 = vmatprep.mubr.f32.mxu0 0.0
        %v2207 = vand.u32 %v1365, 4294901760
        %v2208 = vsub.f32 %v1365, %v2207
        %v2209 = vand.u32 %v2208, 4294901760
        %v2210 = vsub.f32 %v2208, %v2209
        %v2211 = vand.u32 %v2210, 4294901760
        %2212 = vmatmul.mubr.f32.gmra.mxu0 %v2211
        %v2213 = vpop.f32.mrf.mxu0
        %v2214 = vadd.f32 0.0, %v2213
        %v2215 = vpop.f32.mrf.mxu0
        %v2216 = vadd.f32 0.0, %v2215
        %2217 = vdwg.mxu0
        %2218 = vmatprep.subr.mxu0 0.0
        %2219 = vmatpush1.msra.mxu0 0.0
        %2220 = vmatprep.subr.mxu0 0.0
        %2221 = vmatpush1.msra.mxu0 0.0
        %2222 = vmatprep.subr.mxu0 0.0
        %2223 = vmatpush1.msra.mxu0 0.0
        %2224 = vmatprep.subr.mxu0 0.0
        %2225 = vmatpush1.msra.mxu0 0.0
        %v2226 = vand.u32 %v1357, 4294901760
        %v2227 = vsub.f32 %v1357, %v2226
        %v2228 = vand.u32 %v2227, 4294901760
        %v2229 = vsub.f32 %v2227, %v2228
        %v2230 = vand.u32 %v2229, 4294901760
        %2231 = vmatprep.subr.mxu0 %v2230
        %v2232 = vand.u32 %v1356, 4294901760
        %v2233 = vsub.f32 %v1356, %v2232
        %v2234 = vand.u32 %v2233, 4294901760
        %v2235 = vsub.f32 %v2233, %v2234
        %v2236 = vand.u32 %v2235, 4294901760
        %2237 = vmatpush1.msra.mxu0 %v2236
        %v2238 = vand.u32 %v1353, 4294901760
        %v2239 = vsub.f32 %v1353, %v2238
        %v2240 = vand.u32 %v2239, 4294901760
        %v2241 = vsub.f32 %v2239, %v2240
        %v2242 = vand.u32 %v2241, 4294901760
        %2243 = vmatprep.subr.mxu0 %v2242
        %v2244 = vand.u32 %v1352, 4294901760
        %v2245 = vsub.f32 %v1352, %v2244
        %v2246 = vand.u32 %v2245, 4294901760
        %v2247 = vsub.f32 %v2245, %v2246
        %v2248 = vand.u32 %v2247, 4294901760
        %2249 = vmatpush1.msra.mxu0 %v2248
        %v2250 = vand.u32 %v1349, 4294901760
        %v2251 = vsub.f32 %v1349, %v2250
        %v2252 = vand.u32 %v2251, 4294901760
        %v2253 = vsub.f32 %v2251, %v2252
        %v2254 = vand.u32 %v2253, 4294901760
        %2255 = vmatprep.subr.mxu0 %v2254
        %v2256 = vand.u32 %v1348, 4294901760
        %v2257 = vsub.f32 %v1348, %v2256
        %v2258 = vand.u32 %v2257, 4294901760
        %v2259 = vsub.f32 %v2257, %v2258
        %v2260 = vand.u32 %v2259, 4294901760
        %2261 = vmatpush1.msra.mxu0 %v2260
        %v2262 = vand.u32 %v1345, 4294901760
        %v2263 = vsub.f32 %v1345, %v2262
        %v2264 = vand.u32 %v2263, 4294901760
        %v2265 = vsub.f32 %v2263, %v2264
        %v2266 = vand.u32 %v2265, 4294901760
        %2267 = vmatprep.subr.mxu0 %v2266
        %v2268 = vand.u32 %v1344, 4294901760
        %v2269 = vsub.f32 %v1344, %v2268
        %v2270 = vand.u32 %v2269, 4294901760
        %v2271 = vsub.f32 %v2269, %v2270
        %v2272 = vand.u32 %v2271, 4294901760
        %2273 = vmatpush1.msra.mxu0 %v2272
        %v2274 = vand.u32 %v1341, 4294901760
        %v2275 = vsub.f32 %v1341, %v2274
        %v2276 = vand.u32 %v2275, 4294901760
        %v2277 = vsub.f32 %v2275, %v2276
        %v2278 = vand.u32 %v2277, 4294901760
        %2279 = vmatprep.subr.mxu0 %v2278
        %v2280 = vand.u32 %v1340, 4294901760
        %v2281 = vsub.f32 %v1340, %v2280
        %v2282 = vand.u32 %v2281, 4294901760
        %v2283 = vsub.f32 %v2281, %v2282
        %v2284 = vand.u32 %v2283, 4294901760
        %2285 = vmatpush1.msra.mxu0 %v2284
        %v2286 = vand.u32 %v1337, 4294901760
        %v2287 = vsub.f32 %v1337, %v2286
        %v2288 = vand.u32 %v2287, 4294901760
        %v2289 = vsub.f32 %v2287, %v2288
        %v2290 = vand.u32 %v2289, 4294901760
        %2291 = vmatprep.subr.mxu0 %v2290
        %v2292 = vand.u32 %v1336, 4294901760
        %v2293 = vsub.f32 %v1336, %v2292
        %v2294 = vand.u32 %v2293, 4294901760
        %v2295 = vsub.f32 %v2293, %v2294
        %v2296 = vand.u32 %v2295, 4294901760
        %2297 = vmatpush1.msra.mxu0 %v2296
        %v2298 = vand.u32 %v1333, 4294901760
        %v2299 = vsub.f32 %v1333, %v2298
        %v2300 = vand.u32 %v2299, 4294901760
        %v2301 = vsub.f32 %v2299, %v2300
        %v2302 = vand.u32 %v2301, 4294901760
        %2303 = vmatprep.subr.mxu0 %v2302
        %v2304 = vand.u32 %v1332, 4294901760
        %v2305 = vsub.f32 %v1332, %v2304
        %v2306 = vand.u32 %v2305, 4294901760
        %v2307 = vsub.f32 %v2305, %v2306
        %v2308 = vand.u32 %v2307, 4294901760
        %2309 = vmatpush1.msra.mxu0 %v2308
        %v2310 = vand.u32 %v1329, 4294901760
        %v2311 = vsub.f32 %v1329, %v2310
        %v2312 = vand.u32 %v2311, 4294901760
        %v2313 = vsub.f32 %v2311, %v2312
        %v2314 = vand.u32 %v2313, 4294901760
        %2315 = vmatprep.subr.mxu0 %v2314
        %v2316 = vand.u32 %v1328, 4294901760
        %v2317 = vsub.f32 %v1328, %v2316
        %v2318 = vand.u32 %v2317, 4294901760
        %v2319 = vsub.f32 %v2317, %v2318
        %v2320 = vand.u32 %v2319, 4294901760
        %2321 = vmatpush1.msra.mxu0 %v2320
        %v2322 = vand.u32 %v1325, 4294901760
        %v2323 = vsub.f32 %v1325, %v2322
        %v2324 = vand.u32 %v2323, 4294901760
        %v2325 = vsub.f32 %v2323, %v2324
        %v2326 = vand.u32 %v2325, 4294901760
        %2327 = vmatprep.subr.mxu0 %v2326
        %v2328 = vand.u32 %v1324, 4294901760
        %v2329 = vsub.f32 %v1324, %v2328
        %v2330 = vand.u32 %v2329, 4294901760
        %v2331 = vsub.f32 %v2329, %v2330
        %v2332 = vand.u32 %v2331, 4294901760
        %2333 = vmatpush1.msra.mxu0 %v2332
        %v2334 = vand.u32 %v1321, 4294901760
        %v2335 = vsub.f32 %v1321, %v2334
        %v2336 = vand.u32 %v2335, 4294901760
        %v2337 = vsub.f32 %v2335, %v2336
        %v2338 = vand.u32 %v2337, 4294901760
        %2339 = vmatprep.subr.mxu0 %v2338
        %v2340 = vand.u32 %v1320, 4294901760
        %v2341 = vsub.f32 %v1320, %v2340
        %v2342 = vand.u32 %v2341, 4294901760
        %v2343 = vsub.f32 %v2341, %v2342
        %v2344 = vand.u32 %v2343, 4294901760
        %2345 = vmatpush1.msra.mxu0 %v2344
        %v2346 = vand.u32 %v1317, 4294901760
        %v2347 = vsub.f32 %v1317, %v2346
        %v2348 = vand.u32 %v2347, 4294901760
        %v2349 = vsub.f32 %v2347, %v2348
        %v2350 = vand.u32 %v2349, 4294901760
        %2351 = vmatprep.subr.mxu0 %v2350
        %v2352 = vand.u32 %v1316, 4294901760
        %v2353 = vsub.f32 %v1316, %v2352
        %v2354 = vand.u32 %v2353, 4294901760
        %v2355 = vsub.f32 %v2353, %v2354
        %v2356 = vand.u32 %v2355, 4294901760
        %2357 = vmatpush1.msra.mxu0 %v2356
        %v2358 = vand.u32 %v1313, 4294901760
        %v2359 = vsub.f32 %v1313, %v2358
        %v2360 = vand.u32 %v2359, 4294901760
        %v2361 = vsub.f32 %v2359, %v2360
        %v2362 = vand.u32 %v2361, 4294901760
        %2363 = vmatprep.subr.mxu0 %v2362
        %v2364 = vand.u32 %v1312, 4294901760
        %v2365 = vsub.f32 %v1312, %v2364
        %v2366 = vand.u32 %v2365, 4294901760
        %v2367 = vsub.f32 %v2365, %v2366
        %v2368 = vand.u32 %v2367, 4294901760
        %2369 = vmatpush1.msra.mxu0 %v2368
        %2370 = vmatprep.subr.mxu0 0.0
        %2371 = vmatpush2.msra.mxu0 0.0
        %2372 = vmatprep.subr.mxu0 0.0
        %2373 = vmatpush2.msra.mxu0 0.0
        %2374 = vmatprep.subr.mxu0 0.0
        %2375 = vmatpush2.msra.mxu0 0.0
        %2376 = vmatprep.subr.mxu0 0.0
        %2377 = vmatpush2.msra.mxu0 0.0
        %2378 = vmatprep.subr.mxu0 0.0
        %2379 = vmatpush2.msra.mxu0 0.0
        %2380 = vmatprep.subr.mxu0 0.0
        %2381 = vmatpush2.msra.mxu0 0.0
        %2382 = vmatprep.subr.mxu0 0.0
        %2383 = vmatpush2.msra.mxu0 0.0
        %2384 = vmatprep.subr.mxu0 0.0
        %2385 = vmatpush2.msra.mxu0 0.0
        %2386 = vmatprep.subr.mxu0 0.0
        %2387 = vmatpush2.msra.mxu0 0.0
        %2388 = vmatprep.subr.mxu0 0.0
        %2389 = vmatpush2.msra.mxu0 0.0
        %2390 = vmatprep.subr.mxu0 0.0
        %2391 = vmatpush2.msra.mxu0 0.0
        %2392 = vmatprep.subr.mxu0 0.0
        %2393 = vmatpush2.msra.mxu0 0.0
        %2394 = vmatprep.subr.mxu0 0.0
        %2395 = vmatpush2.msra.mxu0 0.0
        %2396 = vmatprep.subr.mxu0 0.0
        %2397 = vmatpush2.msra.mxu0 0.0
        %2398 = vmatprep.subr.mxu0 0.0
        %2399 = vmatpush2.msra.mxu0 0.0
        %2400 = vmatprep.subr.mxu0 0.0
        %2401 = vmatpush2.msra.mxu0 0.0
        %2402 = vmatprep.mubr.f32.mxu0 0.0
        %v2403 = vand.u32 %v1365, 4294901760
        %2404 = vmatmul.mubr.f32.gmra.mxu0 %v2403
        %v2405 = vpop.f32.mrf.mxu0
        %v2406 = vadd.f32 %v2214, %v2405
        %v2407 = vpop.f32.mrf.mxu0
        %v2408 = vadd.f32 %v2216, %v2407
        %2409 = vdwg.mxu0
        %2410 = vmatprep.subr.mxu0 0.0
        %2411 = vmatpush1.msra.mxu0 0.0
        %2412 = vmatprep.subr.mxu0 0.0
        %2413 = vmatpush1.msra.mxu0 0.0
        %2414 = vmatprep.subr.mxu0 0.0
        %2415 = vmatpush1.msra.mxu0 0.0
        %2416 = vmatprep.subr.mxu0 0.0
        %2417 = vmatpush1.msra.mxu0 0.0
        %v2418 = vand.u32 %v1357, 4294901760
        %v2419 = vsub.f32 %v1357, %v2418
        %2420 = vmatprep.subr.mxu0 %v2419
        %v2421 = vand.u32 %v1356, 4294901760
        %v2422 = vsub.f32 %v1356, %v2421
        %2423 = vmatpush1.msra.mxu0 %v2422
        %v2424 = vand.u32 %v1353, 4294901760
        %v2425 = vsub.f32 %v1353, %v2424
        %2426 = vmatprep.subr.mxu0 %v2425
        %v2427 = vand.u32 %v1352, 4294901760
        %v2428 = vsub.f32 %v1352, %v2427
        %2429 = vmatpush1.msra.mxu0 %v2428
        %v2430 = vand.u32 %v1349, 4294901760
        %v2431 = vsub.f32 %v1349, %v2430
        %2432 = vmatprep.subr.mxu0 %v2431
        %v2433 = vand.u32 %v1348, 4294901760
        %v2434 = vsub.f32 %v1348, %v2433
        %2435 = vmatpush1.msra.mxu0 %v2434
        %v2436 = vand.u32 %v1345, 4294901760
        %v2437 = vsub.f32 %v1345, %v2436
        %2438 = vmatprep.subr.mxu0 %v2437
        %v2439 = vand.u32 %v1344, 4294901760
        %v2440 = vsub.f32 %v1344, %v2439
        %2441 = vmatpush1.msra.mxu0 %v2440
        %v2442 = vand.u32 %v1341, 4294901760
        %v2443 = vsub.f32 %v1341, %v2442
        %2444 = vmatprep.subr.mxu0 %v2443
        %v2445 = vand.u32 %v1340, 4294901760
        %v2446 = vsub.f32 %v1340, %v2445
        %2447 = vmatpush1.msra.mxu0 %v2446
        %v2448 = vand.u32 %v1337, 4294901760
        %v2449 = vsub.f32 %v1337, %v2448
        %2450 = vmatprep.subr.mxu0 %v2449
        %v2451 = vand.u32 %v1336, 4294901760
        %v2452 = vsub.f32 %v1336, %v2451
        %2453 = vmatpush1.msra.mxu0 %v2452
        %v2454 = vand.u32 %v1333, 4294901760
        %v2455 = vsub.f32 %v1333, %v2454
        %2456 = vmatprep.subr.mxu0 %v2455
        %v2457 = vand.u32 %v1332, 4294901760
        %v2458 = vsub.f32 %v1332, %v2457
        %2459 = vmatpush1.msra.mxu0 %v2458
        %v2460 = vand.u32 %v1329, 4294901760
        %v2461 = vsub.f32 %v1329, %v2460
        %2462 = vmatprep.subr.mxu0 %v2461
        %v2463 = vand.u32 %v1328, 4294901760
        %v2464 = vsub.f32 %v1328, %v2463
        %2465 = vmatpush1.msra.mxu0 %v2464
        %v2466 = vand.u32 %v1325, 4294901760
        %v2467 = vsub.f32 %v1325, %v2466
        %2468 = vmatprep.subr.mxu0 %v2467
        %v2469 = vand.u32 %v1324, 4294901760
        %v2470 = vsub.f32 %v1324, %v2469
        %2471 = vmatpush1.msra.mxu0 %v2470
        %v2472 = vand.u32 %v1321, 4294901760
        %v2473 = vsub.f32 %v1321, %v2472
        %2474 = vmatprep.subr.mxu0 %v2473
        %v2475 = vand.u32 %v1320, 4294901760
        %v2476 = vsub.f32 %v1320, %v2475
        %2477 = vmatpush1.msra.mxu0 %v2476
        %v2478 = vand.u32 %v1317, 4294901760
        %v2479 = vsub.f32 %v1317, %v2478
        %2480 = vmatprep.subr.mxu0 %v2479
        %v2481 = vand.u32 %v1316, 4294901760
        %v2482 = vsub.f32 %v1316, %v2481
        %2483 = vmatpush1.msra.mxu0 %v2482
        %v2484 = vand.u32 %v1313, 4294901760
        %v2485 = vsub.f32 %v1313, %v2484
        %2486 = vmatprep.subr.mxu0 %v2485
        %v2487 = vand.u32 %v1312, 4294901760
        %v2488 = vsub.f32 %v1312, %v2487
        %2489 = vmatpush1.msra.mxu0 %v2488
        %2490 = vmatprep.subr.mxu0 0.0
        %2491 = vmatpush2.msra.mxu0 0.0
        %2492 = vmatprep.subr.mxu0 0.0
        %2493 = vmatpush2.msra.mxu0 0.0
        %2494 = vmatprep.subr.mxu0 0.0
        %2495 = vmatpush2.msra.mxu0 0.0
        %2496 = vmatprep.subr.mxu0 0.0
        %2497 = vmatpush2.msra.mxu0 0.0
        %2498 = vmatprep.subr.mxu0 0.0
        %2499 = vmatpush2.msra.mxu0 0.0
        %2500 = vmatprep.subr.mxu0 0.0
        %2501 = vmatpush2.msra.mxu0 0.0
        %2502 = vmatprep.subr.mxu0 0.0
        %2503 = vmatpush2.msra.mxu0 0.0
        %2504 = vmatprep.subr.mxu0 0.0
        %2505 = vmatpush2.msra.mxu0 0.0
        %2506 = vmatprep.subr.mxu0 0.0
        %2507 = vmatpush2.msra.mxu0 0.0
        %2508 = vmatprep.subr.mxu0 0.0
        %2509 = vmatpush2.msra.mxu0 0.0
        %2510 = vmatprep.subr.mxu0 0.0
        %2511 = vmatpush2.msra.mxu0 0.0
        %2512 = vmatprep.subr.mxu0 0.0
        %2513 = vmatpush2.msra.mxu0 0.0
        %2514 = vmatprep.subr.mxu0 0.0
        %2515 = vmatpush2.msra.mxu0 0.0
        %2516 = vmatprep.subr.mxu0 0.0
        %2517 = vmatpush2.msra.mxu0 0.0
        %2518 = vmatprep.subr.mxu0 0.0
        %2519 = vmatpush2.msra.mxu0 0.0
        %2520 = vmatprep.subr.mxu0 0.0
        %2521 = vmatpush2.msra.mxu0 0.0
        %2522 = vmatprep.mubr.f32.mxu0 0.0
        %v2523 = vand.u32 %v1365, 4294901760
        %v2524 = vsub.f32 %v1365, %v2523
        %2525 = vmatmul.mubr.f32.gmra.mxu0 %v2524
        %v2526 = vpop.f32.mrf.mxu0
        %v2527 = vadd.f32 %v2406, %v2526
        %v2528 = vpop.f32.mrf.mxu0
        %v2529 = vadd.f32 %v2408, %v2528
        %2530 = vdwg.mxu0
        %2531 = vmatprep.subr.mxu0 0.0
        %2532 = vmatpush1.msra.mxu0 0.0
        %2533 = vmatprep.subr.mxu0 0.0
        %2534 = vmatpush1.msra.mxu0 0.0
        %2535 = vmatprep.subr.mxu0 0.0
        %2536 = vmatpush1.msra.mxu0 0.0
        %2537 = vmatprep.subr.mxu0 0.0
        %2538 = vmatpush1.msra.mxu0 0.0
        %v2539 = vand.u32 %v1357, 4294901760
        %2540 = vmatprep.subr.mxu0 %v2539
        %v2541 = vand.u32 %v1356, 4294901760
        %2542 = vmatpush1.msra.mxu0 %v2541
        %v2543 = vand.u32 %v1353, 4294901760
        %2544 = vmatprep.subr.mxu0 %v2543
        %v2545 = vand.u32 %v1352, 4294901760
        %2546 = vmatpush1.msra.mxu0 %v2545
        %v2547 = vand.u32 %v1349, 4294901760
        %2548 = vmatprep.subr.mxu0 %v2547
        %v2549 = vand.u32 %v1348, 4294901760
        %2550 = vmatpush1.msra.mxu0 %v2549
        %v2551 = vand.u32 %v1345, 4294901760
        %2552 = vmatprep.subr.mxu0 %v2551
        %v2553 = vand.u32 %v1344, 4294901760
        %2554 = vmatpush1.msra.mxu0 %v2553
        %v2555 = vand.u32 %v1341, 4294901760
        %2556 = vmatprep.subr.mxu0 %v2555
        %v2557 = vand.u32 %v1340, 4294901760
        %2558 = vmatpush1.msra.mxu0 %v2557
        %v2559 = vand.u32 %v1337, 4294901760
        %2560 = vmatprep.subr.mxu0 %v2559
        %v2561 = vand.u32 %v1336, 4294901760
        %2562 = vmatpush1.msra.mxu0 %v2561
        %v2563 = vand.u32 %v1333, 4294901760
        %2564 = vmatprep.subr.mxu0 %v2563
        %v2565 = vand.u32 %v1332, 4294901760
        %2566 = vmatpush1.msra.mxu0 %v2565
        %v2567 = vand.u32 %v1329, 4294901760
        %2568 = vmatprep.subr.mxu0 %v2567
        %v2569 = vand.u32 %v1328, 4294901760
        %2570 = vmatpush1.msra.mxu0 %v2569
        %v2571 = vand.u32 %v1325, 4294901760
        %2572 = vmatprep.subr.mxu0 %v2571
        %v2573 = vand.u32 %v1324, 4294901760
        %2574 = vmatpush1.msra.mxu0 %v2573
        %v2575 = vand.u32 %v1321, 4294901760
        %2576 = vmatprep.subr.mxu0 %v2575
        %v2577 = vand.u32 %v1320, 4294901760
        %2578 = vmatpush1.msra.mxu0 %v2577
        %v2579 = vand.u32 %v1317, 4294901760
        %2580 = vmatprep.subr.mxu0 %v2579
        %v2581 = vand.u32 %v1316, 4294901760
        %2582 = vmatpush1.msra.mxu0 %v2581
        %v2583 = vand.u32 %v1313, 4294901760
        %2584 = vmatprep.subr.mxu0 %v2583
        %v2585 = vand.u32 %v1312, 4294901760
        %2586 = vmatpush1.msra.mxu0 %v2585
        %2587 = vmatprep.subr.mxu0 0.0
        %2588 = vmatpush2.msra.mxu0 0.0
        %2589 = vmatprep.subr.mxu0 0.0
        %2590 = vmatpush2.msra.mxu0 0.0
        %2591 = vmatprep.subr.mxu0 0.0
        %2592 = vmatpush2.msra.mxu0 0.0
        %2593 = vmatprep.subr.mxu0 0.0
        %2594 = vmatpush2.msra.mxu0 0.0
        %2595 = vmatprep.subr.mxu0 0.0
        %2596 = vmatpush2.msra.mxu0 0.0
        %2597 = vmatprep.subr.mxu0 0.0
        %2598 = vmatpush2.msra.mxu0 0.0
        %2599 = vmatprep.subr.mxu0 0.0
        %2600 = vmatpush2.msra.mxu0 0.0
        %2601 = vmatprep.subr.mxu0 0.0
        %2602 = vmatpush2.msra.mxu0 0.0
        %2603 = vmatprep.subr.mxu0 0.0
        %2604 = vmatpush2.msra.mxu0 0.0
        %2605 = vmatprep.subr.mxu0 0.0
        %2606 = vmatpush2.msra.mxu0 0.0
        %2607 = vmatprep.subr.mxu0 0.0
        %2608 = vmatpush2.msra.mxu0 0.0
        %2609 = vmatprep.subr.mxu0 0.0
        %2610 = vmatpush2.msra.mxu0 0.0
        %2611 = vmatprep.subr.mxu0 0.0
        %2612 = vmatpush2.msra.mxu0 0.0
        %2613 = vmatprep.subr.mxu0 0.0
        %2614 = vmatpush2.msra.mxu0 0.0
        %2615 = vmatprep.subr.mxu0 0.0
        %2616 = vmatpush2.msra.mxu0 0.0
        %2617 = vmatprep.subr.mxu0 0.0
        %2618 = vmatpush2.msra.mxu0 0.0
        %2619 = vmatprep.mubr.f32.mxu0 0.0
        %v2620 = vand.u32 %v1365, 4294901760
        %v2621 = vsub.f32 %v1365, %v2620
        %v2622 = vand.u32 %v2621, 4294901760
        %2623 = vmatmul.mubr.f32.gmra.mxu0 %v2622
        %v2624 = vpop.f32.mrf.mxu0
        %v2625 = vadd.f32 %v2527, %v2624
        %v2626 = vpop.f32.mrf.mxu0
        %v2627 = vadd.f32 %v2529, %v2626
        %2628 = vdwg.mxu0
        %2629 = vmatprep.subr.mxu0 0.0
        %2630 = vmatpush1.msra.mxu0 0.0
        %2631 = vmatprep.subr.mxu0 0.0
        %2632 = vmatpush1.msra.mxu0 0.0
        %2633 = vmatprep.subr.mxu0 0.0
        %2634 = vmatpush1.msra.mxu0 0.0
        %2635 = vmatprep.subr.mxu0 0.0
        %2636 = vmatpush1.msra.mxu0 0.0
        %v2637 = vand.u32 %v1357, 4294901760
        %v2638 = vsub.f32 %v1357, %v2637
        %v2639 = vand.u32 %v2638, 4294901760
        %2640 = vmatprep.subr.mxu0 %v2639
        %v2641 = vand.u32 %v1356, 4294901760
        %v2642 = vsub.f32 %v1356, %v2641
        %v2643 = vand.u32 %v2642, 4294901760
        %2644 = vmatpush1.msra.mxu0 %v2643
        %v2645 = vand.u32 %v1353, 4294901760
        %v2646 = vsub.f32 %v1353, %v2645
        %v2647 = vand.u32 %v2646, 4294901760
        %2648 = vmatprep.subr.mxu0 %v2647
        %v2649 = vand.u32 %v1352, 4294901760
        %v2650 = vsub.f32 %v1352, %v2649
        %v2651 = vand.u32 %v2650, 4294901760
        %2652 = vmatpush1.msra.mxu0 %v2651
        %v2653 = vand.u32 %v1349, 4294901760
        %v2654 = vsub.f32 %v1349, %v2653
        %v2655 = vand.u32 %v2654, 4294901760
        %2656 = vmatprep.subr.mxu0 %v2655
        %v2657 = vand.u32 %v1348, 4294901760
        %v2658 = vsub.f32 %v1348, %v2657
        %v2659 = vand.u32 %v2658, 4294901760
        %2660 = vmatpush1.msra.mxu0 %v2659
        %v2661 = vand.u32 %v1345, 4294901760
        %v2662 = vsub.f32 %v1345, %v2661
        %v2663 = vand.u32 %v2662, 4294901760
        %2664 = vmatprep.subr.mxu0 %v2663
        %v2665 = vand.u32 %v1344, 4294901760
        %v2666 = vsub.f32 %v1344, %v2665
        %v2667 = vand.u32 %v2666, 4294901760
        %2668 = vmatpush1.msra.mxu0 %v2667
        %v2669 = vand.u32 %v1341, 4294901760
        %v2670 = vsub.f32 %v1341, %v2669
        %v2671 = vand.u32 %v2670, 4294901760
        %2672 = vmatprep.subr.mxu0 %v2671
        %v2673 = vand.u32 %v1340, 4294901760
        %v2674 = vsub.f32 %v1340, %v2673
        %v2675 = vand.u32 %v2674, 4294901760
        %2676 = vmatpush1.msra.mxu0 %v2675
        %v2677 = vand.u32 %v1337, 4294901760
        %v2678 = vsub.f32 %v1337, %v2677
        %v2679 = vand.u32 %v2678, 4294901760
        %2680 = vmatprep.subr.mxu0 %v2679
        %v2681 = vand.u32 %v1336, 4294901760
        %v2682 = vsub.f32 %v1336, %v2681
        %v2683 = vand.u32 %v2682, 4294901760
        %2684 = vmatpush1.msra.mxu0 %v2683
        %v2685 = vand.u32 %v1333, 4294901760
        %v2686 = vsub.f32 %v1333, %v2685
        %v2687 = vand.u32 %v2686, 4294901760
        %2688 = vmatprep.subr.mxu0 %v2687
        %v2689 = vand.u32 %v1332, 4294901760
        %v2690 = vsub.f32 %v1332, %v2689
        %v2691 = vand.u32 %v2690, 4294901760
        %2692 = vmatpush1.msra.mxu0 %v2691
        %v2693 = vand.u32 %v1329, 4294901760
        %v2694 = vsub.f32 %v1329, %v2693
        %v2695 = vand.u32 %v2694, 4294901760
        %2696 = vmatprep.subr.mxu0 %v2695
        %v2697 = vand.u32 %v1328, 4294901760
        %v2698 = vsub.f32 %v1328, %v2697
        %v2699 = vand.u32 %v2698, 4294901760
        %2700 = vmatpush1.msra.mxu0 %v2699
        %v2701 = vand.u32 %v1325, 4294901760
        %v2702 = vsub.f32 %v1325, %v2701
        %v2703 = vand.u32 %v2702, 4294901760
        %2704 = vmatprep.subr.mxu0 %v2703
        %v2705 = vand.u32 %v1324, 4294901760
        %v2706 = vsub.f32 %v1324, %v2705
        %v2707 = vand.u32 %v2706, 4294901760
        %2708 = vmatpush1.msra.mxu0 %v2707
        %v2709 = vand.u32 %v1321, 4294901760
        %v2710 = vsub.f32 %v1321, %v2709
        %v2711 = vand.u32 %v2710, 4294901760
        %2712 = vmatprep.subr.mxu0 %v2711
        %v2713 = vand.u32 %v1320, 4294901760
        %v2714 = vsub.f32 %v1320, %v2713
        %v2715 = vand.u32 %v2714, 4294901760
        %2716 = vmatpush1.msra.mxu0 %v2715
        %v2717 = vand.u32 %v1317, 4294901760
        %v2718 = vsub.f32 %v1317, %v2717
        %v2719 = vand.u32 %v2718, 4294901760
        %2720 = vmatprep.subr.mxu0 %v2719
        %v2721 = vand.u32 %v1316, 4294901760
        %v2722 = vsub.f32 %v1316, %v2721
        %v2723 = vand.u32 %v2722, 4294901760
        %2724 = vmatpush1.msra.mxu0 %v2723
        %v2725 = vand.u32 %v1313, 4294901760
        %v2726 = vsub.f32 %v1313, %v2725
        %v2727 = vand.u32 %v2726, 4294901760
        %2728 = vmatprep.subr.mxu0 %v2727
        %v2729 = vand.u32 %v1312, 4294901760
        %v2730 = vsub.f32 %v1312, %v2729
        %v2731 = vand.u32 %v2730, 4294901760
        %2732 = vmatpush1.msra.mxu0 %v2731
        %2733 = vmatprep.subr.mxu0 0.0
        %2734 = vmatpush2.msra.mxu0 0.0
        %2735 = vmatprep.subr.mxu0 0.0
        %2736 = vmatpush2.msra.mxu0 0.0
        %2737 = vmatprep.subr.mxu0 0.0
        %2738 = vmatpush2.msra.mxu0 0.0
        %2739 = vmatprep.subr.mxu0 0.0
        %2740 = vmatpush2.msra.mxu0 0.0
        %2741 = vmatprep.subr.mxu0 0.0
        %2742 = vmatpush2.msra.mxu0 0.0
        %2743 = vmatprep.subr.mxu0 0.0
        %2744 = vmatpush2.msra.mxu0 0.0
        %2745 = vmatprep.subr.mxu0 0.0
        %2746 = vmatpush2.msra.mxu0 0.0
        %2747 = vmatprep.subr.mxu0 0.0
        %2748 = vmatpush2.msra.mxu0 0.0
        %2749 = vmatprep.subr.mxu0 0.0
        %2750 = vmatpush2.msra.mxu0 0.0
        %2751 = vmatprep.subr.mxu0 0.0
        %2752 = vmatpush2.msra.mxu0 0.0
        %2753 = vmatprep.subr.mxu0 0.0
        %2754 = vmatpush2.msra.mxu0 0.0
        %2755 = vmatprep.subr.mxu0 0.0
        %2756 = vmatpush2.msra.mxu0 0.0
        %2757 = vmatprep.subr.mxu0 0.0
        %2758 = vmatpush2.msra.mxu0 0.0
        %2759 = vmatprep.subr.mxu0 0.0
        %2760 = vmatpush2.msra.mxu0 0.0
        %2761 = vmatprep.subr.mxu0 0.0
        %2762 = vmatpush2.msra.mxu0 0.0
        %2763 = vmatprep.subr.mxu0 0.0
        %2764 = vmatpush2.msra.mxu0 0.0
        %2765 = vmatprep.mubr.f32.mxu0 0.0
        %v2766 = vand.u32 %v1365, 4294901760
        %2767 = vmatmul.mubr.f32.gmra.mxu0 %v2766
        %v2768 = vpop.f32.mrf.mxu0
        %v2769 = vadd.f32 %v2625, %v2768
        %v2770 = vpop.f32.mrf.mxu0
        %v2771 = vadd.f32 %v2627, %v2770
        %2772 = vdwg.mxu0
        %2773 = vmatprep.subr.mxu0 0.0
        %2774 = vmatpush1.msra.mxu0 0.0
        %2775 = vmatprep.subr.mxu0 0.0
        %2776 = vmatpush1.msra.mxu0 0.0
        %2777 = vmatprep.subr.mxu0 0.0
        %2778 = vmatpush1.msra.mxu0 0.0
        %2779 = vmatprep.subr.mxu0 0.0
        %2780 = vmatpush1.msra.mxu0 0.0
        %v2781 = vand.u32 %v1357, 4294901760
        %2782 = vmatprep.subr.mxu0 %v2781
        %v2783 = vand.u32 %v1356, 4294901760
        %2784 = vmatpush1.msra.mxu0 %v2783
        %v2785 = vand.u32 %v1353, 4294901760
        %2786 = vmatprep.subr.mxu0 %v2785
        %v2787 = vand.u32 %v1352, 4294901760
        %2788 = vmatpush1.msra.mxu0 %v2787
        %v2789 = vand.u32 %v1349, 4294901760
        %2790 = vmatprep.subr.mxu0 %v2789
        %v2791 = vand.u32 %v1348, 4294901760
        %2792 = vmatpush1.msra.mxu0 %v2791
        %v2793 = vand.u32 %v1345, 4294901760
        %2794 = vmatprep.subr.mxu0 %v2793
        %v2795 = vand.u32 %v1344, 4294901760
        %2796 = vmatpush1.msra.mxu0 %v2795
        %v2797 = vand.u32 %v1341, 4294901760
        %2798 = vmatprep.subr.mxu0 %v2797
        %v2799 = vand.u32 %v1340, 4294901760
        %2800 = vmatpush1.msra.mxu0 %v2799
        %v2801 = vand.u32 %v1337, 4294901760
        %2802 = vmatprep.subr.mxu0 %v2801
        %v2803 = vand.u32 %v1336, 4294901760
        %2804 = vmatpush1.msra.mxu0 %v2803
        %v2805 = vand.u32 %v1333, 4294901760
        %2806 = vmatprep.subr.mxu0 %v2805
        %v2807 = vand.u32 %v1332, 4294901760
        %2808 = vmatpush1.msra.mxu0 %v2807
        %v2809 = vand.u32 %v1329, 4294901760
        %2810 = vmatprep.subr.mxu0 %v2809
        %v2811 = vand.u32 %v1328, 4294901760
        %2812 = vmatpush1.msra.mxu0 %v2811
        %v2813 = vand.u32 %v1325, 4294901760
        %2814 = vmatprep.subr.mxu0 %v2813
        %v2815 = vand.u32 %v1324, 4294901760
        %2816 = vmatpush1.msra.mxu0 %v2815
        %v2817 = vand.u32 %v1321, 4294901760
        %2818 = vmatprep.subr.mxu0 %v2817
        %v2819 = vand.u32 %v1320, 4294901760
        %2820 = vmatpush1.msra.mxu0 %v2819
        %v2821 = vand.u32 %v1317, 4294901760
        %2822 = vmatprep.subr.mxu0 %v2821
        %v2823 = vand.u32 %v1316, 4294901760
        %2824 = vmatpush1.msra.mxu0 %v2823
        %v2825 = vand.u32 %v1313, 4294901760
        %2826 = vmatprep.subr.mxu0 %v2825
        %v2827 = vand.u32 %v1312, 4294901760
        %2828 = vmatpush1.msra.mxu0 %v2827
        %2829 = vmatprep.subr.mxu0 0.0
        %2830 = vmatpush2.msra.mxu0 0.0
        %2831 = vmatprep.subr.mxu0 0.0
        %2832 = vmatpush2.msra.mxu0 0.0
        %2833 = vmatprep.subr.mxu0 0.0
        %2834 = vmatpush2.msra.mxu0 0.0
        %2835 = vmatprep.subr.mxu0 0.0
        %2836 = vmatpush2.msra.mxu0 0.0
        %2837 = vmatprep.subr.mxu0 0.0
        %2838 = vmatpush2.msra.mxu0 0.0
        %2839 = vmatprep.subr.mxu0 0.0
        %2840 = vmatpush2.msra.mxu0 0.0
        %2841 = vmatprep.subr.mxu0 0.0
        %2842 = vmatpush2.msra.mxu0 0.0
        %2843 = vmatprep.subr.mxu0 0.0
        %2844 = vmatpush2.msra.mxu0 0.0
        %2845 = vmatprep.subr.mxu0 0.0
        %2846 = vmatpush2.msra.mxu0 0.0
        %2847 = vmatprep.subr.mxu0 0.0
        %2848 = vmatpush2.msra.mxu0 0.0
        %2849 = vmatprep.subr.mxu0 0.0
        %2850 = vmatpush2.msra.mxu0 0.0
        %2851 = vmatprep.subr.mxu0 0.0
        %2852 = vmatpush2.msra.mxu0 0.0
        %2853 = vmatprep.subr.mxu0 0.0
        %2854 = vmatpush2.msra.mxu0 0.0
        %2855 = vmatprep.subr.mxu0 0.0
        %2856 = vmatpush2.msra.mxu0 0.0
        %2857 = vmatprep.subr.mxu0 0.0
        %2858 = vmatpush2.msra.mxu0 0.0
        %2859 = vmatprep.subr.mxu0 0.0
        %2860 = vmatpush2.msra.mxu0 0.0
        %2861 = vmatprep.mubr.f32.mxu0 0.0
        %v2862 = vand.u32 %v1365, 4294901760
        %2863 = vmatmul.mubr.f32.gmra.mxu0 %v2862
        %v2864 = vpop.f32.mrf.mxu0
        %v2865 = vadd.f32 %v2769, %v2864
        %v2866 = vpop.f32.mrf.mxu0
        %v2867 = vadd.f32 %v2771, %v2866
        %2868 = vdwg.mxu0
        %v2869 = vsel %vm1364, %v1259, 0
        %2871 = vmatprep.subr.mxu0 0.0
        %2872 = vmatpush1.msra.mxu0 0.0
        %2873 = vmatprep.subr.mxu0 0.0
        %2874 = vmatpush1.msra.mxu0 0.0
        %2875 = vmatprep.subr.mxu0 0.0
        %2876 = vmatpush1.msra.mxu0 0.0
        %2877 = vmatprep.subr.mxu0 0.0
        %2878 = vmatpush1.msra.mxu0 0.0
        %v2879 = vand.u32 %v1306, 4294901760
        %2880 = vmatprep.subr.mxu0 %v2879
        %v2881 = vand.u32 %v1305, 4294901760
        %2882 = vmatpush1.msra.mxu0 %v2881
        %v2883 = vand.u32 %v1302, 4294901760
        %2884 = vmatprep.subr.mxu0 %v2883
        %v2885 = vand.u32 %v1301, 4294901760
        %2886 = vmatpush1.msra.mxu0 %v2885
        %v2887 = vand.u32 %v1298, 4294901760
        %2888 = vmatprep.subr.mxu0 %v2887
        %v2889 = vand.u32 %v1297, 4294901760
        %2890 = vmatpush1.msra.mxu0 %v2889
        %v2891 = vand.u32 %v1294, 4294901760
        %2892 = vmatprep.subr.mxu0 %v2891
        %v2893 = vand.u32 %v1293, 4294901760
        %2894 = vmatpush1.msra.mxu0 %v2893
        %v2895 = vand.u32 %v1290, 4294901760
        %2896 = vmatprep.subr.mxu0 %v2895
        %v2897 = vand.u32 %v1289, 4294901760
        %2898 = vmatpush1.msra.mxu0 %v2897
        %v2899 = vand.u32 %v1286, 4294901760
        %2900 = vmatprep.subr.mxu0 %v2899
        %v2901 = vand.u32 %v1285, 4294901760
        %2902 = vmatpush1.msra.mxu0 %v2901
        %v2903 = vand.u32 %v1282, 4294901760
        %2904 = vmatprep.subr.mxu0 %v2903
        %v2905 = vand.u32 %v1281, 4294901760
        %2906 = vmatpush1.msra.mxu0 %v2905
        %v2907 = vand.u32 %v1278, 4294901760
        %2908 = vmatprep.subr.mxu0 %v2907
        %v2909 = vand.u32 %v1277, 4294901760
        %2910 = vmatpush1.msra.mxu0 %v2909
        %v2911 = vand.u32 %v1274, 4294901760
        %2912 = vmatprep.subr.mxu0 %v2911
        %v2913 = vand.u32 %v1273, 4294901760
        %2914 = vmatpush1.msra.mxu0 %v2913
        %v2915 = vand.u32 %v1270, 4294901760
        %2916 = vmatprep.subr.mxu0 %v2915
        %v2917 = vand.u32 %v1269, 4294901760
        %2918 = vmatpush1.msra.mxu0 %v2917
        %v2919 = vand.u32 %v1266, 4294901760
        %2920 = vmatprep.subr.mxu0 %v2919
        %v2921 = vand.u32 %v1265, 4294901760
        %2922 = vmatpush1.msra.mxu0 %v2921
        %v2923 = vand.u32 %v1262, 4294901760
        %2924 = vmatprep.subr.mxu0 %v2923
        %v2925 = vand.u32 %v1261, 4294901760
        %2926 = vmatpush1.msra.mxu0 %v2925
        %2927 = vmatprep.subr.mxu0 0.0
        %2928 = vmatpush2.msra.mxu0 0.0
        %2929 = vmatprep.subr.mxu0 0.0
        %2930 = vmatpush2.msra.mxu0 0.0
        %2931 = vmatprep.subr.mxu0 0.0
        %2932 = vmatpush2.msra.mxu0 0.0
        %2933 = vmatprep.subr.mxu0 0.0
        %2934 = vmatpush2.msra.mxu0 0.0
        %2935 = vmatprep.subr.mxu0 0.0
        %2936 = vmatpush2.msra.mxu0 0.0
        %2937 = vmatprep.subr.mxu0 0.0
        %2938 = vmatpush2.msra.mxu0 0.0
        %2939 = vmatprep.subr.mxu0 0.0
        %2940 = vmatpush2.msra.mxu0 0.0
        %2941 = vmatprep.subr.mxu0 0.0
        %2942 = vmatpush2.msra.mxu0 0.0
        %2943 = vmatprep.subr.mxu0 0.0
        %2944 = vmatpush2.msra.mxu0 0.0
        %2945 = vmatprep.subr.mxu0 0.0
        %2946 = vmatpush2.msra.mxu0 0.0
        %2947 = vmatprep.subr.mxu0 0.0
        %2948 = vmatpush2.msra.mxu0 0.0
        %2949 = vmatprep.subr.mxu0 0.0
        %2950 = vmatpush2.msra.mxu0 0.0
        %2951 = vmatprep.subr.mxu0 0.0
        %2952 = vmatpush2.msra.mxu0 0.0
        %2953 = vmatprep.subr.mxu0 0.0
        %2954 = vmatpush2.msra.mxu0 0.0
        %2955 = vmatprep.subr.mxu0 0.0
        %2956 = vmatpush2.msra.mxu0 0.0
        %2957 = vmatprep.subr.mxu0 0.0
        %2958 = vmatpush2.msra.mxu0 0.0
        %2959 = vmatprep.mubr.f32.mxu0 0.0
        %v2960 = vand.u32 %v2869, 4294901760
        %v2961 = vsub.f32 %v2869, %v2960
        %v2962 = vand.u32 %v2961, 4294901760
        %v2963 = vsub.f32 %v2961, %v2962
        %v2964 = vand.u32 %v2963, 4294901760
        %2965 = vmatmul.mubr.f32.gmra.mxu0 %v2964
        %v2966 = vpop.f32.mrf.mxu0
        %v2967 = vadd.f32 %v2114, %v2966
        %v2968 = vpop.f32.mrf.mxu0
        %v2969 = vadd.f32 %v2116, %v2968
        %2970 = vdwg.mxu0
        %2971 = vmatprep.subr.mxu0 0.0
        %2972 = vmatpush1.msra.mxu0 0.0
        %2973 = vmatprep.subr.mxu0 0.0
        %2974 = vmatpush1.msra.mxu0 0.0
        %2975 = vmatprep.subr.mxu0 0.0
        %2976 = vmatpush1.msra.mxu0 0.0
        %2977 = vmatprep.subr.mxu0 0.0
        %2978 = vmatpush1.msra.mxu0 0.0
        %v2979 = vand.u32 %v1306, 4294901760
        %v2980 = vsub.f32 %v1306, %v2979
        %v2981 = vand.u32 %v2980, 4294901760
        %v2982 = vsub.f32 %v2980, %v2981
        %v2983 = vand.u32 %v2982, 4294901760
        %2984 = vmatprep.subr.mxu0 %v2983
        %v2985 = vand.u32 %v1305, 4294901760
        %v2986 = vsub.f32 %v1305, %v2985
        %v2987 = vand.u32 %v2986, 4294901760
        %v2988 = vsub.f32 %v2986, %v2987
        %v2989 = vand.u32 %v2988, 4294901760
        %2990 = vmatpush1.msra.mxu0 %v2989
        %v2991 = vand.u32 %v1302, 4294901760
        %v2992 = vsub.f32 %v1302, %v2991
        %v2993 = vand.u32 %v2992, 4294901760
        %v2994 = vsub.f32 %v2992, %v2993
        %v2995 = vand.u32 %v2994, 4294901760
        %2996 = vmatprep.subr.mxu0 %v2995
        %v2997 = vand.u32 %v1301, 4294901760
        %v2998 = vsub.f32 %v1301, %v2997
        %v2999 = vand.u32 %v2998, 4294901760
        %v3000 = vsub.f32 %v2998, %v2999
        %v3001 = vand.u32 %v3000, 4294901760
        %3002 = vmatpush1.msra.mxu0 %v3001
        %v3003 = vand.u32 %v1298, 4294901760
        %v3004 = vsub.f32 %v1298, %v3003
        %v3005 = vand.u32 %v3004, 4294901760
        %v3006 = vsub.f32 %v3004, %v3005
        %v3007 = vand.u32 %v3006, 4294901760
        %3008 = vmatprep.subr.mxu0 %v3007
        %v3009 = vand.u32 %v1297, 4294901760
        %v3010 = vsub.f32 %v1297, %v3009
        %v3011 = vand.u32 %v3010, 4294901760
        %v3012 = vsub.f32 %v3010, %v3011
        %v3013 = vand.u32 %v3012, 4294901760
        %3014 = vmatpush1.msra.mxu0 %v3013
        %v3015 = vand.u32 %v1294, 4294901760
        %v3016 = vsub.f32 %v1294, %v3015
        %v3017 = vand.u32 %v3016, 4294901760
        %v3018 = vsub.f32 %v3016, %v3017
        %v3019 = vand.u32 %v3018, 4294901760
        %3020 = vmatprep.subr.mxu0 %v3019
        %v3021 = vand.u32 %v1293, 4294901760
        %v3022 = vsub.f32 %v1293, %v3021
        %v3023 = vand.u32 %v3022, 4294901760
        %v3024 = vsub.f32 %v3022, %v3023
        %v3025 = vand.u32 %v3024, 4294901760
        %3026 = vmatpush1.msra.mxu0 %v3025
        %v3027 = vand.u32 %v1290, 4294901760
        %v3028 = vsub.f32 %v1290, %v3027
        %v3029 = vand.u32 %v3028, 4294901760
        %v3030 = vsub.f32 %v3028, %v3029
        %v3031 = vand.u32 %v3030, 4294901760
        %3032 = vmatprep.subr.mxu0 %v3031
        %v3033 = vand.u32 %v1289, 4294901760
        %v3034 = vsub.f32 %v1289, %v3033
        %v3035 = vand.u32 %v3034, 4294901760
        %v3036 = vsub.f32 %v3034, %v3035
        %v3037 = vand.u32 %v3036, 4294901760
        %3038 = vmatpush1.msra.mxu0 %v3037
        %v3039 = vand.u32 %v1286, 4294901760
        %v3040 = vsub.f32 %v1286, %v3039
        %v3041 = vand.u32 %v3040, 4294901760
        %v3042 = vsub.f32 %v3040, %v3041
        %v3043 = vand.u32 %v3042, 4294901760
        %3044 = vmatprep.subr.mxu0 %v3043
        %v3045 = vand.u32 %v1285, 4294901760
        %v3046 = vsub.f32 %v1285, %v3045
        %v3047 = vand.u32 %v3046, 4294901760
        %v3048 = vsub.f32 %v3046, %v3047
        %v3049 = vand.u32 %v3048, 4294901760
        %3050 = vmatpush1.msra.mxu0 %v3049
        %v3051 = vand.u32 %v1282, 4294901760
        %v3052 = vsub.f32 %v1282, %v3051
        %v3053 = vand.u32 %v3052, 4294901760
        %v3054 = vsub.f32 %v3052, %v3053
        %v3055 = vand.u32 %v3054, 4294901760
        %3056 = vmatprep.subr.mxu0 %v3055
        %v3057 = vand.u32 %v1281, 4294901760
        %v3058 = vsub.f32 %v1281, %v3057
        %v3059 = vand.u32 %v3058, 4294901760
        %v3060 = vsub.f32 %v3058, %v3059
        %v3061 = vand.u32 %v3060, 4294901760
        %3062 = vmatpush1.msra.mxu0 %v3061
        %v3063 = vand.u32 %v1278, 4294901760
        %v3064 = vsub.f32 %v1278, %v3063
        %v3065 = vand.u32 %v3064, 4294901760
        %v3066 = vsub.f32 %v3064, %v3065
        %v3067 = vand.u32 %v3066, 4294901760
        %3068 = vmatprep.subr.mxu0 %v3067
        %v3069 = vand.u32 %v1277, 4294901760
        %v3070 = vsub.f32 %v1277, %v3069
        %v3071 = vand.u32 %v3070, 4294901760
        %v3072 = vsub.f32 %v3070, %v3071
        %v3073 = vand.u32 %v3072, 4294901760
        %3074 = vmatpush1.msra.mxu0 %v3073
        %v3075 = vand.u32 %v1274, 4294901760
        %v3076 = vsub.f32 %v1274, %v3075
        %v3077 = vand.u32 %v3076, 4294901760
        %v3078 = vsub.f32 %v3076, %v3077
        %v3079 = vand.u32 %v3078, 4294901760
        %3080 = vmatprep.subr.mxu0 %v3079
        %v3081 = vand.u32 %v1273, 4294901760
        %v3082 = vsub.f32 %v1273, %v3081
        %v3083 = vand.u32 %v3082, 4294901760
        %v3084 = vsub.f32 %v3082, %v3083
        %v3085 = vand.u32 %v3084, 4294901760
        %3086 = vmatpush1.msra.mxu0 %v3085
        %v3087 = vand.u32 %v1270, 4294901760
        %v3088 = vsub.f32 %v1270, %v3087
        %v3089 = vand.u32 %v3088, 4294901760
        %v3090 = vsub.f32 %v3088, %v3089
        %v3091 = vand.u32 %v3090, 4294901760
        %3092 = vmatprep.subr.mxu0 %v3091
        %v3093 = vand.u32 %v1269, 4294901760
        %v3094 = vsub.f32 %v1269, %v3093
        %v3095 = vand.u32 %v3094, 4294901760
        %v3096 = vsub.f32 %v3094, %v3095
        %v3097 = vand.u32 %v3096, 4294901760
        %3098 = vmatpush1.msra.mxu0 %v3097
        %v3099 = vand.u32 %v1266, 4294901760
        %v3100 = vsub.f32 %v1266, %v3099
        %v3101 = vand.u32 %v3100, 4294901760
        %v3102 = vsub.f32 %v3100, %v3101
        %v3103 = vand.u32 %v3102, 4294901760
        %3104 = vmatprep.subr.mxu0 %v3103
        %v3105 = vand.u32 %v1265, 4294901760
        %v3106 = vsub.f32 %v1265, %v3105
        %v3107 = vand.u32 %v3106, 4294901760
        %v3108 = vsub.f32 %v3106, %v3107
        %v3109 = vand.u32 %v3108, 4294901760
        %3110 = vmatpush1.msra.mxu0 %v3109
        %v3111 = vand.u32 %v1262, 4294901760
        %v3112 = vsub.f32 %v1262, %v3111
        %v3113 = vand.u32 %v3112, 4294901760
        %v3114 = vsub.f32 %v3112, %v3113
        %v3115 = vand.u32 %v3114, 4294901760
        %3116 = vmatprep.subr.mxu0 %v3115
        %v3117 = vand.u32 %v1261, 4294901760
        %v3118 = vsub.f32 %v1261, %v3117
        %v3119 = vand.u32 %v3118, 4294901760
        %v3120 = vsub.f32 %v3118, %v3119
        %v3121 = vand.u32 %v3120, 4294901760
        %3122 = vmatpush1.msra.mxu0 %v3121
        %3123 = vmatprep.subr.mxu0 0.0
        %3124 = vmatpush2.msra.mxu0 0.0
        %3125 = vmatprep.subr.mxu0 0.0
        %3126 = vmatpush2.msra.mxu0 0.0
        %3127 = vmatprep.subr.mxu0 0.0
        %3128 = vmatpush2.msra.mxu0 0.0
        %3129 = vmatprep.subr.mxu0 0.0
        %3130 = vmatpush2.msra.mxu0 0.0
        %3131 = vmatprep.subr.mxu0 0.0
        %3132 = vmatpush2.msra.mxu0 0.0
        %3133 = vmatprep.subr.mxu0 0.0
        %3134 = vmatpush2.msra.mxu0 0.0
        %3135 = vmatprep.subr.mxu0 0.0
        %3136 = vmatpush2.msra.mxu0 0.0
        %3137 = vmatprep.subr.mxu0 0.0
        %3138 = vmatpush2.msra.mxu0 0.0
        %3139 = vmatprep.subr.mxu0 0.0
        %3140 = vmatpush2.msra.mxu0 0.0
        %3141 = vmatprep.subr.mxu0 0.0
        %3142 = vmatpush2.msra.mxu0 0.0
        %3143 = vmatprep.subr.mxu0 0.0
        %3144 = vmatpush2.msra.mxu0 0.0
        %3145 = vmatprep.subr.mxu0 0.0
        %3146 = vmatpush2.msra.mxu0 0.0
        %3147 = vmatprep.subr.mxu0 0.0
        %3148 = vmatpush2.msra.mxu0 0.0
        %3149 = vmatprep.subr.mxu0 0.0
        %3150 = vmatpush2.msra.mxu0 0.0
        %3151 = vmatprep.subr.mxu0 0.0
        %3152 = vmatpush2.msra.mxu0 0.0
        %3153 = vmatprep.subr.mxu0 0.0
        %3154 = vmatpush2.msra.mxu0 0.0
        %3155 = vmatprep.mubr.f32.mxu0 0.0
        %v3156 = vand.u32 %v2869, 4294901760
        %3157 = vmatmul.mubr.f32.gmra.mxu0 %v3156
        %v3158 = vpop.f32.mrf.mxu0
        %v3159 = vadd.f32 %v2967, %v3158
        %v3160 = vpop.f32.mrf.mxu0
        %v3161 = vadd.f32 %v2969, %v3160
        %3162 = vdwg.mxu0
        %3163 = vmatprep.subr.mxu0 0.0
        %3164 = vmatpush1.msra.mxu0 0.0
        %3165 = vmatprep.subr.mxu0 0.0
        %3166 = vmatpush1.msra.mxu0 0.0
        %3167 = vmatprep.subr.mxu0 0.0
        %3168 = vmatpush1.msra.mxu0 0.0
        %3169 = vmatprep.subr.mxu0 0.0
        %3170 = vmatpush1.msra.mxu0 0.0
        %v3171 = vand.u32 %v1306, 4294901760
        %v3172 = vsub.f32 %v1306, %v3171
        %3173 = vmatprep.subr.mxu0 %v3172
        %v3174 = vand.u32 %v1305, 4294901760
        %v3175 = vsub.f32 %v1305, %v3174
        %3176 = vmatpush1.msra.mxu0 %v3175
        %v3177 = vand.u32 %v1302, 4294901760
        %v3178 = vsub.f32 %v1302, %v3177
        %3179 = vmatprep.subr.mxu0 %v3178
        %v3180 = vand.u32 %v1301, 4294901760
        %v3181 = vsub.f32 %v1301, %v3180
        %3182 = vmatpush1.msra.mxu0 %v3181
        %v3183 = vand.u32 %v1298, 4294901760
        %v3184 = vsub.f32 %v1298, %v3183
        %3185 = vmatprep.subr.mxu0 %v3184
        %v3186 = vand.u32 %v1297, 4294901760
        %v3187 = vsub.f32 %v1297, %v3186
        %3188 = vmatpush1.msra.mxu0 %v3187
        %v3189 = vand.u32 %v1294, 4294901760
        %v3190 = vsub.f32 %v1294, %v3189
        %3191 = vmatprep.subr.mxu0 %v3190
        %v3192 = vand.u32 %v1293, 4294901760
        %v3193 = vsub.f32 %v1293, %v3192
        %3194 = vmatpush1.msra.mxu0 %v3193
        %v3195 = vand.u32 %v1290, 4294901760
        %v3196 = vsub.f32 %v1290, %v3195
        %3197 = vmatprep.subr.mxu0 %v3196
        %v3198 = vand.u32 %v1289, 4294901760
        %v3199 = vsub.f32 %v1289, %v3198
        %3200 = vmatpush1.msra.mxu0 %v3199
        %v3201 = vand.u32 %v1286, 4294901760
        %v3202 = vsub.f32 %v1286, %v3201
        %3203 = vmatprep.subr.mxu0 %v3202
        %v3204 = vand.u32 %v1285, 4294901760
        %v3205 = vsub.f32 %v1285, %v3204
        %3206 = vmatpush1.msra.mxu0 %v3205
        %v3207 = vand.u32 %v1282, 4294901760
        %v3208 = vsub.f32 %v1282, %v3207
        %3209 = vmatprep.subr.mxu0 %v3208
        %v3210 = vand.u32 %v1281, 4294901760
        %v3211 = vsub.f32 %v1281, %v3210
        %3212 = vmatpush1.msra.mxu0 %v3211
        %v3213 = vand.u32 %v1278, 4294901760
        %v3214 = vsub.f32 %v1278, %v3213
        %3215 = vmatprep.subr.mxu0 %v3214
        %v3216 = vand.u32 %v1277, 4294901760
        %v3217 = vsub.f32 %v1277, %v3216
        %3218 = vmatpush1.msra.mxu0 %v3217
        %v3219 = vand.u32 %v1274, 4294901760
        %v3220 = vsub.f32 %v1274, %v3219
        %3221 = vmatprep.subr.mxu0 %v3220
        %v3222 = vand.u32 %v1273, 4294901760
        %v3223 = vsub.f32 %v1273, %v3222
        %3224 = vmatpush1.msra.mxu0 %v3223
        %v3225 = vand.u32 %v1270, 4294901760
        %v3226 = vsub.f32 %v1270, %v3225
        %3227 = vmatprep.subr.mxu0 %v3226
        %v3228 = vand.u32 %v1269, 4294901760
        %v3229 = vsub.f32 %v1269, %v3228
        %3230 = vmatpush1.msra.mxu0 %v3229
        %v3231 = vand.u32 %v1266, 4294901760
        %v3232 = vsub.f32 %v1266, %v3231
        %3233 = vmatprep.subr.mxu0 %v3232
        %v3234 = vand.u32 %v1265, 4294901760
        %v3235 = vsub.f32 %v1265, %v3234
        %3236 = vmatpush1.msra.mxu0 %v3235
        %v3237 = vand.u32 %v1262, 4294901760
        %v3238 = vsub.f32 %v1262, %v3237
        %3239 = vmatprep.subr.mxu0 %v3238
        %v3240 = vand.u32 %v1261, 4294901760
        %v3241 = vsub.f32 %v1261, %v3240
        %3242 = vmatpush1.msra.mxu0 %v3241
        %3243 = vmatprep.subr.mxu0 0.0
        %3244 = vmatpush2.msra.mxu0 0.0
        %3245 = vmatprep.subr.mxu0 0.0
        %3246 = vmatpush2.msra.mxu0 0.0
        %3247 = vmatprep.subr.mxu0 0.0
        %3248 = vmatpush2.msra.mxu0 0.0
        %3249 = vmatprep.subr.mxu0 0.0
        %3250 = vmatpush2.msra.mxu0 0.0
        %3251 = vmatprep.subr.mxu0 0.0
        %3252 = vmatpush2.msra.mxu0 0.0
        %3253 = vmatprep.subr.mxu0 0.0
        %3254 = vmatpush2.msra.mxu0 0.0
        %3255 = vmatprep.subr.mxu0 0.0
        %3256 = vmatpush2.msra.mxu0 0.0
        %3257 = vmatprep.subr.mxu0 0.0
        %3258 = vmatpush2.msra.mxu0 0.0
        %3259 = vmatprep.subr.mxu0 0.0
        %3260 = vmatpush2.msra.mxu0 0.0
        %3261 = vmatprep.subr.mxu0 0.0
        %3262 = vmatpush2.msra.mxu0 0.0
        %3263 = vmatprep.subr.mxu0 0.0
        %3264 = vmatpush2.msra.mxu0 0.0
        %3265 = vmatprep.subr.mxu0 0.0
        %3266 = vmatpush2.msra.mxu0 0.0
        %3267 = vmatprep.subr.mxu0 0.0
        %3268 = vmatpush2.msra.mxu0 0.0
        %3269 = vmatprep.subr.mxu0 0.0
        %3270 = vmatpush2.msra.mxu0 0.0
        %3271 = vmatprep.subr.mxu0 0.0
        %3272 = vmatpush2.msra.mxu0 0.0
        %3273 = vmatprep.subr.mxu0 0.0
        %3274 = vmatpush2.msra.mxu0 0.0
        %3275 = vmatprep.mubr.f32.mxu0 0.0
        %v3276 = vand.u32 %v2869, 4294901760
        %v3277 = vsub.f32 %v2869, %v3276
        %3278 = vmatmul.mubr.f32.gmra.mxu0 %v3277
        %v3279 = vpop.f32.mrf.mxu0
        %v3280 = vadd.f32 %v3159, %v3279
        %v3281 = vpop.f32.mrf.mxu0
        %v3282 = vadd.f32 %v3161, %v3281
        %3283 = vdwg.mxu0
        %3284 = vmatprep.subr.mxu0 0.0
        %3285 = vmatpush1.msra.mxu0 0.0
        %3286 = vmatprep.subr.mxu0 0.0
        %3287 = vmatpush1.msra.mxu0 0.0
        %3288 = vmatprep.subr.mxu0 0.0
        %3289 = vmatpush1.msra.mxu0 0.0
        %3290 = vmatprep.subr.mxu0 0.0
        %3291 = vmatpush1.msra.mxu0 0.0
        %v3292 = vand.u32 %v1306, 4294901760
        %3293 = vmatprep.subr.mxu0 %v3292
        %v3294 = vand.u32 %v1305, 4294901760
        %3295 = vmatpush1.msra.mxu0 %v3294
        %v3296 = vand.u32 %v1302, 4294901760
        %3297 = vmatprep.subr.mxu0 %v3296
        %v3298 = vand.u32 %v1301, 4294901760
        %3299 = vmatpush1.msra.mxu0 %v3298
        %v3300 = vand.u32 %v1298, 4294901760
        %3301 = vmatprep.subr.mxu0 %v3300
        %v3302 = vand.u32 %v1297, 4294901760
        %3303 = vmatpush1.msra.mxu0 %v3302
        %v3304 = vand.u32 %v1294, 4294901760
        %3305 = vmatprep.subr.mxu0 %v3304
        %v3306 = vand.u32 %v1293, 4294901760
        %3307 = vmatpush1.msra.mxu0 %v3306
        %v3308 = vand.u32 %v1290, 4294901760
        %3309 = vmatprep.subr.mxu0 %v3308
        %v3310 = vand.u32 %v1289, 4294901760
        %3311 = vmatpush1.msra.mxu0 %v3310
        %v3312 = vand.u32 %v1286, 4294901760
        %3313 = vmatprep.subr.mxu0 %v3312
        %v3314 = vand.u32 %v1285, 4294901760
        %3315 = vmatpush1.msra.mxu0 %v3314
        %v3316 = vand.u32 %v1282, 4294901760
        %3317 = vmatprep.subr.mxu0 %v3316
        %v3318 = vand.u32 %v1281, 4294901760
        %3319 = vmatpush1.msra.mxu0 %v3318
        %v3320 = vand.u32 %v1278, 4294901760
        %3321 = vmatprep.subr.mxu0 %v3320
        %v3322 = vand.u32 %v1277, 4294901760
        %3323 = vmatpush1.msra.mxu0 %v3322
        %v3324 = vand.u32 %v1274, 4294901760
        %3325 = vmatprep.subr.mxu0 %v3324
        %v3326 = vand.u32 %v1273, 4294901760
        %3327 = vmatpush1.msra.mxu0 %v3326
        %v3328 = vand.u32 %v1270, 4294901760
        %3329 = vmatprep.subr.mxu0 %v3328
        %v3330 = vand.u32 %v1269, 4294901760
        %3331 = vmatpush1.msra.mxu0 %v3330
        %v3332 = vand.u32 %v1266, 4294901760
        %3333 = vmatprep.subr.mxu0 %v3332
        %v3334 = vand.u32 %v1265, 4294901760
        %3335 = vmatpush1.msra.mxu0 %v3334
        %v3336 = vand.u32 %v1262, 4294901760
        %3337 = vmatprep.subr.mxu0 %v3336
        %v3338 = vand.u32 %v1261, 4294901760
        %3339 = vmatpush1.msra.mxu0 %v3338
        %3340 = vmatprep.subr.mxu0 0.0
        %3341 = vmatpush2.msra.mxu0 0.0
        %3342 = vmatprep.subr.mxu0 0.0
        %3343 = vmatpush2.msra.mxu0 0.0
        %3344 = vmatprep.subr.mxu0 0.0
        %3345 = vmatpush2.msra.mxu0 0.0
        %3346 = vmatprep.subr.mxu0 0.0
        %3347 = vmatpush2.msra.mxu0 0.0
        %3348 = vmatprep.subr.mxu0 0.0
        %3349 = vmatpush2.msra.mxu0 0.0
        %3350 = vmatprep.subr.mxu0 0.0
        %3351 = vmatpush2.msra.mxu0 0.0
        %3352 = vmatprep.subr.mxu0 0.0
        %3353 = vmatpush2.msra.mxu0 0.0
        %3354 = vmatprep.subr.mxu0 0.0
        %3355 = vmatpush2.msra.mxu0 0.0
        %3356 = vmatprep.subr.mxu0 0.0
        %3357 = vmatpush2.msra.mxu0 0.0
        %3358 = vmatprep.subr.mxu0 0.0
        %3359 = vmatpush2.msra.mxu0 0.0
        %3360 = vmatprep.subr.mxu0 0.0
        %3361 = vmatpush2.msra.mxu0 0.0
        %3362 = vmatprep.subr.mxu0 0.0
        %3363 = vmatpush2.msra.mxu0 0.0
        %3364 = vmatprep.subr.mxu0 0.0
        %3365 = vmatpush2.msra.mxu0 0.0
        %3366 = vmatprep.subr.mxu0 0.0
        %3367 = vmatpush2.msra.mxu0 0.0
        %3368 = vmatprep.subr.mxu0 0.0
        %3369 = vmatpush2.msra.mxu0 0.0
        %3370 = vmatprep.subr.mxu0 0.0
        %3371 = vmatpush2.msra.mxu0 0.0
        %3372 = vmatprep.mubr.f32.mxu0 0.0
        %v3373 = vand.u32 %v2869, 4294901760
        %v3374 = vsub.f32 %v2869, %v3373
        %v3375 = vand.u32 %v3374, 4294901760
        %3376 = vmatmul.mubr.f32.gmra.mxu0 %v3375
        %v3377 = vpop.f32.mrf.mxu0
        %v3378 = vadd.f32 %v3280, %v3377
        %v3379 = vpop.f32.mrf.mxu0
        %v3380 = vadd.f32 %v3282, %v3379
        %3381 = vdwg.mxu0
        %3382 = vmatprep.subr.mxu0 0.0
        %3383 = vmatpush1.msra.mxu0 0.0
        %3384 = vmatprep.subr.mxu0 0.0
        %3385 = vmatpush1.msra.mxu0 0.0
        %3386 = vmatprep.subr.mxu0 0.0
        %3387 = vmatpush1.msra.mxu0 0.0
        %3388 = vmatprep.subr.mxu0 0.0
        %3389 = vmatpush1.msra.mxu0 0.0
        %v3390 = vand.u32 %v1306, 4294901760
        %v3391 = vsub.f32 %v1306, %v3390
        %v3392 = vand.u32 %v3391, 4294901760
        %3393 = vmatprep.subr.mxu0 %v3392
        %v3394 = vand.u32 %v1305, 4294901760
        %v3395 = vsub.f32 %v1305, %v3394
        %v3396 = vand.u32 %v3395, 4294901760
        %3397 = vmatpush1.msra.mxu0 %v3396
        %v3398 = vand.u32 %v1302, 4294901760
        %v3399 = vsub.f32 %v1302, %v3398
        %v3400 = vand.u32 %v3399, 4294901760
        %3401 = vmatprep.subr.mxu0 %v3400
        %v3402 = vand.u32 %v1301, 4294901760
        %v3403 = vsub.f32 %v1301, %v3402
        %v3404 = vand.u32 %v3403, 4294901760
        %3405 = vmatpush1.msra.mxu0 %v3404
        %v3406 = vand.u32 %v1298, 4294901760
        %v3407 = vsub.f32 %v1298, %v3406
        %v3408 = vand.u32 %v3407, 4294901760
        %3409 = vmatprep.subr.mxu0 %v3408
        %v3410 = vand.u32 %v1297, 4294901760
        %v3411 = vsub.f32 %v1297, %v3410
        %v3412 = vand.u32 %v3411, 4294901760
        %3413 = vmatpush1.msra.mxu0 %v3412
        %v3414 = vand.u32 %v1294, 4294901760
        %v3415 = vsub.f32 %v1294, %v3414
        %v3416 = vand.u32 %v3415, 4294901760
        %3417 = vmatprep.subr.mxu0 %v3416
        %v3418 = vand.u32 %v1293, 4294901760
        %v3419 = vsub.f32 %v1293, %v3418
        %v3420 = vand.u32 %v3419, 4294901760
        %3421 = vmatpush1.msra.mxu0 %v3420
        %v3422 = vand.u32 %v1290, 4294901760
        %v3423 = vsub.f32 %v1290, %v3422
        %v3424 = vand.u32 %v3423, 4294901760
        %3425 = vmatprep.subr.mxu0 %v3424
        %v3426 = vand.u32 %v1289, 4294901760
        %v3427 = vsub.f32 %v1289, %v3426
        %v3428 = vand.u32 %v3427, 4294901760
        %3429 = vmatpush1.msra.mxu0 %v3428
        %v3430 = vand.u32 %v1286, 4294901760
        %v3431 = vsub.f32 %v1286, %v3430
        %v3432 = vand.u32 %v3431, 4294901760
        %3433 = vmatprep.subr.mxu0 %v3432
        %v3434 = vand.u32 %v1285, 4294901760
        %v3435 = vsub.f32 %v1285, %v3434
        %v3436 = vand.u32 %v3435, 4294901760
        %3437 = vmatpush1.msra.mxu0 %v3436
        %v3438 = vand.u32 %v1282, 4294901760
        %v3439 = vsub.f32 %v1282, %v3438
        %v3440 = vand.u32 %v3439, 4294901760
        %3441 = vmatprep.subr.mxu0 %v3440
        %v3442 = vand.u32 %v1281, 4294901760
        %v3443 = vsub.f32 %v1281, %v3442
        %v3444 = vand.u32 %v3443, 4294901760
        %3445 = vmatpush1.msra.mxu0 %v3444
        %v3446 = vand.u32 %v1278, 4294901760
        %v3447 = vsub.f32 %v1278, %v3446
        %v3448 = vand.u32 %v3447, 4294901760
        %3449 = vmatprep.subr.mxu0 %v3448
        %v3450 = vand.u32 %v1277, 4294901760
        %v3451 = vsub.f32 %v1277, %v3450
        %v3452 = vand.u32 %v3451, 4294901760
        %3453 = vmatpush1.msra.mxu0 %v3452
        %v3454 = vand.u32 %v1274, 4294901760
        %v3455 = vsub.f32 %v1274, %v3454
        %v3456 = vand.u32 %v3455, 4294901760
        %3457 = vmatprep.subr.mxu0 %v3456
        %v3458 = vand.u32 %v1273, 4294901760
        %v3459 = vsub.f32 %v1273, %v3458
        %v3460 = vand.u32 %v3459, 4294901760
        %3461 = vmatpush1.msra.mxu0 %v3460
        %v3462 = vand.u32 %v1270, 4294901760
        %v3463 = vsub.f32 %v1270, %v3462
        %v3464 = vand.u32 %v3463, 4294901760
        %3465 = vmatprep.subr.mxu0 %v3464
        %v3466 = vand.u32 %v1269, 4294901760
        %v3467 = vsub.f32 %v1269, %v3466
        %v3468 = vand.u32 %v3467, 4294901760
        %3469 = vmatpush1.msra.mxu0 %v3468
        %v3470 = vand.u32 %v1266, 4294901760
        %v3471 = vsub.f32 %v1266, %v3470
        %v3472 = vand.u32 %v3471, 4294901760
        %3473 = vmatprep.subr.mxu0 %v3472
        %v3474 = vand.u32 %v1265, 4294901760
        %v3475 = vsub.f32 %v1265, %v3474
        %v3476 = vand.u32 %v3475, 4294901760
        %3477 = vmatpush1.msra.mxu0 %v3476
        %v3478 = vand.u32 %v1262, 4294901760
        %v3479 = vsub.f32 %v1262, %v3478
        %v3480 = vand.u32 %v3479, 4294901760
        %3481 = vmatprep.subr.mxu0 %v3480
        %v3482 = vand.u32 %v1261, 4294901760
        %v3483 = vsub.f32 %v1261, %v3482
        %v3484 = vand.u32 %v3483, 4294901760
        %3485 = vmatpush1.msra.mxu0 %v3484
        %3486 = vmatprep.subr.mxu0 0.0
        %3487 = vmatpush2.msra.mxu0 0.0
        %3488 = vmatprep.subr.mxu0 0.0
        %3489 = vmatpush2.msra.mxu0 0.0
        %3490 = vmatprep.subr.mxu0 0.0
        %3491 = vmatpush2.msra.mxu0 0.0
        %3492 = vmatprep.subr.mxu0 0.0
        %3493 = vmatpush2.msra.mxu0 0.0
        %3494 = vmatprep.subr.mxu0 0.0
        %3495 = vmatpush2.msra.mxu0 0.0
        %3496 = vmatprep.subr.mxu0 0.0
        %3497 = vmatpush2.msra.mxu0 0.0
        %3498 = vmatprep.subr.mxu0 0.0
        %3499 = vmatpush2.msra.mxu0 0.0
        %3500 = vmatprep.subr.mxu0 0.0
        %3501 = vmatpush2.msra.mxu0 0.0
        %3502 = vmatprep.subr.mxu0 0.0
        %3503 = vmatpush2.msra.mxu0 0.0
        %3504 = vmatprep.subr.mxu0 0.0
        %3505 = vmatpush2.msra.mxu0 0.0
        %3506 = vmatprep.subr.mxu0 0.0
        %3507 = vmatpush2.msra.mxu0 0.0
        %3508 = vmatprep.subr.mxu0 0.0
        %3509 = vmatpush2.msra.mxu0 0.0
        %3510 = vmatprep.subr.mxu0 0.0
        %3511 = vmatpush2.msra.mxu0 0.0
        %3512 = vmatprep.subr.mxu0 0.0
        %3513 = vmatpush2.msra.mxu0 0.0
        %3514 = vmatprep.subr.mxu0 0.0
        %3515 = vmatpush2.msra.mxu0 0.0
        %3516 = vmatprep.subr.mxu0 0.0
        %3517 = vmatpush2.msra.mxu0 0.0
        %3518 = vmatprep.mubr.f32.mxu0 0.0
        %v3519 = vand.u32 %v2869, 4294901760
        %3520 = vmatmul.mubr.f32.gmra.mxu0 %v3519
        %v3521 = vpop.f32.mrf.mxu0
        %v3522 = vadd.f32 %v3378, %v3521
        %v3523 = vpop.f32.mrf.mxu0
        %v3524 = vadd.f32 %v3380, %v3523
        %3525 = vdwg.mxu0
        %3526 = vmatprep.subr.mxu0 0.0
        %3527 = vmatpush1.msra.mxu0 0.0
        %3528 = vmatprep.subr.mxu0 0.0
        %3529 = vmatpush1.msra.mxu0 0.0
        %3530 = vmatprep.subr.mxu0 0.0
        %3531 = vmatpush1.msra.mxu0 0.0
        %3532 = vmatprep.subr.mxu0 0.0
        %3533 = vmatpush1.msra.mxu0 0.0
        %v3534 = vand.u32 %v1306, 4294901760
        %3535 = vmatprep.subr.mxu0 %v3534
        %v3536 = vand.u32 %v1305, 4294901760
        %3537 = vmatpush1.msra.mxu0 %v3536
        %v3538 = vand.u32 %v1302, 4294901760
        %3539 = vmatprep.subr.mxu0 %v3538
        %v3540 = vand.u32 %v1301, 4294901760
        %3541 = vmatpush1.msra.mxu0 %v3540
        %v3542 = vand.u32 %v1298, 4294901760
        %3543 = vmatprep.subr.mxu0 %v3542
        %v3544 = vand.u32 %v1297, 4294901760
        %3545 = vmatpush1.msra.mxu0 %v3544
        %v3546 = vand.u32 %v1294, 4294901760
        %3547 = vmatprep.subr.mxu0 %v3546
        %v3548 = vand.u32 %v1293, 4294901760
        %3549 = vmatpush1.msra.mxu0 %v3548
        %v3550 = vand.u32 %v1290, 4294901760
        %3551 = vmatprep.subr.mxu0 %v3550
        %v3552 = vand.u32 %v1289, 4294901760
        %3553 = vmatpush1.msra.mxu0 %v3552
        %v3554 = vand.u32 %v1286, 4294901760
        %3555 = vmatprep.subr.mxu0 %v3554
        %v3556 = vand.u32 %v1285, 4294901760
        %3557 = vmatpush1.msra.mxu0 %v3556
        %v3558 = vand.u32 %v1282, 4294901760
        %3559 = vmatprep.subr.mxu0 %v3558
        %v3560 = vand.u32 %v1281, 4294901760
        %3561 = vmatpush1.msra.mxu0 %v3560
        %v3562 = vand.u32 %v1278, 4294901760
        %3563 = vmatprep.subr.mxu0 %v3562
        %v3564 = vand.u32 %v1277, 4294901760
        %3565 = vmatpush1.msra.mxu0 %v3564
        %v3566 = vand.u32 %v1274, 4294901760
        %3567 = vmatprep.subr.mxu0 %v3566
        %v3568 = vand.u32 %v1273, 4294901760
        %3569 = vmatpush1.msra.mxu0 %v3568
        %v3570 = vand.u32 %v1270, 4294901760
        %3571 = vmatprep.subr.mxu0 %v3570
        %v3572 = vand.u32 %v1269, 4294901760
        %3573 = vmatpush1.msra.mxu0 %v3572
        %v3574 = vand.u32 %v1266, 4294901760
        %3575 = vmatprep.subr.mxu0 %v3574
        %v3576 = vand.u32 %v1265, 4294901760
        %3577 = vmatpush1.msra.mxu0 %v3576
        %v3578 = vand.u32 %v1262, 4294901760
        %3579 = vmatprep.subr.mxu0 %v3578
        %v3580 = vand.u32 %v1261, 4294901760
        %3581 = vmatpush1.msra.mxu0 %v3580
        %3582 = vmatprep.subr.mxu0 0.0
        %3583 = vmatpush2.msra.mxu0 0.0
        %3584 = vmatprep.subr.mxu0 0.0
        %3585 = vmatpush2.msra.mxu0 0.0
        %3586 = vmatprep.subr.mxu0 0.0
        %3587 = vmatpush2.msra.mxu0 0.0
        %3588 = vmatprep.subr.mxu0 0.0
        %3589 = vmatpush2.msra.mxu0 0.0
        %3590 = vmatprep.subr.mxu0 0.0
        %3591 = vmatpush2.msra.mxu0 0.0
        %3592 = vmatprep.subr.mxu0 0.0
        %3593 = vmatpush2.msra.mxu0 0.0
        %3594 = vmatprep.subr.mxu0 0.0
        %3595 = vmatpush2.msra.mxu0 0.0
        %3596 = vmatprep.subr.mxu0 0.0
        %3597 = vmatpush2.msra.mxu0 0.0
        %3598 = vmatprep.subr.mxu0 0.0
        %3599 = vmatpush2.msra.mxu0 0.0
        %3600 = vmatprep.subr.mxu0 0.0
        %3601 = vmatpush2.msra.mxu0 0.0
        %3602 = vmatprep.subr.mxu0 0.0
        %3603 = vmatpush2.msra.mxu0 0.0
        %3604 = vmatprep.subr.mxu0 0.0
        %3605 = vmatpush2.msra.mxu0 0.0
        %3606 = vmatprep.subr.mxu0 0.0
        %3607 = vmatpush2.msra.mxu0 0.0
        %3608 = vmatprep.subr.mxu0 0.0
        %3609 = vmatpush2.msra.mxu0 0.0
        %3610 = vmatprep.subr.mxu0 0.0
        %3611 = vmatpush2.msra.mxu0 0.0
        %3612 = vmatprep.subr.mxu0 0.0
        %3613 = vmatpush2.msra.mxu0 0.0
        %3614 = vmatprep.mubr.f32.mxu0 0.0
        %v3615 = vand.u32 %v2869, 4294901760
        %3616 = vmatmul.mubr.f32.gmra.mxu0 %v3615
        %v3617 = vpop.f32.mrf.mxu0
        %v3618 = vadd.f32 %v3522, %v3617
        %v3619 = vpop.f32.mrf.mxu0
        %v3620 = vadd.f32 %v3524, %v3619
        %3621 = vdwg.mxu0
        %3622 = vmatprep.subr.mxu0 0.0
        %3623 = vmatpush1.msra.mxu0 0.0
        %3624 = vmatprep.subr.mxu0 0.0
        %3625 = vmatpush1.msra.mxu0 0.0
        %3626 = vmatprep.subr.mxu0 0.0
        %3627 = vmatpush1.msra.mxu0 0.0
        %3628 = vmatprep.subr.mxu0 0.0
        %3629 = vmatpush1.msra.mxu0 0.0
        %v3630 = vand.u32 %v1308, 4294901760
        %3631 = vmatprep.subr.mxu0 %v3630
        %v3632 = vand.u32 %v1307, 4294901760
        %3633 = vmatpush1.msra.mxu0 %v3632
        %v3634 = vand.u32 %v1304, 4294901760
        %3635 = vmatprep.subr.mxu0 %v3634
        %v3636 = vand.u32 %v1303, 4294901760
        %3637 = vmatpush1.msra.mxu0 %v3636
        %v3638 = vand.u32 %v1300, 4294901760
        %3639 = vmatprep.subr.mxu0 %v3638
        %v3640 = vand.u32 %v1299, 4294901760
        %3641 = vmatpush1.msra.mxu0 %v3640
        %v3642 = vand.u32 %v1296, 4294901760
        %3643 = vmatprep.subr.mxu0 %v3642
        %v3644 = vand.u32 %v1295, 4294901760
        %3645 = vmatpush1.msra.mxu0 %v3644
        %v3646 = vand.u32 %v1292, 4294901760
        %3647 = vmatprep.subr.mxu0 %v3646
        %v3648 = vand.u32 %v1291, 4294901760
        %3649 = vmatpush1.msra.mxu0 %v3648
        %v3650 = vand.u32 %v1288, 4294901760
        %3651 = vmatprep.subr.mxu0 %v3650
        %v3652 = vand.u32 %v1287, 4294901760
        %3653 = vmatpush1.msra.mxu0 %v3652
        %v3654 = vand.u32 %v1284, 4294901760
        %3655 = vmatprep.subr.mxu0 %v3654
        %v3656 = vand.u32 %v1283, 4294901760
        %3657 = vmatpush1.msra.mxu0 %v3656
        %v3658 = vand.u32 %v1280, 4294901760
        %3659 = vmatprep.subr.mxu0 %v3658
        %v3660 = vand.u32 %v1279, 4294901760
        %3661 = vmatpush1.msra.mxu0 %v3660
        %v3662 = vand.u32 %v1276, 4294901760
        %3663 = vmatprep.subr.mxu0 %v3662
        %v3664 = vand.u32 %v1275, 4294901760
        %3665 = vmatpush1.msra.mxu0 %v3664
        %v3666 = vand.u32 %v1272, 4294901760
        %3667 = vmatprep.subr.mxu0 %v3666
        %v3668 = vand.u32 %v1271, 4294901760
        %3669 = vmatpush1.msra.mxu0 %v3668
        %v3670 = vand.u32 %v1268, 4294901760
        %3671 = vmatprep.subr.mxu0 %v3670
        %v3672 = vand.u32 %v1267, 4294901760
        %3673 = vmatpush1.msra.mxu0 %v3672
        %v3674 = vand.u32 %v1264, 4294901760
        %3675 = vmatprep.subr.mxu0 %v3674
        %v3676 = vand.u32 %v1263, 4294901760
        %3677 = vmatpush1.msra.mxu0 %v3676
        %3678 = vmatprep.subr.mxu0 0.0
        %3679 = vmatpush2.msra.mxu0 0.0
        %3680 = vmatprep.subr.mxu0 0.0
        %3681 = vmatpush2.msra.mxu0 0.0
        %3682 = vmatprep.subr.mxu0 0.0
        %3683 = vmatpush2.msra.mxu0 0.0
        %3684 = vmatprep.subr.mxu0 0.0
        %3685 = vmatpush2.msra.mxu0 0.0
        %3686 = vmatprep.subr.mxu0 0.0
        %3687 = vmatpush2.msra.mxu0 0.0
        %3688 = vmatprep.subr.mxu0 0.0
        %3689 = vmatpush2.msra.mxu0 0.0
        %3690 = vmatprep.subr.mxu0 0.0
        %3691 = vmatpush2.msra.mxu0 0.0
        %3692 = vmatprep.subr.mxu0 0.0
        %3693 = vmatpush2.msra.mxu0 0.0
        %3694 = vmatprep.subr.mxu0 0.0
        %3695 = vmatpush2.msra.mxu0 0.0
        %3696 = vmatprep.subr.mxu0 0.0
        %3697 = vmatpush2.msra.mxu0 0.0
        %3698 = vmatprep.subr.mxu0 0.0
        %3699 = vmatpush2.msra.mxu0 0.0
        %3700 = vmatprep.subr.mxu0 0.0
        %3701 = vmatpush2.msra.mxu0 0.0
        %3702 = vmatprep.subr.mxu0 0.0
        %3703 = vmatpush2.msra.mxu0 0.0
        %3704 = vmatprep.subr.mxu0 0.0
        %3705 = vmatpush2.msra.mxu0 0.0
        %3706 = vmatprep.subr.mxu0 0.0
        %3707 = vmatpush2.msra.mxu0 0.0
        %3708 = vmatprep.subr.mxu0 0.0
        %3709 = vmatpush2.msra.mxu0 0.0
        %3710 = vmatprep.mubr.f32.mxu0 0.0
        %v3711 = vand.u32 %v2869, 4294901760
        %v3712 = vsub.f32 %v2869, %v3711
        %v3713 = vand.u32 %v3712, 4294901760
        %v3714 = vsub.f32 %v3712, %v3713
        %v3715 = vand.u32 %v3714, 4294901760
        %3716 = vmatmul.mubr.f32.gmra.mxu0 %v3715
        %v3717 = vpop.f32.mrf.mxu0
        %v3718 = vadd.f32 %v2865, %v3717
        %v3719 = vpop.f32.mrf.mxu0
        %v3720 = vadd.f32 %v2867, %v3719
        %3721 = vdwg.mxu0
        %3722 = vmatprep.subr.mxu0 0.0
        %3723 = vmatpush1.msra.mxu0 0.0
        %3724 = vmatprep.subr.mxu0 0.0
        %3725 = vmatpush1.msra.mxu0 0.0
        %3726 = vmatprep.subr.mxu0 0.0
        %3727 = vmatpush1.msra.mxu0 0.0
        %3728 = vmatprep.subr.mxu0 0.0
        %3729 = vmatpush1.msra.mxu0 0.0
        %v3730 = vand.u32 %v1308, 4294901760
        %v3731 = vsub.f32 %v1308, %v3730
        %v3732 = vand.u32 %v3731, 4294901760
        %v3733 = vsub.f32 %v3731, %v3732
        %v3734 = vand.u32 %v3733, 4294901760
        %3735 = vmatprep.subr.mxu0 %v3734
        %v3736 = vand.u32 %v1307, 4294901760
        %v3737 = vsub.f32 %v1307, %v3736
        %v3738 = vand.u32 %v3737, 4294901760
        %v3739 = vsub.f32 %v3737, %v3738
        %v3740 = vand.u32 %v3739, 4294901760
        %3741 = vmatpush1.msra.mxu0 %v3740
        %v3742 = vand.u32 %v1304, 4294901760
        %v3743 = vsub.f32 %v1304, %v3742
        %v3744 = vand.u32 %v3743, 4294901760
        %v3745 = vsub.f32 %v3743, %v3744
        %v3746 = vand.u32 %v3745, 4294901760
        %3747 = vmatprep.subr.mxu0 %v3746
        %v3748 = vand.u32 %v1303, 4294901760
        %v3749 = vsub.f32 %v1303, %v3748
        %v3750 = vand.u32 %v3749, 4294901760
        %v3751 = vsub.f32 %v3749, %v3750
        %v3752 = vand.u32 %v3751, 4294901760
        %3753 = vmatpush1.msra.mxu0 %v3752
        %v3754 = vand.u32 %v1300, 4294901760
        %v3755 = vsub.f32 %v1300, %v3754
        %v3756 = vand.u32 %v3755, 4294901760
        %v3757 = vsub.f32 %v3755, %v3756
        %v3758 = vand.u32 %v3757, 4294901760
        %3759 = vmatprep.subr.mxu0 %v3758
        %v3760 = vand.u32 %v1299, 4294901760
        %v3761 = vsub.f32 %v1299, %v3760
        %v3762 = vand.u32 %v3761, 4294901760
        %v3763 = vsub.f32 %v3761, %v3762
        %v3764 = vand.u32 %v3763, 4294901760
        %3765 = vmatpush1.msra.mxu0 %v3764
        %v3766 = vand.u32 %v1296, 4294901760
        %v3767 = vsub.f32 %v1296, %v3766
        %v3768 = vand.u32 %v3767, 4294901760
        %v3769 = vsub.f32 %v3767, %v3768
        %v3770 = vand.u32 %v3769, 4294901760
        %3771 = vmatprep.subr.mxu0 %v3770
        %v3772 = vand.u32 %v1295, 4294901760
        %v3773 = vsub.f32 %v1295, %v3772
        %v3774 = vand.u32 %v3773, 4294901760
        %v3775 = vsub.f32 %v3773, %v3774
        %v3776 = vand.u32 %v3775, 4294901760
        %3777 = vmatpush1.msra.mxu0 %v3776
        %v3778 = vand.u32 %v1292, 4294901760
        %v3779 = vsub.f32 %v1292, %v3778
        %v3780 = vand.u32 %v3779, 4294901760
        %v3781 = vsub.f32 %v3779, %v3780
        %v3782 = vand.u32 %v3781, 4294901760
        %3783 = vmatprep.subr.mxu0 %v3782
        %v3784 = vand.u32 %v1291, 4294901760
        %v3785 = vsub.f32 %v1291, %v3784
        %v3786 = vand.u32 %v3785, 4294901760
        %v3787 = vsub.f32 %v3785, %v3786
        %v3788 = vand.u32 %v3787, 4294901760
        %3789 = vmatpush1.msra.mxu0 %v3788
        %v3790 = vand.u32 %v1288, 4294901760
        %v3791 = vsub.f32 %v1288, %v3790
        %v3792 = vand.u32 %v3791, 4294901760
        %v3793 = vsub.f32 %v3791, %v3792
        %v3794 = vand.u32 %v3793, 4294901760
        %3795 = vmatprep.subr.mxu0 %v3794
        %v3796 = vand.u32 %v1287, 4294901760
        %v3797 = vsub.f32 %v1287, %v3796
        %v3798 = vand.u32 %v3797, 4294901760
        %v3799 = vsub.f32 %v3797, %v3798
        %v3800 = vand.u32 %v3799, 4294901760
        %3801 = vmatpush1.msra.mxu0 %v3800
        %v3802 = vand.u32 %v1284, 4294901760
        %v3803 = vsub.f32 %v1284, %v3802
        %v3804 = vand.u32 %v3803, 4294901760
        %v3805 = vsub.f32 %v3803, %v3804
        %v3806 = vand.u32 %v3805, 4294901760
        %3807 = vmatprep.subr.mxu0 %v3806
        %v3808 = vand.u32 %v1283, 4294901760
        %v3809 = vsub.f32 %v1283, %v3808
        %v3810 = vand.u32 %v3809, 4294901760
        %v3811 = vsub.f32 %v3809, %v3810
        %v3812 = vand.u32 %v3811, 4294901760
        %3813 = vmatpush1.msra.mxu0 %v3812
        %v3814 = vand.u32 %v1280, 4294901760
        %v3815 = vsub.f32 %v1280, %v3814
        %v3816 = vand.u32 %v3815, 4294901760
        %v3817 = vsub.f32 %v3815, %v3816
        %v3818 = vand.u32 %v3817, 4294901760
        %3819 = vmatprep.subr.mxu0 %v3818
        %v3820 = vand.u32 %v1279, 4294901760
        %v3821 = vsub.f32 %v1279, %v3820
        %v3822 = vand.u32 %v3821, 4294901760
        %v3823 = vsub.f32 %v3821, %v3822
        %v3824 = vand.u32 %v3823, 4294901760
        %3825 = vmatpush1.msra.mxu0 %v3824
        %v3826 = vand.u32 %v1276, 4294901760
        %v3827 = vsub.f32 %v1276, %v3826
        %v3828 = vand.u32 %v3827, 4294901760
        %v3829 = vsub.f32 %v3827, %v3828
        %v3830 = vand.u32 %v3829, 4294901760
        %3831 = vmatprep.subr.mxu0 %v3830
        %v3832 = vand.u32 %v1275, 4294901760
        %v3833 = vsub.f32 %v1275, %v3832
        %v3834 = vand.u32 %v3833, 4294901760
        %v3835 = vsub.f32 %v3833, %v3834
        %v3836 = vand.u32 %v3835, 4294901760
        %3837 = vmatpush1.msra.mxu0 %v3836
        %v3838 = vand.u32 %v1272, 4294901760
        %v3839 = vsub.f32 %v1272, %v3838
        %v3840 = vand.u32 %v3839, 4294901760
        %v3841 = vsub.f32 %v3839, %v3840
        %v3842 = vand.u32 %v3841, 4294901760
        %3843 = vmatprep.subr.mxu0 %v3842
        %v3844 = vand.u32 %v1271, 4294901760
        %v3845 = vsub.f32 %v1271, %v3844
        %v3846 = vand.u32 %v3845, 4294901760
        %v3847 = vsub.f32 %v3845, %v3846
        %v3848 = vand.u32 %v3847, 4294901760
        %3849 = vmatpush1.msra.mxu0 %v3848
        %v3850 = vand.u32 %v1268, 4294901760
        %v3851 = vsub.f32 %v1268, %v3850
        %v3852 = vand.u32 %v3851, 4294901760
        %v3853 = vsub.f32 %v3851, %v3852
        %v3854 = vand.u32 %v3853, 4294901760
        %3855 = vmatprep.subr.mxu0 %v3854
        %v3856 = vand.u32 %v1267, 4294901760
        %v3857 = vsub.f32 %v1267, %v3856
        %v3858 = vand.u32 %v3857, 4294901760
        %v3859 = vsub.f32 %v3857, %v3858
        %v3860 = vand.u32 %v3859, 4294901760
        %3861 = vmatpush1.msra.mxu0 %v3860
        %v3862 = vand.u32 %v1264, 4294901760
        %v3863 = vsub.f32 %v1264, %v3862
        %v3864 = vand.u32 %v3863, 4294901760
        %v3865 = vsub.f32 %v3863, %v3864
        %v3866 = vand.u32 %v3865, 4294901760
        %3867 = vmatprep.subr.mxu0 %v3866
        %v3868 = vand.u32 %v1263, 4294901760
        %v3869 = vsub.f32 %v1263, %v3868
        %v3870 = vand.u32 %v3869, 4294901760
        %v3871 = vsub.f32 %v3869, %v3870
        %v3872 = vand.u32 %v3871, 4294901760
        %3873 = vmatpush1.msra.mxu0 %v3872
        %3874 = vmatprep.subr.mxu0 0.0
        %3875 = vmatpush2.msra.mxu0 0.0
        %3876 = vmatprep.subr.mxu0 0.0
        %3877 = vmatpush2.msra.mxu0 0.0
        %3878 = vmatprep.subr.mxu0 0.0
        %3879 = vmatpush2.msra.mxu0 0.0
        %3880 = vmatprep.subr.mxu0 0.0
        %3881 = vmatpush2.msra.mxu0 0.0
        %3882 = vmatprep.subr.mxu0 0.0
        %3883 = vmatpush2.msra.mxu0 0.0
        %3884 = vmatprep.subr.mxu0 0.0
        %3885 = vmatpush2.msra.mxu0 0.0
        %3886 = vmatprep.subr.mxu0 0.0
        %3887 = vmatpush2.msra.mxu0 0.0
        %3888 = vmatprep.subr.mxu0 0.0
        %3889 = vmatpush2.msra.mxu0 0.0
        %3890 = vmatprep.subr.mxu0 0.0
        %3891 = vmatpush2.msra.mxu0 0.0
        %3892 = vmatprep.subr.mxu0 0.0
        %3893 = vmatpush2.msra.mxu0 0.0
        %3894 = vmatprep.subr.mxu0 0.0
        %3895 = vmatpush2.msra.mxu0 0.0
        %3896 = vmatprep.subr.mxu0 0.0
        %3897 = vmatpush2.msra.mxu0 0.0
        %3898 = vmatprep.subr.mxu0 0.0
        %3899 = vmatpush2.msra.mxu0 0.0
        %3900 = vmatprep.subr.mxu0 0.0
        %3901 = vmatpush2.msra.mxu0 0.0
        %3902 = vmatprep.subr.mxu0 0.0
        %3903 = vmatpush2.msra.mxu0 0.0
        %3904 = vmatprep.subr.mxu0 0.0
        %3905 = vmatpush2.msra.mxu0 0.0
        %3906 = vmatprep.mubr.f32.mxu0 0.0
        %v3907 = vand.u32 %v2869, 4294901760
        %3908 = vmatmul.mubr.f32.gmra.mxu0 %v3907
        %v3909 = vpop.f32.mrf.mxu0
        %v3910 = vadd.f32 %v3718, %v3909
        %v3911 = vpop.f32.mrf.mxu0
        %v3912 = vadd.f32 %v3720, %v3911
        %3913 = vdwg.mxu0
        %3914 = vmatprep.subr.mxu0 0.0
        %3915 = vmatpush1.msra.mxu0 0.0
        %3916 = vmatprep.subr.mxu0 0.0
        %3917 = vmatpush1.msra.mxu0 0.0
        %3918 = vmatprep.subr.mxu0 0.0
        %3919 = vmatpush1.msra.mxu0 0.0
        %3920 = vmatprep.subr.mxu0 0.0
        %3921 = vmatpush1.msra.mxu0 0.0
        %v3922 = vand.u32 %v1308, 4294901760
        %v3923 = vsub.f32 %v1308, %v3922
        %3924 = vmatprep.subr.mxu0 %v3923
        %v3925 = vand.u32 %v1307, 4294901760
        %v3926 = vsub.f32 %v1307, %v3925
        %3927 = vmatpush1.msra.mxu0 %v3926
        %v3928 = vand.u32 %v1304, 4294901760
        %v3929 = vsub.f32 %v1304, %v3928
        %3930 = vmatprep.subr.mxu0 %v3929
        %v3931 = vand.u32 %v1303, 4294901760
        %v3932 = vsub.f32 %v1303, %v3931
        %3933 = vmatpush1.msra.mxu0 %v3932
        %v3934 = vand.u32 %v1300, 4294901760
        %v3935 = vsub.f32 %v1300, %v3934
        %3936 = vmatprep.subr.mxu0 %v3935
        %v3937 = vand.u32 %v1299, 4294901760
        %v3938 = vsub.f32 %v1299, %v3937
        %3939 = vmatpush1.msra.mxu0 %v3938
        %v3940 = vand.u32 %v1296, 4294901760
        %v3941 = vsub.f32 %v1296, %v3940
        %3942 = vmatprep.subr.mxu0 %v3941
        %v3943 = vand.u32 %v1295, 4294901760
        %v3944 = vsub.f32 %v1295, %v3943
        %3945 = vmatpush1.msra.mxu0 %v3944
        %v3946 = vand.u32 %v1292, 4294901760
        %v3947 = vsub.f32 %v1292, %v3946
        %3948 = vmatprep.subr.mxu0 %v3947
        %v3949 = vand.u32 %v1291, 4294901760
        %v3950 = vsub.f32 %v1291, %v3949
        %3951 = vmatpush1.msra.mxu0 %v3950
        %v3952 = vand.u32 %v1288, 4294901760
        %v3953 = vsub.f32 %v1288, %v3952
        %3954 = vmatprep.subr.mxu0 %v3953
        %v3955 = vand.u32 %v1287, 4294901760
        %v3956 = vsub.f32 %v1287, %v3955
        %3957 = vmatpush1.msra.mxu0 %v3956
        %v3958 = vand.u32 %v1284, 4294901760
        %v3959 = vsub.f32 %v1284, %v3958
        %3960 = vmatprep.subr.mxu0 %v3959
        %v3961 = vand.u32 %v1283, 4294901760
        %v3962 = vsub.f32 %v1283, %v3961
        %3963 = vmatpush1.msra.mxu0 %v3962
        %v3964 = vand.u32 %v1280, 4294901760
        %v3965 = vsub.f32 %v1280, %v3964
        %3966 = vmatprep.subr.mxu0 %v3965
        %v3967 = vand.u32 %v1279, 4294901760
        %v3968 = vsub.f32 %v1279, %v3967
        %3969 = vmatpush1.msra.mxu0 %v3968
        %v3970 = vand.u32 %v1276, 4294901760
        %v3971 = vsub.f32 %v1276, %v3970
        %3972 = vmatprep.subr.mxu0 %v3971
        %v3973 = vand.u32 %v1275, 4294901760
        %v3974 = vsub.f32 %v1275, %v3973
        %3975 = vmatpush1.msra.mxu0 %v3974
        %v3976 = vand.u32 %v1272, 4294901760
        %v3977 = vsub.f32 %v1272, %v3976
        %3978 = vmatprep.subr.mxu0 %v3977
        %v3979 = vand.u32 %v1271, 4294901760
        %v3980 = vsub.f32 %v1271, %v3979
        %3981 = vmatpush1.msra.mxu0 %v3980
        %v3982 = vand.u32 %v1268, 4294901760
        %v3983 = vsub.f32 %v1268, %v3982
        %3984 = vmatprep.subr.mxu0 %v3983
        %v3985 = vand.u32 %v1267, 4294901760
        %v3986 = vsub.f32 %v1267, %v3985
        %3987 = vmatpush1.msra.mxu0 %v3986
        %v3988 = vand.u32 %v1264, 4294901760
        %v3989 = vsub.f32 %v1264, %v3988
        %3990 = vmatprep.subr.mxu0 %v3989
        %v3991 = vand.u32 %v1263, 4294901760
        %v3992 = vsub.f32 %v1263, %v3991
        %3993 = vmatpush1.msra.mxu0 %v3992
        %3994 = vmatprep.subr.mxu0 0.0
        %3995 = vmatpush2.msra.mxu0 0.0
        %3996 = vmatprep.subr.mxu0 0.0
        %3997 = vmatpush2.msra.mxu0 0.0
        %3998 = vmatprep.subr.mxu0 0.0
        %3999 = vmatpush2.msra.mxu0 0.0
        %4000 = vmatprep.subr.mxu0 0.0
        %4001 = vmatpush2.msra.mxu0 0.0
        %4002 = vmatprep.subr.mxu0 0.0
        %4003 = vmatpush2.msra.mxu0 0.0
        %4004 = vmatprep.subr.mxu0 0.0
        %4005 = vmatpush2.msra.mxu0 0.0
        %4006 = vmatprep.subr.mxu0 0.0
        %4007 = vmatpush2.msra.mxu0 0.0
        %4008 = vmatprep.subr.mxu0 0.0
        %4009 = vmatpush2.msra.mxu0 0.0
        %4010 = vmatprep.subr.mxu0 0.0
        %4011 = vmatpush2.msra.mxu0 0.0
        %4012 = vmatprep.subr.mxu0 0.0
        %4013 = vmatpush2.msra.mxu0 0.0
        %4014 = vmatprep.subr.mxu0 0.0
        %4015 = vmatpush2.msra.mxu0 0.0
        %4016 = vmatprep.subr.mxu0 0.0
        %4017 = vmatpush2.msra.mxu0 0.0
        %4018 = vmatprep.subr.mxu0 0.0
        %4019 = vmatpush2.msra.mxu0 0.0
        %4020 = vmatprep.subr.mxu0 0.0
        %4021 = vmatpush2.msra.mxu0 0.0
        %4022 = vmatprep.subr.mxu0 0.0
        %4023 = vmatpush2.msra.mxu0 0.0
        %4024 = vmatprep.subr.mxu0 0.0
        %4025 = vmatpush2.msra.mxu0 0.0
        %4026 = vmatprep.mubr.f32.mxu0 0.0
        %v4027 = vand.u32 %v2869, 4294901760
        %v4028 = vsub.f32 %v2869, %v4027
        %4029 = vmatmul.mubr.f32.gmra.mxu0 %v4028
        %v4030 = vpop.f32.mrf.mxu0
        %v4031 = vadd.f32 %v3910, %v4030
        %v4032 = vpop.f32.mrf.mxu0
        %v4033 = vadd.f32 %v3912, %v4032
        %4034 = vdwg.mxu0
        %4035 = vmatprep.subr.mxu0 0.0
        %4036 = vmatpush1.msra.mxu0 0.0
        %4037 = vmatprep.subr.mxu0 0.0
        %4038 = vmatpush1.msra.mxu0 0.0
        %4039 = vmatprep.subr.mxu0 0.0
        %4040 = vmatpush1.msra.mxu0 0.0
        %4041 = vmatprep.subr.mxu0 0.0
        %4042 = vmatpush1.msra.mxu0 0.0
        %v4043 = vand.u32 %v1308, 4294901760
        %4044 = vmatprep.subr.mxu0 %v4043
        %v4045 = vand.u32 %v1307, 4294901760
        %4046 = vmatpush1.msra.mxu0 %v4045
        %v4047 = vand.u32 %v1304, 4294901760
        %4048 = vmatprep.subr.mxu0 %v4047
        %v4049 = vand.u32 %v1303, 4294901760
        %4050 = vmatpush1.msra.mxu0 %v4049
        %v4051 = vand.u32 %v1300, 4294901760
        %4052 = vmatprep.subr.mxu0 %v4051
        %v4053 = vand.u32 %v1299, 4294901760
        %4054 = vmatpush1.msra.mxu0 %v4053
        %v4055 = vand.u32 %v1296, 4294901760
        %4056 = vmatprep.subr.mxu0 %v4055
        %v4057 = vand.u32 %v1295, 4294901760
        %4058 = vmatpush1.msra.mxu0 %v4057
        %v4059 = vand.u32 %v1292, 4294901760
        %4060 = vmatprep.subr.mxu0 %v4059
        %v4061 = vand.u32 %v1291, 4294901760
        %4062 = vmatpush1.msra.mxu0 %v4061
        %v4063 = vand.u32 %v1288, 4294901760
        %4064 = vmatprep.subr.mxu0 %v4063
        %v4065 = vand.u32 %v1287, 4294901760
        %4066 = vmatpush1.msra.mxu0 %v4065
        %v4067 = vand.u32 %v1284, 4294901760
        %4068 = vmatprep.subr.mxu0 %v4067
        %v4069 = vand.u32 %v1283, 4294901760
        %4070 = vmatpush1.msra.mxu0 %v4069
        %v4071 = vand.u32 %v1280, 4294901760
        %4072 = vmatprep.subr.mxu0 %v4071
        %v4073 = vand.u32 %v1279, 4294901760
        %4074 = vmatpush1.msra.mxu0 %v4073
        %v4075 = vand.u32 %v1276, 4294901760
        %4076 = vmatprep.subr.mxu0 %v4075
        %v4077 = vand.u32 %v1275, 4294901760
        %4078 = vmatpush1.msra.mxu0 %v4077
        %v4079 = vand.u32 %v1272, 4294901760
        %4080 = vmatprep.subr.mxu0 %v4079
        %v4081 = vand.u32 %v1271, 4294901760
        %4082 = vmatpush1.msra.mxu0 %v4081
        %v4083 = vand.u32 %v1268, 4294901760
        %4084 = vmatprep.subr.mxu0 %v4083
        %v4085 = vand.u32 %v1267, 4294901760
        %4086 = vmatpush1.msra.mxu0 %v4085
        %v4087 = vand.u32 %v1264, 4294901760
        %4088 = vmatprep.subr.mxu0 %v4087
        %v4089 = vand.u32 %v1263, 4294901760
        %4090 = vmatpush1.msra.mxu0 %v4089
        %4091 = vmatprep.subr.mxu0 0.0
        %4092 = vmatpush2.msra.mxu0 0.0
        %4093 = vmatprep.subr.mxu0 0.0
        %4094 = vmatpush2.msra.mxu0 0.0
        %4095 = vmatprep.subr.mxu0 0.0
        %4096 = vmatpush2.msra.mxu0 0.0
        %4097 = vmatprep.subr.mxu0 0.0
        %4098 = vmatpush2.msra.mxu0 0.0
        %4099 = vmatprep.subr.mxu0 0.0
        %4100 = vmatpush2.msra.mxu0 0.0
        %4101 = vmatprep.subr.mxu0 0.0
        %4102 = vmatpush2.msra.mxu0 0.0
        %4103 = vmatprep.subr.mxu0 0.0
        %4104 = vmatpush2.msra.mxu0 0.0
        %4105 = vmatprep.subr.mxu0 0.0
        %4106 = vmatpush2.msra.mxu0 0.0
        %4107 = vmatprep.subr.mxu0 0.0
        %4108 = vmatpush2.msra.mxu0 0.0
        %4109 = vmatprep.subr.mxu0 0.0
        %4110 = vmatpush2.msra.mxu0 0.0
        %4111 = vmatprep.subr.mxu0 0.0
        %4112 = vmatpush2.msra.mxu0 0.0
        %4113 = vmatprep.subr.mxu0 0.0
        %4114 = vmatpush2.msra.mxu0 0.0
        %4115 = vmatprep.subr.mxu0 0.0
        %4116 = vmatpush2.msra.mxu0 0.0
        %4117 = vmatprep.subr.mxu0 0.0
        %4118 = vmatpush2.msra.mxu0 0.0
        %4119 = vmatprep.subr.mxu0 0.0
        %4120 = vmatpush2.msra.mxu0 0.0
        %4121 = vmatprep.subr.mxu0 0.0
        %4122 = vmatpush2.msra.mxu0 0.0
        %4123 = vmatprep.mubr.f32.mxu0 0.0
        %v4124 = vand.u32 %v2869, 4294901760
        %v4125 = vsub.f32 %v2869, %v4124
        %v4126 = vand.u32 %v4125, 4294901760
        %4127 = vmatmul.mubr.f32.gmra.mxu0 %v4126
        %v4128 = vpop.f32.mrf.mxu0
        %v4129 = vadd.f32 %v4031, %v4128
        %v4130 = vpop.f32.mrf.mxu0
        %v4131 = vadd.f32 %v4033, %v4130
        %4132 = vdwg.mxu0
        %4133 = vmatprep.subr.mxu0 0.0
        %4134 = vmatpush1.msra.mxu0 0.0
        %4135 = vmatprep.subr.mxu0 0.0
        %4136 = vmatpush1.msra.mxu0 0.0
        %4137 = vmatprep.subr.mxu0 0.0
        %4138 = vmatpush1.msra.mxu0 0.0
        %4139 = vmatprep.subr.mxu0 0.0
        %4140 = vmatpush1.msra.mxu0 0.0
        %v4141 = vand.u32 %v1308, 4294901760
        %v4142 = vsub.f32 %v1308, %v4141
        %v4143 = vand.u32 %v4142, 4294901760
        %4144 = vmatprep.subr.mxu0 %v4143
        %v4145 = vand.u32 %v1307, 4294901760
        %v4146 = vsub.f32 %v1307, %v4145
        %v4147 = vand.u32 %v4146, 4294901760
        %4148 = vmatpush1.msra.mxu0 %v4147
        %v4149 = vand.u32 %v1304, 4294901760
        %v4150 = vsub.f32 %v1304, %v4149
        %v4151 = vand.u32 %v4150, 4294901760
        %4152 = vmatprep.subr.mxu0 %v4151
        %v4153 = vand.u32 %v1303, 4294901760
        %v4154 = vsub.f32 %v1303, %v4153
        %v4155 = vand.u32 %v4154, 4294901760
        %4156 = vmatpush1.msra.mxu0 %v4155
        %v4157 = vand.u32 %v1300, 4294901760
        %v4158 = vsub.f32 %v1300, %v4157
        %v4159 = vand.u32 %v4158, 4294901760
        %4160 = vmatprep.subr.mxu0 %v4159
        %v4161 = vand.u32 %v1299, 4294901760
        %v4162 = vsub.f32 %v1299, %v4161
        %v4163 = vand.u32 %v4162, 4294901760
        %4164 = vmatpush1.msra.mxu0 %v4163
        %v4165 = vand.u32 %v1296, 4294901760
        %v4166 = vsub.f32 %v1296, %v4165
        %v4167 = vand.u32 %v4166, 4294901760
        %4168 = vmatprep.subr.mxu0 %v4167
        %v4169 = vand.u32 %v1295, 4294901760
        %v4170 = vsub.f32 %v1295, %v4169
        %v4171 = vand.u32 %v4170, 4294901760
        %4172 = vmatpush1.msra.mxu0 %v4171
        %v4173 = vand.u32 %v1292, 4294901760
        %v4174 = vsub.f32 %v1292, %v4173
        %v4175 = vand.u32 %v4174, 4294901760
        %4176 = vmatprep.subr.mxu0 %v4175
        %v4177 = vand.u32 %v1291, 4294901760
        %v4178 = vsub.f32 %v1291, %v4177
        %v4179 = vand.u32 %v4178, 4294901760
        %4180 = vmatpush1.msra.mxu0 %v4179
        %v4181 = vand.u32 %v1288, 4294901760
        %v4182 = vsub.f32 %v1288, %v4181
        %v4183 = vand.u32 %v4182, 4294901760
        %4184 = vmatprep.subr.mxu0 %v4183
        %v4185 = vand.u32 %v1287, 4294901760
        %v4186 = vsub.f32 %v1287, %v4185
        %v4187 = vand.u32 %v4186, 4294901760
        %4188 = vmatpush1.msra.mxu0 %v4187
        %v4189 = vand.u32 %v1284, 4294901760
        %v4190 = vsub.f32 %v1284, %v4189
        %v4191 = vand.u32 %v4190, 4294901760
        %4192 = vmatprep.subr.mxu0 %v4191
        %v4193 = vand.u32 %v1283, 4294901760
        %v4194 = vsub.f32 %v1283, %v4193
        %v4195 = vand.u32 %v4194, 4294901760
        %4196 = vmatpush1.msra.mxu0 %v4195
        %v4197 = vand.u32 %v1280, 4294901760
        %v4198 = vsub.f32 %v1280, %v4197
        %v4199 = vand.u32 %v4198, 4294901760
        %4200 = vmatprep.subr.mxu0 %v4199
        %v4201 = vand.u32 %v1279, 4294901760
        %v4202 = vsub.f32 %v1279, %v4201
        %v4203 = vand.u32 %v4202, 4294901760
        %4204 = vmatpush1.msra.mxu0 %v4203
        %v4205 = vand.u32 %v1276, 4294901760
        %v4206 = vsub.f32 %v1276, %v4205
        %v4207 = vand.u32 %v4206, 4294901760
        %4208 = vmatprep.subr.mxu0 %v4207
        %v4209 = vand.u32 %v1275, 4294901760
        %v4210 = vsub.f32 %v1275, %v4209
        %v4211 = vand.u32 %v4210, 4294901760
        %4212 = vmatpush1.msra.mxu0 %v4211
        %v4213 = vand.u32 %v1272, 4294901760
        %v4214 = vsub.f32 %v1272, %v4213
        %v4215 = vand.u32 %v4214, 4294901760
        %4216 = vmatprep.subr.mxu0 %v4215
        %v4217 = vand.u32 %v1271, 4294901760
        %v4218 = vsub.f32 %v1271, %v4217
        %v4219 = vand.u32 %v4218, 4294901760
        %4220 = vmatpush1.msra.mxu0 %v4219
        %v4221 = vand.u32 %v1268, 4294901760
        %v4222 = vsub.f32 %v1268, %v4221
        %v4223 = vand.u32 %v4222, 4294901760
        %4224 = vmatprep.subr.mxu0 %v4223
        %v4225 = vand.u32 %v1267, 4294901760
        %v4226 = vsub.f32 %v1267, %v4225
        %v4227 = vand.u32 %v4226, 4294901760
        %4228 = vmatpush1.msra.mxu0 %v4227
        %v4229 = vand.u32 %v1264, 4294901760
        %v4230 = vsub.f32 %v1264, %v4229
        %v4231 = vand.u32 %v4230, 4294901760
        %4232 = vmatprep.subr.mxu0 %v4231
        %v4233 = vand.u32 %v1263, 4294901760
        %v4234 = vsub.f32 %v1263, %v4233
        %v4235 = vand.u32 %v4234, 4294901760
        %4236 = vmatpush1.msra.mxu0 %v4235
        %4237 = vmatprep.subr.mxu0 0.0
        %4238 = vmatpush2.msra.mxu0 0.0
        %4239 = vmatprep.subr.mxu0 0.0
        %4240 = vmatpush2.msra.mxu0 0.0
        %4241 = vmatprep.subr.mxu0 0.0
        %4242 = vmatpush2.msra.mxu0 0.0
        %4243 = vmatprep.subr.mxu0 0.0
        %4244 = vmatpush2.msra.mxu0 0.0
        %4245 = vmatprep.subr.mxu0 0.0
        %4246 = vmatpush2.msra.mxu0 0.0
        %4247 = vmatprep.subr.mxu0 0.0
        %4248 = vmatpush2.msra.mxu0 0.0
        %4249 = vmatprep.subr.mxu0 0.0
        %4250 = vmatpush2.msra.mxu0 0.0
        %4251 = vmatprep.subr.mxu0 0.0
        %4252 = vmatpush2.msra.mxu0 0.0
        %4253 = vmatprep.subr.mxu0 0.0
        %4254 = vmatpush2.msra.mxu0 0.0
        %4255 = vmatprep.subr.mxu0 0.0
        %4256 = vmatpush2.msra.mxu0 0.0
        %4257 = vmatprep.subr.mxu0 0.0
        %4258 = vmatpush2.msra.mxu0 0.0
        %4259 = vmatprep.subr.mxu0 0.0
        %4260 = vmatpush2.msra.mxu0 0.0
        %4261 = vmatprep.subr.mxu0 0.0
        %4262 = vmatpush2.msra.mxu0 0.0
        %4263 = vmatprep.subr.mxu0 0.0
        %4264 = vmatpush2.msra.mxu0 0.0
        %4265 = vmatprep.subr.mxu0 0.0
        %4266 = vmatpush2.msra.mxu0 0.0
        %4267 = vmatprep.subr.mxu0 0.0
        %4268 = vmatpush2.msra.mxu0 0.0
        %4269 = vmatprep.mubr.f32.mxu0 0.0
        %v4270 = vand.u32 %v2869, 4294901760
        %4271 = vmatmul.mubr.f32.gmra.mxu0 %v4270
        %v4272 = vpop.f32.mrf.mxu0
        %v4273 = vadd.f32 %v4129, %v4272
        %v4274 = vpop.f32.mrf.mxu0
        %v4275 = vadd.f32 %v4131, %v4274
        %4276 = vdwg.mxu0
        %4277 = vmatprep.subr.mxu0 0.0
        %4278 = vmatpush1.msra.mxu0 0.0
        %4279 = vmatprep.subr.mxu0 0.0
        %4280 = vmatpush1.msra.mxu0 0.0
        %4281 = vmatprep.subr.mxu0 0.0
        %4282 = vmatpush1.msra.mxu0 0.0
        %4283 = vmatprep.subr.mxu0 0.0
        %4284 = vmatpush1.msra.mxu0 0.0
        %v4285 = vand.u32 %v1308, 4294901760
        %4286 = vmatprep.subr.mxu0 %v4285
        %v4287 = vand.u32 %v1307, 4294901760
        %4288 = vmatpush1.msra.mxu0 %v4287
        %v4289 = vand.u32 %v1304, 4294901760
        %4290 = vmatprep.subr.mxu0 %v4289
        %v4291 = vand.u32 %v1303, 4294901760
        %4292 = vmatpush1.msra.mxu0 %v4291
        %v4293 = vand.u32 %v1300, 4294901760
        %4294 = vmatprep.subr.mxu0 %v4293
        %v4295 = vand.u32 %v1299, 4294901760
        %4296 = vmatpush1.msra.mxu0 %v4295
        %v4297 = vand.u32 %v1296, 4294901760
        %4298 = vmatprep.subr.mxu0 %v4297
        %v4299 = vand.u32 %v1295, 4294901760
        %4300 = vmatpush1.msra.mxu0 %v4299
        %v4301 = vand.u32 %v1292, 4294901760
        %4302 = vmatprep.subr.mxu0 %v4301
        %v4303 = vand.u32 %v1291, 4294901760
        %4304 = vmatpush1.msra.mxu0 %v4303
        %v4305 = vand.u32 %v1288, 4294901760
        %4306 = vmatprep.subr.mxu0 %v4305
        %v4307 = vand.u32 %v1287, 4294901760
        %4308 = vmatpush1.msra.mxu0 %v4307
        %v4309 = vand.u32 %v1284, 4294901760
        %4310 = vmatprep.subr.mxu0 %v4309
        %v4311 = vand.u32 %v1283, 4294901760
        %4312 = vmatpush1.msra.mxu0 %v4311
        %v4313 = vand.u32 %v1280, 4294901760
        %4314 = vmatprep.subr.mxu0 %v4313
        %v4315 = vand.u32 %v1279, 4294901760
        %4316 = vmatpush1.msra.mxu0 %v4315
        %v4317 = vand.u32 %v1276, 4294901760
        %4318 = vmatprep.subr.mxu0 %v4317
        %v4319 = vand.u32 %v1275, 4294901760
        %4320 = vmatpush1.msra.mxu0 %v4319
        %v4321 = vand.u32 %v1272, 4294901760
        %4322 = vmatprep.subr.mxu0 %v4321
        %v4323 = vand.u32 %v1271, 4294901760
        %4324 = vmatpush1.msra.mxu0 %v4323
        %v4325 = vand.u32 %v1268, 4294901760
        %4326 = vmatprep.subr.mxu0 %v4325
        %v4327 = vand.u32 %v1267, 4294901760
        %4328 = vmatpush1.msra.mxu0 %v4327
        %v4329 = vand.u32 %v1264, 4294901760
        %4330 = vmatprep.subr.mxu0 %v4329
        %v4331 = vand.u32 %v1263, 4294901760
        %4332 = vmatpush1.msra.mxu0 %v4331
        %4333 = vmatprep.subr.mxu0 0.0
        %4334 = vmatpush2.msra.mxu0 0.0
        %4335 = vmatprep.subr.mxu0 0.0
        %4336 = vmatpush2.msra.mxu0 0.0
        %4337 = vmatprep.subr.mxu0 0.0
        %4338 = vmatpush2.msra.mxu0 0.0
        %4339 = vmatprep.subr.mxu0 0.0
        %4340 = vmatpush2.msra.mxu0 0.0
        %4341 = vmatprep.subr.mxu0 0.0
        %4342 = vmatpush2.msra.mxu0 0.0
        %4343 = vmatprep.subr.mxu0 0.0
        %4344 = vmatpush2.msra.mxu0 0.0
        %4345 = vmatprep.subr.mxu0 0.0
        %4346 = vmatpush2.msra.mxu0 0.0
        %4347 = vmatprep.subr.mxu0 0.0
        %4348 = vmatpush2.msra.mxu0 0.0
        %4349 = vmatprep.subr.mxu0 0.0
        %4350 = vmatpush2.msra.mxu0 0.0
        %4351 = vmatprep.subr.mxu0 0.0
        %4352 = vmatpush2.msra.mxu0 0.0
        %4353 = vmatprep.subr.mxu0 0.0
        %4354 = vmatpush2.msra.mxu0 0.0
        %4355 = vmatprep.subr.mxu0 0.0
        %4356 = vmatpush2.msra.mxu0 0.0
        %4357 = vmatprep.subr.mxu0 0.0
        %4358 = vmatpush2.msra.mxu0 0.0
        %4359 = vmatprep.subr.mxu0 0.0
        %4360 = vmatpush2.msra.mxu0 0.0
        %4361 = vmatprep.subr.mxu0 0.0
        %4362 = vmatpush2.msra.mxu0 0.0
        %4363 = vmatprep.subr.mxu0 0.0
        %4364 = vmatpush2.msra.mxu0 0.0
        %4365 = vmatprep.mubr.f32.mxu0 0.0
        %v4366 = vand.u32 %v2869, 4294901760
        %4367 = vmatmul.mubr.f32.gmra.mxu0 %v4366
        %v4368 = vpop.f32.mrf.mxu0
        %v4369 = vadd.f32 %v4273, %v4368
        %v4370 = vpop.f32.mrf.mxu0
        %v4371 = vadd.f32 %v4275, %v4370
        %4372 = vdwg.mxu0
        %s4373 = scalar_lea.vmem %s5, 768
        %v4374 = vld [vmem:[%s4373] sm:$0xff]
        %v4375 = vld [vmem:[%s4373 + $0x8] sm:$0xff]
        %v4376 = vld [vmem:[%s4373 + $0x10] sm:$0xff]
        %v4377 = vld [vmem:[%s4373 + $0x18] sm:$0xff]
        %v4378 = vld [vmem:[%s4373 + $0x20] sm:$0xff]
        %v4379 = vld [vmem:[%s4373 + $0x28] sm:$0xff]
        %v4380 = vld [vmem:[%s4373 + $0x30] sm:$0xff]
        %v4381 = vld [vmem:[%s4373 + $0x38] sm:$0xff]
        %v4382 = vld [vmem:[%s4373 + $0x40] sm:$0xff]
        %v4383 = vld [vmem:[%s4373 + $0x48] sm:$0xff]
        %v4384 = vld [vmem:[%s4373 + $0x50] sm:$0xff]
        %v4385 = vld [vmem:[%s4373 + $0x58] sm:$0xff]
        %v4386 = vld [vmem:[%s4373 + $0x60] sm:$0xff]
        %v4387 = vld [vmem:[%s4373 + $0x68] sm:$0xff]
        %v4388 = vld [vmem:[%s4373 + $0x70] sm:$0xff]
        %v4389 = vld [vmem:[%s4373 + $0x78] sm:$0xff]
        %v4390 = vld [vmem:[%s4373 + $0x80] sm:$0xff]
        %v4391 = vld [vmem:[%s4373 + $0x88] sm:$0xff]
        %v4392 = vld [vmem:[%s4373 + $0x90] sm:$0xff]
        %v4393 = vld [vmem:[%s4373 + $0x98] sm:$0xff]
        %v4394 = vld [vmem:[%s4373 + $0xa0] sm:$0xff]
        %v4395 = vld [vmem:[%s4373 + $0xa8] sm:$0xff]
        %v4396 = vld [vmem:[%s4373 + $0xb0] sm:$0xff]
        %v4397 = vld [vmem:[%s4373 + $0xb8] sm:$0xff]
        %v4398 = vld [vmem:[%s4373 + $0xc0] sm:$0xff]
        %v4399 = vld [vmem:[%s4373 + $0xc8] sm:$0xff]
        %v4400 = vld [vmem:[%s4373 + $0xd0] sm:$0xff]
        %v4401 = vld [vmem:[%s4373 + $0xd8] sm:$0xff]
        %v4402 = vld [vmem:[%s4373 + $0xe0] sm:$0xff]
        %v4403 = vld [vmem:[%s4373 + $0xe8] sm:$0xff]
        %v4404 = vld [vmem:[%s4373 + $0xf0] sm:$0xff]
        %v4405 = vld [vmem:[%s4373 + $0xf8] sm:$0xff]
        %v4406 = vld [vmem:[%s4373 + $0x100] sm:$0xff]
        %v4407 = vld [vmem:[%s4373 + $0x108] sm:$0xff]
        %v4408 = vld [vmem:[%s4373 + $0x110] sm:$0xff]
        %v4409 = vld [vmem:[%s4373 + $0x118] sm:$0xff]
        %v4410 = vld [vmem:[%s4373 + $0x120] sm:$0xff]
        %v4411 = vld [vmem:[%s4373 + $0x128] sm:$0xff]
        %v4412 = vld [vmem:[%s4373 + $0x130] sm:$0xff]
        %v4413 = vld [vmem:[%s4373 + $0x138] sm:$0xff]
        %v4414 = vld [vmem:[%s4373 + $0x140] sm:$0xff]
        %v4415 = vld [vmem:[%s4373 + $0x148] sm:$0xff]
        %v4416 = vld [vmem:[%s4373 + $0x150] sm:$0xff]
        %v4417 = vld [vmem:[%s4373 + $0x158] sm:$0xff]
        %v4418 = vld [vmem:[%s4373 + $0x160] sm:$0xff]
        %v4419 = vld [vmem:[%s4373 + $0x168] sm:$0xff]
        %v4420 = vld [vmem:[%s4373 + $0x170] sm:$0xff]
        %v4421 = vld [vmem:[%s4373 + $0x178] sm:$0xff]
        %vm4422 = vcmask 1045504
        %v4423 = vrot.slane %v1259, 2
        %v4424 = vrot.slane %v1260, 2
        %v4425 = vsel %vm4422, %v4423, %v4424
        %v4426 = vsel %vm1364, %v4425, 0
        %4428 = vmatprep.subr.mxu0 0.0
        %4429 = vmatpush1.msra.mxu0 0.0
        %4430 = vmatprep.subr.mxu0 0.0
        %4431 = vmatpush1.msra.mxu0 0.0
        %4432 = vmatprep.subr.mxu0 0.0
        %4433 = vmatpush1.msra.mxu0 0.0
        %4434 = vmatprep.subr.mxu0 0.0
        %4435 = vmatpush1.msra.mxu0 0.0
        %v4436 = vand.u32 %v4419, 4294901760
        %4437 = vmatprep.subr.mxu0 %v4436
        %v4438 = vand.u32 %v4418, 4294901760
        %4439 = vmatpush1.msra.mxu0 %v4438
        %v4440 = vand.u32 %v4415, 4294901760
        %4441 = vmatprep.subr.mxu0 %v4440
        %v4442 = vand.u32 %v4414, 4294901760
        %4443 = vmatpush1.msra.mxu0 %v4442
        %v4444 = vand.u32 %v4411, 4294901760
        %4445 = vmatprep.subr.mxu0 %v4444
        %v4446 = vand.u32 %v4410, 4294901760
        %4447 = vmatpush1.msra.mxu0 %v4446
        %v4448 = vand.u32 %v4407, 4294901760
        %4449 = vmatprep.subr.mxu0 %v4448
        %v4450 = vand.u32 %v4406, 4294901760
        %4451 = vmatpush1.msra.mxu0 %v4450
        %v4452 = vand.u32 %v4403, 4294901760
        %4453 = vmatprep.subr.mxu0 %v4452
        %v4454 = vand.u32 %v4402, 4294901760
        %4455 = vmatpush1.msra.mxu0 %v4454
        %v4456 = vand.u32 %v4399, 4294901760
        %4457 = vmatprep.subr.mxu0 %v4456
        %v4458 = vand.u32 %v4398, 4294901760
        %4459 = vmatpush1.msra.mxu0 %v4458
        %v4460 = vand.u32 %v4395, 4294901760
        %4461 = vmatprep.subr.mxu0 %v4460
        %v4462 = vand.u32 %v4394, 4294901760
        %4463 = vmatpush1.msra.mxu0 %v4462
        %v4464 = vand.u32 %v4391, 4294901760
        %4465 = vmatprep.subr.mxu0 %v4464
        %v4466 = vand.u32 %v4390, 4294901760
        %4467 = vmatpush1.msra.mxu0 %v4466
        %v4468 = vand.u32 %v4387, 4294901760
        %4469 = vmatprep.subr.mxu0 %v4468
        %v4470 = vand.u32 %v4386, 4294901760
        %4471 = vmatpush1.msra.mxu0 %v4470
        %v4472 = vand.u32 %v4383, 4294901760
        %4473 = vmatprep.subr.mxu0 %v4472
        %v4474 = vand.u32 %v4382, 4294901760
        %4475 = vmatpush1.msra.mxu0 %v4474
        %v4476 = vand.u32 %v4379, 4294901760
        %4477 = vmatprep.subr.mxu0 %v4476
        %v4478 = vand.u32 %v4378, 4294901760
        %4479 = vmatpush1.msra.mxu0 %v4478
        %v4480 = vand.u32 %v4375, 4294901760
        %4481 = vmatprep.subr.mxu0 %v4480
        %v4482 = vand.u32 %v4374, 4294901760
        %4483 = vmatpush1.msra.mxu0 %v4482
        %4484 = vmatprep.subr.mxu0 0.0
        %4485 = vmatpush2.msra.mxu0 0.0
        %4486 = vmatprep.subr.mxu0 0.0
        %4487 = vmatpush2.msra.mxu0 0.0
        %4488 = vmatprep.subr.mxu0 0.0
        %4489 = vmatpush2.msra.mxu0 0.0
        %4490 = vmatprep.subr.mxu0 0.0
        %4491 = vmatpush2.msra.mxu0 0.0
        %4492 = vmatprep.subr.mxu0 0.0
        %4493 = vmatpush2.msra.mxu0 0.0
        %4494 = vmatprep.subr.mxu0 0.0
        %4495 = vmatpush2.msra.mxu0 0.0
        %4496 = vmatprep.subr.mxu0 0.0
        %4497 = vmatpush2.msra.mxu0 0.0
        %4498 = vmatprep.subr.mxu0 0.0
        %4499 = vmatpush2.msra.mxu0 0.0
        %4500 = vmatprep.subr.mxu0 0.0
        %4501 = vmatpush2.msra.mxu0 0.0
        %4502 = vmatprep.subr.mxu0 0.0
        %4503 = vmatpush2.msra.mxu0 0.0
        %4504 = vmatprep.subr.mxu0 0.0
        %4505 = vmatpush2.msra.mxu0 0.0
        %4506 = vmatprep.subr.mxu0 0.0
        %4507 = vmatpush2.msra.mxu0 0.0
        %4508 = vmatprep.subr.mxu0 0.0
        %4509 = vmatpush2.msra.mxu0 0.0
        %4510 = vmatprep.subr.mxu0 0.0
        %4511 = vmatpush2.msra.mxu0 0.0
        %4512 = vmatprep.subr.mxu0 0.0
        %4513 = vmatpush2.msra.mxu0 0.0
        %4514 = vmatprep.subr.mxu0 0.0
        %4515 = vmatpush2.msra.mxu0 0.0
        %4516 = vmatprep.mubr.f32.mxu0 0.0
        %v4517 = vand.u32 %v4426, 4294901760
        %v4518 = vsub.f32 %v4426, %v4517
        %v4519 = vand.u32 %v4518, 4294901760
        %v4520 = vsub.f32 %v4518, %v4519
        %v4521 = vand.u32 %v4520, 4294901760
        %4522 = vmatmul.mubr.f32.gmra.mxu0 %v4521
        %v4523 = vpop.f32.mrf.mxu0
        %v4524 = vadd.f32 0.0, %v4523
        %v4525 = vpop.f32.mrf.mxu0
        %v4526 = vadd.f32 0.0, %v4525
        %4527 = vdwg.mxu0
        %4528 = vmatprep.subr.mxu0 0.0
        %4529 = vmatpush1.msra.mxu0 0.0
        %4530 = vmatprep.subr.mxu0 0.0
        %4531 = vmatpush1.msra.mxu0 0.0
        %4532 = vmatprep.subr.mxu0 0.0
        %4533 = vmatpush1.msra.mxu0 0.0
        %4534 = vmatprep.subr.mxu0 0.0
        %4535 = vmatpush1.msra.mxu0 0.0
        %v4536 = vand.u32 %v4419, 4294901760
        %v4537 = vsub.f32 %v4419, %v4536
        %v4538 = vand.u32 %v4537, 4294901760
        %v4539 = vsub.f32 %v4537, %v4538
        %v4540 = vand.u32 %v4539, 4294901760
        %4541 = vmatprep.subr.mxu0 %v4540
        %v4542 = vand.u32 %v4418, 4294901760
        %v4543 = vsub.f32 %v4418, %v4542
        %v4544 = vand.u32 %v4543, 4294901760
        %v4545 = vsub.f32 %v4543, %v4544
        %v4546 = vand.u32 %v4545, 4294901760
        %4547 = vmatpush1.msra.mxu0 %v4546
        %v4548 = vand.u32 %v4415, 4294901760
        %v4549 = vsub.f32 %v4415, %v4548
        %v4550 = vand.u32 %v4549, 4294901760
        %v4551 = vsub.f32 %v4549, %v4550
        %v4552 = vand.u32 %v4551, 4294901760
        %4553 = vmatprep.subr.mxu0 %v4552
        %v4554 = vand.u32 %v4414, 4294901760
        %v4555 = vsub.f32 %v4414, %v4554
        %v4556 = vand.u32 %v4555, 4294901760
        %v4557 = vsub.f32 %v4555, %v4556
        %v4558 = vand.u32 %v4557, 4294901760
        %4559 = vmatpush1.msra.mxu0 %v4558
        %v4560 = vand.u32 %v4411, 4294901760
        %v4561 = vsub.f32 %v4411, %v4560
        %v4562 = vand.u32 %v4561, 4294901760
        %v4563 = vsub.f32 %v4561, %v4562
        %v4564 = vand.u32 %v4563, 4294901760
        %4565 = vmatprep.subr.mxu0 %v4564
        %v4566 = vand.u32 %v4410, 4294901760
        %v4567 = vsub.f32 %v4410, %v4566
        %v4568 = vand.u32 %v4567, 4294901760
        %v4569 = vsub.f32 %v4567, %v4568
        %v4570 = vand.u32 %v4569, 4294901760
        %4571 = vmatpush1.msra.mxu0 %v4570
        %v4572 = vand.u32 %v4407, 4294901760
        %v4573 = vsub.f32 %v4407, %v4572
        %v4574 = vand.u32 %v4573, 4294901760
        %v4575 = vsub.f32 %v4573, %v4574
        %v4576 = vand.u32 %v4575, 4294901760
        %4577 = vmatprep.subr.mxu0 %v4576
        %v4578 = vand.u32 %v4406, 4294901760
        %v4579 = vsub.f32 %v4406, %v4578
        %v4580 = vand.u32 %v4579, 4294901760
        %v4581 = vsub.f32 %v4579, %v4580
        %v4582 = vand.u32 %v4581, 4294901760
        %4583 = vmatpush1.msra.mxu0 %v4582
        %v4584 = vand.u32 %v4403, 4294901760
        %v4585 = vsub.f32 %v4403, %v4584
        %v4586 = vand.u32 %v4585, 4294901760
        %v4587 = vsub.f32 %v4585, %v4586
        %v4588 = vand.u32 %v4587, 4294901760
        %4589 = vmatprep.subr.mxu0 %v4588
        %v4590 = vand.u32 %v4402, 4294901760
        %v4591 = vsub.f32 %v4402, %v4590
        %v4592 = vand.u32 %v4591, 4294901760
        %v4593 = vsub.f32 %v4591, %v4592
        %v4594 = vand.u32 %v4593, 4294901760
        %4595 = vmatpush1.msra.mxu0 %v4594
        %v4596 = vand.u32 %v4399, 4294901760
        %v4597 = vsub.f32 %v4399, %v4596
        %v4598 = vand.u32 %v4597, 4294901760
        %v4599 = vsub.f32 %v4597, %v4598
        %v4600 = vand.u32 %v4599, 4294901760
        %4601 = vmatprep.subr.mxu0 %v4600
        %v4602 = vand.u32 %v4398, 4294901760
        %v4603 = vsub.f32 %v4398, %v4602
        %v4604 = vand.u32 %v4603, 4294901760
        %v4605 = vsub.f32 %v4603, %v4604
        %v4606 = vand.u32 %v4605, 4294901760
        %4607 = vmatpush1.msra.mxu0 %v4606
        %v4608 = vand.u32 %v4395, 4294901760
        %v4609 = vsub.f32 %v4395, %v4608
        %v4610 = vand.u32 %v4609, 4294901760
        %v4611 = vsub.f32 %v4609, %v4610
        %v4612 = vand.u32 %v4611, 4294901760
        %4613 = vmatprep.subr.mxu0 %v4612
        %v4614 = vand.u32 %v4394, 4294901760
        %v4615 = vsub.f32 %v4394, %v4614
        %v4616 = vand.u32 %v4615, 4294901760
        %v4617 = vsub.f32 %v4615, %v4616
        %v4618 = vand.u32 %v4617, 4294901760
        %4619 = vmatpush1.msra.mxu0 %v4618
        %v4620 = vand.u32 %v4391, 4294901760
        %v4621 = vsub.f32 %v4391, %v4620
        %v4622 = vand.u32 %v4621, 4294901760
        %v4623 = vsub.f32 %v4621, %v4622
        %v4624 = vand.u32 %v4623, 4294901760
        %4625 = vmatprep.subr.mxu0 %v4624
        %v4626 = vand.u32 %v4390, 4294901760
        %v4627 = vsub.f32 %v4390, %v4626
        %v4628 = vand.u32 %v4627, 4294901760
        %v4629 = vsub.f32 %v4627, %v4628
        %v4630 = vand.u32 %v4629, 4294901760
        %4631 = vmatpush1.msra.mxu0 %v4630
        %v4632 = vand.u32 %v4387, 4294901760
        %v4633 = vsub.f32 %v4387, %v4632
        %v4634 = vand.u32 %v4633, 4294901760
        %v4635 = vsub.f32 %v4633, %v4634
        %v4636 = vand.u32 %v4635, 4294901760
        %4637 = vmatprep.subr.mxu0 %v4636
        %v4638 = vand.u32 %v4386, 4294901760
        %v4639 = vsub.f32 %v4386, %v4638
        %v4640 = vand.u32 %v4639, 4294901760
        %v4641 = vsub.f32 %v4639, %v4640
        %v4642 = vand.u32 %v4641, 4294901760
        %4643 = vmatpush1.msra.mxu0 %v4642
        %v4644 = vand.u32 %v4383, 4294901760
        %v4645 = vsub.f32 %v4383, %v4644
        %v4646 = vand.u32 %v4645, 4294901760
        %v4647 = vsub.f32 %v4645, %v4646
        %v4648 = vand.u32 %v4647, 4294901760
        %4649 = vmatprep.subr.mxu0 %v4648
        %v4650 = vand.u32 %v4382, 4294901760
        %v4651 = vsub.f32 %v4382, %v4650
        %v4652 = vand.u32 %v4651, 4294901760
        %v4653 = vsub.f32 %v4651, %v4652
        %v4654 = vand.u32 %v4653, 4294901760
        %4655 = vmatpush1.msra.mxu0 %v4654
        %v4656 = vand.u32 %v4379, 4294901760
        %v4657 = vsub.f32 %v4379, %v4656
        %v4658 = vand.u32 %v4657, 4294901760
        %v4659 = vsub.f32 %v4657, %v4658
        %v4660 = vand.u32 %v4659, 4294901760
        %4661 = vmatprep.subr.mxu0 %v4660
        %v4662 = vand.u32 %v4378, 4294901760
        %v4663 = vsub.f32 %v4378, %v4662
        %v4664 = vand.u32 %v4663, 4294901760
        %v4665 = vsub.f32 %v4663, %v4664
        %v4666 = vand.u32 %v4665, 4294901760
        %4667 = vmatpush1.msra.mxu0 %v4666
        %v4668 = vand.u32 %v4375, 4294901760
        %v4669 = vsub.f32 %v4375, %v4668
        %v4670 = vand.u32 %v4669, 4294901760
        %v4671 = vsub.f32 %v4669, %v4670
        %v4672 = vand.u32 %v4671, 4294901760
        %4673 = vmatprep.subr.mxu0 %v4672
        %v4674 = vand.u32 %v4374, 4294901760
        %v4675 = vsub.f32 %v4374, %v4674
        %v4676 = vand.u32 %v4675, 4294901760
        %v4677 = vsub.f32 %v4675, %v4676
        %v4678 = vand.u32 %v4677, 4294901760
        %4679 = vmatpush1.msra.mxu0 %v4678
        %4680 = vmatprep.subr.mxu0 0.0
        %4681 = vmatpush2.msra.mxu0 0.0
        %4682 = vmatprep.subr.mxu0 0.0
        %4683 = vmatpush2.msra.mxu0 0.0
        %4684 = vmatprep.subr.mxu0 0.0
        %4685 = vmatpush2.msra.mxu0 0.0
        %4686 = vmatprep.subr.mxu0 0.0
        %4687 = vmatpush2.msra.mxu0 0.0
        %4688 = vmatprep.subr.mxu0 0.0
        %4689 = vmatpush2.msra.mxu0 0.0
        %4690 = vmatprep.subr.mxu0 0.0
        %4691 = vmatpush2.msra.mxu0 0.0
        %4692 = vmatprep.subr.mxu0 0.0
        %4693 = vmatpush2.msra.mxu0 0.0
        %4694 = vmatprep.subr.mxu0 0.0
        %4695 = vmatpush2.msra.mxu0 0.0
        %4696 = vmatprep.subr.mxu0 0.0
        %4697 = vmatpush2.msra.mxu0 0.0
        %4698 = vmatprep.subr.mxu0 0.0
        %4699 = vmatpush2.msra.mxu0 0.0
        %4700 = vmatprep.subr.mxu0 0.0
        %4701 = vmatpush2.msra.mxu0 0.0
        %4702 = vmatprep.subr.mxu0 0.0
        %4703 = vmatpush2.msra.mxu0 0.0
        %4704 = vmatprep.subr.mxu0 0.0
        %4705 = vmatpush2.msra.mxu0 0.0
        %4706 = vmatprep.subr.mxu0 0.0
        %4707 = vmatpush2.msra.mxu0 0.0
        %4708 = vmatprep.subr.mxu0 0.0
        %4709 = vmatpush2.msra.mxu0 0.0
        %4710 = vmatprep.subr.mxu0 0.0
        %4711 = vmatpush2.msra.mxu0 0.0
        %4712 = vmatprep.mubr.f32.mxu0 0.0
        %v4713 = vand.u32 %v4426, 4294901760
        %4714 = vmatmul.mubr.f32.gmra.mxu0 %v4713
        %v4715 = vpop.f32.mrf.mxu0
        %v4716 = vadd.f32 %v4524, %v4715
        %v4717 = vpop.f32.mrf.mxu0
        %v4718 = vadd.f32 %v4526, %v4717
        %4719 = vdwg.mxu0
        %4720 = vmatprep.subr.mxu0 0.0
        %4721 = vmatpush1.msra.mxu0 0.0
        %4722 = vmatprep.subr.mxu0 0.0
        %4723 = vmatpush1.msra.mxu0 0.0
        %4724 = vmatprep.subr.mxu0 0.0
        %4725 = vmatpush1.msra.mxu0 0.0
        %4726 = vmatprep.subr.mxu0 0.0
        %4727 = vmatpush1.msra.mxu0 0.0
        %v4728 = vand.u32 %v4419, 4294901760
        %v4729 = vsub.f32 %v4419, %v4728
        %4730 = vmatprep.subr.mxu0 %v4729
        %v4731 = vand.u32 %v4418, 4294901760
        %v4732 = vsub.f32 %v4418, %v4731
        %4733 = vmatpush1.msra.mxu0 %v4732
        %v4734 = vand.u32 %v4415, 4294901760
        %v4735 = vsub.f32 %v4415, %v4734
        %4736 = vmatprep.subr.mxu0 %v4735
        %v4737 = vand.u32 %v4414, 4294901760
        %v4738 = vsub.f32 %v4414, %v4737
        %4739 = vmatpush1.msra.mxu0 %v4738
        %v4740 = vand.u32 %v4411, 4294901760
        %v4741 = vsub.f32 %v4411, %v4740
        %4742 = vmatprep.subr.mxu0 %v4741
        %v4743 = vand.u32 %v4410, 4294901760
        %v4744 = vsub.f32 %v4410, %v4743
        %4745 = vmatpush1.msra.mxu0 %v4744
        %v4746 = vand.u32 %v4407, 4294901760
        %v4747 = vsub.f32 %v4407, %v4746
        %4748 = vmatprep.subr.mxu0 %v4747
        %v4749 = vand.u32 %v4406, 4294901760
        %v4750 = vsub.f32 %v4406, %v4749
        %4751 = vmatpush1.msra.mxu0 %v4750
        %v4752 = vand.u32 %v4403, 4294901760
        %v4753 = vsub.f32 %v4403, %v4752
        %4754 = vmatprep.subr.mxu0 %v4753
        %v4755 = vand.u32 %v4402, 4294901760
        %v4756 = vsub.f32 %v4402, %v4755
        %4757 = vmatpush1.msra.mxu0 %v4756
        %v4758 = vand.u32 %v4399, 4294901760
        %v4759 = vsub.f32 %v4399, %v4758
        %4760 = vmatprep.subr.mxu0 %v4759
        %v4761 = vand.u32 %v4398, 4294901760
        %v4762 = vsub.f32 %v4398, %v4761
        %4763 = vmatpush1.msra.mxu0 %v4762
        %v4764 = vand.u32 %v4395, 4294901760
        %v4765 = vsub.f32 %v4395, %v4764
        %4766 = vmatprep.subr.mxu0 %v4765
        %v4767 = vand.u32 %v4394, 4294901760
        %v4768 = vsub.f32 %v4394, %v4767
        %4769 = vmatpush1.msra.mxu0 %v4768
        %v4770 = vand.u32 %v4391, 4294901760
        %v4771 = vsub.f32 %v4391, %v4770
        %4772 = vmatprep.subr.mxu0 %v4771
        %v4773 = vand.u32 %v4390, 4294901760
        %v4774 = vsub.f32 %v4390, %v4773
        %4775 = vmatpush1.msra.mxu0 %v4774
        %v4776 = vand.u32 %v4387, 4294901760
        %v4777 = vsub.f32 %v4387, %v4776
        %4778 = vmatprep.subr.mxu0 %v4777
        %v4779 = vand.u32 %v4386, 4294901760
        %v4780 = vsub.f32 %v4386, %v4779
        %4781 = vmatpush1.msra.mxu0 %v4780
        %v4782 = vand.u32 %v4383, 4294901760
        %v4783 = vsub.f32 %v4383, %v4782
        %4784 = vmatprep.subr.mxu0 %v4783
        %v4785 = vand.u32 %v4382, 4294901760
        %v4786 = vsub.f32 %v4382, %v4785
        %4787 = vmatpush1.msra.mxu0 %v4786
        %v4788 = vand.u32 %v4379, 4294901760
        %v4789 = vsub.f32 %v4379, %v4788
        %4790 = vmatprep.subr.mxu0 %v4789
        %v4791 = vand.u32 %v4378, 4294901760
        %v4792 = vsub.f32 %v4378, %v4791
        %4793 = vmatpush1.msra.mxu0 %v4792
        %v4794 = vand.u32 %v4375, 4294901760
        %v4795 = vsub.f32 %v4375, %v4794
        %4796 = vmatprep.subr.mxu0 %v4795
        %v4797 = vand.u32 %v4374, 4294901760
        %v4798 = vsub.f32 %v4374, %v4797
        %4799 = vmatpush1.msra.mxu0 %v4798
        %4800 = vmatprep.subr.mxu0 0.0
        %4801 = vmatpush2.msra.mxu0 0.0
        %4802 = vmatprep.subr.mxu0 0.0
        %4803 = vmatpush2.msra.mxu0 0.0
        %4804 = vmatprep.subr.mxu0 0.0
        %4805 = vmatpush2.msra.mxu0 0.0
        %4806 = vmatprep.subr.mxu0 0.0
        %4807 = vmatpush2.msra.mxu0 0.0
        %4808 = vmatprep.subr.mxu0 0.0
        %4809 = vmatpush2.msra.mxu0 0.0
        %4810 = vmatprep.subr.mxu0 0.0
        %4811 = vmatpush2.msra.mxu0 0.0
        %4812 = vmatprep.subr.mxu0 0.0
        %4813 = vmatpush2.msra.mxu0 0.0
        %4814 = vmatprep.subr.mxu0 0.0
        %4815 = vmatpush2.msra.mxu0 0.0
        %4816 = vmatprep.subr.mxu0 0.0
        %4817 = vmatpush2.msra.mxu0 0.0
        %4818 = vmatprep.subr.mxu0 0.0
        %4819 = vmatpush2.msra.mxu0 0.0
        %4820 = vmatprep.subr.mxu0 0.0
        %4821 = vmatpush2.msra.mxu0 0.0
        %4822 = vmatprep.subr.mxu0 0.0
        %4823 = vmatpush2.msra.mxu0 0.0
        %4824 = vmatprep.subr.mxu0 0.0
        %4825 = vmatpush2.msra.mxu0 0.0
        %4826 = vmatprep.subr.mxu0 0.0
        %4827 = vmatpush2.msra.mxu0 0.0
        %4828 = vmatprep.subr.mxu0 0.0
        %4829 = vmatpush2.msra.mxu0 0.0
        %4830 = vmatprep.subr.mxu0 0.0
        %4831 = vmatpush2.msra.mxu0 0.0
        %4832 = vmatprep.mubr.f32.mxu0 0.0
        %v4833 = vand.u32 %v4426, 4294901760
        %v4834 = vsub.f32 %v4426, %v4833
        %4835 = vmatmul.mubr.f32.gmra.mxu0 %v4834
        %v4836 = vpop.f32.mrf.mxu0
        %v4837 = vadd.f32 %v4716, %v4836
        %v4838 = vpop.f32.mrf.mxu0
        %v4839 = vadd.f32 %v4718, %v4838
        %4840 = vdwg.mxu0
        %4841 = vmatprep.subr.mxu0 0.0
        %4842 = vmatpush1.msra.mxu0 0.0
        %4843 = vmatprep.subr.mxu0 0.0
        %4844 = vmatpush1.msra.mxu0 0.0
        %4845 = vmatprep.subr.mxu0 0.0
        %4846 = vmatpush1.msra.mxu0 0.0
        %4847 = vmatprep.subr.mxu0 0.0
        %4848 = vmatpush1.msra.mxu0 0.0
        %v4849 = vand.u32 %v4419, 4294901760
        %4850 = vmatprep.subr.mxu0 %v4849
        %v4851 = vand.u32 %v4418, 4294901760
        %4852 = vmatpush1.msra.mxu0 %v4851
        %v4853 = vand.u32 %v4415, 4294901760
        %4854 = vmatprep.subr.mxu0 %v4853
        %v4855 = vand.u32 %v4414, 4294901760
        %4856 = vmatpush1.msra.mxu0 %v4855
        %v4857 = vand.u32 %v4411, 4294901760
        %4858 = vmatprep.subr.mxu0 %v4857
        %v4859 = vand.u32 %v4410, 4294901760
        %4860 = vmatpush1.msra.mxu0 %v4859
        %v4861 = vand.u32 %v4407, 4294901760
        %4862 = vmatprep.subr.mxu0 %v4861
        %v4863 = vand.u32 %v4406, 4294901760
        %4864 = vmatpush1.msra.mxu0 %v4863
        %v4865 = vand.u32 %v4403, 4294901760
        %4866 = vmatprep.subr.mxu0 %v4865
        %v4867 = vand.u32 %v4402, 4294901760
        %4868 = vmatpush1.msra.mxu0 %v4867
        %v4869 = vand.u32 %v4399, 4294901760
        %4870 = vmatprep.subr.mxu0 %v4869
        %v4871 = vand.u32 %v4398, 4294901760
        %4872 = vmatpush1.msra.mxu0 %v4871
        %v4873 = vand.u32 %v4395, 4294901760
        %4874 = vmatprep.subr.mxu0 %v4873
        %v4875 = vand.u32 %v4394, 4294901760
        %4876 = vmatpush1.msra.mxu0 %v4875
        %v4877 = vand.u32 %v4391, 4294901760
        %4878 = vmatprep.subr.mxu0 %v4877
        %v4879 = vand.u32 %v4390, 4294901760
        %4880 = vmatpush1.msra.mxu0 %v4879
        %v4881 = vand.u32 %v4387, 4294901760
        %4882 = vmatprep.subr.mxu0 %v4881
        %v4883 = vand.u32 %v4386, 4294901760
        %4884 = vmatpush1.msra.mxu0 %v4883
        %v4885 = vand.u32 %v4383, 4294901760
        %4886 = vmatprep.subr.mxu0 %v4885
        %v4887 = vand.u32 %v4382, 4294901760
        %4888 = vmatpush1.msra.mxu0 %v4887
        %v4889 = vand.u32 %v4379, 4294901760
        %4890 = vmatprep.subr.mxu0 %v4889
        %v4891 = vand.u32 %v4378, 4294901760
        %4892 = vmatpush1.msra.mxu0 %v4891
        %v4893 = vand.u32 %v4375, 4294901760
        %4894 = vmatprep.subr.mxu0 %v4893
        %v4895 = vand.u32 %v4374, 4294901760
        %4896 = vmatpush1.msra.mxu0 %v4895
        %4897 = vmatprep.subr.mxu0 0.0
        %4898 = vmatpush2.msra.mxu0 0.0
        %4899 = vmatprep.subr.mxu0 0.0
        %4900 = vmatpush2.msra.mxu0 0.0
        %4901 = vmatprep.subr.mxu0 0.0
        %4902 = vmatpush2.msra.mxu0 0.0
        %4903 = vmatprep.subr.mxu0 0.0
        %4904 = vmatpush2.msra.mxu0 0.0
        %4905 = vmatprep.subr.mxu0 0.0
        %4906 = vmatpush2.msra.mxu0 0.0
        %4907 = vmatprep.subr.mxu0 0.0
        %4908 = vmatpush2.msra.mxu0 0.0
        %4909 = vmatprep.subr.mxu0 0.0
        %4910 = vmatpush2.msra.mxu0 0.0
        %4911 = vmatprep.subr.mxu0 0.0
        %4912 = vmatpush2.msra.mxu0 0.0
        %4913 = vmatprep.subr.mxu0 0.0
        %4914 = vmatpush2.msra.mxu0 0.0
        %4915 = vmatprep.subr.mxu0 0.0
        %4916 = vmatpush2.msra.mxu0 0.0
        %4917 = vmatprep.subr.mxu0 0.0
        %4918 = vmatpush2.msra.mxu0 0.0
        %4919 = vmatprep.subr.mxu0 0.0
        %4920 = vmatpush2.msra.mxu0 0.0
        %4921 = vmatprep.subr.mxu0 0.0
        %4922 = vmatpush2.msra.mxu0 0.0
        %4923 = vmatprep.subr.mxu0 0.0
        %4924 = vmatpush2.msra.mxu0 0.0
        %4925 = vmatprep.subr.mxu0 0.0
        %4926 = vmatpush2.msra.mxu0 0.0
        %4927 = vmatprep.subr.mxu0 0.0
        %4928 = vmatpush2.msra.mxu0 0.0
        %4929 = vmatprep.mubr.f32.mxu0 0.0
        %v4930 = vand.u32 %v4426, 4294901760
        %v4931 = vsub.f32 %v4426, %v4930
        %v4932 = vand.u32 %v4931, 4294901760
        %4933 = vmatmul.mubr.f32.gmra.mxu0 %v4932
        %v4934 = vpop.f32.mrf.mxu0
        %v4935 = vadd.f32 %v4837, %v4934
        %v4936 = vpop.f32.mrf.mxu0
        %v4937 = vadd.f32 %v4839, %v4936
        %4938 = vdwg.mxu0
        %4939 = vmatprep.subr.mxu0 0.0
        %4940 = vmatpush1.msra.mxu0 0.0
        %4941 = vmatprep.subr.mxu0 0.0
        %4942 = vmatpush1.msra.mxu0 0.0
        %4943 = vmatprep.subr.mxu0 0.0
        %4944 = vmatpush1.msra.mxu0 0.0
        %4945 = vmatprep.subr.mxu0 0.0
        %4946 = vmatpush1.msra.mxu0 0.0
        %v4947 = vand.u32 %v4419, 4294901760
        %v4948 = vsub.f32 %v4419, %v4947
        %v4949 = vand.u32 %v4948, 4294901760
        %4950 = vmatprep.subr.mxu0 %v4949
        %v4951 = vand.u32 %v4418, 4294901760
        %v4952 = vsub.f32 %v4418, %v4951
        %v4953 = vand.u32 %v4952, 4294901760
        %4954 = vmatpush1.msra.mxu0 %v4953
        %v4955 = vand.u32 %v4415, 4294901760
        %v4956 = vsub.f32 %v4415, %v4955
        %v4957 = vand.u32 %v4956, 4294901760
        %4958 = vmatprep.subr.mxu0 %v4957
        %v4959 = vand.u32 %v4414, 4294901760
        %v4960 = vsub.f32 %v4414, %v4959
        %v4961 = vand.u32 %v4960, 4294901760
        %4962 = vmatpush1.msra.mxu0 %v4961
        %v4963 = vand.u32 %v4411, 4294901760
        %v4964 = vsub.f32 %v4411, %v4963
        %v4965 = vand.u32 %v4964, 4294901760
        %4966 = vmatprep.subr.mxu0 %v4965
        %v4967 = vand.u32 %v4410, 4294901760
        %v4968 = vsub.f32 %v4410, %v4967
        %v4969 = vand.u32 %v4968, 4294901760
        %4970 = vmatpush1.msra.mxu0 %v4969
        %v4971 = vand.u32 %v4407, 4294901760
        %v4972 = vsub.f32 %v4407, %v4971
        %v4973 = vand.u32 %v4972, 4294901760
        %4974 = vmatprep.subr.mxu0 %v4973
        %v4975 = vand.u32 %v4406, 4294901760
        %v4976 = vsub.f32 %v4406, %v4975
        %v4977 = vand.u32 %v4976, 4294901760
        %4978 = vmatpush1.msra.mxu0 %v4977
        %v4979 = vand.u32 %v4403, 4294901760
        %v4980 = vsub.f32 %v4403, %v4979
        %v4981 = vand.u32 %v4980, 4294901760
        %4982 = vmatprep.subr.mxu0 %v4981
        %v4983 = vand.u32 %v4402, 4294901760
        %v4984 = vsub.f32 %v4402, %v4983
        %v4985 = vand.u32 %v4984, 4294901760
        %4986 = vmatpush1.msra.mxu0 %v4985
        %v4987 = vand.u32 %v4399, 4294901760
        %v4988 = vsub.f32 %v4399, %v4987
        %v4989 = vand.u32 %v4988, 4294901760
        %4990 = vmatprep.subr.mxu0 %v4989
        %v4991 = vand.u32 %v4398, 4294901760
        %v4992 = vsub.f32 %v4398, %v4991
        %v4993 = vand.u32 %v4992, 4294901760
        %4994 = vmatpush1.msra.mxu0 %v4993
        %v4995 = vand.u32 %v4395, 4294901760
        %v4996 = vsub.f32 %v4395, %v4995
        %v4997 = vand.u32 %v4996, 4294901760
        %4998 = vmatprep.subr.mxu0 %v4997
        %v4999 = vand.u32 %v4394, 4294901760
        %v5000 = vsub.f32 %v4394, %v4999
        %v5001 = vand.u32 %v5000, 4294901760
        %5002 = vmatpush1.msra.mxu0 %v5001
        %v5003 = vand.u32 %v4391, 4294901760
        %v5004 = vsub.f32 %v4391, %v5003
        %v5005 = vand.u32 %v5004, 4294901760
        %5006 = vmatprep.subr.mxu0 %v5005
        %v5007 = vand.u32 %v4390, 4294901760
        %v5008 = vsub.f32 %v4390, %v5007
        %v5009 = vand.u32 %v5008, 4294901760
        %5010 = vmatpush1.msra.mxu0 %v5009
        %v5011 = vand.u32 %v4387, 4294901760
        %v5012 = vsub.f32 %v4387, %v5011
        %v5013 = vand.u32 %v5012, 4294901760
        %5014 = vmatprep.subr.mxu0 %v5013
        %v5015 = vand.u32 %v4386, 4294901760
        %v5016 = vsub.f32 %v4386, %v5015
        %v5017 = vand.u32 %v5016, 4294901760
        %5018 = vmatpush1.msra.mxu0 %v5017
        %v5019 = vand.u32 %v4383, 4294901760
        %v5020 = vsub.f32 %v4383, %v5019
        %v5021 = vand.u32 %v5020, 4294901760
        %5022 = vmatprep.subr.mxu0 %v5021
        %v5023 = vand.u32 %v4382, 4294901760
        %v5024 = vsub.f32 %v4382, %v5023
        %v5025 = vand.u32 %v5024, 4294901760
        %5026 = vmatpush1.msra.mxu0 %v5025
        %v5027 = vand.u32 %v4379, 4294901760
        %v5028 = vsub.f32 %v4379, %v5027
        %v5029 = vand.u32 %v5028, 4294901760
        %5030 = vmatprep.subr.mxu0 %v5029
        %v5031 = vand.u32 %v4378, 4294901760
        %v5032 = vsub.f32 %v4378, %v5031
        %v5033 = vand.u32 %v5032, 4294901760
        %5034 = vmatpush1.msra.mxu0 %v5033
        %v5035 = vand.u32 %v4375, 4294901760
        %v5036 = vsub.f32 %v4375, %v5035
        %v5037 = vand.u32 %v5036, 4294901760
        %5038 = vmatprep.subr.mxu0 %v5037
        %v5039 = vand.u32 %v4374, 4294901760
        %v5040 = vsub.f32 %v4374, %v5039
        %v5041 = vand.u32 %v5040, 4294901760
        %5042 = vmatpush1.msra.mxu0 %v5041
        %5043 = vmatprep.subr.mxu0 0.0
        %5044 = vmatpush2.msra.mxu0 0.0
        %5045 = vmatprep.subr.mxu0 0.0
        %5046 = vmatpush2.msra.mxu0 0.0
        %5047 = vmatprep.subr.mxu0 0.0
        %5048 = vmatpush2.msra.mxu0 0.0
        %5049 = vmatprep.subr.mxu0 0.0
        %5050 = vmatpush2.msra.mxu0 0.0
        %5051 = vmatprep.subr.mxu0 0.0
        %5052 = vmatpush2.msra.mxu0 0.0
        %5053 = vmatprep.subr.mxu0 0.0
        %5054 = vmatpush2.msra.mxu0 0.0
        %5055 = vmatprep.subr.mxu0 0.0
        %5056 = vmatpush2.msra.mxu0 0.0
        %5057 = vmatprep.subr.mxu0 0.0
        %5058 = vmatpush2.msra.mxu0 0.0
        %5059 = vmatprep.subr.mxu0 0.0
        %5060 = vmatpush2.msra.mxu0 0.0
        %5061 = vmatprep.subr.mxu0 0.0
        %5062 = vmatpush2.msra.mxu0 0.0
        %5063 = vmatprep.subr.mxu0 0.0
        %5064 = vmatpush2.msra.mxu0 0.0
        %5065 = vmatprep.subr.mxu0 0.0
        %5066 = vmatpush2.msra.mxu0 0.0
        %5067 = vmatprep.subr.mxu0 0.0
        %5068 = vmatpush2.msra.mxu0 0.0
        %5069 = vmatprep.subr.mxu0 0.0
        %5070 = vmatpush2.msra.mxu0 0.0
        %5071 = vmatprep.subr.mxu0 0.0
        %5072 = vmatpush2.msra.mxu0 0.0
        %5073 = vmatprep.subr.mxu0 0.0
        %5074 = vmatpush2.msra.mxu0 0.0
        %5075 = vmatprep.mubr.f32.mxu0 0.0
        %v5076 = vand.u32 %v4426, 4294901760
        %5077 = vmatmul.mubr.f32.gmra.mxu0 %v5076
        %v5078 = vpop.f32.mrf.mxu0
        %v5079 = vadd.f32 %v4935, %v5078
        %v5080 = vpop.f32.mrf.mxu0
        %v5081 = vadd.f32 %v4937, %v5080
        %5082 = vdwg.mxu0
        %5083 = vmatprep.subr.mxu0 0.0
        %5084 = vmatpush1.msra.mxu0 0.0
        %5085 = vmatprep.subr.mxu0 0.0
        %5086 = vmatpush1.msra.mxu0 0.0
        %5087 = vmatprep.subr.mxu0 0.0
        %5088 = vmatpush1.msra.mxu0 0.0
        %5089 = vmatprep.subr.mxu0 0.0
        %5090 = vmatpush1.msra.mxu0 0.0
        %v5091 = vand.u32 %v4419, 4294901760
        %5092 = vmatprep.subr.mxu0 %v5091
        %v5093 = vand.u32 %v4418, 4294901760
        %5094 = vmatpush1.msra.mxu0 %v5093
        %v5095 = vand.u32 %v4415, 4294901760
        %5096 = vmatprep.subr.mxu0 %v5095
        %v5097 = vand.u32 %v4414, 4294901760
        %5098 = vmatpush1.msra.mxu0 %v5097
        %v5099 = vand.u32 %v4411, 4294901760
        %5100 = vmatprep.subr.mxu0 %v5099
        %v5101 = vand.u32 %v4410, 4294901760
        %5102 = vmatpush1.msra.mxu0 %v5101
        %v5103 = vand.u32 %v4407, 4294901760
        %5104 = vmatprep.subr.mxu0 %v5103
        %v5105 = vand.u32 %v4406, 4294901760
        %5106 = vmatpush1.msra.mxu0 %v5105
        %v5107 = vand.u32 %v4403, 4294901760
        %5108 = vmatprep.subr.mxu0 %v5107
        %v5109 = vand.u32 %v4402, 4294901760
        %5110 = vmatpush1.msra.mxu0 %v5109
        %v5111 = vand.u32 %v4399, 4294901760
        %5112 = vmatprep.subr.mxu0 %v5111
        %v5113 = vand.u32 %v4398, 4294901760
        %5114 = vmatpush1.msra.mxu0 %v5113
        %v5115 = vand.u32 %v4395, 4294901760
        %5116 = vmatprep.subr.mxu0 %v5115
        %v5117 = vand.u32 %v4394, 4294901760
        %5118 = vmatpush1.msra.mxu0 %v5117
        %v5119 = vand.u32 %v4391, 4294901760
        %5120 = vmatprep.subr.mxu0 %v5119
        %v5121 = vand.u32 %v4390, 4294901760
        %5122 = vmatpush1.msra.mxu0 %v5121
        %v5123 = vand.u32 %v4387, 4294901760
        %5124 = vmatprep.subr.mxu0 %v5123
        %v5125 = vand.u32 %v4386, 4294901760
        %5126 = vmatpush1.msra.mxu0 %v5125
        %v5127 = vand.u32 %v4383, 4294901760
        %5128 = vmatprep.subr.mxu0 %v5127
        %v5129 = vand.u32 %v4382, 4294901760
        %5130 = vmatpush1.msra.mxu0 %v5129
        %v5131 = vand.u32 %v4379, 4294901760
        %5132 = vmatprep.subr.mxu0 %v5131
        %v5133 = vand.u32 %v4378, 4294901760
        %5134 = vmatpush1.msra.mxu0 %v5133
        %v5135 = vand.u32 %v4375, 4294901760
        %5136 = vmatprep.subr.mxu0 %v5135
        %v5137 = vand.u32 %v4374, 4294901760
        %5138 = vmatpush1.msra.mxu0 %v5137
        %5139 = vmatprep.subr.mxu0 0.0
        %5140 = vmatpush2.msra.mxu0 0.0
        %5141 = vmatprep.subr.mxu0 0.0
        %5142 = vmatpush2.msra.mxu0 0.0
        %5143 = vmatprep.subr.mxu0 0.0
        %5144 = vmatpush2.msra.mxu0 0.0
        %5145 = vmatprep.subr.mxu0 0.0
        %5146 = vmatpush2.msra.mxu0 0.0
        %5147 = vmatprep.subr.mxu0 0.0
        %5148 = vmatpush2.msra.mxu0 0.0
        %5149 = vmatprep.subr.mxu0 0.0
        %5150 = vmatpush2.msra.mxu0 0.0
        %5151 = vmatprep.subr.mxu0 0.0
        %5152 = vmatpush2.msra.mxu0 0.0
        %5153 = vmatprep.subr.mxu0 0.0
        %5154 = vmatpush2.msra.mxu0 0.0
        %5155 = vmatprep.subr.mxu0 0.0
        %5156 = vmatpush2.msra.mxu0 0.0
        %5157 = vmatprep.subr.mxu0 0.0
        %5158 = vmatpush2.msra.mxu0 0.0
        %5159 = vmatprep.subr.mxu0 0.0
        %5160 = vmatpush2.msra.mxu0 0.0
        %5161 = vmatprep.subr.mxu0 0.0
        %5162 = vmatpush2.msra.mxu0 0.0
        %5163 = vmatprep.subr.mxu0 0.0
        %5164 = vmatpush2.msra.mxu0 0.0
        %5165 = vmatprep.subr.mxu0 0.0
        %5166 = vmatpush2.msra.mxu0 0.0
        %5167 = vmatprep.subr.mxu0 0.0
        %5168 = vmatpush2.msra.mxu0 0.0
        %5169 = vmatprep.subr.mxu0 0.0
        %5170 = vmatpush2.msra.mxu0 0.0
        %5171 = vmatprep.mubr.f32.mxu0 0.0
        %v5172 = vand.u32 %v4426, 4294901760
        %5173 = vmatmul.mubr.f32.gmra.mxu0 %v5172
        %v5174 = vpop.f32.mrf.mxu0
        %v5175 = vadd.f32 %v5079, %v5174
        %v5176 = vpop.f32.mrf.mxu0
        %v5177 = vadd.f32 %v5081, %v5176
        %5178 = vdwg.mxu0
        %5179 = vmatprep.subr.mxu0 0.0
        %5180 = vmatpush1.msra.mxu0 0.0
        %5181 = vmatprep.subr.mxu0 0.0
        %5182 = vmatpush1.msra.mxu0 0.0
        %5183 = vmatprep.subr.mxu0 0.0
        %5184 = vmatpush1.msra.mxu0 0.0
        %5185 = vmatprep.subr.mxu0 0.0
        %5186 = vmatpush1.msra.mxu0 0.0
        %v5187 = vand.u32 %v4421, 4294901760
        %5188 = vmatprep.subr.mxu0 %v5187
        %v5189 = vand.u32 %v4420, 4294901760
        %5190 = vmatpush1.msra.mxu0 %v5189
        %v5191 = vand.u32 %v4417, 4294901760
        %5192 = vmatprep.subr.mxu0 %v5191
        %v5193 = vand.u32 %v4416, 4294901760
        %5194 = vmatpush1.msra.mxu0 %v5193
        %v5195 = vand.u32 %v4413, 4294901760
        %5196 = vmatprep.subr.mxu0 %v5195
        %v5197 = vand.u32 %v4412, 4294901760
        %5198 = vmatpush1.msra.mxu0 %v5197
        %v5199 = vand.u32 %v4409, 4294901760
        %5200 = vmatprep.subr.mxu0 %v5199
        %v5201 = vand.u32 %v4408, 4294901760
        %5202 = vmatpush1.msra.mxu0 %v5201
        %v5203 = vand.u32 %v4405, 4294901760
        %5204 = vmatprep.subr.mxu0 %v5203
        %v5205 = vand.u32 %v4404, 4294901760
        %5206 = vmatpush1.msra.mxu0 %v5205
        %v5207 = vand.u32 %v4401, 4294901760
        %5208 = vmatprep.subr.mxu0 %v5207
        %v5209 = vand.u32 %v4400, 4294901760
        %5210 = vmatpush1.msra.mxu0 %v5209
        %v5211 = vand.u32 %v4397, 4294901760
        %5212 = vmatprep.subr.mxu0 %v5211
        %v5213 = vand.u32 %v4396, 4294901760
        %5214 = vmatpush1.msra.mxu0 %v5213
        %v5215 = vand.u32 %v4393, 4294901760
        %5216 = vmatprep.subr.mxu0 %v5215
        %v5217 = vand.u32 %v4392, 4294901760
        %5218 = vmatpush1.msra.mxu0 %v5217
        %v5219 = vand.u32 %v4389, 4294901760
        %5220 = vmatprep.subr.mxu0 %v5219
        %v5221 = vand.u32 %v4388, 4294901760
        %5222 = vmatpush1.msra.mxu0 %v5221
        %v5223 = vand.u32 %v4385, 4294901760
        %5224 = vmatprep.subr.mxu0 %v5223
        %v5225 = vand.u32 %v4384, 4294901760
        %5226 = vmatpush1.msra.mxu0 %v5225
        %v5227 = vand.u32 %v4381, 4294901760
        %5228 = vmatprep.subr.mxu0 %v5227
        %v5229 = vand.u32 %v4380, 4294901760
        %5230 = vmatpush1.msra.mxu0 %v5229
        %v5231 = vand.u32 %v4377, 4294901760
        %5232 = vmatprep.subr.mxu0 %v5231
        %v5233 = vand.u32 %v4376, 4294901760
        %5234 = vmatpush1.msra.mxu0 %v5233
        %5235 = vmatprep.subr.mxu0 0.0
        %5236 = vmatpush2.msra.mxu0 0.0
        %5237 = vmatprep.subr.mxu0 0.0
        %5238 = vmatpush2.msra.mxu0 0.0
        %5239 = vmatprep.subr.mxu0 0.0
        %5240 = vmatpush2.msra.mxu0 0.0
        %5241 = vmatprep.subr.mxu0 0.0
        %5242 = vmatpush2.msra.mxu0 0.0
        %5243 = vmatprep.subr.mxu0 0.0
        %5244 = vmatpush2.msra.mxu0 0.0
        %5245 = vmatprep.subr.mxu0 0.0
        %5246 = vmatpush2.msra.mxu0 0.0
        %5247 = vmatprep.subr.mxu0 0.0
        %5248 = vmatpush2.msra.mxu0 0.0
        %5249 = vmatprep.subr.mxu0 0.0
        %5250 = vmatpush2.msra.mxu0 0.0
        %5251 = vmatprep.subr.mxu0 0.0
        %5252 = vmatpush2.msra.mxu0 0.0
        %5253 = vmatprep.subr.mxu0 0.0
        %5254 = vmatpush2.msra.mxu0 0.0
        %5255 = vmatprep.subr.mxu0 0.0
        %5256 = vmatpush2.msra.mxu0 0.0
        %5257 = vmatprep.subr.mxu0 0.0
        %5258 = vmatpush2.msra.mxu0 0.0
        %5259 = vmatprep.subr.mxu0 0.0
        %5260 = vmatpush2.msra.mxu0 0.0
        %5261 = vmatprep.subr.mxu0 0.0
        %5262 = vmatpush2.msra.mxu0 0.0
        %5263 = vmatprep.subr.mxu0 0.0
        %5264 = vmatpush2.msra.mxu0 0.0
        %5265 = vmatprep.subr.mxu0 0.0
        %5266 = vmatpush2.msra.mxu0 0.0
        %5267 = vmatprep.mubr.f32.mxu0 0.0
        %v5268 = vand.u32 %v4426, 4294901760
        %v5269 = vsub.f32 %v4426, %v5268
        %v5270 = vand.u32 %v5269, 4294901760
        %v5271 = vsub.f32 %v5269, %v5270
        %v5272 = vand.u32 %v5271, 4294901760
        %5273 = vmatmul.mubr.f32.gmra.mxu0 %v5272
        %v5274 = vpop.f32.mrf.mxu0
        %v5275 = vadd.f32 0.0, %v5274
        %v5276 = vpop.f32.mrf.mxu0
        %v5277 = vadd.f32 0.0, %v5276
        %5278 = vdwg.mxu0
        %5279 = vmatprep.subr.mxu0 0.0
        %5280 = vmatpush1.msra.mxu0 0.0
        %5281 = vmatprep.subr.mxu0 0.0
        %5282 = vmatpush1.msra.mxu0 0.0
        %5283 = vmatprep.subr.mxu0 0.0
        %5284 = vmatpush1.msra.mxu0 0.0
        %5285 = vmatprep.subr.mxu0 0.0
        %5286 = vmatpush1.msra.mxu0 0.0
        %v5287 = vand.u32 %v4421, 4294901760
        %v5288 = vsub.f32 %v4421, %v5287
        %v5289 = vand.u32 %v5288, 4294901760
        %v5290 = vsub.f32 %v5288, %v5289
        %v5291 = vand.u32 %v5290, 4294901760
        %5292 = vmatprep.subr.mxu0 %v5291
        %v5293 = vand.u32 %v4420, 4294901760
        %v5294 = vsub.f32 %v4420, %v5293
        %v5295 = vand.u32 %v5294, 4294901760
        %v5296 = vsub.f32 %v5294, %v5295
        %v5297 = vand.u32 %v5296, 4294901760
        %5298 = vmatpush1.msra.mxu0 %v5297
        %v5299 = vand.u32 %v4417, 4294901760
        %v5300 = vsub.f32 %v4417, %v5299
        %v5301 = vand.u32 %v5300, 4294901760
        %v5302 = vsub.f32 %v5300, %v5301
        %v5303 = vand.u32 %v5302, 4294901760
        %5304 = vmatprep.subr.mxu0 %v5303
        %v5305 = vand.u32 %v4416, 4294901760
        %v5306 = vsub.f32 %v4416, %v5305
        %v5307 = vand.u32 %v5306, 4294901760
        %v5308 = vsub.f32 %v5306, %v5307
        %v5309 = vand.u32 %v5308, 4294901760
        %5310 = vmatpush1.msra.mxu0 %v5309
        %v5311 = vand.u32 %v4413, 4294901760
        %v5312 = vsub.f32 %v4413, %v5311
        %v5313 = vand.u32 %v5312, 4294901760
        %v5314 = vsub.f32 %v5312, %v5313
        %v5315 = vand.u32 %v5314, 4294901760
        %5316 = vmatprep.subr.mxu0 %v5315
        %v5317 = vand.u32 %v4412, 4294901760
        %v5318 = vsub.f32 %v4412, %v5317
        %v5319 = vand.u32 %v5318, 4294901760
        %v5320 = vsub.f32 %v5318, %v5319
        %v5321 = vand.u32 %v5320, 4294901760
        %5322 = vmatpush1.msra.mxu0 %v5321
        %v5323 = vand.u32 %v4409, 4294901760
        %v5324 = vsub.f32 %v4409, %v5323
        %v5325 = vand.u32 %v5324, 4294901760
        %v5326 = vsub.f32 %v5324, %v5325
        %v5327 = vand.u32 %v5326, 4294901760
        %5328 = vmatprep.subr.mxu0 %v5327
        %v5329 = vand.u32 %v4408, 4294901760
        %v5330 = vsub.f32 %v4408, %v5329
        %v5331 = vand.u32 %v5330, 4294901760
        %v5332 = vsub.f32 %v5330, %v5331
        %v5333 = vand.u32 %v5332, 4294901760
        %5334 = vmatpush1.msra.mxu0 %v5333
        %v5335 = vand.u32 %v4405, 4294901760
        %v5336 = vsub.f32 %v4405, %v5335
        %v5337 = vand.u32 %v5336, 4294901760
        %v5338 = vsub.f32 %v5336, %v5337
        %v5339 = vand.u32 %v5338, 4294901760
        %5340 = vmatprep.subr.mxu0 %v5339
        %v5341 = vand.u32 %v4404, 4294901760
        %v5342 = vsub.f32 %v4404, %v5341
        %v5343 = vand.u32 %v5342, 4294901760
        %v5344 = vsub.f32 %v5342, %v5343
        %v5345 = vand.u32 %v5344, 4294901760
        %5346 = vmatpush1.msra.mxu0 %v5345
        %v5347 = vand.u32 %v4401, 4294901760
        %v5348 = vsub.f32 %v4401, %v5347
        %v5349 = vand.u32 %v5348, 4294901760
        %v5350 = vsub.f32 %v5348, %v5349
        %v5351 = vand.u32 %v5350, 4294901760
        %5352 = vmatprep.subr.mxu0 %v5351
        %v5353 = vand.u32 %v4400, 4294901760
        %v5354 = vsub.f32 %v4400, %v5353
        %v5355 = vand.u32 %v5354, 4294901760
        %v5356 = vsub.f32 %v5354, %v5355
        %v5357 = vand.u32 %v5356, 4294901760
        %5358 = vmatpush1.msra.mxu0 %v5357
        %v5359 = vand.u32 %v4397, 4294901760
        %v5360 = vsub.f32 %v4397, %v5359
        %v5361 = vand.u32 %v5360, 4294901760
        %v5362 = vsub.f32 %v5360, %v5361
        %v5363 = vand.u32 %v5362, 4294901760
        %5364 = vmatprep.subr.mxu0 %v5363
        %v5365 = vand.u32 %v4396, 4294901760
        %v5366 = vsub.f32 %v4396, %v5365
        %v5367 = vand.u32 %v5366, 4294901760
        %v5368 = vsub.f32 %v5366, %v5367
        %v5369 = vand.u32 %v5368, 4294901760
        %5370 = vmatpush1.msra.mxu0 %v5369
        %v5371 = vand.u32 %v4393, 4294901760
        %v5372 = vsub.f32 %v4393, %v5371
        %v5373 = vand.u32 %v5372, 4294901760
        %v5374 = vsub.f32 %v5372, %v5373
        %v5375 = vand.u32 %v5374, 4294901760
        %5376 = vmatprep.subr.mxu0 %v5375
        %v5377 = vand.u32 %v4392, 4294901760
        %v5378 = vsub.f32 %v4392, %v5377
        %v5379 = vand.u32 %v5378, 4294901760
        %v5380 = vsub.f32 %v5378, %v5379
        %v5381 = vand.u32 %v5380, 4294901760
        %5382 = vmatpush1.msra.mxu0 %v5381
        %v5383 = vand.u32 %v4389, 4294901760
        %v5384 = vsub.f32 %v4389, %v5383
        %v5385 = vand.u32 %v5384, 4294901760
        %v5386 = vsub.f32 %v5384, %v5385
        %v5387 = vand.u32 %v5386, 4294901760
        %5388 = vmatprep.subr.mxu0 %v5387
        %v5389 = vand.u32 %v4388, 4294901760
        %v5390 = vsub.f32 %v4388, %v5389
        %v5391 = vand.u32 %v5390, 4294901760
        %v5392 = vsub.f32 %v5390, %v5391
        %v5393 = vand.u32 %v5392, 4294901760
        %5394 = vmatpush1.msra.mxu0 %v5393
        %v5395 = vand.u32 %v4385, 4294901760
        %v5396 = vsub.f32 %v4385, %v5395
        %v5397 = vand.u32 %v5396, 4294901760
        %v5398 = vsub.f32 %v5396, %v5397
        %v5399 = vand.u32 %v5398, 4294901760
        %5400 = vmatprep.subr.mxu0 %v5399
        %v5401 = vand.u32 %v4384, 4294901760
        %v5402 = vsub.f32 %v4384, %v5401
        %v5403 = vand.u32 %v5402, 4294901760
        %v5404 = vsub.f32 %v5402, %v5403
        %v5405 = vand.u32 %v5404, 4294901760
        %5406 = vmatpush1.msra.mxu0 %v5405
        %v5407 = vand.u32 %v4381, 4294901760
        %v5408 = vsub.f32 %v4381, %v5407
        %v5409 = vand.u32 %v5408, 4294901760
        %v5410 = vsub.f32 %v5408, %v5409
        %v5411 = vand.u32 %v5410, 4294901760
        %5412 = vmatprep.subr.mxu0 %v5411
        %v5413 = vand.u32 %v4380, 4294901760
        %v5414 = vsub.f32 %v4380, %v5413
        %v5415 = vand.u32 %v5414, 4294901760
        %v5416 = vsub.f32 %v5414, %v5415
        %v5417 = vand.u32 %v5416, 4294901760
        %5418 = vmatpush1.msra.mxu0 %v5417
        %v5419 = vand.u32 %v4377, 4294901760
        %v5420 = vsub.f32 %v4377, %v5419
        %v5421 = vand.u32 %v5420, 4294901760
        %v5422 = vsub.f32 %v5420, %v5421
        %v5423 = vand.u32 %v5422, 4294901760
        %5424 = vmatprep.subr.mxu0 %v5423
        %v5425 = vand.u32 %v4376, 4294901760
        %v5426 = vsub.f32 %v4376, %v5425
        %v5427 = vand.u32 %v5426, 4294901760
        %v5428 = vsub.f32 %v5426, %v5427
        %v5429 = vand.u32 %v5428, 4294901760
        %5430 = vmatpush1.msra.mxu0 %v5429
        %5431 = vmatprep.subr.mxu0 0.0
        %5432 = vmatpush2.msra.mxu0 0.0
        %5433 = vmatprep.subr.mxu0 0.0
        %5434 = vmatpush2.msra.mxu0 0.0
        %5435 = vmatprep.subr.mxu0 0.0
        %5436 = vmatpush2.msra.mxu0 0.0
        %5437 = vmatprep.subr.mxu0 0.0
        %5438 = vmatpush2.msra.mxu0 0.0
        %5439 = vmatprep.subr.mxu0 0.0
        %5440 = vmatpush2.msra.mxu0 0.0
        %5441 = vmatprep.subr.mxu0 0.0
        %5442 = vmatpush2.msra.mxu0 0.0
        %5443 = vmatprep.subr.mxu0 0.0
        %5444 = vmatpush2.msra.mxu0 0.0
        %5445 = vmatprep.subr.mxu0 0.0
        %5446 = vmatpush2.msra.mxu0 0.0
        %5447 = vmatprep.subr.mxu0 0.0
        %5448 = vmatpush2.msra.mxu0 0.0
        %5449 = vmatprep.subr.mxu0 0.0
        %5450 = vmatpush2.msra.mxu0 0.0
        %5451 = vmatprep.subr.mxu0 0.0
        %5452 = vmatpush2.msra.mxu0 0.0
        %5453 = vmatprep.subr.mxu0 0.0
        %5454 = vmatpush2.msra.mxu0 0.0
        %5455 = vmatprep.subr.mxu0 0.0
        %5456 = vmatpush2.msra.mxu0 0.0
        %5457 = vmatprep.subr.mxu0 0.0
        %5458 = vmatpush2.msra.mxu0 0.0
        %5459 = vmatprep.subr.mxu0 0.0
        %5460 = vmatpush2.msra.mxu0 0.0
        %5461 = vmatprep.subr.mxu0 0.0
        %5462 = vmatpush2.msra.mxu0 0.0
        %5463 = vmatprep.mubr.f32.mxu0 0.0
        %v5464 = vand.u32 %v4426, 4294901760
        %5465 = vmatmul.mubr.f32.gmra.mxu0 %v5464
        %v5466 = vpop.f32.mrf.mxu0
        %v5467 = vadd.f32 %v5275, %v5466
        %v5468 = vpop.f32.mrf.mxu0
        %v5469 = vadd.f32 %v5277, %v5468
        %5470 = vdwg.mxu0
        %5471 = vmatprep.subr.mxu0 0.0
        %5472 = vmatpush1.msra.mxu0 0.0
        %5473 = vmatprep.subr.mxu0 0.0
        %5474 = vmatpush1.msra.mxu0 0.0
        %5475 = vmatprep.subr.mxu0 0.0
        %5476 = vmatpush1.msra.mxu0 0.0
        %5477 = vmatprep.subr.mxu0 0.0
        %5478 = vmatpush1.msra.mxu0 0.0
        %v5479 = vand.u32 %v4421, 4294901760
        %v5480 = vsub.f32 %v4421, %v5479
        %5481 = vmatprep.subr.mxu0 %v5480
        %v5482 = vand.u32 %v4420, 4294901760
        %v5483 = vsub.f32 %v4420, %v5482
        %5484 = vmatpush1.msra.mxu0 %v5483
        %v5485 = vand.u32 %v4417, 4294901760
        %v5486 = vsub.f32 %v4417, %v5485
        %5487 = vmatprep.subr.mxu0 %v5486
        %v5488 = vand.u32 %v4416, 4294901760
        %v5489 = vsub.f32 %v4416, %v5488
        %5490 = vmatpush1.msra.mxu0 %v5489
        %v5491 = vand.u32 %v4413, 4294901760
        %v5492 = vsub.f32 %v4413, %v5491
        %5493 = vmatprep.subr.mxu0 %v5492
        %v5494 = vand.u32 %v4412, 4294901760
        %v5495 = vsub.f32 %v4412, %v5494
        %5496 = vmatpush1.msra.mxu0 %v5495
        %v5497 = vand.u32 %v4409, 4294901760
        %v5498 = vsub.f32 %v4409, %v5497
        %5499 = vmatprep.subr.mxu0 %v5498
        %v5500 = vand.u32 %v4408, 4294901760
        %v5501 = vsub.f32 %v4408, %v5500
        %5502 = vmatpush1.msra.mxu0 %v5501
        %v5503 = vand.u32 %v4405, 4294901760
        %v5504 = vsub.f32 %v4405, %v5503
        %5505 = vmatprep.subr.mxu0 %v5504
        %v5506 = vand.u32 %v4404, 4294901760
        %v5507 = vsub.f32 %v4404, %v5506
        %5508 = vmatpush1.msra.mxu0 %v5507
        %v5509 = vand.u32 %v4401, 4294901760
        %v5510 = vsub.f32 %v4401, %v5509
        %5511 = vmatprep.subr.mxu0 %v5510
        %v5512 = vand.u32 %v4400, 4294901760
        %v5513 = vsub.f32 %v4400, %v5512
        %5514 = vmatpush1.msra.mxu0 %v5513
        %v5515 = vand.u32 %v4397, 4294901760
        %v5516 = vsub.f32 %v4397, %v5515
        %5517 = vmatprep.subr.mxu0 %v5516
        %v5518 = vand.u32 %v4396, 4294901760
        %v5519 = vsub.f32 %v4396, %v5518
        %5520 = vmatpush1.msra.mxu0 %v5519
        %v5521 = vand.u32 %v4393, 4294901760
        %v5522 = vsub.f32 %v4393, %v5521
        %5523 = vmatprep.subr.mxu0 %v5522
        %v5524 = vand.u32 %v4392, 4294901760
        %v5525 = vsub.f32 %v4392, %v5524
        %5526 = vmatpush1.msra.mxu0 %v5525
        %v5527 = vand.u32 %v4389, 4294901760
        %v5528 = vsub.f32 %v4389, %v5527
        %5529 = vmatprep.subr.mxu0 %v5528
        %v5530 = vand.u32 %v4388, 4294901760
        %v5531 = vsub.f32 %v4388, %v5530
        %5532 = vmatpush1.msra.mxu0 %v5531
        %v5533 = vand.u32 %v4385, 4294901760
        %v5534 = vsub.f32 %v4385, %v5533
        %5535 = vmatprep.subr.mxu0 %v5534
        %v5536 = vand.u32 %v4384, 4294901760
        %v5537 = vsub.f32 %v4384, %v5536
        %5538 = vmatpush1.msra.mxu0 %v5537
        %v5539 = vand.u32 %v4381, 4294901760
        %v5540 = vsub.f32 %v4381, %v5539
        %5541 = vmatprep.subr.mxu0 %v5540
        %v5542 = vand.u32 %v4380, 4294901760
        %v5543 = vsub.f32 %v4380, %v5542
        %5544 = vmatpush1.msra.mxu0 %v5543
        %v5545 = vand.u32 %v4377, 4294901760
        %v5546 = vsub.f32 %v4377, %v5545
        %5547 = vmatprep.subr.mxu0 %v5546
        %v5548 = vand.u32 %v4376, 4294901760
        %v5549 = vsub.f32 %v4376, %v5548
        %5550 = vmatpush1.msra.mxu0 %v5549
        %5551 = vmatprep.subr.mxu0 0.0
        %5552 = vmatpush2.msra.mxu0 0.0
        %5553 = vmatprep.subr.mxu0 0.0
        %5554 = vmatpush2.msra.mxu0 0.0
        %5555 = vmatprep.subr.mxu0 0.0
        %5556 = vmatpush2.msra.mxu0 0.0
        %5557 = vmatprep.subr.mxu0 0.0
        %5558 = vmatpush2.msra.mxu0 0.0
        %5559 = vmatprep.subr.mxu0 0.0
        %5560 = vmatpush2.msra.mxu0 0.0
        %5561 = vmatprep.subr.mxu0 0.0
        %5562 = vmatpush2.msra.mxu0 0.0
        %5563 = vmatprep.subr.mxu0 0.0
        %5564 = vmatpush2.msra.mxu0 0.0
        %5565 = vmatprep.subr.mxu0 0.0
        %5566 = vmatpush2.msra.mxu0 0.0
        %5567 = vmatprep.subr.mxu0 0.0
        %5568 = vmatpush2.msra.mxu0 0.0
        %5569 = vmatprep.subr.mxu0 0.0
        %5570 = vmatpush2.msra.mxu0 0.0
        %5571 = vmatprep.subr.mxu0 0.0
        %5572 = vmatpush2.msra.mxu0 0.0
        %5573 = vmatprep.subr.mxu0 0.0
        %5574 = vmatpush2.msra.mxu0 0.0
        %5575 = vmatprep.subr.mxu0 0.0
        %5576 = vmatpush2.msra.mxu0 0.0
        %5577 = vmatprep.subr.mxu0 0.0
        %5578 = vmatpush2.msra.mxu0 0.0
        %5579 = vmatprep.subr.mxu0 0.0
        %5580 = vmatpush2.msra.mxu0 0.0
        %5581 = vmatprep.subr.mxu0 0.0
        %5582 = vmatpush2.msra.mxu0 0.0
        %5583 = vmatprep.mubr.f32.mxu0 0.0
        %v5584 = vand.u32 %v4426, 4294901760
        %v5585 = vsub.f32 %v4426, %v5584
        %5586 = vmatmul.mubr.f32.gmra.mxu0 %v5585
        %v5587 = vpop.f32.mrf.mxu0
        %v5588 = vadd.f32 %v5467, %v5587
        %v5589 = vpop.f32.mrf.mxu0
        %v5590 = vadd.f32 %v5469, %v5589
        %5591 = vdwg.mxu0
        %5592 = vmatprep.subr.mxu0 0.0
        %5593 = vmatpush1.msra.mxu0 0.0
        %5594 = vmatprep.subr.mxu0 0.0
        %5595 = vmatpush1.msra.mxu0 0.0
        %5596 = vmatprep.subr.mxu0 0.0
        %5597 = vmatpush1.msra.mxu0 0.0
        %5598 = vmatprep.subr.mxu0 0.0
        %5599 = vmatpush1.msra.mxu0 0.0
        %v5600 = vand.u32 %v4421, 4294901760
        %5601 = vmatprep.subr.mxu0 %v5600
        %v5602 = vand.u32 %v4420, 4294901760
        %5603 = vmatpush1.msra.mxu0 %v5602
        %v5604 = vand.u32 %v4417, 4294901760
        %5605 = vmatprep.subr.mxu0 %v5604
        %v5606 = vand.u32 %v4416, 4294901760
        %5607 = vmatpush1.msra.mxu0 %v5606
        %v5608 = vand.u32 %v4413, 4294901760
        %5609 = vmatprep.subr.mxu0 %v5608
        %v5610 = vand.u32 %v4412, 4294901760
        %5611 = vmatpush1.msra.mxu0 %v5610
        %v5612 = vand.u32 %v4409, 4294901760
        %5613 = vmatprep.subr.mxu0 %v5612
        %v5614 = vand.u32 %v4408, 4294901760
        %5615 = vmatpush1.msra.mxu0 %v5614
        %v5616 = vand.u32 %v4405, 4294901760
        %5617 = vmatprep.subr.mxu0 %v5616
        %v5618 = vand.u32 %v4404, 4294901760
        %5619 = vmatpush1.msra.mxu0 %v5618
        %v5620 = vand.u32 %v4401, 4294901760
        %5621 = vmatprep.subr.mxu0 %v5620
        %v5622 = vand.u32 %v4400, 4294901760
        %5623 = vmatpush1.msra.mxu0 %v5622
        %v5624 = vand.u32 %v4397, 4294901760
        %5625 = vmatprep.subr.mxu0 %v5624
        %v5626 = vand.u32 %v4396, 4294901760
        %5627 = vmatpush1.msra.mxu0 %v5626
        %v5628 = vand.u32 %v4393, 4294901760
        %5629 = vmatprep.subr.mxu0 %v5628
        %v5630 = vand.u32 %v4392, 4294901760
        %5631 = vmatpush1.msra.mxu0 %v5630
        %v5632 = vand.u32 %v4389, 4294901760
        %5633 = vmatprep.subr.mxu0 %v5632
        %v5634 = vand.u32 %v4388, 4294901760
        %5635 = vmatpush1.msra.mxu0 %v5634
        %v5636 = vand.u32 %v4385, 4294901760
        %5637 = vmatprep.subr.mxu0 %v5636
        %v5638 = vand.u32 %v4384, 4294901760
        %5639 = vmatpush1.msra.mxu0 %v5638
        %v5640 = vand.u32 %v4381, 4294901760
        %5641 = vmatprep.subr.mxu0 %v5640
        %v5642 = vand.u32 %v4380, 4294901760
        %5643 = vmatpush1.msra.mxu0 %v5642
        %v5644 = vand.u32 %v4377, 4294901760
        %5645 = vmatprep.subr.mxu0 %v5644
        %v5646 = vand.u32 %v4376, 4294901760
        %5647 = vmatpush1.msra.mxu0 %v5646
        %5648 = vmatprep.subr.mxu0 0.0
        %5649 = vmatpush2.msra.mxu0 0.0
        %5650 = vmatprep.subr.mxu0 0.0
        %5651 = vmatpush2.msra.mxu0 0.0
        %5652 = vmatprep.subr.mxu0 0.0
        %5653 = vmatpush2.msra.mxu0 0.0
        %5654 = vmatprep.subr.mxu0 0.0
        %5655 = vmatpush2.msra.mxu0 0.0
        %5656 = vmatprep.subr.mxu0 0.0
        %5657 = vmatpush2.msra.mxu0 0.0
        %5658 = vmatprep.subr.mxu0 0.0
        %5659 = vmatpush2.msra.mxu0 0.0
        %5660 = vmatprep.subr.mxu0 0.0
        %5661 = vmatpush2.msra.mxu0 0.0
        %5662 = vmatprep.subr.mxu0 0.0
        %5663 = vmatpush2.msra.mxu0 0.0
        %5664 = vmatprep.subr.mxu0 0.0
        %5665 = vmatpush2.msra.mxu0 0.0
        %5666 = vmatprep.subr.mxu0 0.0
        %5667 = vmatpush2.msra.mxu0 0.0
        %5668 = vmatprep.subr.mxu0 0.0
        %5669 = vmatpush2.msra.mxu0 0.0
        %5670 = vmatprep.subr.mxu0 0.0
        %5671 = vmatpush2.msra.mxu0 0.0
        %5672 = vmatprep.subr.mxu0 0.0
        %5673 = vmatpush2.msra.mxu0 0.0
        %5674 = vmatprep.subr.mxu0 0.0
        %5675 = vmatpush2.msra.mxu0 0.0
        %5676 = vmatprep.subr.mxu0 0.0
        %5677 = vmatpush2.msra.mxu0 0.0
        %5678 = vmatprep.subr.mxu0 0.0
        %5679 = vmatpush2.msra.mxu0 0.0
        %5680 = vmatprep.mubr.f32.mxu0 0.0
        %v5681 = vand.u32 %v4426, 4294901760
        %v5682 = vsub.f32 %v4426, %v5681
        %v5683 = vand.u32 %v5682, 4294901760
        %5684 = vmatmul.mubr.f32.gmra.mxu0 %v5683
        %v5685 = vpop.f32.mrf.mxu0
        %v5686 = vadd.f32 %v5588, %v5685
        %v5687 = vpop.f32.mrf.mxu0
        %v5688 = vadd.f32 %v5590, %v5687
        %5689 = vdwg.mxu0
        %5690 = vmatprep.subr.mxu0 0.0
        %5691 = vmatpush1.msra.mxu0 0.0
        %5692 = vmatprep.subr.mxu0 0.0
        %5693 = vmatpush1.msra.mxu0 0.0
        %5694 = vmatprep.subr.mxu0 0.0
        %5695 = vmatpush1.msra.mxu0 0.0
        %5696 = vmatprep.subr.mxu0 0.0
        %5697 = vmatpush1.msra.mxu0 0.0
        %v5698 = vand.u32 %v4421, 4294901760
        %v5699 = vsub.f32 %v4421, %v5698
        %v5700 = vand.u32 %v5699, 4294901760
        %5701 = vmatprep.subr.mxu0 %v5700
        %v5702 = vand.u32 %v4420, 4294901760
        %v5703 = vsub.f32 %v4420, %v5702
        %v5704 = vand.u32 %v5703, 4294901760
        %5705 = vmatpush1.msra.mxu0 %v5704
        %v5706 = vand.u32 %v4417, 4294901760
        %v5707 = vsub.f32 %v4417, %v5706
        %v5708 = vand.u32 %v5707, 4294901760
        %5709 = vmatprep.subr.mxu0 %v5708
        %v5710 = vand.u32 %v4416, 4294901760
        %v5711 = vsub.f32 %v4416, %v5710
        %v5712 = vand.u32 %v5711, 4294901760
        %5713 = vmatpush1.msra.mxu0 %v5712
        %v5714 = vand.u32 %v4413, 4294901760
        %v5715 = vsub.f32 %v4413, %v5714
        %v5716 = vand.u32 %v5715, 4294901760
        %5717 = vmatprep.subr.mxu0 %v5716
        %v5718 = vand.u32 %v4412, 4294901760
        %v5719 = vsub.f32 %v4412, %v5718
        %v5720 = vand.u32 %v5719, 4294901760
        %5721 = vmatpush1.msra.mxu0 %v5720
        %v5722 = vand.u32 %v4409, 4294901760
        %v5723 = vsub.f32 %v4409, %v5722
        %v5724 = vand.u32 %v5723, 4294901760
        %5725 = vmatprep.subr.mxu0 %v5724
        %v5726 = vand.u32 %v4408, 4294901760
        %v5727 = vsub.f32 %v4408, %v5726
        %v5728 = vand.u32 %v5727, 4294901760
        %5729 = vmatpush1.msra.mxu0 %v5728
        %v5730 = vand.u32 %v4405, 4294901760
        %v5731 = vsub.f32 %v4405, %v5730
        %v5732 = vand.u32 %v5731, 4294901760
        %5733 = vmatprep.subr.mxu0 %v5732
        %v5734 = vand.u32 %v4404, 4294901760
        %v5735 = vsub.f32 %v4404, %v5734
        %v5736 = vand.u32 %v5735, 4294901760
        %5737 = vmatpush1.msra.mxu0 %v5736
        %v5738 = vand.u32 %v4401, 4294901760
        %v5739 = vsub.f32 %v4401, %v5738
        %v5740 = vand.u32 %v5739, 4294901760
        %5741 = vmatprep.subr.mxu0 %v5740
        %v5742 = vand.u32 %v4400, 4294901760
        %v5743 = vsub.f32 %v4400, %v5742
        %v5744 = vand.u32 %v5743, 4294901760
        %5745 = vmatpush1.msra.mxu0 %v5744
        %v5746 = vand.u32 %v4397, 4294901760
        %v5747 = vsub.f32 %v4397, %v5746
        %v5748 = vand.u32 %v5747, 4294901760
        %5749 = vmatprep.subr.mxu0 %v5748
        %v5750 = vand.u32 %v4396, 4294901760
        %v5751 = vsub.f32 %v4396, %v5750
        %v5752 = vand.u32 %v5751, 4294901760
        %5753 = vmatpush1.msra.mxu0 %v5752
        %v5754 = vand.u32 %v4393, 4294901760
        %v5755 = vsub.f32 %v4393, %v5754
        %v5756 = vand.u32 %v5755, 4294901760
        %5757 = vmatprep.subr.mxu0 %v5756
        %v5758 = vand.u32 %v4392, 4294901760
        %v5759 = vsub.f32 %v4392, %v5758
        %v5760 = vand.u32 %v5759, 4294901760
        %5761 = vmatpush1.msra.mxu0 %v5760
        %v5762 = vand.u32 %v4389, 4294901760
        %v5763 = vsub.f32 %v4389, %v5762
        %v5764 = vand.u32 %v5763, 4294901760
        %5765 = vmatprep.subr.mxu0 %v5764
        %v5766 = vand.u32 %v4388, 4294901760
        %v5767 = vsub.f32 %v4388, %v5766
        %v5768 = vand.u32 %v5767, 4294901760
        %5769 = vmatpush1.msra.mxu0 %v5768
        %v5770 = vand.u32 %v4385, 4294901760
        %v5771 = vsub.f32 %v4385, %v5770
        %v5772 = vand.u32 %v5771, 4294901760
        %5773 = vmatprep.subr.mxu0 %v5772
        %v5774 = vand.u32 %v4384, 4294901760
        %v5775 = vsub.f32 %v4384, %v5774
        %v5776 = vand.u32 %v5775, 4294901760
        %5777 = vmatpush1.msra.mxu0 %v5776
        %v5778 = vand.u32 %v4381, 4294901760
        %v5779 = vsub.f32 %v4381, %v5778
        %v5780 = vand.u32 %v5779, 4294901760
        %5781 = vmatprep.subr.mxu0 %v5780
        %v5782 = vand.u32 %v4380, 4294901760
        %v5783 = vsub.f32 %v4380, %v5782
        %v5784 = vand.u32 %v5783, 4294901760
        %5785 = vmatpush1.msra.mxu0 %v5784
        %v5786 = vand.u32 %v4377, 4294901760
        %v5787 = vsub.f32 %v4377, %v5786
        %v5788 = vand.u32 %v5787, 4294901760
        %5789 = vmatprep.subr.mxu0 %v5788
        %v5790 = vand.u32 %v4376, 4294901760
        %v5791 = vsub.f32 %v4376, %v5790
        %v5792 = vand.u32 %v5791, 4294901760
        %5793 = vmatpush1.msra.mxu0 %v5792
        %5794 = vmatprep.subr.mxu0 0.0
        %5795 = vmatpush2.msra.mxu0 0.0
        %5796 = vmatprep.subr.mxu0 0.0
        %5797 = vmatpush2.msra.mxu0 0.0
        %5798 = vmatprep.subr.mxu0 0.0
        %5799 = vmatpush2.msra.mxu0 0.0
        %5800 = vmatprep.subr.mxu0 0.0
        %5801 = vmatpush2.msra.mxu0 0.0
        %5802 = vmatprep.subr.mxu0 0.0
        %5803 = vmatpush2.msra.mxu0 0.0
        %5804 = vmatprep.subr.mxu0 0.0
        %5805 = vmatpush2.msra.mxu0 0.0
        %5806 = vmatprep.subr.mxu0 0.0
        %5807 = vmatpush2.msra.mxu0 0.0
        %5808 = vmatprep.subr.mxu0 0.0
        %5809 = vmatpush2.msra.mxu0 0.0
        %5810 = vmatprep.subr.mxu0 0.0
        %5811 = vmatpush2.msra.mxu0 0.0
        %5812 = vmatprep.subr.mxu0 0.0
        %5813 = vmatpush2.msra.mxu0 0.0
        %5814 = vmatprep.subr.mxu0 0.0
        %5815 = vmatpush2.msra.mxu0 0.0
        %5816 = vmatprep.subr.mxu0 0.0
        %5817 = vmatpush2.msra.mxu0 0.0
        %5818 = vmatprep.subr.mxu0 0.0
        %5819 = vmatpush2.msra.mxu0 0.0
        %5820 = vmatprep.subr.mxu0 0.0
        %5821 = vmatpush2.msra.mxu0 0.0
        %5822 = vmatprep.subr.mxu0 0.0
        %5823 = vmatpush2.msra.mxu0 0.0
        %5824 = vmatprep.subr.mxu0 0.0
        %5825 = vmatpush2.msra.mxu0 0.0
        %5826 = vmatprep.mubr.f32.mxu0 0.0
        %v5827 = vand.u32 %v4426, 4294901760
        %5828 = vmatmul.mubr.f32.gmra.mxu0 %v5827
        %v5829 = vpop.f32.mrf.mxu0
        %v5830 = vadd.f32 %v5686, %v5829
        %v5831 = vpop.f32.mrf.mxu0
        %v5832 = vadd.f32 %v5688, %v5831
        %5833 = vdwg.mxu0
        %5834 = vmatprep.subr.mxu0 0.0
        %5835 = vmatpush1.msra.mxu0 0.0
        %5836 = vmatprep.subr.mxu0 0.0
        %5837 = vmatpush1.msra.mxu0 0.0
        %5838 = vmatprep.subr.mxu0 0.0
        %5839 = vmatpush1.msra.mxu0 0.0
        %5840 = vmatprep.subr.mxu0 0.0
        %5841 = vmatpush1.msra.mxu0 0.0
        %v5842 = vand.u32 %v4421, 4294901760
        %5843 = vmatprep.subr.mxu0 %v5842
        %v5844 = vand.u32 %v4420, 4294901760
        %5845 = vmatpush1.msra.mxu0 %v5844
        %v5846 = vand.u32 %v4417, 4294901760
        %5847 = vmatprep.subr.mxu0 %v5846
        %v5848 = vand.u32 %v4416, 4294901760
        %5849 = vmatpush1.msra.mxu0 %v5848
        %v5850 = vand.u32 %v4413, 4294901760
        %5851 = vmatprep.subr.mxu0 %v5850
        %v5852 = vand.u32 %v4412, 4294901760
        %5853 = vmatpush1.msra.mxu0 %v5852
        %v5854 = vand.u32 %v4409, 4294901760
        %5855 = vmatprep.subr.mxu0 %v5854
        %v5856 = vand.u32 %v4408, 4294901760
        %5857 = vmatpush1.msra.mxu0 %v5856
        %v5858 = vand.u32 %v4405, 4294901760
        %5859 = vmatprep.subr.mxu0 %v5858
        %v5860 = vand.u32 %v4404, 4294901760
        %5861 = vmatpush1.msra.mxu0 %v5860
        %v5862 = vand.u32 %v4401, 4294901760
        %5863 = vmatprep.subr.mxu0 %v5862
        %v5864 = vand.u32 %v4400, 4294901760
        %5865 = vmatpush1.msra.mxu0 %v5864
        %v5866 = vand.u32 %v4397, 4294901760
        %5867 = vmatprep.subr.mxu0 %v5866
        %v5868 = vand.u32 %v4396, 4294901760
        %5869 = vmatpush1.msra.mxu0 %v5868
        %v5870 = vand.u32 %v4393, 4294901760
        %5871 = vmatprep.subr.mxu0 %v5870
        %v5872 = vand.u32 %v4392, 4294901760
        %5873 = vmatpush1.msra.mxu0 %v5872
        %v5874 = vand.u32 %v4389, 4294901760
        %5875 = vmatprep.subr.mxu0 %v5874
        %v5876 = vand.u32 %v4388, 4294901760
        %5877 = vmatpush1.msra.mxu0 %v5876
        %v5878 = vand.u32 %v4385, 4294901760
        %5879 = vmatprep.subr.mxu0 %v5878
        %v5880 = vand.u32 %v4384, 4294901760
        %5881 = vmatpush1.msra.mxu0 %v5880
        %v5882 = vand.u32 %v4381, 4294901760
        %5883 = vmatprep.subr.mxu0 %v5882
        %v5884 = vand.u32 %v4380, 4294901760
        %5885 = vmatpush1.msra.mxu0 %v5884
        %v5886 = vand.u32 %v4377, 4294901760
        %5887 = vmatprep.subr.mxu0 %v5886
        %v5888 = vand.u32 %v4376, 4294901760
        %5889 = vmatpush1.msra.mxu0 %v5888
        %5890 = vmatprep.subr.mxu0 0.0
        %5891 = vmatpush2.msra.mxu0 0.0
        %5892 = vmatprep.subr.mxu0 0.0
        %5893 = vmatpush2.msra.mxu0 0.0
        %5894 = vmatprep.subr.mxu0 0.0
        %5895 = vmatpush2.msra.mxu0 0.0
        %5896 = vmatprep.subr.mxu0 0.0
        %5897 = vmatpush2.msra.mxu0 0.0
        %5898 = vmatprep.subr.mxu0 0.0
        %5899 = vmatpush2.msra.mxu0 0.0
        %5900 = vmatprep.subr.mxu0 0.0
        %5901 = vmatpush2.msra.mxu0 0.0
        %5902 = vmatprep.subr.mxu0 0.0
        %5903 = vmatpush2.msra.mxu0 0.0
        %5904 = vmatprep.subr.mxu0 0.0
        %5905 = vmatpush2.msra.mxu0 0.0
        %5906 = vmatprep.subr.mxu0 0.0
        %5907 = vmatpush2.msra.mxu0 0.0
        %5908 = vmatprep.subr.mxu0 0.0
        %5909 = vmatpush2.msra.mxu0 0.0
        %5910 = vmatprep.subr.mxu0 0.0
        %5911 = vmatpush2.msra.mxu0 0.0
        %5912 = vmatprep.subr.mxu0 0.0
        %5913 = vmatpush2.msra.mxu0 0.0
        %5914 = vmatprep.subr.mxu0 0.0
        %5915 = vmatpush2.msra.mxu0 0.0
        %5916 = vmatprep.subr.mxu0 0.0
        %5917 = vmatpush2.msra.mxu0 0.0
        %5918 = vmatprep.subr.mxu0 0.0
        %5919 = vmatpush2.msra.mxu0 0.0
        %5920 = vmatprep.subr.mxu0 0.0
        %5921 = vmatpush2.msra.mxu0 0.0
        %5922 = vmatprep.mubr.f32.mxu0 0.0
        %v5923 = vand.u32 %v4426, 4294901760
        %5924 = vmatmul.mubr.f32.gmra.mxu0 %v5923
        %v5925 = vpop.f32.mrf.mxu0
        %v5926 = vadd.f32 %v5830, %v5925
        %v5927 = vpop.f32.mrf.mxu0
        %v5928 = vadd.f32 %v5832, %v5927
        %5929 = vdwg.mxu0
        %v5930 = vadd.f32 %v3618, %v5175
        %v5931 = vadd.f32 %v3620, %v5177
        %v5932 = vadd.f32 %v4369, %v5926
        %v5933 = vadd.f32 %v4371, %v5928
        %v5934 = vld [vmem:[%s6] sm:$0xf]
        %v5936 = vlaneseq
        %v5937 = vshrl.u32 %v5936, 7
        %v5938 = vsub.s32 0, %v5937
        %v5939 = vrot.slane %v5934, %v5938
        %v5940 = vlaneseq
        %v5941 = vshrl.u32 %v5940, 7
        %v5942 = vsub.s32 1, %v5941
        %v5943 = vrot.slane %v5934, %v5942
        %v5944 = vlaneseq
        %v5945 = vshrl.u32 %v5944, 7
        %v5946 = vsub.s32 2, %v5945
        %v5947 = vrot.slane %v5934, %v5946
        %v5948 = vlaneseq
        %v5949 = vshrl.u32 %v5948, 7
        %v5950 = vsub.s32 3, %v5949
        %v5951 = vrot.slane %v5934, %v5950
        %v5956 = vadd.f32 %v5930, %v5939
        %v5957 = vadd.f32 %v5931, %v5943
        %v5958 = vadd.f32 %v5932, %v5947
        %v5959 = vadd.f32 %v5933, %v5951
        %v5960 = vmax.f32 %v5956, 0.0
        %v5961 = vmax.f32 %v5957, 0.0
        %v5962 = vmax.f32 %v5958, 0.0
        %v5963 = vmax.f32 %v5959, 0.0
        %v5964 = vld [vmem:[%s7] sm:$0xff]
        %v5965 = vld [vmem:[%s7 + $0x8] sm:$0xff]
        %v5966 = vld [vmem:[%s7 + $0x10] sm:$0xff]
        %v5967 = vld [vmem:[%s7 + $0x18] sm:$0xff]
        %v5968 = vld [vmem:[%s7 + $0x20] sm:$0xff]
        %v5969 = vld [vmem:[%s7 + $0x28] sm:$0xff]
        %v5970 = vld [vmem:[%s7 + $0x30] sm:$0xff]
        %v5971 = vld [vmem:[%s7 + $0x38] sm:$0xff]
        %v5972 = vld [vmem:[%s7 + $0x40] sm:$0xff]
        %v5973 = vld [vmem:[%s7 + $0x48] sm:$0xff]
        %v5974 = vld [vmem:[%s7 + $0x50] sm:$0xff]
        %v5975 = vld [vmem:[%s7 + $0x58] sm:$0xff]
        %v5976 = vld [vmem:[%s7 + $0x60] sm:$0xff]
        %v5977 = vld [vmem:[%s7 + $0x68] sm:$0xff]
        %v5978 = vld [vmem:[%s7 + $0x70] sm:$0xff]
        %v5979 = vld [vmem:[%s7 + $0x78] sm:$0xff]
        %v5980 = vld [vmem:[%s7 + $0x80] sm:$0xff]
        %v5981 = vld [vmem:[%s7 + $0x88] sm:$0xff]
        %v5982 = vld [vmem:[%s7 + $0x90] sm:$0xff]
        %v5983 = vld [vmem:[%s7 + $0x98] sm:$0xff]
        %v5984 = vld [vmem:[%s7 + $0xa0] sm:$0xff]
        %v5985 = vld [vmem:[%s7 + $0xa8] sm:$0xff]
        %v5986 = vld [vmem:[%s7 + $0xb0] sm:$0xff]
        %v5987 = vld [vmem:[%s7 + $0xb8] sm:$0xff]
        %v5988 = vld [vmem:[%s7 + $0xc0] sm:$0xff]
        %v5989 = vld [vmem:[%s7 + $0xc8] sm:$0xff]
        %v5990 = vld [vmem:[%s7 + $0xd0] sm:$0xff]
        %v5991 = vld [vmem:[%s7 + $0xd8] sm:$0xff]
        %v5992 = vld [vmem:[%s7 + $0xe0] sm:$0xff]
        %v5993 = vld [vmem:[%s7 + $0xe8] sm:$0xff]
        %v5994 = vld [vmem:[%s7 + $0xf0] sm:$0xff]
        %v5995 = vld [vmem:[%s7 + $0xf8] sm:$0xff]
        %v5996 = vld [vmem:[%s7 + $0x100] sm:$0xff]
        %v5997 = vld [vmem:[%s7 + $0x108] sm:$0xff]
        %v5998 = vld [vmem:[%s7 + $0x110] sm:$0xff]
        %v5999 = vld [vmem:[%s7 + $0x118] sm:$0xff]
        %v6000 = vld [vmem:[%s7 + $0x120] sm:$0xff]
        %v6001 = vld [vmem:[%s7 + $0x128] sm:$0xff]
        %v6002 = vld [vmem:[%s7 + $0x130] sm:$0xff]
        %v6003 = vld [vmem:[%s7 + $0x138] sm:$0xff]
        %v6004 = vld [vmem:[%s7 + $0x140] sm:$0xff]
        %v6005 = vld [vmem:[%s7 + $0x148] sm:$0xff]
        %v6006 = vld [vmem:[%s7 + $0x150] sm:$0xff]
        %v6007 = vld [vmem:[%s7 + $0x158] sm:$0xff]
        %v6008 = vld [vmem:[%s7 + $0x160] sm:$0xff]
        %v6009 = vld [vmem:[%s7 + $0x168] sm:$0xff]
        %v6010 = vld [vmem:[%s7 + $0x170] sm:$0xff]
        %v6011 = vld [vmem:[%s7 + $0x178] sm:$0xff]
        %v6012 = vld [vmem:[%s7 + $0x180] sm:$0xff]
        %v6013 = vld [vmem:[%s7 + $0x188] sm:$0xff]
        %v6014 = vld [vmem:[%s7 + $0x190] sm:$0xff]
        %v6015 = vld [vmem:[%s7 + $0x198] sm:$0xff]
        %v6016 = vld [vmem:[%s7 + $0x1a0] sm:$0xff]
        %v6017 = vld [vmem:[%s7 + $0x1a8] sm:$0xff]
        %v6018 = vld [vmem:[%s7 + $0x1b0] sm:$0xff]
        %v6019 = vld [vmem:[%s7 + $0x1b8] sm:$0xff]
        %v6020 = vld [vmem:[%s7 + $0x1c0] sm:$0xff]
        %v6021 = vld [vmem:[%s7 + $0x1c8] sm:$0xff]
        %v6022 = vld [vmem:[%s7 + $0x1d0] sm:$0xff]
        %v6023 = vld [vmem:[%s7 + $0x1d8] sm:$0xff]
        %v6024 = vld [vmem:[%s7 + $0x1e0] sm:$0xff]
        %v6025 = vld [vmem:[%s7 + $0x1e8] sm:$0xff]
        %v6026 = vld [vmem:[%s7 + $0x1f0] sm:$0xff]
        %v6027 = vld [vmem:[%s7 + $0x1f8] sm:$0xff]
        %v6028 = vld [vmem:[%s8] sm:$0x1]
        %v6030 = vlaneseq
        %v6031 = vshrl.u32 %v6030, 7
        %v6032 = vsub.s32 0, %v6031
        %v6033 = vrot.slane %v6028, %v6032
        %6035 = vmatprep.subr.mxu0 0.0
        %v6036 = vand.u32 %v5979, 4294901760
        %6037 = vmatpush1.msra.mxu0 %v6036
        %6038 = vmatprep.subr.mxu0 0.0
        %v6039 = vand.u32 %v5978, 4294901760
        %6040 = vmatpush1.msra.mxu0 %v6039
        %6041 = vmatprep.subr.mxu0 0.0
        %v6042 = vand.u32 %v5977, 4294901760
        %6043 = vmatpush1.msra.mxu0 %v6042
        %6044 = vmatprep.subr.mxu0 0.0
        %v6045 = vand.u32 %v5976, 4294901760
        %6046 = vmatpush1.msra.mxu0 %v6045
        %6047 = vmatprep.subr.mxu0 0.0
        %v6048 = vand.u32 %v5975, 4294901760
        %6049 = vmatpush1.msra.mxu0 %v6048
        %6050 = vmatprep.subr.mxu0 0.0
        %v6051 = vand.u32 %v5974, 4294901760
        %6052 = vmatpush1.msra.mxu0 %v6051
        %6053 = vmatprep.subr.mxu0 0.0
        %v6054 = vand.u32 %v5973, 4294901760
        %6055 = vmatpush1.msra.mxu0 %v6054
        %6056 = vmatprep.subr.mxu0 0.0
        %v6057 = vand.u32 %v5972, 4294901760
        %6058 = vmatpush1.msra.mxu0 %v6057
        %6059 = vmatprep.subr.mxu0 0.0
        %v6060 = vand.u32 %v5971, 4294901760
        %6061 = vmatpush1.msra.mxu0 %v6060
        %6062 = vmatprep.subr.mxu0 0.0
        %v6063 = vand.u32 %v5970, 4294901760
        %6064 = vmatpush1.msra.mxu0 %v6063
        %6065 = vmatprep.subr.mxu0 0.0
        %v6066 = vand.u32 %v5969, 4294901760
        %6067 = vmatpush1.msra.mxu0 %v6066
        %6068 = vmatprep.subr.mxu0 0.0
        %v6069 = vand.u32 %v5968, 4294901760
        %6070 = vmatpush1.msra.mxu0 %v6069
        %6071 = vmatprep.subr.mxu0 0.0
        %v6072 = vand.u32 %v5967, 4294901760
        %6073 = vmatpush1.msra.mxu0 %v6072
        %6074 = vmatprep.subr.mxu0 0.0
        %v6075 = vand.u32 %v5966, 4294901760
        %6076 = vmatpush1.msra.mxu0 %v6075
        %6077 = vmatprep.subr.mxu0 0.0
        %v6078 = vand.u32 %v5965, 4294901760
        %6079 = vmatpush1.msra.mxu0 %v6078
        %6080 = vmatprep.subr.mxu0 0.0
        %v6081 = vand.u32 %v5964, 4294901760
        %6082 = vmatpush1.msra.mxu0 %v6081
        %6083 = vmatprep.subr.mxu0 0.0
        %v6084 = vand.u32 %v5995, 4294901760
        %6085 = vmatpush2.msra.mxu0 %v6084
        %6086 = vmatprep.subr.mxu0 0.0
        %v6087 = vand.u32 %v5994, 4294901760
        %6088 = vmatpush2.msra.mxu0 %v6087
        %6089 = vmatprep.subr.mxu0 0.0
        %v6090 = vand.u32 %v5993, 4294901760
        %6091 = vmatpush2.msra.mxu0 %v6090
        %6092 = vmatprep.subr.mxu0 0.0
        %v6093 = vand.u32 %v5992, 4294901760
        %6094 = vmatpush2.msra.mxu0 %v6093
        %6095 = vmatprep.subr.mxu0 0.0
        %v6096 = vand.u32 %v5991, 4294901760
        %6097 = vmatpush2.msra.mxu0 %v6096
        %6098 = vmatprep.subr.mxu0 0.0
        %v6099 = vand.u32 %v5990, 4294901760
        %6100 = vmatpush2.msra.mxu0 %v6099
        %6101 = vmatprep.subr.mxu0 0.0
        %v6102 = vand.u32 %v5989, 4294901760
        %6103 = vmatpush2.msra.mxu0 %v6102
        %6104 = vmatprep.subr.mxu0 0.0
        %v6105 = vand.u32 %v5988, 4294901760
        %6106 = vmatpush2.msra.mxu0 %v6105
        %6107 = vmatprep.subr.mxu0 0.0
        %v6108 = vand.u32 %v5987, 4294901760
        %6109 = vmatpush2.msra.mxu0 %v6108
        %6110 = vmatprep.subr.mxu0 0.0
        %v6111 = vand.u32 %v5986, 4294901760
        %6112 = vmatpush2.msra.mxu0 %v6111
        %6113 = vmatprep.subr.mxu0 0.0
        %v6114 = vand.u32 %v5985, 4294901760
        %6115 = vmatpush2.msra.mxu0 %v6114
        %6116 = vmatprep.subr.mxu0 0.0
        %v6117 = vand.u32 %v5984, 4294901760
        %6118 = vmatpush2.msra.mxu0 %v6117
        %6119 = vmatprep.subr.mxu0 0.0
        %v6120 = vand.u32 %v5983, 4294901760
        %6121 = vmatpush2.msra.mxu0 %v6120
        %6122 = vmatprep.subr.mxu0 0.0
        %v6123 = vand.u32 %v5982, 4294901760
        %6124 = vmatpush2.msra.mxu0 %v6123
        %6125 = vmatprep.subr.mxu0 0.0
        %v6126 = vand.u32 %v5981, 4294901760
        %6127 = vmatpush2.msra.mxu0 %v6126
        %6128 = vmatprep.subr.mxu0 0.0
        %v6129 = vand.u32 %v5980, 4294901760
        %6130 = vmatpush2.msra.mxu0 %v6129
        %v6131 = vand.u32 %v5961, 4294901760
        %v6132 = vsub.f32 %v5961, %v6131
        %v6133 = vand.u32 %v6132, 4294901760
        %v6134 = vsub.f32 %v6132, %v6133
        %v6135 = vand.u32 %v6134, 4294901760
        %6136 = vmatprep.mubr.f32.mxu0 %v6135
        %v6137 = vand.u32 %v5960, 4294901760
        %v6138 = vsub.f32 %v5960, %v6137
        %v6139 = vand.u32 %v6138, 4294901760
        %v6140 = vsub.f32 %v6138, %v6139
        %v6141 = vand.u32 %v6140, 4294901760
        %6142 = vmatmul.mubr.f32.gmra.mxu0 %v6141
        %v6143 = vpop.f32.mrf.mxu0
        %v6144 = vadd.f32 %v6033, %v6143
        %v6145 = vpop.f32.mrf.mxu0
        %6146 = vdwg.mxu0
        %6147 = vmatprep.subr.mxu0 0.0
        %v6148 = vand.u32 %v5979, 4294901760
        %v6149 = vsub.f32 %v5979, %v6148
        %v6150 = vand.u32 %v6149, 4294901760
        %v6151 = vsub.f32 %v6149, %v6150
        %v6152 = vand.u32 %v6151, 4294901760
        %6153 = vmatpush1.msra.mxu0 %v6152
        %6154 = vmatprep.subr.mxu0 0.0
        %v6155 = vand.u32 %v5978, 4294901760
        %v6156 = vsub.f32 %v5978, %v6155
        %v6157 = vand.u32 %v6156, 4294901760
        %v6158 = vsub.f32 %v6156, %v6157
        %v6159 = vand.u32 %v6158, 4294901760
        %6160 = vmatpush1.msra.mxu0 %v6159
        %6161 = vmatprep.subr.mxu0 0.0
        %v6162 = vand.u32 %v5977, 4294901760
        %v6163 = vsub.f32 %v5977, %v6162
        %v6164 = vand.u32 %v6163, 4294901760
        %v6165 = vsub.f32 %v6163, %v6164
        %v6166 = vand.u32 %v6165, 4294901760
        %6167 = vmatpush1.msra.mxu0 %v6166
        %6168 = vmatprep.subr.mxu0 0.0
        %v6169 = vand.u32 %v5976, 4294901760
        %v6170 = vsub.f32 %v5976, %v6169
        %v6171 = vand.u32 %v6170, 4294901760
        %v6172 = vsub.f32 %v6170, %v6171
        %v6173 = vand.u32 %v6172, 4294901760
        %6174 = vmatpush1.msra.mxu0 %v6173
        %6175 = vmatprep.subr.mxu0 0.0
        %v6176 = vand.u32 %v5975, 4294901760
        %v6177 = vsub.f32 %v5975, %v6176
        %v6178 = vand.u32 %v6177, 4294901760
        %v6179 = vsub.f32 %v6177, %v6178
        %v6180 = vand.u32 %v6179, 4294901760
        %6181 = vmatpush1.msra.mxu0 %v6180
        %6182 = vmatprep.subr.mxu0 0.0
        %v6183 = vand.u32 %v5974, 4294901760
        %v6184 = vsub.f32 %v5974, %v6183
        %v6185 = vand.u32 %v6184, 4294901760
        %v6186 = vsub.f32 %v6184, %v6185
        %v6187 = vand.u32 %v6186, 4294901760
        %6188 = vmatpush1.msra.mxu0 %v6187
        %6189 = vmatprep.subr.mxu0 0.0
        %v6190 = vand.u32 %v5973, 4294901760
        %v6191 = vsub.f32 %v5973, %v6190
        %v6192 = vand.u32 %v6191, 4294901760
        %v6193 = vsub.f32 %v6191, %v6192
        %v6194 = vand.u32 %v6193, 4294901760
        %6195 = vmatpush1.msra.mxu0 %v6194
        %6196 = vmatprep.subr.mxu0 0.0
        %v6197 = vand.u32 %v5972, 4294901760
        %v6198 = vsub.f32 %v5972, %v6197
        %v6199 = vand.u32 %v6198, 4294901760
        %v6200 = vsub.f32 %v6198, %v6199
        %v6201 = vand.u32 %v6200, 4294901760
        %6202 = vmatpush1.msra.mxu0 %v6201
        %6203 = vmatprep.subr.mxu0 0.0
        %v6204 = vand.u32 %v5971, 4294901760
        %v6205 = vsub.f32 %v5971, %v6204
        %v6206 = vand.u32 %v6205, 4294901760
        %v6207 = vsub.f32 %v6205, %v6206
        %v6208 = vand.u32 %v6207, 4294901760
        %6209 = vmatpush1.msra.mxu0 %v6208
        %6210 = vmatprep.subr.mxu0 0.0
        %v6211 = vand.u32 %v5970, 4294901760
        %v6212 = vsub.f32 %v5970, %v6211
        %v6213 = vand.u32 %v6212, 4294901760
        %v6214 = vsub.f32 %v6212, %v6213
        %v6215 = vand.u32 %v6214, 4294901760
        %6216 = vmatpush1.msra.mxu0 %v6215
        %6217 = vmatprep.subr.mxu0 0.0
        %v6218 = vand.u32 %v5969, 4294901760
        %v6219 = vsub.f32 %v5969, %v6218
        %v6220 = vand.u32 %v6219, 4294901760
        %v6221 = vsub.f32 %v6219, %v6220
        %v6222 = vand.u32 %v6221, 4294901760
        %6223 = vmatpush1.msra.mxu0 %v6222
        %6224 = vmatprep.subr.mxu0 0.0
        %v6225 = vand.u32 %v5968, 4294901760
        %v6226 = vsub.f32 %v5968, %v6225
        %v6227 = vand.u32 %v6226, 4294901760
        %v6228 = vsub.f32 %v6226, %v6227
        %v6229 = vand.u32 %v6228, 4294901760
        %6230 = vmatpush1.msra.mxu0 %v6229
        %6231 = vmatprep.subr.mxu0 0.0
        %v6232 = vand.u32 %v5967, 4294901760
        %v6233 = vsub.f32 %v5967, %v6232
        %v6234 = vand.u32 %v6233, 4294901760
        %v6235 = vsub.f32 %v6233, %v6234
        %v6236 = vand.u32 %v6235, 4294901760
        %6237 = vmatpush1.msra.mxu0 %v6236
        %6238 = vmatprep.subr.mxu0 0.0
        %v6239 = vand.u32 %v5966, 4294901760
        %v6240 = vsub.f32 %v5966, %v6239
        %v6241 = vand.u32 %v6240, 4294901760
        %v6242 = vsub.f32 %v6240, %v6241
        %v6243 = vand.u32 %v6242, 4294901760
        %6244 = vmatpush1.msra.mxu0 %v6243
        %6245 = vmatprep.subr.mxu0 0.0
        %v6246 = vand.u32 %v5965, 4294901760
        %v6247 = vsub.f32 %v5965, %v6246
        %v6248 = vand.u32 %v6247, 4294901760
        %v6249 = vsub.f32 %v6247, %v6248
        %v6250 = vand.u32 %v6249, 4294901760
        %6251 = vmatpush1.msra.mxu0 %v6250
        %6252 = vmatprep.subr.mxu0 0.0
        %v6253 = vand.u32 %v5964, 4294901760
        %v6254 = vsub.f32 %v5964, %v6253
        %v6255 = vand.u32 %v6254, 4294901760
        %v6256 = vsub.f32 %v6254, %v6255
        %v6257 = vand.u32 %v6256, 4294901760
        %6258 = vmatpush1.msra.mxu0 %v6257
        %6259 = vmatprep.subr.mxu0 0.0
        %v6260 = vand.u32 %v5995, 4294901760
        %v6261 = vsub.f32 %v5995, %v6260
        %v6262 = vand.u32 %v6261, 4294901760
        %v6263 = vsub.f32 %v6261, %v6262
        %v6264 = vand.u32 %v6263, 4294901760
        %6265 = vmatpush2.msra.mxu0 %v6264
        %6266 = vmatprep.subr.mxu0 0.0
        %v6267 = vand.u32 %v5994, 4294901760
        %v6268 = vsub.f32 %v5994, %v6267
        %v6269 = vand.u32 %v6268, 4294901760
        %v6270 = vsub.f32 %v6268, %v6269
        %v6271 = vand.u32 %v6270, 4294901760
        %6272 = vmatpush2.msra.mxu0 %v6271
        %6273 = vmatprep.subr.mxu0 0.0
        %v6274 = vand.u32 %v5993, 4294901760
        %v6275 = vsub.f32 %v5993, %v6274
        %v6276 = vand.u32 %v6275, 4294901760
        %v6277 = vsub.f32 %v6275, %v6276
        %v6278 = vand.u32 %v6277, 4294901760
        %6279 = vmatpush2.msra.mxu0 %v6278
        %6280 = vmatprep.subr.mxu0 0.0
        %v6281 = vand.u32 %v5992, 4294901760
        %v6282 = vsub.f32 %v5992, %v6281
        %v6283 = vand.u32 %v6282, 4294901760
        %v6284 = vsub.f32 %v6282, %v6283
        %v6285 = vand.u32 %v6284, 4294901760
        %6286 = vmatpush2.msra.mxu0 %v6285
        %6287 = vmatprep.subr.mxu0 0.0
        %v6288 = vand.u32 %v5991, 4294901760
        %v6289 = vsub.f32 %v5991, %v6288
        %v6290 = vand.u32 %v6289, 4294901760
        %v6291 = vsub.f32 %v6289, %v6290
        %v6292 = vand.u32 %v6291, 4294901760
        %6293 = vmatpush2.msra.mxu0 %v6292
        %6294 = vmatprep.subr.mxu0 0.0
        %v6295 = vand.u32 %v5990, 4294901760
        %v6296 = vsub.f32 %v5990, %v6295
        %v6297 = vand.u32 %v6296, 4294901760
        %v6298 = vsub.f32 %v6296, %v6297
        %v6299 = vand.u32 %v6298, 4294901760
        %6300 = vmatpush2.msra.mxu0 %v6299
        %6301 = vmatprep.subr.mxu0 0.0
        %v6302 = vand.u32 %v5989, 4294901760
        %v6303 = vsub.f32 %v5989, %v6302
        %v6304 = vand.u32 %v6303, 4294901760
        %v6305 = vsub.f32 %v6303, %v6304
        %v6306 = vand.u32 %v6305, 4294901760
        %6307 = vmatpush2.msra.mxu0 %v6306
        %6308 = vmatprep.subr.mxu0 0.0
        %v6309 = vand.u32 %v5988, 4294901760
        %v6310 = vsub.f32 %v5988, %v6309
        %v6311 = vand.u32 %v6310, 4294901760
        %v6312 = vsub.f32 %v6310, %v6311
        %v6313 = vand.u32 %v6312, 4294901760
        %6314 = vmatpush2.msra.mxu0 %v6313
        %6315 = vmatprep.subr.mxu0 0.0
        %v6316 = vand.u32 %v5987, 4294901760
        %v6317 = vsub.f32 %v5987, %v6316
        %v6318 = vand.u32 %v6317, 4294901760
        %v6319 = vsub.f32 %v6317, %v6318
        %v6320 = vand.u32 %v6319, 4294901760
        %6321 = vmatpush2.msra.mxu0 %v6320
        %6322 = vmatprep.subr.mxu0 0.0
        %v6323 = vand.u32 %v5986, 4294901760
        %v6324 = vsub.f32 %v5986, %v6323
        %v6325 = vand.u32 %v6324, 4294901760
        %v6326 = vsub.f32 %v6324, %v6325
        %v6327 = vand.u32 %v6326, 4294901760
        %6328 = vmatpush2.msra.mxu0 %v6327
        %6329 = vmatprep.subr.mxu0 0.0
        %v6330 = vand.u32 %v5985, 4294901760
        %v6331 = vsub.f32 %v5985, %v6330
        %v6332 = vand.u32 %v6331, 4294901760
        %v6333 = vsub.f32 %v6331, %v6332
        %v6334 = vand.u32 %v6333, 4294901760
        %6335 = vmatpush2.msra.mxu0 %v6334
        %6336 = vmatprep.subr.mxu0 0.0
        %v6337 = vand.u32 %v5984, 4294901760
        %v6338 = vsub.f32 %v5984, %v6337
        %v6339 = vand.u32 %v6338, 4294901760
        %v6340 = vsub.f32 %v6338, %v6339
        %v6341 = vand.u32 %v6340, 4294901760
        %6342 = vmatpush2.msra.mxu0 %v6341
        %6343 = vmatprep.subr.mxu0 0.0
        %v6344 = vand.u32 %v5983, 4294901760
        %v6345 = vsub.f32 %v5983, %v6344
        %v6346 = vand.u32 %v6345, 4294901760
        %v6347 = vsub.f32 %v6345, %v6346
        %v6348 = vand.u32 %v6347, 4294901760
        %6349 = vmatpush2.msra.mxu0 %v6348
        %6350 = vmatprep.subr.mxu0 0.0
        %v6351 = vand.u32 %v5982, 4294901760
        %v6352 = vsub.f32 %v5982, %v6351
        %v6353 = vand.u32 %v6352, 4294901760
        %v6354 = vsub.f32 %v6352, %v6353
        %v6355 = vand.u32 %v6354, 4294901760
        %6356 = vmatpush2.msra.mxu0 %v6355
        %6357 = vmatprep.subr.mxu0 0.0
        %v6358 = vand.u32 %v5981, 4294901760
        %v6359 = vsub.f32 %v5981, %v6358
        %v6360 = vand.u32 %v6359, 4294901760
        %v6361 = vsub.f32 %v6359, %v6360
        %v6362 = vand.u32 %v6361, 4294901760
        %6363 = vmatpush2.msra.mxu0 %v6362
        %6364 = vmatprep.subr.mxu0 0.0
        %v6365 = vand.u32 %v5980, 4294901760
        %v6366 = vsub.f32 %v5980, %v6365
        %v6367 = vand.u32 %v6366, 4294901760
        %v6368 = vsub.f32 %v6366, %v6367
        %v6369 = vand.u32 %v6368, 4294901760
        %6370 = vmatpush2.msra.mxu0 %v6369
        %v6371 = vand.u32 %v5961, 4294901760
        %6372 = vmatprep.mubr.f32.mxu0 %v6371
        %v6373 = vand.u32 %v5960, 4294901760
        %6374 = vmatmul.mubr.f32.gmra.mxu0 %v6373
        %v6375 = vpop.f32.mrf.mxu0
        %v6376 = vadd.f32 %v6144, %v6375
        %v6377 = vpop.f32.mrf.mxu0
        %6378 = vdwg.mxu0
        %6379 = vmatprep.subr.mxu0 0.0
        %v6380 = vand.u32 %v5979, 4294901760
        %v6381 = vsub.f32 %v5979, %v6380
        %6382 = vmatpush1.msra.mxu0 %v6381
        %6383 = vmatprep.subr.mxu0 0.0
        %v6384 = vand.u32 %v5978, 4294901760
        %v6385 = vsub.f32 %v5978, %v6384
        %6386 = vmatpush1.msra.mxu0 %v6385
        %6387 = vmatprep.subr.mxu0 0.0
        %v6388 = vand.u32 %v5977, 4294901760
        %v6389 = vsub.f32 %v5977, %v6388
        %6390 = vmatpush1.msra.mxu0 %v6389
        %6391 = vmatprep.subr.mxu0 0.0
        %v6392 = vand.u32 %v5976, 4294901760
        %v6393 = vsub.f32 %v5976, %v6392
        %6394 = vmatpush1.msra.mxu0 %v6393
        %6395 = vmatprep.subr.mxu0 0.0
        %v6396 = vand.u32 %v5975, 4294901760
        %v6397 = vsub.f32 %v5975, %v6396
        %6398 = vmatpush1.msra.mxu0 %v6397
        %6399 = vmatprep.subr.mxu0 0.0
        %v6400 = vand.u32 %v5974, 4294901760
        %v6401 = vsub.f32 %v5974, %v6400
        %6402 = vmatpush1.msra.mxu0 %v6401
        %6403 = vmatprep.subr.mxu0 0.0
        %v6404 = vand.u32 %v5973, 4294901760
        %v6405 = vsub.f32 %v5973, %v6404
        %6406 = vmatpush1.msra.mxu0 %v6405
        %6407 = vmatprep.subr.mxu0 0.0
        %v6408 = vand.u32 %v5972, 4294901760
        %v6409 = vsub.f32 %v5972, %v6408
        %6410 = vmatpush1.msra.mxu0 %v6409
        %6411 = vmatprep.subr.mxu0 0.0
        %v6412 = vand.u32 %v5971, 4294901760
        %v6413 = vsub.f32 %v5971, %v6412
        %6414 = vmatpush1.msra.mxu0 %v6413
        %6415 = vmatprep.subr.mxu0 0.0
        %v6416 = vand.u32 %v5970, 4294901760
        %v6417 = vsub.f32 %v5970, %v6416
        %6418 = vmatpush1.msra.mxu0 %v6417
        %6419 = vmatprep.subr.mxu0 0.0
        %v6420 = vand.u32 %v5969, 4294901760
        %v6421 = vsub.f32 %v5969, %v6420
        %6422 = vmatpush1.msra.mxu0 %v6421
        %6423 = vmatprep.subr.mxu0 0.0
        %v6424 = vand.u32 %v5968, 4294901760
        %v6425 = vsub.f32 %v5968, %v6424
        %6426 = vmatpush1.msra.mxu0 %v6425
        %6427 = vmatprep.subr.mxu0 0.0
        %v6428 = vand.u32 %v5967, 4294901760
        %v6429 = vsub.f32 %v5967, %v6428
        %6430 = vmatpush1.msra.mxu0 %v6429
        %6431 = vmatprep.subr.mxu0 0.0
        %v6432 = vand.u32 %v5966, 4294901760
        %v6433 = vsub.f32 %v5966, %v6432
        %6434 = vmatpush1.msra.mxu0 %v6433
        %6435 = vmatprep.subr.mxu0 0.0
        %v6436 = vand.u32 %v5965, 4294901760
        %v6437 = vsub.f32 %v5965, %v6436
        %6438 = vmatpush1.msra.mxu0 %v6437
        %6439 = vmatprep.subr.mxu0 0.0
        %v6440 = vand.u32 %v5964, 4294901760
        %v6441 = vsub.f32 %v5964, %v6440
        %6442 = vmatpush1.msra.mxu0 %v6441
        %6443 = vmatprep.subr.mxu0 0.0
        %v6444 = vand.u32 %v5995, 4294901760
        %v6445 = vsub.f32 %v5995, %v6444
        %6446 = vmatpush2.msra.mxu0 %v6445
        %6447 = vmatprep.subr.mxu0 0.0
        %v6448 = vand.u32 %v5994, 4294901760
        %v6449 = vsub.f32 %v5994, %v6448
        %6450 = vmatpush2.msra.mxu0 %v6449
        %6451 = vmatprep.subr.mxu0 0.0
        %v6452 = vand.u32 %v5993, 4294901760
        %v6453 = vsub.f32 %v5993, %v6452
        %6454 = vmatpush2.msra.mxu0 %v6453
        %6455 = vmatprep.subr.mxu0 0.0
        %v6456 = vand.u32 %v5992, 4294901760
        %v6457 = vsub.f32 %v5992, %v6456
        %6458 = vmatpush2.msra.mxu0 %v6457
        %6459 = vmatprep.subr.mxu0 0.0
        %v6460 = vand.u32 %v5991, 4294901760
        %v6461 = vsub.f32 %v5991, %v6460
        %6462 = vmatpush2.msra.mxu0 %v6461
        %6463 = vmatprep.subr.mxu0 0.0
        %v6464 = vand.u32 %v5990, 4294901760
        %v6465 = vsub.f32 %v5990, %v6464
        %6466 = vmatpush2.msra.mxu0 %v6465
        %6467 = vmatprep.subr.mxu0 0.0
        %v6468 = vand.u32 %v5989, 4294901760
        %v6469 = vsub.f32 %v5989, %v6468
        %6470 = vmatpush2.msra.mxu0 %v6469
        %6471 = vmatprep.subr.mxu0 0.0
        %v6472 = vand.u32 %v5988, 4294901760
        %v6473 = vsub.f32 %v5988, %v6472
        %6474 = vmatpush2.msra.mxu0 %v6473
        %6475 = vmatprep.subr.mxu0 0.0
        %v6476 = vand.u32 %v5987, 4294901760
        %v6477 = vsub.f32 %v5987, %v6476
        %6478 = vmatpush2.msra.mxu0 %v6477
        %6479 = vmatprep.subr.mxu0 0.0
        %v6480 = vand.u32 %v5986, 4294901760
        %v6481 = vsub.f32 %v5986, %v6480
        %6482 = vmatpush2.msra.mxu0 %v6481
        %6483 = vmatprep.subr.mxu0 0.0
        %v6484 = vand.u32 %v5985, 4294901760
        %v6485 = vsub.f32 %v5985, %v6484
        %6486 = vmatpush2.msra.mxu0 %v6485
        %6487 = vmatprep.subr.mxu0 0.0
        %v6488 = vand.u32 %v5984, 4294901760
        %v6489 = vsub.f32 %v5984, %v6488
        %6490 = vmatpush2.msra.mxu0 %v6489
        %6491 = vmatprep.subr.mxu0 0.0
        %v6492 = vand.u32 %v5983, 4294901760
        %v6493 = vsub.f32 %v5983, %v6492
        %6494 = vmatpush2.msra.mxu0 %v6493
        %6495 = vmatprep.subr.mxu0 0.0
        %v6496 = vand.u32 %v5982, 4294901760
        %v6497 = vsub.f32 %v5982, %v6496
        %6498 = vmatpush2.msra.mxu0 %v6497
        %6499 = vmatprep.subr.mxu0 0.0
        %v6500 = vand.u32 %v5981, 4294901760
        %v6501 = vsub.f32 %v5981, %v6500
        %6502 = vmatpush2.msra.mxu0 %v6501
        %6503 = vmatprep.subr.mxu0 0.0
        %v6504 = vand.u32 %v5980, 4294901760
        %v6505 = vsub.f32 %v5980, %v6504
        %6506 = vmatpush2.msra.mxu0 %v6505
        %v6507 = vand.u32 %v5961, 4294901760
        %v6508 = vsub.f32 %v5961, %v6507
        %6509 = vmatprep.mubr.f32.mxu0 %v6508
        %v6510 = vand.u32 %v5960, 4294901760
        %v6511 = vsub.f32 %v5960, %v6510
        %6512 = vmatmul.mubr.f32.gmra.mxu0 %v6511
        %v6513 = vpop.f32.mrf.mxu0
        %v6514 = vadd.f32 %v6376, %v6513
        %v6515 = vpop.f32.mrf.mxu0
        %6516 = vdwg.mxu0
        %6517 = vmatprep.subr.mxu0 0.0
        %v6518 = vand.u32 %v5979, 4294901760
        %6519 = vmatpush1.msra.mxu0 %v6518
        %6520 = vmatprep.subr.mxu0 0.0
        %v6521 = vand.u32 %v5978, 4294901760
        %6522 = vmatpush1.msra.mxu0 %v6521
        %6523 = vmatprep.subr.mxu0 0.0
        %v6524 = vand.u32 %v5977, 4294901760
        %6525 = vmatpush1.msra.mxu0 %v6524
        %6526 = vmatprep.subr.mxu0 0.0
        %v6527 = vand.u32 %v5976, 4294901760
        %6528 = vmatpush1.msra.mxu0 %v6527
        %6529 = vmatprep.subr.mxu0 0.0
        %v6530 = vand.u32 %v5975, 4294901760
        %6531 = vmatpush1.msra.mxu0 %v6530
        %6532 = vmatprep.subr.mxu0 0.0
        %v6533 = vand.u32 %v5974, 4294901760
        %6534 = vmatpush1.msra.mxu0 %v6533
        %6535 = vmatprep.subr.mxu0 0.0
        %v6536 = vand.u32 %v5973, 4294901760
        %6537 = vmatpush1.msra.mxu0 %v6536
        %6538 = vmatprep.subr.mxu0 0.0
        %v6539 = vand.u32 %v5972, 4294901760
        %6540 = vmatpush1.msra.mxu0 %v6539
        %6541 = vmatprep.subr.mxu0 0.0
        %v6542 = vand.u32 %v5971, 4294901760
        %6543 = vmatpush1.msra.mxu0 %v6542
        %6544 = vmatprep.subr.mxu0 0.0
        %v6545 = vand.u32 %v5970, 4294901760
        %6546 = vmatpush1.msra.mxu0 %v6545
        %6547 = vmatprep.subr.mxu0 0.0
        %v6548 = vand.u32 %v5969, 4294901760
        %6549 = vmatpush1.msra.mxu0 %v6548
        %6550 = vmatprep.subr.mxu0 0.0
        %v6551 = vand.u32 %v5968, 4294901760
        %6552 = vmatpush1.msra.mxu0 %v6551
        %6553 = vmatprep.subr.mxu0 0.0
        %v6554 = vand.u32 %v5967, 4294901760
        %6555 = vmatpush1.msra.mxu0 %v6554
        %6556 = vmatprep.subr.mxu0 0.0
        %v6557 = vand.u32 %v5966, 4294901760
        %6558 = vmatpush1.msra.mxu0 %v6557
        %6559 = vmatprep.subr.mxu0 0.0
        %v6560 = vand.u32 %v5965, 4294901760
        %6561 = vmatpush1.msra.mxu0 %v6560
        %6562 = vmatprep.subr.mxu0 0.0
        %v6563 = vand.u32 %v5964, 4294901760
        %6564 = vmatpush1.msra.mxu0 %v6563
        %6565 = vmatprep.subr.mxu0 0.0
        %v6566 = vand.u32 %v5995, 4294901760
        %6567 = vmatpush2.msra.mxu0 %v6566
        %6568 = vmatprep.subr.mxu0 0.0
        %v6569 = vand.u32 %v5994, 4294901760
        %6570 = vmatpush2.msra.mxu0 %v6569
        %6571 = vmatprep.subr.mxu0 0.0
        %v6572 = vand.u32 %v5993, 4294901760
        %6573 = vmatpush2.msra.mxu0 %v6572
        %6574 = vmatprep.subr.mxu0 0.0
        %v6575 = vand.u32 %v5992, 4294901760
        %6576 = vmatpush2.msra.mxu0 %v6575
        %6577 = vmatprep.subr.mxu0 0.0
        %v6578 = vand.u32 %v5991, 4294901760
        %6579 = vmatpush2.msra.mxu0 %v6578
        %6580 = vmatprep.subr.mxu0 0.0
        %v6581 = vand.u32 %v5990, 4294901760
        %6582 = vmatpush2.msra.mxu0 %v6581
        %6583 = vmatprep.subr.mxu0 0.0
        %v6584 = vand.u32 %v5989, 4294901760
        %6585 = vmatpush2.msra.mxu0 %v6584
        %6586 = vmatprep.subr.mxu0 0.0
        %v6587 = vand.u32 %v5988, 4294901760
        %6588 = vmatpush2.msra.mxu0 %v6587
        %6589 = vmatprep.subr.mxu0 0.0
        %v6590 = vand.u32 %v5987, 4294901760
        %6591 = vmatpush2.msra.mxu0 %v6590
        %6592 = vmatprep.subr.mxu0 0.0
        %v6593 = vand.u32 %v5986, 4294901760
        %6594 = vmatpush2.msra.mxu0 %v6593
        %6595 = vmatprep.subr.mxu0 0.0
        %v6596 = vand.u32 %v5985, 4294901760
        %6597 = vmatpush2.msra.mxu0 %v6596
        %6598 = vmatprep.subr.mxu0 0.0
        %v6599 = vand.u32 %v5984, 4294901760
        %6600 = vmatpush2.msra.mxu0 %v6599
        %6601 = vmatprep.subr.mxu0 0.0
        %v6602 = vand.u32 %v5983, 4294901760
        %6603 = vmatpush2.msra.mxu0 %v6602
        %6604 = vmatprep.subr.mxu0 0.0
        %v6605 = vand.u32 %v5982, 4294901760
        %6606 = vmatpush2.msra.mxu0 %v6605
        %6607 = vmatprep.subr.mxu0 0.0
        %v6608 = vand.u32 %v5981, 4294901760
        %6609 = vmatpush2.msra.mxu0 %v6608
        %6610 = vmatprep.subr.mxu0 0.0
        %v6611 = vand.u32 %v5980, 4294901760
        %6612 = vmatpush2.msra.mxu0 %v6611
        %v6613 = vand.u32 %v5961, 4294901760
        %v6614 = vsub.f32 %v5961, %v6613
        %v6615 = vand.u32 %v6614, 4294901760
        %6616 = vmatprep.mubr.f32.mxu0 %v6615
        %v6617 = vand.u32 %v5960, 4294901760
        %v6618 = vsub.f32 %v5960, %v6617
        %v6619 = vand.u32 %v6618, 4294901760
        %6620 = vmatmul.mubr.f32.gmra.mxu0 %v6619
        %v6621 = vpop.f32.mrf.mxu0
        %v6622 = vadd.f32 %v6514, %v6621
        %v6623 = vpop.f32.mrf.mxu0
        %6624 = vdwg.mxu0
        %6625 = vmatprep.subr.mxu0 0.0
        %v6626 = vand.u32 %v5979, 4294901760
        %v6627 = vsub.f32 %v5979, %v6626
        %v6628 = vand.u32 %v6627, 4294901760
        %6629 = vmatpush1.msra.mxu0 %v6628
        %6630 = vmatprep.subr.mxu0 0.0
        %v6631 = vand.u32 %v5978, 4294901760
        %v6632 = vsub.f32 %v5978, %v6631
        %v6633 = vand.u32 %v6632, 4294901760
        %6634 = vmatpush1.msra.mxu0 %v6633
        %6635 = vmatprep.subr.mxu0 0.0
        %v6636 = vand.u32 %v5977, 4294901760
        %v6637 = vsub.f32 %v5977, %v6636
        %v6638 = vand.u32 %v6637, 4294901760
        %6639 = vmatpush1.msra.mxu0 %v6638
        %6640 = vmatprep.subr.mxu0 0.0
        %v6641 = vand.u32 %v5976, 4294901760
        %v6642 = vsub.f32 %v5976, %v6641
        %v6643 = vand.u32 %v6642, 4294901760
        %6644 = vmatpush1.msra.mxu0 %v6643
        %6645 = vmatprep.subr.mxu0 0.0
        %v6646 = vand.u32 %v5975, 4294901760
        %v6647 = vsub.f32 %v5975, %v6646
        %v6648 = vand.u32 %v6647, 4294901760
        %6649 = vmatpush1.msra.mxu0 %v6648
        %6650 = vmatprep.subr.mxu0 0.0
        %v6651 = vand.u32 %v5974, 4294901760
        %v6652 = vsub.f32 %v5974, %v6651
        %v6653 = vand.u32 %v6652, 4294901760
        %6654 = vmatpush1.msra.mxu0 %v6653
        %6655 = vmatprep.subr.mxu0 0.0
        %v6656 = vand.u32 %v5973, 4294901760
        %v6657 = vsub.f32 %v5973, %v6656
        %v6658 = vand.u32 %v6657, 4294901760
        %6659 = vmatpush1.msra.mxu0 %v6658
        %6660 = vmatprep.subr.mxu0 0.0
        %v6661 = vand.u32 %v5972, 4294901760
        %v6662 = vsub.f32 %v5972, %v6661
        %v6663 = vand.u32 %v6662, 4294901760
        %6664 = vmatpush1.msra.mxu0 %v6663
        %6665 = vmatprep.subr.mxu0 0.0
        %v6666 = vand.u32 %v5971, 4294901760
        %v6667 = vsub.f32 %v5971, %v6666
        %v6668 = vand.u32 %v6667, 4294901760
        %6669 = vmatpush1.msra.mxu0 %v6668
        %6670 = vmatprep.subr.mxu0 0.0
        %v6671 = vand.u32 %v5970, 4294901760
        %v6672 = vsub.f32 %v5970, %v6671
        %v6673 = vand.u32 %v6672, 4294901760
        %6674 = vmatpush1.msra.mxu0 %v6673
        %6675 = vmatprep.subr.mxu0 0.0
        %v6676 = vand.u32 %v5969, 4294901760
        %v6677 = vsub.f32 %v5969, %v6676
        %v6678 = vand.u32 %v6677, 4294901760
        %6679 = vmatpush1.msra.mxu0 %v6678
        %6680 = vmatprep.subr.mxu0 0.0
        %v6681 = vand.u32 %v5968, 4294901760
        %v6682 = vsub.f32 %v5968, %v6681
        %v6683 = vand.u32 %v6682, 4294901760
        %6684 = vmatpush1.msra.mxu0 %v6683
        %6685 = vmatprep.subr.mxu0 0.0
        %v6686 = vand.u32 %v5967, 4294901760
        %v6687 = vsub.f32 %v5967, %v6686
        %v6688 = vand.u32 %v6687, 4294901760
        %6689 = vmatpush1.msra.mxu0 %v6688
        %6690 = vmatprep.subr.mxu0 0.0
        %v6691 = vand.u32 %v5966, 4294901760
        %v6692 = vsub.f32 %v5966, %v6691
        %v6693 = vand.u32 %v6692, 4294901760
        %6694 = vmatpush1.msra.mxu0 %v6693
        %6695 = vmatprep.subr.mxu0 0.0
        %v6696 = vand.u32 %v5965, 4294901760
        %v6697 = vsub.f32 %v5965, %v6696
        %v6698 = vand.u32 %v6697, 4294901760
        %6699 = vmatpush1.msra.mxu0 %v6698
        %6700 = vmatprep.subr.mxu0 0.0
        %v6701 = vand.u32 %v5964, 4294901760
        %v6702 = vsub.f32 %v5964, %v6701
        %v6703 = vand.u32 %v6702, 4294901760
        %6704 = vmatpush1.msra.mxu0 %v6703
        %6705 = vmatprep.subr.mxu0 0.0
        %v6706 = vand.u32 %v5995, 4294901760
        %v6707 = vsub.f32 %v5995, %v6706
        %v6708 = vand.u32 %v6707, 4294901760
        %6709 = vmatpush2.msra.mxu0 %v6708
        %6710 = vmatprep.subr.mxu0 0.0
        %v6711 = vand.u32 %v5994, 4294901760
        %v6712 = vsub.f32 %v5994, %v6711
        %v6713 = vand.u32 %v6712, 4294901760
        %6714 = vmatpush2.msra.mxu0 %v6713
        %6715 = vmatprep.subr.mxu0 0.0
        %v6716 = vand.u32 %v5993, 4294901760
        %v6717 = vsub.f32 %v5993, %v6716
        %v6718 = vand.u32 %v6717, 4294901760
        %6719 = vmatpush2.msra.mxu0 %v6718
        %6720 = vmatprep.subr.mxu0 0.0
        %v6721 = vand.u32 %v5992, 4294901760
        %v6722 = vsub.f32 %v5992, %v6721
        %v6723 = vand.u32 %v6722, 4294901760
        %6724 = vmatpush2.msra.mxu0 %v6723
        %6725 = vmatprep.subr.mxu0 0.0
        %v6726 = vand.u32 %v5991, 4294901760
        %v6727 = vsub.f32 %v5991, %v6726
        %v6728 = vand.u32 %v6727, 4294901760
        %6729 = vmatpush2.msra.mxu0 %v6728
        %6730 = vmatprep.subr.mxu0 0.0
        %v6731 = vand.u32 %v5990, 4294901760
        %v6732 = vsub.f32 %v5990, %v6731
        %v6733 = vand.u32 %v6732, 4294901760
        %6734 = vmatpush2.msra.mxu0 %v6733
        %6735 = vmatprep.subr.mxu0 0.0
        %v6736 = vand.u32 %v5989, 4294901760
        %v6737 = vsub.f32 %v5989, %v6736
        %v6738 = vand.u32 %v6737, 4294901760
        %6739 = vmatpush2.msra.mxu0 %v6738
        %6740 = vmatprep.subr.mxu0 0.0
        %v6741 = vand.u32 %v5988, 4294901760
        %v6742 = vsub.f32 %v5988, %v6741
        %v6743 = vand.u32 %v6742, 4294901760
        %6744 = vmatpush2.msra.mxu0 %v6743
        %6745 = vmatprep.subr.mxu0 0.0
        %v6746 = vand.u32 %v5987, 4294901760
        %v6747 = vsub.f32 %v5987, %v6746
        %v6748 = vand.u32 %v6747, 4294901760
        %6749 = vmatpush2.msra.mxu0 %v6748
        %6750 = vmatprep.subr.mxu0 0.0
        %v6751 = vand.u32 %v5986, 4294901760
        %v6752 = vsub.f32 %v5986, %v6751
        %v6753 = vand.u32 %v6752, 4294901760
        %6754 = vmatpush2.msra.mxu0 %v6753
        %6755 = vmatprep.subr.mxu0 0.0
        %v6756 = vand.u32 %v5985, 4294901760
        %v6757 = vsub.f32 %v5985, %v6756
        %v6758 = vand.u32 %v6757, 4294901760
        %6759 = vmatpush2.msra.mxu0 %v6758
        %6760 = vmatprep.subr.mxu0 0.0
        %v6761 = vand.u32 %v5984, 4294901760
        %v6762 = vsub.f32 %v5984, %v6761
        %v6763 = vand.u32 %v6762, 4294901760
        %6764 = vmatpush2.msra.mxu0 %v6763
        %6765 = vmatprep.subr.mxu0 0.0
        %v6766 = vand.u32 %v5983, 4294901760
        %v6767 = vsub.f32 %v5983, %v6766
        %v6768 = vand.u32 %v6767, 4294901760
        %6769 = vmatpush2.msra.mxu0 %v6768
        %6770 = vmatprep.subr.mxu0 0.0
        %v6771 = vand.u32 %v5982, 4294901760
        %v6772 = vsub.f32 %v5982, %v6771
        %v6773 = vand.u32 %v6772, 4294901760
        %6774 = vmatpush2.msra.mxu0 %v6773
        %6775 = vmatprep.subr.mxu0 0.0
        %v6776 = vand.u32 %v5981, 4294901760
        %v6777 = vsub.f32 %v5981, %v6776
        %v6778 = vand.u32 %v6777, 4294901760
        %6779 = vmatpush2.msra.mxu0 %v6778
        %6780 = vmatprep.subr.mxu0 0.0
        %v6781 = vand.u32 %v5980, 4294901760
        %v6782 = vsub.f32 %v5980, %v6781
        %v6783 = vand.u32 %v6782, 4294901760
        %6784 = vmatpush2.msra.mxu0 %v6783
        %v6785 = vand.u32 %v5961, 4294901760
        %6786 = vmatprep.mubr.f32.mxu0 %v6785
        %v6787 = vand.u32 %v5960, 4294901760
        %6788 = vmatmul.mubr.f32.gmra.mxu0 %v6787
        %v6789 = vpop.f32.mrf.mxu0
        %v6790 = vadd.f32 %v6622, %v6789
        %v6791 = vpop.f32.mrf.mxu0
        %6792 = vdwg.mxu0
        %6793 = vmatprep.subr.mxu0 0.0
        %v6794 = vand.u32 %v5979, 4294901760
        %6795 = vmatpush1.msra.mxu0 %v6794
        %6796 = vmatprep.subr.mxu0 0.0
        %v6797 = vand.u32 %v5978, 4294901760
        %6798 = vmatpush1.msra.mxu0 %v6797
        %6799 = vmatprep.subr.mxu0 0.0
        %v6800 = vand.u32 %v5977, 4294901760
        %6801 = vmatpush1.msra.mxu0 %v6800
        %6802 = vmatprep.subr.mxu0 0.0
        %v6803 = vand.u32 %v5976, 4294901760
        %6804 = vmatpush1.msra.mxu0 %v6803
        %6805 = vmatprep.subr.mxu0 0.0
        %v6806 = vand.u32 %v5975, 4294901760
        %6807 = vmatpush1.msra.mxu0 %v6806
        %6808 = vmatprep.subr.mxu0 0.0
        %v6809 = vand.u32 %v5974, 4294901760
        %6810 = vmatpush1.msra.mxu0 %v6809
        %6811 = vmatprep.subr.mxu0 0.0
        %v6812 = vand.u32 %v5973, 4294901760
        %6813 = vmatpush1.msra.mxu0 %v6812
        %6814 = vmatprep.subr.mxu0 0.0
        %v6815 = vand.u32 %v5972, 4294901760
        %6816 = vmatpush1.msra.mxu0 %v6815
        %6817 = vmatprep.subr.mxu0 0.0
        %v6818 = vand.u32 %v5971, 4294901760
        %6819 = vmatpush1.msra.mxu0 %v6818
        %6820 = vmatprep.subr.mxu0 0.0
        %v6821 = vand.u32 %v5970, 4294901760
        %6822 = vmatpush1.msra.mxu0 %v6821
        %6823 = vmatprep.subr.mxu0 0.0
        %v6824 = vand.u32 %v5969, 4294901760
        %6825 = vmatpush1.msra.mxu0 %v6824
        %6826 = vmatprep.subr.mxu0 0.0
        %v6827 = vand.u32 %v5968, 4294901760
        %6828 = vmatpush1.msra.mxu0 %v6827
        %6829 = vmatprep.subr.mxu0 0.0
        %v6830 = vand.u32 %v5967, 4294901760
        %6831 = vmatpush1.msra.mxu0 %v6830
        %6832 = vmatprep.subr.mxu0 0.0
        %v6833 = vand.u32 %v5966, 4294901760
        %6834 = vmatpush1.msra.mxu0 %v6833
        %6835 = vmatprep.subr.mxu0 0.0
        %v6836 = vand.u32 %v5965, 4294901760
        %6837 = vmatpush1.msra.mxu0 %v6836
        %6838 = vmatprep.subr.mxu0 0.0
        %v6839 = vand.u32 %v5964, 4294901760
        %6840 = vmatpush1.msra.mxu0 %v6839
        %6841 = vmatprep.subr.mxu0 0.0
        %v6842 = vand.u32 %v5995, 4294901760
        %6843 = vmatpush2.msra.mxu0 %v6842
        %6844 = vmatprep.subr.mxu0 0.0
        %v6845 = vand.u32 %v5994, 4294901760
        %6846 = vmatpush2.msra.mxu0 %v6845
        %6847 = vmatprep.subr.mxu0 0.0
        %v6848 = vand.u32 %v5993, 4294901760
        %6849 = vmatpush2.msra.mxu0 %v6848
        %6850 = vmatprep.subr.mxu0 0.0
        %v6851 = vand.u32 %v5992, 4294901760
        %6852 = vmatpush2.msra.mxu0 %v6851
        %6853 = vmatprep.subr.mxu0 0.0
        %v6854 = vand.u32 %v5991, 4294901760
        %6855 = vmatpush2.msra.mxu0 %v6854
        %6856 = vmatprep.subr.mxu0 0.0
        %v6857 = vand.u32 %v5990, 4294901760
        %6858 = vmatpush2.msra.mxu0 %v6857
        %6859 = vmatprep.subr.mxu0 0.0
        %v6860 = vand.u32 %v5989, 4294901760
        %6861 = vmatpush2.msra.mxu0 %v6860
        %6862 = vmatprep.subr.mxu0 0.0
        %v6863 = vand.u32 %v5988, 4294901760
        %6864 = vmatpush2.msra.mxu0 %v6863
        %6865 = vmatprep.subr.mxu0 0.0
        %v6866 = vand.u32 %v5987, 4294901760
        %6867 = vmatpush2.msra.mxu0 %v6866
        %6868 = vmatprep.subr.mxu0 0.0
        %v6869 = vand.u32 %v5986, 4294901760
        %6870 = vmatpush2.msra.mxu0 %v6869
        %6871 = vmatprep.subr.mxu0 0.0
        %v6872 = vand.u32 %v5985, 4294901760
        %6873 = vmatpush2.msra.mxu0 %v6872
        %6874 = vmatprep.subr.mxu0 0.0
        %v6875 = vand.u32 %v5984, 4294901760
        %6876 = vmatpush2.msra.mxu0 %v6875
        %6877 = vmatprep.subr.mxu0 0.0
        %v6878 = vand.u32 %v5983, 4294901760
        %6879 = vmatpush2.msra.mxu0 %v6878
        %6880 = vmatprep.subr.mxu0 0.0
        %v6881 = vand.u32 %v5982, 4294901760
        %6882 = vmatpush2.msra.mxu0 %v6881
        %6883 = vmatprep.subr.mxu0 0.0
        %v6884 = vand.u32 %v5981, 4294901760
        %6885 = vmatpush2.msra.mxu0 %v6884
        %6886 = vmatprep.subr.mxu0 0.0
        %v6887 = vand.u32 %v5980, 4294901760
        %6888 = vmatpush2.msra.mxu0 %v6887
        %v6889 = vand.u32 %v5961, 4294901760
        %6890 = vmatprep.mubr.f32.mxu0 %v6889
        %v6891 = vand.u32 %v5960, 4294901760
        %6892 = vmatmul.mubr.f32.gmra.mxu0 %v6891
        %v6893 = vpop.f32.mrf.mxu0
        %v6894 = vadd.f32 %v6790, %v6893
        %v6895 = vpop.f32.mrf.mxu0
        %6896 = vdwg.mxu0
        %6897 = vmatprep.subr.mxu0 0.0
        %v6898 = vand.u32 %v6011, 4294901760
        %6899 = vmatpush1.msra.mxu0 %v6898
        %6900 = vmatprep.subr.mxu0 0.0
        %v6901 = vand.u32 %v6010, 4294901760
        %6902 = vmatpush1.msra.mxu0 %v6901
        %6903 = vmatprep.subr.mxu0 0.0
        %v6904 = vand.u32 %v6009, 4294901760
        %6905 = vmatpush1.msra.mxu0 %v6904
        %6906 = vmatprep.subr.mxu0 0.0
        %v6907 = vand.u32 %v6008, 4294901760
        %6908 = vmatpush1.msra.mxu0 %v6907
        %6909 = vmatprep.subr.mxu0 0.0
        %v6910 = vand.u32 %v6007, 4294901760
        %6911 = vmatpush1.msra.mxu0 %v6910
        %6912 = vmatprep.subr.mxu0 0.0
        %v6913 = vand.u32 %v6006, 4294901760
        %6914 = vmatpush1.msra.mxu0 %v6913
        %6915 = vmatprep.subr.mxu0 0.0
        %v6916 = vand.u32 %v6005, 4294901760
        %6917 = vmatpush1.msra.mxu0 %v6916
        %6918 = vmatprep.subr.mxu0 0.0
        %v6919 = vand.u32 %v6004, 4294901760
        %6920 = vmatpush1.msra.mxu0 %v6919
        %6921 = vmatprep.subr.mxu0 0.0
        %v6922 = vand.u32 %v6003, 4294901760
        %6923 = vmatpush1.msra.mxu0 %v6922
        %6924 = vmatprep.subr.mxu0 0.0
        %v6925 = vand.u32 %v6002, 4294901760
        %6926 = vmatpush1.msra.mxu0 %v6925
        %6927 = vmatprep.subr.mxu0 0.0
        %v6928 = vand.u32 %v6001, 4294901760
        %6929 = vmatpush1.msra.mxu0 %v6928
        %6930 = vmatprep.subr.mxu0 0.0
        %v6931 = vand.u32 %v6000, 4294901760
        %6932 = vmatpush1.msra.mxu0 %v6931
        %6933 = vmatprep.subr.mxu0 0.0
        %v6934 = vand.u32 %v5999, 4294901760
        %6935 = vmatpush1.msra.mxu0 %v6934
        %6936 = vmatprep.subr.mxu0 0.0
        %v6937 = vand.u32 %v5998, 4294901760
        %6938 = vmatpush1.msra.mxu0 %v6937
        %6939 = vmatprep.subr.mxu0 0.0
        %v6940 = vand.u32 %v5997, 4294901760
        %6941 = vmatpush1.msra.mxu0 %v6940
        %6942 = vmatprep.subr.mxu0 0.0
        %v6943 = vand.u32 %v5996, 4294901760
        %6944 = vmatpush1.msra.mxu0 %v6943
        %6945 = vmatprep.subr.mxu0 0.0
        %v6946 = vand.u32 %v6027, 4294901760
        %6947 = vmatpush2.msra.mxu0 %v6946
        %6948 = vmatprep.subr.mxu0 0.0
        %v6949 = vand.u32 %v6026, 4294901760
        %6950 = vmatpush2.msra.mxu0 %v6949
        %6951 = vmatprep.subr.mxu0 0.0
        %v6952 = vand.u32 %v6025, 4294901760
        %6953 = vmatpush2.msra.mxu0 %v6952
        %6954 = vmatprep.subr.mxu0 0.0
        %v6955 = vand.u32 %v6024, 4294901760
        %6956 = vmatpush2.msra.mxu0 %v6955
        %6957 = vmatprep.subr.mxu0 0.0
        %v6958 = vand.u32 %v6023, 4294901760
        %6959 = vmatpush2.msra.mxu0 %v6958
        %6960 = vmatprep.subr.mxu0 0.0
        %v6961 = vand.u32 %v6022, 4294901760
        %6962 = vmatpush2.msra.mxu0 %v6961
        %6963 = vmatprep.subr.mxu0 0.0
        %v6964 = vand.u32 %v6021, 4294901760
        %6965 = vmatpush2.msra.mxu0 %v6964
        %6966 = vmatprep.subr.mxu0 0.0
        %v6967 = vand.u32 %v6020, 4294901760
        %6968 = vmatpush2.msra.mxu0 %v6967
        %6969 = vmatprep.subr.mxu0 0.0
        %v6970 = vand.u32 %v6019, 4294901760
        %6971 = vmatpush2.msra.mxu0 %v6970
        %6972 = vmatprep.subr.mxu0 0.0
        %v6973 = vand.u32 %v6018, 4294901760
        %6974 = vmatpush2.msra.mxu0 %v6973
        %6975 = vmatprep.subr.mxu0 0.0
        %v6976 = vand.u32 %v6017, 4294901760
        %6977 = vmatpush2.msra.mxu0 %v6976
        %6978 = vmatprep.subr.mxu0 0.0
        %v6979 = vand.u32 %v6016, 4294901760
        %6980 = vmatpush2.msra.mxu0 %v6979
        %6981 = vmatprep.subr.mxu0 0.0
        %v6982 = vand.u32 %v6015, 4294901760
        %6983 = vmatpush2.msra.mxu0 %v6982
        %6984 = vmatprep.subr.mxu0 0.0
        %v6985 = vand.u32 %v6014, 4294901760
        %6986 = vmatpush2.msra.mxu0 %v6985
        %6987 = vmatprep.subr.mxu0 0.0
        %v6988 = vand.u32 %v6013, 4294901760
        %6989 = vmatpush2.msra.mxu0 %v6988
        %6990 = vmatprep.subr.mxu0 0.0
        %v6991 = vand.u32 %v6012, 4294901760
        %6992 = vmatpush2.msra.mxu0 %v6991
        %v6993 = vand.u32 %v5963, 4294901760
        %v6994 = vsub.f32 %v5963, %v6993
        %v6995 = vand.u32 %v6994, 4294901760
        %v6996 = vsub.f32 %v6994, %v6995
        %v6997 = vand.u32 %v6996, 4294901760
        %6998 = vmatprep.mubr.f32.mxu0 %v6997
        %v6999 = vand.u32 %v5962, 4294901760
        %v7000 = vsub.f32 %v5962, %v6999
        %v7001 = vand.u32 %v7000, 4294901760
        %v7002 = vsub.f32 %v7000, %v7001
        %v7003 = vand.u32 %v7002, 4294901760
        %7004 = vmatmul.mubr.f32.gmra.mxu0 %v7003
        %v7005 = vpop.f32.mrf.mxu0
        %v7006 = vadd.f32 %v6894, %v7005
        %v7007 = vpop.f32.mrf.mxu0
        %7008 = vdwg.mxu0
        %7009 = vmatprep.subr.mxu0 0.0
        %v7010 = vand.u32 %v6011, 4294901760
        %v7011 = vsub.f32 %v6011, %v7010
        %v7012 = vand.u32 %v7011, 4294901760
        %v7013 = vsub.f32 %v7011, %v7012
        %v7014 = vand.u32 %v7013, 4294901760
        %7015 = vmatpush1.msra.mxu0 %v7014
        %7016 = vmatprep.subr.mxu0 0.0
        %v7017 = vand.u32 %v6010, 4294901760
        %v7018 = vsub.f32 %v6010, %v7017
        %v7019 = vand.u32 %v7018, 4294901760
        %v7020 = vsub.f32 %v7018, %v7019
        %v7021 = vand.u32 %v7020, 4294901760
        %7022 = vmatpush1.msra.mxu0 %v7021
        %7023 = vmatprep.subr.mxu0 0.0
        %v7024 = vand.u32 %v6009, 4294901760
        %v7025 = vsub.f32 %v6009, %v7024
        %v7026 = vand.u32 %v7025, 4294901760
        %v7027 = vsub.f32 %v7025, %v7026
        %v7028 = vand.u32 %v7027, 4294901760
        %7029 = vmatpush1.msra.mxu0 %v7028
        %7030 = vmatprep.subr.mxu0 0.0
        %v7031 = vand.u32 %v6008, 4294901760
        %v7032 = vsub.f32 %v6008, %v7031
        %v7033 = vand.u32 %v7032, 4294901760
        %v7034 = vsub.f32 %v7032, %v7033
        %v7035 = vand.u32 %v7034, 4294901760
        %7036 = vmatpush1.msra.mxu0 %v7035
        %7037 = vmatprep.subr.mxu0 0.0
        %v7038 = vand.u32 %v6007, 4294901760
        %v7039 = vsub.f32 %v6007, %v7038
        %v7040 = vand.u32 %v7039, 4294901760
        %v7041 = vsub.f32 %v7039, %v7040
        %v7042 = vand.u32 %v7041, 4294901760
        %7043 = vmatpush1.msra.mxu0 %v7042
        %7044 = vmatprep.subr.mxu0 0.0
        %v7045 = vand.u32 %v6006, 4294901760
        %v7046 = vsub.f32 %v6006, %v7045
        %v7047 = vand.u32 %v7046, 4294901760
        %v7048 = vsub.f32 %v7046, %v7047
        %v7049 = vand.u32 %v7048, 4294901760
        %7050 = vmatpush1.msra.mxu0 %v7049
        %7051 = vmatprep.subr.mxu0 0.0
        %v7052 = vand.u32 %v6005, 4294901760
        %v7053 = vsub.f32 %v6005, %v7052
        %v7054 = vand.u32 %v7053, 4294901760
        %v7055 = vsub.f32 %v7053, %v7054
        %v7056 = vand.u32 %v7055, 4294901760
        %7057 = vmatpush1.msra.mxu0 %v7056
        %7058 = vmatprep.subr.mxu0 0.0
        %v7059 = vand.u32 %v6004, 4294901760
        %v7060 = vsub.f32 %v6004, %v7059
        %v7061 = vand.u32 %v7060, 4294901760
        %v7062 = vsub.f32 %v7060, %v7061
        %v7063 = vand.u32 %v7062, 4294901760
        %7064 = vmatpush1.msra.mxu0 %v7063
        %7065 = vmatprep.subr.mxu0 0.0
        %v7066 = vand.u32 %v6003, 4294901760
        %v7067 = vsub.f32 %v6003, %v7066
        %v7068 = vand.u32 %v7067, 4294901760
        %v7069 = vsub.f32 %v7067, %v7068
        %v7070 = vand.u32 %v7069, 4294901760
        %7071 = vmatpush1.msra.mxu0 %v7070
        %7072 = vmatprep.subr.mxu0 0.0
        %v7073 = vand.u32 %v6002, 4294901760
        %v7074 = vsub.f32 %v6002, %v7073
        %v7075 = vand.u32 %v7074, 4294901760
        %v7076 = vsub.f32 %v7074, %v7075
        %v7077 = vand.u32 %v7076, 4294901760
        %7078 = vmatpush1.msra.mxu0 %v7077
        %7079 = vmatprep.subr.mxu0 0.0
        %v7080 = vand.u32 %v6001, 4294901760
        %v7081 = vsub.f32 %v6001, %v7080
        %v7082 = vand.u32 %v7081, 4294901760
        %v7083 = vsub.f32 %v7081, %v7082
        %v7084 = vand.u32 %v7083, 4294901760
        %7085 = vmatpush1.msra.mxu0 %v7084
        %7086 = vmatprep.subr.mxu0 0.0
        %v7087 = vand.u32 %v6000, 4294901760
        %v7088 = vsub.f32 %v6000, %v7087
        %v7089 = vand.u32 %v7088, 4294901760
        %v7090 = vsub.f32 %v7088, %v7089
        %v7091 = vand.u32 %v7090, 4294901760
        %7092 = vmatpush1.msra.mxu0 %v7091
        %7093 = vmatprep.subr.mxu0 0.0
        %v7094 = vand.u32 %v5999, 4294901760
        %v7095 = vsub.f32 %v5999, %v7094
        %v7096 = vand.u32 %v7095, 4294901760
        %v7097 = vsub.f32 %v7095, %v7096
        %v7098 = vand.u32 %v7097, 4294901760
        %7099 = vmatpush1.msra.mxu0 %v7098
        %7100 = vmatprep.subr.mxu0 0.0
        %v7101 = vand.u32 %v5998, 4294901760
        %v7102 = vsub.f32 %v5998, %v7101
        %v7103 = vand.u32 %v7102, 4294901760
        %v7104 = vsub.f32 %v7102, %v7103
        %v7105 = vand.u32 %v7104, 4294901760
        %7106 = vmatpush1.msra.mxu0 %v7105
        %7107 = vmatprep.subr.mxu0 0.0
        %v7108 = vand.u32 %v5997, 4294901760
        %v7109 = vsub.f32 %v5997, %v7108
        %v7110 = vand.u32 %v7109, 4294901760
        %v7111 = vsub.f32 %v7109, %v7110
        %v7112 = vand.u32 %v7111, 4294901760
        %7113 = vmatpush1.msra.mxu0 %v7112
        %7114 = vmatprep.subr.mxu0 0.0
        %v7115 = vand.u32 %v5996, 4294901760
        %v7116 = vsub.f32 %v5996, %v7115
        %v7117 = vand.u32 %v7116, 4294901760
        %v7118 = vsub.f32 %v7116, %v7117
        %v7119 = vand.u32 %v7118, 4294901760
        %7120 = vmatpush1.msra.mxu0 %v7119
        %7121 = vmatprep.subr.mxu0 0.0
        %v7122 = vand.u32 %v6027, 4294901760
        %v7123 = vsub.f32 %v6027, %v7122
        %v7124 = vand.u32 %v7123, 4294901760
        %v7125 = vsub.f32 %v7123, %v7124
        %v7126 = vand.u32 %v7125, 4294901760
        %7127 = vmatpush2.msra.mxu0 %v7126
        %7128 = vmatprep.subr.mxu0 0.0
        %v7129 = vand.u32 %v6026, 4294901760
        %v7130 = vsub.f32 %v6026, %v7129
        %v7131 = vand.u32 %v7130, 4294901760
        %v7132 = vsub.f32 %v7130, %v7131
        %v7133 = vand.u32 %v7132, 4294901760
        %7134 = vmatpush2.msra.mxu0 %v7133
        %7135 = vmatprep.subr.mxu0 0.0
        %v7136 = vand.u32 %v6025, 4294901760
        %v7137 = vsub.f32 %v6025, %v7136
        %v7138 = vand.u32 %v7137, 4294901760
        %v7139 = vsub.f32 %v7137, %v7138
        %v7140 = vand.u32 %v7139, 4294901760
        %7141 = vmatpush2.msra.mxu0 %v7140
        %7142 = vmatprep.subr.mxu0 0.0
        %v7143 = vand.u32 %v6024, 4294901760
        %v7144 = vsub.f32 %v6024, %v7143
        %v7145 = vand.u32 %v7144, 4294901760
        %v7146 = vsub.f32 %v7144, %v7145
        %v7147 = vand.u32 %v7146, 4294901760
        %7148 = vmatpush2.msra.mxu0 %v7147
        %7149 = vmatprep.subr.mxu0 0.0
        %v7150 = vand.u32 %v6023, 4294901760
        %v7151 = vsub.f32 %v6023, %v7150
        %v7152 = vand.u32 %v7151, 4294901760
        %v7153 = vsub.f32 %v7151, %v7152
        %v7154 = vand.u32 %v7153, 4294901760
        %7155 = vmatpush2.msra.mxu0 %v7154
        %7156 = vmatprep.subr.mxu0 0.0
        %v7157 = vand.u32 %v6022, 4294901760
        %v7158 = vsub.f32 %v6022, %v7157
        %v7159 = vand.u32 %v7158, 4294901760
        %v7160 = vsub.f32 %v7158, %v7159
        %v7161 = vand.u32 %v7160, 4294901760
        %7162 = vmatpush2.msra.mxu0 %v7161
        %7163 = vmatprep.subr.mxu0 0.0
        %v7164 = vand.u32 %v6021, 4294901760
        %v7165 = vsub.f32 %v6021, %v7164
        %v7166 = vand.u32 %v7165, 4294901760
        %v7167 = vsub.f32 %v7165, %v7166
        %v7168 = vand.u32 %v7167, 4294901760
        %7169 = vmatpush2.msra.mxu0 %v7168
        %7170 = vmatprep.subr.mxu0 0.0
        %v7171 = vand.u32 %v6020, 4294901760
        %v7172 = vsub.f32 %v6020, %v7171
        %v7173 = vand.u32 %v7172, 4294901760
        %v7174 = vsub.f32 %v7172, %v7173
        %v7175 = vand.u32 %v7174, 4294901760
        %7176 = vmatpush2.msra.mxu0 %v7175
        %7177 = vmatprep.subr.mxu0 0.0
        %v7178 = vand.u32 %v6019, 4294901760
        %v7179 = vsub.f32 %v6019, %v7178
        %v7180 = vand.u32 %v7179, 4294901760
        %v7181 = vsub.f32 %v7179, %v7180
        %v7182 = vand.u32 %v7181, 4294901760
        %7183 = vmatpush2.msra.mxu0 %v7182
        %7184 = vmatprep.subr.mxu0 0.0
        %v7185 = vand.u32 %v6018, 4294901760
        %v7186 = vsub.f32 %v6018, %v7185
        %v7187 = vand.u32 %v7186, 4294901760
        %v7188 = vsub.f32 %v7186, %v7187
        %v7189 = vand.u32 %v7188, 4294901760
        %7190 = vmatpush2.msra.mxu0 %v7189
        %7191 = vmatprep.subr.mxu0 0.0
        %v7192 = vand.u32 %v6017, 4294901760
        %v7193 = vsub.f32 %v6017, %v7192
        %v7194 = vand.u32 %v7193, 4294901760
        %v7195 = vsub.f32 %v7193, %v7194
        %v7196 = vand.u32 %v7195, 4294901760
        %7197 = vmatpush2.msra.mxu0 %v7196
        %7198 = vmatprep.subr.mxu0 0.0
        %v7199 = vand.u32 %v6016, 4294901760
        %v7200 = vsub.f32 %v6016, %v7199
        %v7201 = vand.u32 %v7200, 4294901760
        %v7202 = vsub.f32 %v7200, %v7201
        %v7203 = vand.u32 %v7202, 4294901760
        %7204 = vmatpush2.msra.mxu0 %v7203
        %7205 = vmatprep.subr.mxu0 0.0
        %v7206 = vand.u32 %v6015, 4294901760
        %v7207 = vsub.f32 %v6015, %v7206
        %v7208 = vand.u32 %v7207, 4294901760
        %v7209 = vsub.f32 %v7207, %v7208
        %v7210 = vand.u32 %v7209, 4294901760
        %7211 = vmatpush2.msra.mxu0 %v7210
        %7212 = vmatprep.subr.mxu0 0.0
        %v7213 = vand.u32 %v6014, 4294901760
        %v7214 = vsub.f32 %v6014, %v7213
        %v7215 = vand.u32 %v7214, 4294901760
        %v7216 = vsub.f32 %v7214, %v7215
        %v7217 = vand.u32 %v7216, 4294901760
        %7218 = vmatpush2.msra.mxu0 %v7217
        %7219 = vmatprep.subr.mxu0 0.0
        %v7220 = vand.u32 %v6013, 4294901760
        %v7221 = vsub.f32 %v6013, %v7220
        %v7222 = vand.u32 %v7221, 4294901760
        %v7223 = vsub.f32 %v7221, %v7222
        %v7224 = vand.u32 %v7223, 4294901760
        %7225 = vmatpush2.msra.mxu0 %v7224
        %7226 = vmatprep.subr.mxu0 0.0
        %v7227 = vand.u32 %v6012, 4294901760
        %v7228 = vsub.f32 %v6012, %v7227
        %v7229 = vand.u32 %v7228, 4294901760
        %v7230 = vsub.f32 %v7228, %v7229
        %v7231 = vand.u32 %v7230, 4294901760
        %7232 = vmatpush2.msra.mxu0 %v7231
        %v7233 = vand.u32 %v5963, 4294901760
        %7234 = vmatprep.mubr.f32.mxu0 %v7233
        %v7235 = vand.u32 %v5962, 4294901760
        %7236 = vmatmul.mubr.f32.gmra.mxu0 %v7235
        %v7237 = vpop.f32.mrf.mxu0
        %v7238 = vadd.f32 %v7006, %v7237
        %v7239 = vpop.f32.mrf.mxu0
        %7240 = vdwg.mxu0
        %7241 = vmatprep.subr.mxu0 0.0
        %v7242 = vand.u32 %v6011, 4294901760
        %v7243 = vsub.f32 %v6011, %v7242
        %7244 = vmatpush1.msra.mxu0 %v7243
        %7245 = vmatprep.subr.mxu0 0.0
        %v7246 = vand.u32 %v6010, 4294901760
        %v7247 = vsub.f32 %v6010, %v7246
        %7248 = vmatpush1.msra.mxu0 %v7247
        %7249 = vmatprep.subr.mxu0 0.0
        %v7250 = vand.u32 %v6009, 4294901760
        %v7251 = vsub.f32 %v6009, %v7250
        %7252 = vmatpush1.msra.mxu0 %v7251
        %7253 = vmatprep.subr.mxu0 0.0
        %v7254 = vand.u32 %v6008, 4294901760
        %v7255 = vsub.f32 %v6008, %v7254
        %7256 = vmatpush1.msra.mxu0 %v7255
        %7257 = vmatprep.subr.mxu0 0.0
        %v7258 = vand.u32 %v6007, 4294901760
        %v7259 = vsub.f32 %v6007, %v7258
        %7260 = vmatpush1.msra.mxu0 %v7259
        %7261 = vmatprep.subr.mxu0 0.0
        %v7262 = vand.u32 %v6006, 4294901760
        %v7263 = vsub.f32 %v6006, %v7262
        %7264 = vmatpush1.msra.mxu0 %v7263
        %7265 = vmatprep.subr.mxu0 0.0
        %v7266 = vand.u32 %v6005, 4294901760
        %v7267 = vsub.f32 %v6005, %v7266
        %7268 = vmatpush1.msra.mxu0 %v7267
        %7269 = vmatprep.subr.mxu0 0.0
        %v7270 = vand.u32 %v6004, 4294901760
        %v7271 = vsub.f32 %v6004, %v7270
        %7272 = vmatpush1.msra.mxu0 %v7271
        %7273 = vmatprep.subr.mxu0 0.0
        %v7274 = vand.u32 %v6003, 4294901760
        %v7275 = vsub.f32 %v6003, %v7274
        %7276 = vmatpush1.msra.mxu0 %v7275
        %7277 = vmatprep.subr.mxu0 0.0
        %v7278 = vand.u32 %v6002, 4294901760
        %v7279 = vsub.f32 %v6002, %v7278
        %7280 = vmatpush1.msra.mxu0 %v7279
        %7281 = vmatprep.subr.mxu0 0.0
        %v7282 = vand.u32 %v6001, 4294901760
        %v7283 = vsub.f32 %v6001, %v7282
        %7284 = vmatpush1.msra.mxu0 %v7283
        %7285 = vmatprep.subr.mxu0 0.0
        %v7286 = vand.u32 %v6000, 4294901760
        %v7287 = vsub.f32 %v6000, %v7286
        %7288 = vmatpush1.msra.mxu0 %v7287
        %7289 = vmatprep.subr.mxu0 0.0
        %v7290 = vand.u32 %v5999, 4294901760
        %v7291 = vsub.f32 %v5999, %v7290
        %7292 = vmatpush1.msra.mxu0 %v7291
        %7293 = vmatprep.subr.mxu0 0.0
        %v7294 = vand.u32 %v5998, 4294901760
        %v7295 = vsub.f32 %v5998, %v7294
        %7296 = vmatpush1.msra.mxu0 %v7295
        %7297 = vmatprep.subr.mxu0 0.0
        %v7298 = vand.u32 %v5997, 4294901760
        %v7299 = vsub.f32 %v5997, %v7298
        %7300 = vmatpush1.msra.mxu0 %v7299
        %7301 = vmatprep.subr.mxu0 0.0
        %v7302 = vand.u32 %v5996, 4294901760
        %v7303 = vsub.f32 %v5996, %v7302
        %7304 = vmatpush1.msra.mxu0 %v7303
        %7305 = vmatprep.subr.mxu0 0.0
        %v7306 = vand.u32 %v6027, 4294901760
        %v7307 = vsub.f32 %v6027, %v7306
        %7308 = vmatpush2.msra.mxu0 %v7307
        %7309 = vmatprep.subr.mxu0 0.0
        %v7310 = vand.u32 %v6026, 4294901760
        %v7311 = vsub.f32 %v6026, %v7310
        %7312 = vmatpush2.msra.mxu0 %v7311
        %7313 = vmatprep.subr.mxu0 0.0
        %v7314 = vand.u32 %v6025, 4294901760
        %v7315 = vsub.f32 %v6025, %v7314
        %7316 = vmatpush2.msra.mxu0 %v7315
        %7317 = vmatprep.subr.mxu0 0.0
        %v7318 = vand.u32 %v6024, 4294901760
        %v7319 = vsub.f32 %v6024, %v7318
        %7320 = vmatpush2.msra.mxu0 %v7319
        %7321 = vmatprep.subr.mxu0 0.0
        %v7322 = vand.u32 %v6023, 4294901760
        %v7323 = vsub.f32 %v6023, %v7322
        %7324 = vmatpush2.msra.mxu0 %v7323
        %7325 = vmatprep.subr.mxu0 0.0
        %v7326 = vand.u32 %v6022, 4294901760
        %v7327 = vsub.f32 %v6022, %v7326
        %7328 = vmatpush2.msra.mxu0 %v7327
        %7329 = vmatprep.subr.mxu0 0.0
        %v7330 = vand.u32 %v6021, 4294901760
        %v7331 = vsub.f32 %v6021, %v7330
        %7332 = vmatpush2.msra.mxu0 %v7331
        %7333 = vmatprep.subr.mxu0 0.0
        %v7334 = vand.u32 %v6020, 4294901760
        %v7335 = vsub.f32 %v6020, %v7334
        %7336 = vmatpush2.msra.mxu0 %v7335
        %7337 = vmatprep.subr.mxu0 0.0
        %v7338 = vand.u32 %v6019, 4294901760
        %v7339 = vsub.f32 %v6019, %v7338
        %7340 = vmatpush2.msra.mxu0 %v7339
        %7341 = vmatprep.subr.mxu0 0.0
        %v7342 = vand.u32 %v6018, 4294901760
        %v7343 = vsub.f32 %v6018, %v7342
        %7344 = vmatpush2.msra.mxu0 %v7343
        %7345 = vmatprep.subr.mxu0 0.0
        %v7346 = vand.u32 %v6017, 4294901760
        %v7347 = vsub.f32 %v6017, %v7346
        %7348 = vmatpush2.msra.mxu0 %v7347
        %7349 = vmatprep.subr.mxu0 0.0
        %v7350 = vand.u32 %v6016, 4294901760
        %v7351 = vsub.f32 %v6016, %v7350
        %7352 = vmatpush2.msra.mxu0 %v7351
        %7353 = vmatprep.subr.mxu0 0.0
        %v7354 = vand.u32 %v6015, 4294901760
        %v7355 = vsub.f32 %v6015, %v7354
        %7356 = vmatpush2.msra.mxu0 %v7355
        %7357 = vmatprep.subr.mxu0 0.0
        %v7358 = vand.u32 %v6014, 4294901760
        %v7359 = vsub.f32 %v6014, %v7358
        %7360 = vmatpush2.msra.mxu0 %v7359
        %7361 = vmatprep.subr.mxu0 0.0
        %v7362 = vand.u32 %v6013, 4294901760
        %v7363 = vsub.f32 %v6013, %v7362
        %7364 = vmatpush2.msra.mxu0 %v7363
        %7365 = vmatprep.subr.mxu0 0.0
        %v7366 = vand.u32 %v6012, 4294901760
        %v7367 = vsub.f32 %v6012, %v7366
        %7368 = vmatpush2.msra.mxu0 %v7367
        %v7369 = vand.u32 %v5963, 4294901760
        %v7370 = vsub.f32 %v5963, %v7369
        %7371 = vmatprep.mubr.f32.mxu0 %v7370
        %v7372 = vand.u32 %v5962, 4294901760
        %v7373 = vsub.f32 %v5962, %v7372
        %7374 = vmatmul.mubr.f32.gmra.mxu0 %v7373
        %v7375 = vpop.f32.mrf.mxu0
        %v7376 = vadd.f32 %v7238, %v7375
        %v7377 = vpop.f32.mrf.mxu0
        %7378 = vdwg.mxu0
        %7379 = vmatprep.subr.mxu0 0.0
        %v7380 = vand.u32 %v6011, 4294901760
        %7381 = vmatpush1.msra.mxu0 %v7380
        %7382 = vmatprep.subr.mxu0 0.0
        %v7383 = vand.u32 %v6010, 4294901760
        %7384 = vmatpush1.msra.mxu0 %v7383
        %7385 = vmatprep.subr.mxu0 0.0
        %v7386 = vand.u32 %v6009, 4294901760
        %7387 = vmatpush1.msra.mxu0 %v7386
        %7388 = vmatprep.subr.mxu0 0.0
        %v7389 = vand.u32 %v6008, 4294901760
        %7390 = vmatpush1.msra.mxu0 %v7389
        %7391 = vmatprep.subr.mxu0 0.0
        %v7392 = vand.u32 %v6007, 4294901760
        %7393 = vmatpush1.msra.mxu0 %v7392
        %7394 = vmatprep.subr.mxu0 0.0
        %v7395 = vand.u32 %v6006, 4294901760
        %7396 = vmatpush1.msra.mxu0 %v7395
        %7397 = vmatprep.subr.mxu0 0.0
        %v7398 = vand.u32 %v6005, 4294901760
        %7399 = vmatpush1.msra.mxu0 %v7398
        %7400 = vmatprep.subr.mxu0 0.0
        %v7401 = vand.u32 %v6004, 4294901760
        %7402 = vmatpush1.msra.mxu0 %v7401
        %7403 = vmatprep.subr.mxu0 0.0
        %v7404 = vand.u32 %v6003, 4294901760
        %7405 = vmatpush1.msra.mxu0 %v7404
        %7406 = vmatprep.subr.mxu0 0.0
        %v7407 = vand.u32 %v6002, 4294901760
        %7408 = vmatpush1.msra.mxu0 %v7407
        %7409 = vmatprep.subr.mxu0 0.0
        %v7410 = vand.u32 %v6001, 4294901760
        %7411 = vmatpush1.msra.mxu0 %v7410
        %7412 = vmatprep.subr.mxu0 0.0
        %v7413 = vand.u32 %v6000, 4294901760
        %7414 = vmatpush1.msra.mxu0 %v7413
        %7415 = vmatprep.subr.mxu0 0.0
        %v7416 = vand.u32 %v5999, 4294901760
        %7417 = vmatpush1.msra.mxu0 %v7416
        %7418 = vmatprep.subr.mxu0 0.0
        %v7419 = vand.u32 %v5998, 4294901760
        %7420 = vmatpush1.msra.mxu0 %v7419
        %7421 = vmatprep.subr.mxu0 0.0
        %v7422 = vand.u32 %v5997, 4294901760
        %7423 = vmatpush1.msra.mxu0 %v7422
        %7424 = vmatprep.subr.mxu0 0.0
        %v7425 = vand.u32 %v5996, 4294901760
        %7426 = vmatpush1.msra.mxu0 %v7425
        %7427 = vmatprep.subr.mxu0 0.0
        %v7428 = vand.u32 %v6027, 4294901760
        %7429 = vmatpush2.msra.mxu0 %v7428
        %7430 = vmatprep.subr.mxu0 0.0
        %v7431 = vand.u32 %v6026, 4294901760
        %7432 = vmatpush2.msra.mxu0 %v7431
        %7433 = vmatprep.subr.mxu0 0.0
        %v7434 = vand.u32 %v6025, 4294901760
        %7435 = vmatpush2.msra.mxu0 %v7434
        %7436 = vmatprep.subr.mxu0 0.0
        %v7437 = vand.u32 %v6024, 4294901760
        %7438 = vmatpush2.msra.mxu0 %v7437
        %7439 = vmatprep.subr.mxu0 0.0
        %v7440 = vand.u32 %v6023, 4294901760
        %7441 = vmatpush2.msra.mxu0 %v7440
        %7442 = vmatprep.subr.mxu0 0.0
        %v7443 = vand.u32 %v6022, 4294901760
        %7444 = vmatpush2.msra.mxu0 %v7443
        %7445 = vmatprep.subr.mxu0 0.0
        %v7446 = vand.u32 %v6021, 4294901760
        %7447 = vmatpush2.msra.mxu0 %v7446
        %7448 = vmatprep.subr.mxu0 0.0
        %v7449 = vand.u32 %v6020, 4294901760
        %7450 = vmatpush2.msra.mxu0 %v7449
        %7451 = vmatprep.subr.mxu0 0.0
        %v7452 = vand.u32 %v6019, 4294901760
        %7453 = vmatpush2.msra.mxu0 %v7452
        %7454 = vmatprep.subr.mxu0 0.0
        %v7455 = vand.u32 %v6018, 4294901760
        %7456 = vmatpush2.msra.mxu0 %v7455
        %7457 = vmatprep.subr.mxu0 0.0
        %v7458 = vand.u32 %v6017, 4294901760
        %7459 = vmatpush2.msra.mxu0 %v7458
        %7460 = vmatprep.subr.mxu0 0.0
        %v7461 = vand.u32 %v6016, 4294901760
        %7462 = vmatpush2.msra.mxu0 %v7461
        %7463 = vmatprep.subr.mxu0 0.0
        %v7464 = vand.u32 %v6015, 4294901760
        %7465 = vmatpush2.msra.mxu0 %v7464
        %7466 = vmatprep.subr.mxu0 0.0
        %v7467 = vand.u32 %v6014, 4294901760
        %7468 = vmatpush2.msra.mxu0 %v7467
        %7469 = vmatprep.subr.mxu0 0.0
        %v7470 = vand.u32 %v6013, 4294901760
        %7471 = vmatpush2.msra.mxu0 %v7470
        %7472 = vmatprep.subr.mxu0 0.0
        %v7473 = vand.u32 %v6012, 4294901760
        %7474 = vmatpush2.msra.mxu0 %v7473
        %v7475 = vand.u32 %v5963, 4294901760
        %v7476 = vsub.f32 %v5963, %v7475
        %v7477 = vand.u32 %v7476, 4294901760
        %7478 = vmatprep.mubr.f32.mxu0 %v7477
        %v7479 = vand.u32 %v5962, 4294901760
        %v7480 = vsub.f32 %v5962, %v7479
        %v7481 = vand.u32 %v7480, 4294901760
        %7482 = vmatmul.mubr.f32.gmra.mxu0 %v7481
        %v7483 = vpop.f32.mrf.mxu0
        %v7484 = vadd.f32 %v7376, %v7483
        %v7485 = vpop.f32.mrf.mxu0
        %7486 = vdwg.mxu0
        %7487 = vmatprep.subr.mxu0 0.0
        %v7488 = vand.u32 %v6011, 4294901760
        %v7489 = vsub.f32 %v6011, %v7488
        %v7490 = vand.u32 %v7489, 4294901760
        %7491 = vmatpush1.msra.mxu0 %v7490
        %7492 = vmatprep.subr.mxu0 0.0
        %v7493 = vand.u32 %v6010, 4294901760
        %v7494 = vsub.f32 %v6010, %v7493
        %v7495 = vand.u32 %v7494, 4294901760
        %7496 = vmatpush1.msra.mxu0 %v7495
        %7497 = vmatprep.subr.mxu0 0.0
        %v7498 = vand.u32 %v6009, 4294901760
        %v7499 = vsub.f32 %v6009, %v7498
        %v7500 = vand.u32 %v7499, 4294901760
        %7501 = vmatpush1.msra.mxu0 %v7500
        %7502 = vmatprep.subr.mxu0 0.0
        %v7503 = vand.u32 %v6008, 4294901760
        %v7504 = vsub.f32 %v6008, %v7503
        %v7505 = vand.u32 %v7504, 4294901760
        %7506 = vmatpush1.msra.mxu0 %v7505
        %7507 = vmatprep.subr.mxu0 0.0
        %v7508 = vand.u32 %v6007, 4294901760
        %v7509 = vsub.f32 %v6007, %v7508
        %v7510 = vand.u32 %v7509, 4294901760
        %7511 = vmatpush1.msra.mxu0 %v7510
        %7512 = vmatprep.subr.mxu0 0.0
        %v7513 = vand.u32 %v6006, 4294901760
        %v7514 = vsub.f32 %v6006, %v7513
        %v7515 = vand.u32 %v7514, 4294901760
        %7516 = vmatpush1.msra.mxu0 %v7515
        %7517 = vmatprep.subr.mxu0 0.0
        %v7518 = vand.u32 %v6005, 4294901760
        %v7519 = vsub.f32 %v6005, %v7518
        %v7520 = vand.u32 %v7519, 4294901760
        %7521 = vmatpush1.msra.mxu0 %v7520
        %7522 = vmatprep.subr.mxu0 0.0
        %v7523 = vand.u32 %v6004, 4294901760
        %v7524 = vsub.f32 %v6004, %v7523
        %v7525 = vand.u32 %v7524, 4294901760
        %7526 = vmatpush1.msra.mxu0 %v7525
        %7527 = vmatprep.subr.mxu0 0.0
        %v7528 = vand.u32 %v6003, 4294901760
        %v7529 = vsub.f32 %v6003, %v7528
        %v7530 = vand.u32 %v7529, 4294901760
        %7531 = vmatpush1.msra.mxu0 %v7530
        %7532 = vmatprep.subr.mxu0 0.0
        %v7533 = vand.u32 %v6002, 4294901760
        %v7534 = vsub.f32 %v6002, %v7533
        %v7535 = vand.u32 %v7534, 4294901760
        %7536 = vmatpush1.msra.mxu0 %v7535
        %7537 = vmatprep.subr.mxu0 0.0
        %v7538 = vand.u32 %v6001, 4294901760
        %v7539 = vsub.f32 %v6001, %v7538
        %v7540 = vand.u32 %v7539, 4294901760
        %7541 = vmatpush1.msra.mxu0 %v7540
        %7542 = vmatprep.subr.mxu0 0.0
        %v7543 = vand.u32 %v6000, 4294901760
        %v7544 = vsub.f32 %v6000, %v7543
        %v7545 = vand.u32 %v7544, 4294901760
        %7546 = vmatpush1.msra.mxu0 %v7545
        %7547 = vmatprep.subr.mxu0 0.0
        %v7548 = vand.u32 %v5999, 4294901760
        %v7549 = vsub.f32 %v5999, %v7548
        %v7550 = vand.u32 %v7549, 4294901760
        %7551 = vmatpush1.msra.mxu0 %v7550
        %7552 = vmatprep.subr.mxu0 0.0
        %v7553 = vand.u32 %v5998, 4294901760
        %v7554 = vsub.f32 %v5998, %v7553
        %v7555 = vand.u32 %v7554, 4294901760
        %7556 = vmatpush1.msra.mxu0 %v7555
        %7557 = vmatprep.subr.mxu0 0.0
        %v7558 = vand.u32 %v5997, 4294901760
        %v7559 = vsub.f32 %v5997, %v7558
        %v7560 = vand.u32 %v7559, 4294901760
        %7561 = vmatpush1.msra.mxu0 %v7560
        %7562 = vmatprep.subr.mxu0 0.0
        %v7563 = vand.u32 %v5996, 4294901760
        %v7564 = vsub.f32 %v5996, %v7563
        %v7565 = vand.u32 %v7564, 4294901760
        %7566 = vmatpush1.msra.mxu0 %v7565
        %7567 = vmatprep.subr.mxu0 0.0
        %v7568 = vand.u32 %v6027, 4294901760
        %v7569 = vsub.f32 %v6027, %v7568
        %v7570 = vand.u32 %v7569, 4294901760
        %7571 = vmatpush2.msra.mxu0 %v7570
        %7572 = vmatprep.subr.mxu0 0.0
        %v7573 = vand.u32 %v6026, 4294901760
        %v7574 = vsub.f32 %v6026, %v7573
        %v7575 = vand.u32 %v7574, 4294901760
        %7576 = vmatpush2.msra.mxu0 %v7575
        %7577 = vmatprep.subr.mxu0 0.0
        %v7578 = vand.u32 %v6025, 4294901760
        %v7579 = vsub.f32 %v6025, %v7578
        %v7580 = vand.u32 %v7579, 4294901760
        %7581 = vmatpush2.msra.mxu0 %v7580
        %7582 = vmatprep.subr.mxu0 0.0
        %v7583 = vand.u32 %v6024, 4294901760
        %v7584 = vsub.f32 %v6024, %v7583
        %v7585 = vand.u32 %v7584, 4294901760
        %7586 = vmatpush2.msra.mxu0 %v7585
        %7587 = vmatprep.subr.mxu0 0.0
        %v7588 = vand.u32 %v6023, 4294901760
        %v7589 = vsub.f32 %v6023, %v7588
        %v7590 = vand.u32 %v7589, 4294901760
        %7591 = vmatpush2.msra.mxu0 %v7590
        %7592 = vmatprep.subr.mxu0 0.0
        %v7593 = vand.u32 %v6022, 4294901760
        %v7594 = vsub.f32 %v6022, %v7593
        %v7595 = vand.u32 %v7594, 4294901760
        %7596 = vmatpush2.msra.mxu0 %v7595
        %7597 = vmatprep.subr.mxu0 0.0
        %v7598 = vand.u32 %v6021, 4294901760
        %v7599 = vsub.f32 %v6021, %v7598
        %v7600 = vand.u32 %v7599, 4294901760
        %7601 = vmatpush2.msra.mxu0 %v7600
        %7602 = vmatprep.subr.mxu0 0.0
        %v7603 = vand.u32 %v6020, 4294901760
        %v7604 = vsub.f32 %v6020, %v7603
        %v7605 = vand.u32 %v7604, 4294901760
        %7606 = vmatpush2.msra.mxu0 %v7605
        %7607 = vmatprep.subr.mxu0 0.0
        %v7608 = vand.u32 %v6019, 4294901760
        %v7609 = vsub.f32 %v6019, %v7608
        %v7610 = vand.u32 %v7609, 4294901760
        %7611 = vmatpush2.msra.mxu0 %v7610
        %7612 = vmatprep.subr.mxu0 0.0
        %v7613 = vand.u32 %v6018, 4294901760
        %v7614 = vsub.f32 %v6018, %v7613
        %v7615 = vand.u32 %v7614, 4294901760
        %7616 = vmatpush2.msra.mxu0 %v7615
        %7617 = vmatprep.subr.mxu0 0.0
        %v7618 = vand.u32 %v6017, 4294901760
        %v7619 = vsub.f32 %v6017, %v7618
        %v7620 = vand.u32 %v7619, 4294901760
        %7621 = vmatpush2.msra.mxu0 %v7620
        %7622 = vmatprep.subr.mxu0 0.0
        %v7623 = vand.u32 %v6016, 4294901760
        %v7624 = vsub.f32 %v6016, %v7623
        %v7625 = vand.u32 %v7624, 4294901760
        %7626 = vmatpush2.msra.mxu0 %v7625
        %7627 = vmatprep.subr.mxu0 0.0
        %v7628 = vand.u32 %v6015, 4294901760
        %v7629 = vsub.f32 %v6015, %v7628
        %v7630 = vand.u32 %v7629, 4294901760
        %7631 = vmatpush2.msra.mxu0 %v7630
        %7632 = vmatprep.subr.mxu0 0.0
        %v7633 = vand.u32 %v6014, 4294901760
        %v7634 = vsub.f32 %v6014, %v7633
        %v7635 = vand.u32 %v7634, 4294901760
        %7636 = vmatpush2.msra.mxu0 %v7635
        %7637 = vmatprep.subr.mxu0 0.0
        %v7638 = vand.u32 %v6013, 4294901760
        %v7639 = vsub.f32 %v6013, %v7638
        %v7640 = vand.u32 %v7639, 4294901760
        %7641 = vmatpush2.msra.mxu0 %v7640
        %7642 = vmatprep.subr.mxu0 0.0
        %v7643 = vand.u32 %v6012, 4294901760
        %v7644 = vsub.f32 %v6012, %v7643
        %v7645 = vand.u32 %v7644, 4294901760
        %7646 = vmatpush2.msra.mxu0 %v7645
        %v7647 = vand.u32 %v5963, 4294901760
        %7648 = vmatprep.mubr.f32.mxu0 %v7647
        %v7649 = vand.u32 %v5962, 4294901760
        %7650 = vmatmul.mubr.f32.gmra.mxu0 %v7649
        %v7651 = vpop.f32.mrf.mxu0
        %v7652 = vadd.f32 %v7484, %v7651
        %v7653 = vpop.f32.mrf.mxu0
        %7654 = vdwg.mxu0
        %7655 = vmatprep.subr.mxu0 0.0
        %v7656 = vand.u32 %v6011, 4294901760
        %7657 = vmatpush1.msra.mxu0 %v7656
        %7658 = vmatprep.subr.mxu0 0.0
        %v7659 = vand.u32 %v6010, 4294901760
        %7660 = vmatpush1.msra.mxu0 %v7659
        %7661 = vmatprep.subr.mxu0 0.0
        %v7662 = vand.u32 %v6009, 4294901760
        %7663 = vmatpush1.msra.mxu0 %v7662
        %7664 = vmatprep.subr.mxu0 0.0
        %v7665 = vand.u32 %v6008, 4294901760
        %7666 = vmatpush1.msra.mxu0 %v7665
        %7667 = vmatprep.subr.mxu0 0.0
        %v7668 = vand.u32 %v6007, 4294901760
        %7669 = vmatpush1.msra.mxu0 %v7668
        %7670 = vmatprep.subr.mxu0 0.0
        %v7671 = vand.u32 %v6006, 4294901760
        %7672 = vmatpush1.msra.mxu0 %v7671
        %7673 = vmatprep.subr.mxu0 0.0
        %v7674 = vand.u32 %v6005, 4294901760
        %7675 = vmatpush1.msra.mxu0 %v7674
        %7676 = vmatprep.subr.mxu0 0.0
        %v7677 = vand.u32 %v6004, 4294901760
        %7678 = vmatpush1.msra.mxu0 %v7677
        %7679 = vmatprep.subr.mxu0 0.0
        %v7680 = vand.u32 %v6003, 4294901760
        %7681 = vmatpush1.msra.mxu0 %v7680
        %7682 = vmatprep.subr.mxu0 0.0
        %v7683 = vand.u32 %v6002, 4294901760
        %7684 = vmatpush1.msra.mxu0 %v7683
        %7685 = vmatprep.subr.mxu0 0.0
        %v7686 = vand.u32 %v6001, 4294901760
        %7687 = vmatpush1.msra.mxu0 %v7686
        %7688 = vmatprep.subr.mxu0 0.0
        %v7689 = vand.u32 %v6000, 4294901760
        %7690 = vmatpush1.msra.mxu0 %v7689
        %7691 = vmatprep.subr.mxu0 0.0
        %v7692 = vand.u32 %v5999, 4294901760
        %7693 = vmatpush1.msra.mxu0 %v7692
        %7694 = vmatprep.subr.mxu0 0.0
        %v7695 = vand.u32 %v5998, 4294901760
        %7696 = vmatpush1.msra.mxu0 %v7695
        %7697 = vmatprep.subr.mxu0 0.0
        %v7698 = vand.u32 %v5997, 4294901760
        %7699 = vmatpush1.msra.mxu0 %v7698
        %7700 = vmatprep.subr.mxu0 0.0
        %v7701 = vand.u32 %v5996, 4294901760
        %7702 = vmatpush1.msra.mxu0 %v7701
        %7703 = vmatprep.subr.mxu0 0.0
        %v7704 = vand.u32 %v6027, 4294901760
        %7705 = vmatpush2.msra.mxu0 %v7704
        %7706 = vmatprep.subr.mxu0 0.0
        %v7707 = vand.u32 %v6026, 4294901760
        %7708 = vmatpush2.msra.mxu0 %v7707
        %7709 = vmatprep.subr.mxu0 0.0
        %v7710 = vand.u32 %v6025, 4294901760
        %7711 = vmatpush2.msra.mxu0 %v7710
        %7712 = vmatprep.subr.mxu0 0.0
        %v7713 = vand.u32 %v6024, 4294901760
        %7714 = vmatpush2.msra.mxu0 %v7713
        %7715 = vmatprep.subr.mxu0 0.0
        %v7716 = vand.u32 %v6023, 4294901760
        %7717 = vmatpush2.msra.mxu0 %v7716
        %7718 = vmatprep.subr.mxu0 0.0
        %v7719 = vand.u32 %v6022, 4294901760
        %7720 = vmatpush2.msra.mxu0 %v7719
        %7721 = vmatprep.subr.mxu0 0.0
        %v7722 = vand.u32 %v6021, 4294901760
        %7723 = vmatpush2.msra.mxu0 %v7722
        %7724 = vmatprep.subr.mxu0 0.0
        %v7725 = vand.u32 %v6020, 4294901760
        %7726 = vmatpush2.msra.mxu0 %v7725
        %7727 = vmatprep.subr.mxu0 0.0
        %v7728 = vand.u32 %v6019, 4294901760
        %7729 = vmatpush2.msra.mxu0 %v7728
        %7730 = vmatprep.subr.mxu0 0.0
        %v7731 = vand.u32 %v6018, 4294901760
        %7732 = vmatpush2.msra.mxu0 %v7731
        %7733 = vmatprep.subr.mxu0 0.0
        %v7734 = vand.u32 %v6017, 4294901760
        %7735 = vmatpush2.msra.mxu0 %v7734
        %7736 = vmatprep.subr.mxu0 0.0
        %v7737 = vand.u32 %v6016, 4294901760
        %7738 = vmatpush2.msra.mxu0 %v7737
        %7739 = vmatprep.subr.mxu0 0.0
        %v7740 = vand.u32 %v6015, 4294901760
        %7741 = vmatpush2.msra.mxu0 %v7740
        %7742 = vmatprep.subr.mxu0 0.0
        %v7743 = vand.u32 %v6014, 4294901760
        %7744 = vmatpush2.msra.mxu0 %v7743
        %7745 = vmatprep.subr.mxu0 0.0
        %v7746 = vand.u32 %v6013, 4294901760
        %7747 = vmatpush2.msra.mxu0 %v7746
        %7748 = vmatprep.subr.mxu0 0.0
        %v7749 = vand.u32 %v6012, 4294901760
        %7750 = vmatpush2.msra.mxu0 %v7749
        %v7751 = vand.u32 %v5963, 4294901760
        %7752 = vmatprep.mubr.f32.mxu0 %v7751
        %v7753 = vand.u32 %v5962, 4294901760
        %7754 = vmatmul.mubr.f32.gmra.mxu0 %v7753
        %v7755 = vpop.f32.mrf.mxu0
        %v7756 = vadd.f32 %v7652, %v7755
        %v7757 = vpop.f32.mrf.mxu0
        %7758 = vdwg.mxu0
        %v7759 = vmax.f32 %v7756, 0.0
        %v7760 = vld [vmem:[%s9] sm:$0xff]
        %v7761 = vld [vmem:[%s9 + $0x8] sm:$0xff]
        %v7762 = vld [vmem:[%s9 + $0x10] sm:$0xff]
        %v7763 = vld [vmem:[%s9 + $0x18] sm:$0xff]
        %v7764 = vld [vmem:[%s9 + $0x20] sm:$0xff]
        %v7765 = vld [vmem:[%s9 + $0x28] sm:$0xff]
        %v7766 = vld [vmem:[%s9 + $0x30] sm:$0xff]
        %v7767 = vld [vmem:[%s9 + $0x38] sm:$0xff]
        %v7768 = vld [vmem:[%s9 + $0x40] sm:$0xff]
        %v7769 = vld [vmem:[%s9 + $0x48] sm:$0xff]
        %v7770 = vld [vmem:[%s9 + $0x50] sm:$0xff]
        %v7771 = vld [vmem:[%s9 + $0x58] sm:$0xff]
        %v7772 = vld [vmem:[%s9 + $0x60] sm:$0xff]
        %v7773 = vld [vmem:[%s9 + $0x68] sm:$0xff]
        %v7774 = vld [vmem:[%s9 + $0x70] sm:$0xff]
        %v7775 = vld [vmem:[%s9 + $0x78] sm:$0xff]
        %v7776 = vld [vmem:[%s10] sm:$0x1]
        %v7778 = vlaneseq
        %v7779 = vshrl.u32 %v7778, 7
        %v7780 = vsub.s32 0, %v7779
        %v7781 = vrot.slane %v7776, %v7780
        %7783 = vmatprep.subr.mxu0 0.0
        %v7784 = vand.u32 %v7775, 4294901760
        %7785 = vmatpush1.msra.mxu0 %v7784
        %7786 = vmatprep.subr.mxu0 0.0
        %v7787 = vand.u32 %v7774, 4294901760
        %7788 = vmatpush1.msra.mxu0 %v7787
        %7789 = vmatprep.subr.mxu0 0.0
        %v7790 = vand.u32 %v7773, 4294901760
        %7791 = vmatpush1.msra.mxu0 %v7790
        %7792 = vmatprep.subr.mxu0 0.0
        %v7793 = vand.u32 %v7772, 4294901760
        %7794 = vmatpush1.msra.mxu0 %v7793
        %7795 = vmatprep.subr.mxu0 0.0
        %v7796 = vand.u32 %v7771, 4294901760
        %7797 = vmatpush1.msra.mxu0 %v7796
        %7798 = vmatprep.subr.mxu0 0.0
        %v7799 = vand.u32 %v7770, 4294901760
        %7800 = vmatpush1.msra.mxu0 %v7799
        %7801 = vmatprep.subr.mxu0 0.0
        %v7802 = vand.u32 %v7769, 4294901760
        %7803 = vmatpush1.msra.mxu0 %v7802
        %7804 = vmatprep.subr.mxu0 0.0
        %v7805 = vand.u32 %v7768, 4294901760
        %7806 = vmatpush1.msra.mxu0 %v7805
        %7807 = vmatprep.subr.mxu0 0.0
        %v7808 = vand.u32 %v7767, 4294901760
        %7809 = vmatpush1.msra.mxu0 %v7808
        %7810 = vmatprep.subr.mxu0 0.0
        %v7811 = vand.u32 %v7766, 4294901760
        %7812 = vmatpush1.msra.mxu0 %v7811
        %7813 = vmatprep.subr.mxu0 0.0
        %v7814 = vand.u32 %v7765, 4294901760
        %7815 = vmatpush1.msra.mxu0 %v7814
        %7816 = vmatprep.subr.mxu0 0.0
        %v7817 = vand.u32 %v7764, 4294901760
        %7818 = vmatpush1.msra.mxu0 %v7817
        %7819 = vmatprep.subr.mxu0 0.0
        %v7820 = vand.u32 %v7763, 4294901760
        %7821 = vmatpush1.msra.mxu0 %v7820
        %7822 = vmatprep.subr.mxu0 0.0
        %v7823 = vand.u32 %v7762, 4294901760
        %7824 = vmatpush1.msra.mxu0 %v7823
        %7825 = vmatprep.subr.mxu0 0.0
        %v7826 = vand.u32 %v7761, 4294901760
        %7827 = vmatpush1.msra.mxu0 %v7826
        %7828 = vmatprep.subr.mxu0 0.0
        %v7829 = vand.u32 %v7760, 4294901760
        %7830 = vmatpush1.msra.mxu0 %v7829
        %7831 = vmatprep.subr.mxu0 0.0
        %7832 = vmatpush2.msra.mxu0 0.0
        %7833 = vmatprep.subr.mxu0 0.0
        %7834 = vmatpush2.msra.mxu0 0.0
        %7835 = vmatprep.subr.mxu0 0.0
        %7836 = vmatpush2.msra.mxu0 0.0
        %7837 = vmatprep.subr.mxu0 0.0
        %7838 = vmatpush2.msra.mxu0 0.0
        %7839 = vmatprep.subr.mxu0 0.0
        %7840 = vmatpush2.msra.mxu0 0.0
        %7841 = vmatprep.subr.mxu0 0.0
        %7842 = vmatpush2.msra.mxu0 0.0
        %7843 = vmatprep.subr.mxu0 0.0
        %7844 = vmatpush2.msra.mxu0 0.0
        %7845 = vmatprep.subr.mxu0 0.0
        %7846 = vmatpush2.msra.mxu0 0.0
        %7847 = vmatprep.subr.mxu0 0.0
        %7848 = vmatpush2.msra.mxu0 0.0
        %7849 = vmatprep.subr.mxu0 0.0
        %7850 = vmatpush2.msra.mxu0 0.0
        %7851 = vmatprep.subr.mxu0 0.0
        %7852 = vmatpush2.msra.mxu0 0.0
        %7853 = vmatprep.subr.mxu0 0.0
        %7854 = vmatpush2.msra.mxu0 0.0
        %7855 = vmatprep.subr.mxu0 0.0
        %7856 = vmatpush2.msra.mxu0 0.0
        %7857 = vmatprep.subr.mxu0 0.0
        %7858 = vmatpush2.msra.mxu0 0.0
        %7859 = vmatprep.subr.mxu0 0.0
        %7860 = vmatpush2.msra.mxu0 0.0
        %7861 = vmatprep.subr.mxu0 0.0
        %7862 = vmatpush2.msra.mxu0 0.0
        %7863 = vmatprep.mubr.f32.mxu0 0.0
        %v7864 = vand.u32 %v7759, 4294901760
        %v7865 = vsub.f32 %v7759, %v7864
        %v7866 = vand.u32 %v7865, 4294901760
        %v7867 = vsub.f32 %v7865, %v7866
        %v7868 = vand.u32 %v7867, 4294901760
        %7869 = vmatmul.mubr.f32.gmra.mxu0 %v7868
        %v7870 = vpop.f32.mrf.mxu0
        %v7871 = vadd.f32 %v7781, %v7870
        %v7872 = vpop.f32.mrf.mxu0
        %7873 = vdwg.mxu0
        %7874 = vmatprep.subr.mxu0 0.0
        %v7875 = vand.u32 %v7775, 4294901760
        %v7876 = vsub.f32 %v7775, %v7875
        %v7877 = vand.u32 %v7876, 4294901760
        %v7878 = vsub.f32 %v7876, %v7877
        %v7879 = vand.u32 %v7878, 4294901760
        %7880 = vmatpush1.msra.mxu0 %v7879
        %7881 = vmatprep.subr.mxu0 0.0
        %v7882 = vand.u32 %v7774, 4294901760
        %v7883 = vsub.f32 %v7774, %v7882
        %v7884 = vand.u32 %v7883, 4294901760
        %v7885 = vsub.f32 %v7883, %v7884
        %v7886 = vand.u32 %v7885, 4294901760
        %7887 = vmatpush1.msra.mxu0 %v7886
        %7888 = vmatprep.subr.mxu0 0.0
        %v7889 = vand.u32 %v7773, 4294901760
        %v7890 = vsub.f32 %v7773, %v7889
        %v7891 = vand.u32 %v7890, 4294901760
        %v7892 = vsub.f32 %v7890, %v7891
        %v7893 = vand.u32 %v7892, 4294901760
        %7894 = vmatpush1.msra.mxu0 %v7893
        %7895 = vmatprep.subr.mxu0 0.0
        %v7896 = vand.u32 %v7772, 4294901760
        %v7897 = vsub.f32 %v7772, %v7896
        %v7898 = vand.u32 %v7897, 4294901760
        %v7899 = vsub.f32 %v7897, %v7898
        %v7900 = vand.u32 %v7899, 4294901760
        %7901 = vmatpush1.msra.mxu0 %v7900
        %7902 = vmatprep.subr.mxu0 0.0
        %v7903 = vand.u32 %v7771, 4294901760
        %v7904 = vsub.f32 %v7771, %v7903
        %v7905 = vand.u32 %v7904, 4294901760
        %v7906 = vsub.f32 %v7904, %v7905
        %v7907 = vand.u32 %v7906, 4294901760
        %7908 = vmatpush1.msra.mxu0 %v7907
        %7909 = vmatprep.subr.mxu0 0.0
        %v7910 = vand.u32 %v7770, 4294901760
        %v7911 = vsub.f32 %v7770, %v7910
        %v7912 = vand.u32 %v7911, 4294901760
        %v7913 = vsub.f32 %v7911, %v7912
        %v7914 = vand.u32 %v7913, 4294901760
        %7915 = vmatpush1.msra.mxu0 %v7914
        %7916 = vmatprep.subr.mxu0 0.0
        %v7917 = vand.u32 %v7769, 4294901760
        %v7918 = vsub.f32 %v7769, %v7917
        %v7919 = vand.u32 %v7918, 4294901760
        %v7920 = vsub.f32 %v7918, %v7919
        %v7921 = vand.u32 %v7920, 4294901760
        %7922 = vmatpush1.msra.mxu0 %v7921
        %7923 = vmatprep.subr.mxu0 0.0
        %v7924 = vand.u32 %v7768, 4294901760
        %v7925 = vsub.f32 %v7768, %v7924
        %v7926 = vand.u32 %v7925, 4294901760
        %v7927 = vsub.f32 %v7925, %v7926
        %v7928 = vand.u32 %v7927, 4294901760
        %7929 = vmatpush1.msra.mxu0 %v7928
        %7930 = vmatprep.subr.mxu0 0.0
        %v7931 = vand.u32 %v7767, 4294901760
        %v7932 = vsub.f32 %v7767, %v7931
        %v7933 = vand.u32 %v7932, 4294901760
        %v7934 = vsub.f32 %v7932, %v7933
        %v7935 = vand.u32 %v7934, 4294901760
        %7936 = vmatpush1.msra.mxu0 %v7935
        %7937 = vmatprep.subr.mxu0 0.0
        %v7938 = vand.u32 %v7766, 4294901760
        %v7939 = vsub.f32 %v7766, %v7938
        %v7940 = vand.u32 %v7939, 4294901760
        %v7941 = vsub.f32 %v7939, %v7940
        %v7942 = vand.u32 %v7941, 4294901760
        %7943 = vmatpush1.msra.mxu0 %v7942
        %7944 = vmatprep.subr.mxu0 0.0
        %v7945 = vand.u32 %v7765, 4294901760
        %v7946 = vsub.f32 %v7765, %v7945
        %v7947 = vand.u32 %v7946, 4294901760
        %v7948 = vsub.f32 %v7946, %v7947
        %v7949 = vand.u32 %v7948, 4294901760
        %7950 = vmatpush1.msra.mxu0 %v7949
        %7951 = vmatprep.subr.mxu0 0.0
        %v7952 = vand.u32 %v7764, 4294901760
        %v7953 = vsub.f32 %v7764, %v7952
        %v7954 = vand.u32 %v7953, 4294901760
        %v7955 = vsub.f32 %v7953, %v7954
        %v7956 = vand.u32 %v7955, 4294901760
        %7957 = vmatpush1.msra.mxu0 %v7956
        %7958 = vmatprep.subr.mxu0 0.0
        %v7959 = vand.u32 %v7763, 4294901760
        %v7960 = vsub.f32 %v7763, %v7959
        %v7961 = vand.u32 %v7960, 4294901760
        %v7962 = vsub.f32 %v7960, %v7961
        %v7963 = vand.u32 %v7962, 4294901760
        %7964 = vmatpush1.msra.mxu0 %v7963
        %7965 = vmatprep.subr.mxu0 0.0
        %v7966 = vand.u32 %v7762, 4294901760
        %v7967 = vsub.f32 %v7762, %v7966
        %v7968 = vand.u32 %v7967, 4294901760
        %v7969 = vsub.f32 %v7967, %v7968
        %v7970 = vand.u32 %v7969, 4294901760
        %7971 = vmatpush1.msra.mxu0 %v7970
        %7972 = vmatprep.subr.mxu0 0.0
        %v7973 = vand.u32 %v7761, 4294901760
        %v7974 = vsub.f32 %v7761, %v7973
        %v7975 = vand.u32 %v7974, 4294901760
        %v7976 = vsub.f32 %v7974, %v7975
        %v7977 = vand.u32 %v7976, 4294901760
        %7978 = vmatpush1.msra.mxu0 %v7977
        %7979 = vmatprep.subr.mxu0 0.0
        %v7980 = vand.u32 %v7760, 4294901760
        %v7981 = vsub.f32 %v7760, %v7980
        %v7982 = vand.u32 %v7981, 4294901760
        %v7983 = vsub.f32 %v7981, %v7982
        %v7984 = vand.u32 %v7983, 4294901760
        %7985 = vmatpush1.msra.mxu0 %v7984
        %7986 = vmatprep.subr.mxu0 0.0
        %7987 = vmatpush2.msra.mxu0 0.0
        %7988 = vmatprep.subr.mxu0 0.0
        %7989 = vmatpush2.msra.mxu0 0.0
        %7990 = vmatprep.subr.mxu0 0.0
        %7991 = vmatpush2.msra.mxu0 0.0
        %7992 = vmatprep.subr.mxu0 0.0
        %7993 = vmatpush2.msra.mxu0 0.0
        %7994 = vmatprep.subr.mxu0 0.0
        %7995 = vmatpush2.msra.mxu0 0.0
        %7996 = vmatprep.subr.mxu0 0.0
        %7997 = vmatpush2.msra.mxu0 0.0
        %7998 = vmatprep.subr.mxu0 0.0
        %7999 = vmatpush2.msra.mxu0 0.0
        %8000 = vmatprep.subr.mxu0 0.0
        %8001 = vmatpush2.msra.mxu0 0.0
        %8002 = vmatprep.subr.mxu0 0.0
        %8003 = vmatpush2.msra.mxu0 0.0
        %8004 = vmatprep.subr.mxu0 0.0
        %8005 = vmatpush2.msra.mxu0 0.0
        %8006 = vmatprep.subr.mxu0 0.0
        %8007 = vmatpush2.msra.mxu0 0.0
        %8008 = vmatprep.subr.mxu0 0.0
        %8009 = vmatpush2.msra.mxu0 0.0
        %8010 = vmatprep.subr.mxu0 0.0
        %8011 = vmatpush2.msra.mxu0 0.0
        %8012 = vmatprep.subr.mxu0 0.0
        %8013 = vmatpush2.msra.mxu0 0.0
        %8014 = vmatprep.subr.mxu0 0.0
        %8015 = vmatpush2.msra.mxu0 0.0
        %8016 = vmatprep.subr.mxu0 0.0
        %8017 = vmatpush2.msra.mxu0 0.0
        %8018 = vmatprep.mubr.f32.mxu0 0.0
        %v8019 = vand.u32 %v7759, 4294901760
        %8020 = vmatmul.mubr.f32.gmra.mxu0 %v8019
        %v8021 = vpop.f32.mrf.mxu0
        %v8022 = vadd.f32 %v7871, %v8021
        %v8023 = vpop.f32.mrf.mxu0
        %8024 = vdwg.mxu0
        %8025 = vmatprep.subr.mxu0 0.0
        %v8026 = vand.u32 %v7775, 4294901760
        %v8027 = vsub.f32 %v7775, %v8026
        %8028 = vmatpush1.msra.mxu0 %v8027
        %8029 = vmatprep.subr.mxu0 0.0
        %v8030 = vand.u32 %v7774, 4294901760
        %v8031 = vsub.f32 %v7774, %v8030
        %8032 = vmatpush1.msra.mxu0 %v8031
        %8033 = vmatprep.subr.mxu0 0.0
        %v8034 = vand.u32 %v7773, 4294901760
        %v8035 = vsub.f32 %v7773, %v8034
        %8036 = vmatpush1.msra.mxu0 %v8035
        %8037 = vmatprep.subr.mxu0 0.0
        %v8038 = vand.u32 %v7772, 4294901760
        %v8039 = vsub.f32 %v7772, %v8038
        %8040 = vmatpush1.msra.mxu0 %v8039
        %8041 = vmatprep.subr.mxu0 0.0
        %v8042 = vand.u32 %v7771, 4294901760
        %v8043 = vsub.f32 %v7771, %v8042
        %8044 = vmatpush1.msra.mxu0 %v8043
        %8045 = vmatprep.subr.mxu0 0.0
        %v8046 = vand.u32 %v7770, 4294901760
        %v8047 = vsub.f32 %v7770, %v8046
        %8048 = vmatpush1.msra.mxu0 %v8047
        %8049 = vmatprep.subr.mxu0 0.0
        %v8050 = vand.u32 %v7769, 4294901760
        %v8051 = vsub.f32 %v7769, %v8050
        %8052 = vmatpush1.msra.mxu0 %v8051
        %8053 = vmatprep.subr.mxu0 0.0
        %v8054 = vand.u32 %v7768, 4294901760
        %v8055 = vsub.f32 %v7768, %v8054
        %8056 = vmatpush1.msra.mxu0 %v8055
        %8057 = vmatprep.subr.mxu0 0.0
        %v8058 = vand.u32 %v7767, 4294901760
        %v8059 = vsub.f32 %v7767, %v8058
        %8060 = vmatpush1.msra.mxu0 %v8059
        %8061 = vmatprep.subr.mxu0 0.0
        %v8062 = vand.u32 %v7766, 4294901760
        %v8063 = vsub.f32 %v7766, %v8062
        %8064 = vmatpush1.msra.mxu0 %v8063
        %8065 = vmatprep.subr.mxu0 0.0
        %v8066 = vand.u32 %v7765, 4294901760
        %v8067 = vsub.f32 %v7765, %v8066
        %8068 = vmatpush1.msra.mxu0 %v8067
        %8069 = vmatprep.subr.mxu0 0.0
        %v8070 = vand.u32 %v7764, 4294901760
        %v8071 = vsub.f32 %v7764, %v8070
        %8072 = vmatpush1.msra.mxu0 %v8071
        %8073 = vmatprep.subr.mxu0 0.0
        %v8074 = vand.u32 %v7763, 4294901760
        %v8075 = vsub.f32 %v7763, %v8074
        %8076 = vmatpush1.msra.mxu0 %v8075
        %8077 = vmatprep.subr.mxu0 0.0
        %v8078 = vand.u32 %v7762, 4294901760
        %v8079 = vsub.f32 %v7762, %v8078
        %8080 = vmatpush1.msra.mxu0 %v8079
        %8081 = vmatprep.subr.mxu0 0.0
        %v8082 = vand.u32 %v7761, 4294901760
        %v8083 = vsub.f32 %v7761, %v8082
        %8084 = vmatpush1.msra.mxu0 %v8083
        %8085 = vmatprep.subr.mxu0 0.0
        %v8086 = vand.u32 %v7760, 4294901760
        %v8087 = vsub.f32 %v7760, %v8086
        %8088 = vmatpush1.msra.mxu0 %v8087
        %8089 = vmatprep.subr.mxu0 0.0
        %8090 = vmatpush2.msra.mxu0 0.0
        %8091 = vmatprep.subr.mxu0 0.0
        %8092 = vmatpush2.msra.mxu0 0.0
        %8093 = vmatprep.subr.mxu0 0.0
        %8094 = vmatpush2.msra.mxu0 0.0
        %8095 = vmatprep.subr.mxu0 0.0
        %8096 = vmatpush2.msra.mxu0 0.0
        %8097 = vmatprep.subr.mxu0 0.0
        %8098 = vmatpush2.msra.mxu0 0.0
        %8099 = vmatprep.subr.mxu0 0.0
        %8100 = vmatpush2.msra.mxu0 0.0
        %8101 = vmatprep.subr.mxu0 0.0
        %8102 = vmatpush2.msra.mxu0 0.0
        %8103 = vmatprep.subr.mxu0 0.0
        %8104 = vmatpush2.msra.mxu0 0.0
        %8105 = vmatprep.subr.mxu0 0.0
        %8106 = vmatpush2.msra.mxu0 0.0
        %8107 = vmatprep.subr.mxu0 0.0
        %8108 = vmatpush2.msra.mxu0 0.0
        %8109 = vmatprep.subr.mxu0 0.0
        %8110 = vmatpush2.msra.mxu0 0.0
        %8111 = vmatprep.subr.mxu0 0.0
        %8112 = vmatpush2.msra.mxu0 0.0
        %8113 = vmatprep.subr.mxu0 0.0
        %8114 = vmatpush2.msra.mxu0 0.0
        %8115 = vmatprep.subr.mxu0 0.0
        %8116 = vmatpush2.msra.mxu0 0.0
        %8117 = vmatprep.subr.mxu0 0.0
        %8118 = vmatpush2.msra.mxu0 0.0
        %8119 = vmatprep.subr.mxu0 0.0
        %8120 = vmatpush2.msra.mxu0 0.0
        %8121 = vmatprep.mubr.f32.mxu0 0.0
        %v8122 = vand.u32 %v7759, 4294901760
        %v8123 = vsub.f32 %v7759, %v8122
        %8124 = vmatmul.mubr.f32.gmra.mxu0 %v8123
        %v8125 = vpop.f32.mrf.mxu0
        %v8126 = vadd.f32 %v8022, %v8125
        %v8127 = vpop.f32.mrf.mxu0
        %8128 = vdwg.mxu0
        %8129 = vmatprep.subr.mxu0 0.0
        %v8130 = vand.u32 %v7775, 4294901760
        %8131 = vmatpush1.msra.mxu0 %v8130
        %8132 = vmatprep.subr.mxu0 0.0
        %v8133 = vand.u32 %v7774, 4294901760
        %8134 = vmatpush1.msra.mxu0 %v8133
        %8135 = vmatprep.subr.mxu0 0.0
        %v8136 = vand.u32 %v7773, 4294901760
        %8137 = vmatpush1.msra.mxu0 %v8136
        %8138 = vmatprep.subr.mxu0 0.0
        %v8139 = vand.u32 %v7772, 4294901760
        %8140 = vmatpush1.msra.mxu0 %v8139
        %8141 = vmatprep.subr.mxu0 0.0
        %v8142 = vand.u32 %v7771, 4294901760
        %8143 = vmatpush1.msra.mxu0 %v8142
        %8144 = vmatprep.subr.mxu0 0.0
        %v8145 = vand.u32 %v7770, 4294901760
        %8146 = vmatpush1.msra.mxu0 %v8145
        %8147 = vmatprep.subr.mxu0 0.0
        %v8148 = vand.u32 %v7769, 4294901760
        %8149 = vmatpush1.msra.mxu0 %v8148
        %8150 = vmatprep.subr.mxu0 0.0
        %v8151 = vand.u32 %v7768, 4294901760
        %8152 = vmatpush1.msra.mxu0 %v8151
        %8153 = vmatprep.subr.mxu0 0.0
        %v8154 = vand.u32 %v7767, 4294901760
        %8155 = vmatpush1.msra.mxu0 %v8154
        %8156 = vmatprep.subr.mxu0 0.0
        %v8157 = vand.u32 %v7766, 4294901760
        %8158 = vmatpush1.msra.mxu0 %v8157
        %8159 = vmatprep.subr.mxu0 0.0
        %v8160 = vand.u32 %v7765, 4294901760
        %8161 = vmatpush1.msra.mxu0 %v8160
        %8162 = vmatprep.subr.mxu0 0.0
        %v8163 = vand.u32 %v7764, 4294901760
        %8164 = vmatpush1.msra.mxu0 %v8163
        %8165 = vmatprep.subr.mxu0 0.0
        %v8166 = vand.u32 %v7763, 4294901760
        %8167 = vmatpush1.msra.mxu0 %v8166
        %8168 = vmatprep.subr.mxu0 0.0
        %v8169 = vand.u32 %v7762, 4294901760
        %8170 = vmatpush1.msra.mxu0 %v8169
        %8171 = vmatprep.subr.mxu0 0.0
        %v8172 = vand.u32 %v7761, 4294901760
        %8173 = vmatpush1.msra.mxu0 %v8172
        %8174 = vmatprep.subr.mxu0 0.0
        %v8175 = vand.u32 %v7760, 4294901760
        %8176 = vmatpush1.msra.mxu0 %v8175
        %8177 = vmatprep.subr.mxu0 0.0
        %8178 = vmatpush2.msra.mxu0 0.0
        %8179 = vmatprep.subr.mxu0 0.0
        %8180 = vmatpush2.msra.mxu0 0.0
        %8181 = vmatprep.subr.mxu0 0.0
        %8182 = vmatpush2.msra.mxu0 0.0
        %8183 = vmatprep.subr.mxu0 0.0
        %8184 = vmatpush2.msra.mxu0 0.0
        %8185 = vmatprep.subr.mxu0 0.0
        %8186 = vmatpush2.msra.mxu0 0.0
        %8187 = vmatprep.subr.mxu0 0.0
        %8188 = vmatpush2.msra.mxu0 0.0
        %8189 = vmatprep.subr.mxu0 0.0
        %8190 = vmatpush2.msra.mxu0 0.0
        %8191 = vmatprep.subr.mxu0 0.0
        %8192 = vmatpush2.msra.mxu0 0.0
        %8193 = vmatprep.subr.mxu0 0.0
        %8194 = vmatpush2.msra.mxu0 0.0
        %8195 = vmatprep.subr.mxu0 0.0
        %8196 = vmatpush2.msra.mxu0 0.0
        %8197 = vmatprep.subr.mxu0 0.0
        %8198 = vmatpush2.msra.mxu0 0.0
        %8199 = vmatprep.subr.mxu0 0.0
        %8200 = vmatpush2.msra.mxu0 0.0
        %8201 = vmatprep.subr.mxu0 0.0
        %8202 = vmatpush2.msra.mxu0 0.0
        %8203 = vmatprep.subr.mxu0 0.0
        %8204 = vmatpush2.msra.mxu0 0.0
        %8205 = vmatprep.subr.mxu0 0.0
        %8206 = vmatpush2.msra.mxu0 0.0
        %8207 = vmatprep.subr.mxu0 0.0
        %8208 = vmatpush2.msra.mxu0 0.0
        %8209 = vmatprep.mubr.f32.mxu0 0.0
        %v8210 = vand.u32 %v7759, 4294901760
        %v8211 = vsub.f32 %v7759, %v8210
        %v8212 = vand.u32 %v8211, 4294901760
        %8213 = vmatmul.mubr.f32.gmra.mxu0 %v8212
        %v8214 = vpop.f32.mrf.mxu0
        %v8215 = vadd.f32 %v8126, %v8214
        %v8216 = vpop.f32.mrf.mxu0
        %8217 = vdwg.mxu0
        %8218 = vmatprep.subr.mxu0 0.0
        %v8219 = vand.u32 %v7775, 4294901760
        %v8220 = vsub.f32 %v7775, %v8219
        %v8221 = vand.u32 %v8220, 4294901760
        %8222 = vmatpush1.msra.mxu0 %v8221
        %8223 = vmatprep.subr.mxu0 0.0
        %v8224 = vand.u32 %v7774, 4294901760
        %v8225 = vsub.f32 %v7774, %v8224
        %v8226 = vand.u32 %v8225, 4294901760
        %8227 = vmatpush1.msra.mxu0 %v8226
        %8228 = vmatprep.subr.mxu0 0.0
        %v8229 = vand.u32 %v7773, 4294901760
        %v8230 = vsub.f32 %v7773, %v8229
        %v8231 = vand.u32 %v8230, 4294901760
        %8232 = vmatpush1.msra.mxu0 %v8231
        %8233 = vmatprep.subr.mxu0 0.0
        %v8234 = vand.u32 %v7772, 4294901760
        %v8235 = vsub.f32 %v7772, %v8234
        %v8236 = vand.u32 %v8235, 4294901760
        %8237 = vmatpush1.msra.mxu0 %v8236
        %8238 = vmatprep.subr.mxu0 0.0
        %v8239 = vand.u32 %v7771, 4294901760
        %v8240 = vsub.f32 %v7771, %v8239
        %v8241 = vand.u32 %v8240, 4294901760
        %8242 = vmatpush1.msra.mxu0 %v8241
        %8243 = vmatprep.subr.mxu0 0.0
        %v8244 = vand.u32 %v7770, 4294901760
        %v8245 = vsub.f32 %v7770, %v8244
        %v8246 = vand.u32 %v8245, 4294901760
        %8247 = vmatpush1.msra.mxu0 %v8246
        %8248 = vmatprep.subr.mxu0 0.0
        %v8249 = vand.u32 %v7769, 4294901760
        %v8250 = vsub.f32 %v7769, %v8249
        %v8251 = vand.u32 %v8250, 4294901760
        %8252 = vmatpush1.msra.mxu0 %v8251
        %8253 = vmatprep.subr.mxu0 0.0
        %v8254 = vand.u32 %v7768, 4294901760
        %v8255 = vsub.f32 %v7768, %v8254
        %v8256 = vand.u32 %v8255, 4294901760
        %8257 = vmatpush1.msra.mxu0 %v8256
        %8258 = vmatprep.subr.mxu0 0.0
        %v8259 = vand.u32 %v7767, 4294901760
        %v8260 = vsub.f32 %v7767, %v8259
        %v8261 = vand.u32 %v8260, 4294901760
        %8262 = vmatpush1.msra.mxu0 %v8261
        %8263 = vmatprep.subr.mxu0 0.0
        %v8264 = vand.u32 %v7766, 4294901760
        %v8265 = vsub.f32 %v7766, %v8264
        %v8266 = vand.u32 %v8265, 4294901760
        %8267 = vmatpush1.msra.mxu0 %v8266
        %8268 = vmatprep.subr.mxu0 0.0
        %v8269 = vand.u32 %v7765, 4294901760
        %v8270 = vsub.f32 %v7765, %v8269
        %v8271 = vand.u32 %v8270, 4294901760
        %8272 = vmatpush1.msra.mxu0 %v8271
        %8273 = vmatprep.subr.mxu0 0.0
        %v8274 = vand.u32 %v7764, 4294901760
        %v8275 = vsub.f32 %v7764, %v8274
        %v8276 = vand.u32 %v8275, 4294901760
        %8277 = vmatpush1.msra.mxu0 %v8276
        %8278 = vmatprep.subr.mxu0 0.0
        %v8279 = vand.u32 %v7763, 4294901760
        %v8280 = vsub.f32 %v7763, %v8279
        %v8281 = vand.u32 %v8280, 4294901760
        %8282 = vmatpush1.msra.mxu0 %v8281
        %8283 = vmatprep.subr.mxu0 0.0
        %v8284 = vand.u32 %v7762, 4294901760
        %v8285 = vsub.f32 %v7762, %v8284
        %v8286 = vand.u32 %v8285, 4294901760
        %8287 = vmatpush1.msra.mxu0 %v8286
        %8288 = vmatprep.subr.mxu0 0.0
        %v8289 = vand.u32 %v7761, 4294901760
        %v8290 = vsub.f32 %v7761, %v8289
        %v8291 = vand.u32 %v8290, 4294901760
        %8292 = vmatpush1.msra.mxu0 %v8291
        %8293 = vmatprep.subr.mxu0 0.0
        %v8294 = vand.u32 %v7760, 4294901760
        %v8295 = vsub.f32 %v7760, %v8294
        %v8296 = vand.u32 %v8295, 4294901760
        %8297 = vmatpush1.msra.mxu0 %v8296
        %8298 = vmatprep.subr.mxu0 0.0
        %8299 = vmatpush2.msra.mxu0 0.0
        %8300 = vmatprep.subr.mxu0 0.0
        %8301 = vmatpush2.msra.mxu0 0.0
        %8302 = vmatprep.subr.mxu0 0.0
        %8303 = vmatpush2.msra.mxu0 0.0
        %8304 = vmatprep.subr.mxu0 0.0
        %8305 = vmatpush2.msra.mxu0 0.0
        %8306 = vmatprep.subr.mxu0 0.0
        %8307 = vmatpush2.msra.mxu0 0.0
        %8308 = vmatprep.subr.mxu0 0.0
        %8309 = vmatpush2.msra.mxu0 0.0
        %8310 = vmatprep.subr.mxu0 0.0
        %8311 = vmatpush2.msra.mxu0 0.0
        %8312 = vmatprep.subr.mxu0 0.0
        %8313 = vmatpush2.msra.mxu0 0.0
        %8314 = vmatprep.subr.mxu0 0.0
        %8315 = vmatpush2.msra.mxu0 0.0
        %8316 = vmatprep.subr.mxu0 0.0
        %8317 = vmatpush2.msra.mxu0 0.0
        %8318 = vmatprep.subr.mxu0 0.0
        %8319 = vmatpush2.msra.mxu0 0.0
        %8320 = vmatprep.subr.mxu0 0.0
        %8321 = vmatpush2.msra.mxu0 0.0
        %8322 = vmatprep.subr.mxu0 0.0
        %8323 = vmatpush2.msra.mxu0 0.0
        %8324 = vmatprep.subr.mxu0 0.0
        %8325 = vmatpush2.msra.mxu0 0.0
        %8326 = vmatprep.subr.mxu0 0.0
        %8327 = vmatpush2.msra.mxu0 0.0
        %8328 = vmatprep.subr.mxu0 0.0
        %8329 = vmatpush2.msra.mxu0 0.0
        %8330 = vmatprep.mubr.f32.mxu0 0.0
        %v8331 = vand.u32 %v7759, 4294901760
        %8332 = vmatmul.mubr.f32.gmra.mxu0 %v8331
        %v8333 = vpop.f32.mrf.mxu0
        %v8334 = vadd.f32 %v8215, %v8333
        %v8335 = vpop.f32.mrf.mxu0
        %8336 = vdwg.mxu0
        %8337 = vmatprep.subr.mxu0 0.0
        %v8338 = vand.u32 %v7775, 4294901760
        %8339 = vmatpush1.msra.mxu0 %v8338
        %8340 = vmatprep.subr.mxu0 0.0
        %v8341 = vand.u32 %v7774, 4294901760
        %8342 = vmatpush1.msra.mxu0 %v8341
        %8343 = vmatprep.subr.mxu0 0.0
        %v8344 = vand.u32 %v7773, 4294901760
        %8345 = vmatpush1.msra.mxu0 %v8344
        %8346 = vmatprep.subr.mxu0 0.0
        %v8347 = vand.u32 %v7772, 4294901760
        %8348 = vmatpush1.msra.mxu0 %v8347
        %8349 = vmatprep.subr.mxu0 0.0
        %v8350 = vand.u32 %v7771, 4294901760
        %8351 = vmatpush1.msra.mxu0 %v8350
        %8352 = vmatprep.subr.mxu0 0.0
        %v8353 = vand.u32 %v7770, 4294901760
        %8354 = vmatpush1.msra.mxu0 %v8353
        %8355 = vmatprep.subr.mxu0 0.0
        %v8356 = vand.u32 %v7769, 4294901760
        %8357 = vmatpush1.msra.mxu0 %v8356
        %8358 = vmatprep.subr.mxu0 0.0
        %v8359 = vand.u32 %v7768, 4294901760
        %8360 = vmatpush1.msra.mxu0 %v8359
        %8361 = vmatprep.subr.mxu0 0.0
        %v8362 = vand.u32 %v7767, 4294901760
        %8363 = vmatpush1.msra.mxu0 %v8362
        %8364 = vmatprep.subr.mxu0 0.0
        %v8365 = vand.u32 %v7766, 4294901760
        %8366 = vmatpush1.msra.mxu0 %v8365
        %8367 = vmatprep.subr.mxu0 0.0
        %v8368 = vand.u32 %v7765, 4294901760
        %8369 = vmatpush1.msra.mxu0 %v8368
        %8370 = vmatprep.subr.mxu0 0.0
        %v8371 = vand.u32 %v7764, 4294901760
        %8372 = vmatpush1.msra.mxu0 %v8371
        %8373 = vmatprep.subr.mxu0 0.0
        %v8374 = vand.u32 %v7763, 4294901760
        %8375 = vmatpush1.msra.mxu0 %v8374
        %8376 = vmatprep.subr.mxu0 0.0
        %v8377 = vand.u32 %v7762, 4294901760
        %8378 = vmatpush1.msra.mxu0 %v8377
        %8379 = vmatprep.subr.mxu0 0.0
        %v8380 = vand.u32 %v7761, 4294901760
        %8381 = vmatpush1.msra.mxu0 %v8380
        %8382 = vmatprep.subr.mxu0 0.0
        %v8383 = vand.u32 %v7760, 4294901760
        %8384 = vmatpush1.msra.mxu0 %v8383
        %8385 = vmatprep.subr.mxu0 0.0
        %8386 = vmatpush2.msra.mxu0 0.0
        %8387 = vmatprep.subr.mxu0 0.0
        %8388 = vmatpush2.msra.mxu0 0.0
        %8389 = vmatprep.subr.mxu0 0.0
        %8390 = vmatpush2.msra.mxu0 0.0
        %8391 = vmatprep.subr.mxu0 0.0
        %8392 = vmatpush2.msra.mxu0 0.0
        %8393 = vmatprep.subr.mxu0 0.0
        %8394 = vmatpush2.msra.mxu0 0.0
        %8395 = vmatprep.subr.mxu0 0.0
        %8396 = vmatpush2.msra.mxu0 0.0
        %8397 = vmatprep.subr.mxu0 0.0
        %8398 = vmatpush2.msra.mxu0 0.0
        %8399 = vmatprep.subr.mxu0 0.0
        %8400 = vmatpush2.msra.mxu0 0.0
        %8401 = vmatprep.subr.mxu0 0.0
        %8402 = vmatpush2.msra.mxu0 0.0
        %8403 = vmatprep.subr.mxu0 0.0
        %8404 = vmatpush2.msra.mxu0 0.0
        %8405 = vmatprep.subr.mxu0 0.0
        %8406 = vmatpush2.msra.mxu0 0.0
        %8407 = vmatprep.subr.mxu0 0.0
        %8408 = vmatpush2.msra.mxu0 0.0
        %8409 = vmatprep.subr.mxu0 0.0
        %8410 = vmatpush2.msra.mxu0 0.0
        %8411 = vmatprep.subr.mxu0 0.0
        %8412 = vmatpush2.msra.mxu0 0.0
        %8413 = vmatprep.subr.mxu0 0.0
        %8414 = vmatpush2.msra.mxu0 0.0
        %8415 = vmatprep.subr.mxu0 0.0
        %8416 = vmatpush2.msra.mxu0 0.0
        %8417 = vmatprep.mubr.f32.mxu0 0.0
        %v8418 = vand.u32 %v7759, 4294901760
        %8419 = vmatmul.mubr.f32.gmra.mxu0 %v8418
        %v8420 = vpop.f32.mrf.mxu0
        %v8421 = vadd.f32 %v8334, %v8420
        %v8422 = vpop.f32.mrf.mxu0
        %8423 = vdwg.mxu0
        %v8424 = vmax.f32 %v8421, 0.0
        %vm8425 = vcmask 261120
        %8426 = vst.msk [vmem:[%s379] sm:$0xff] %vm8425, %v8424
        %s8427 = sand.u32 %s269, 1
        %s8428 = scalar_lea.sflag [#allocation3], %s8427
        %s8429 = sand.u32 %s269, 1
        %s8430 = smul.addr %s8429, 8
        %s8431 = scalar_lea.vmem [#allocation2], %s8430
        // Predicated region
        $region65: #{eeg_extended_forward.1} parent=63 // pred_check
          %p8432 = pneg %p279
        $region66: #{eeg_extended_forward.1} parent=63 // pred_check_branch
          %8434 = sbr.rel (%p8432) target = $region68
        $region67: #{eeg_extended_forward.1} parent=63 // pred_region
          %s8436 = ssub.s32 128, 128
          %8437 = vsyncadd %s8428, %s8436
          %s8438 = smul.addr %s25, 128
          %s8439 = scalar_lea.hbm %s11, %s8438
          %s8441 = sshll.u32 %s8431, 4
          %s8442 = int_to_ptr.vmem [resolvable:$true] %s8441
          %8444 = dma.vmem_to_hbm [thread:$0]  %s8442, 128, %s8439, %s8428
        $region68: #{eeg_extended_forward.1} parent=63 // pred_fallthru
          _
      $region64: #{eeg_extended_forward.1} parent=5 // pred_fallthru
        _
      %p8445 = scmp.le.s32.totalorder 2, %s20
      // Predicated region
      $region69: #{eeg_extended_forward.1} parent=5 // pred_check
        %p8446 = pneg %p8445
      $region70: #{eeg_extended_forward.1} parent=5 // pred_check_branch
        %8448 = sbr.rel (%p8446) target = $region72
      $region71: #{eeg_extended_forward.1} parent=5 // pred_region
        %s8449 = ssub.s32 %s20, 2
        // Predicated region
        $region73: #{eeg_extended_forward.1} parent=71 // pred_check
          %p8450 = pneg %p285
        $region74: #{eeg_extended_forward.1} parent=71 // pred_check_branch
          %8452 = sbr.rel (%p8450) target = $region76
        $region75: #{eeg_extended_forward.1} parent=71 // pred_region
          %s8453 = sand.u32 %s270, 1
          %s8454 = scalar_lea.sflag [#allocation3], %s8453
          %s8455 = sand.u32 %s270, 1
          %s8456 = smul.addr %s8455, 8
          %s8457 = scalar_lea.vmem [#allocation2], %s8456
          %8458 = dma.done %s8454, 128
        $region76: #{eeg_extended_forward.1} parent=71 // pred_fallthru
          _
      $region72: #{eeg_extended_forward.1} parent=5 // pred_fallthru
        _
    $region6: #{eeg_extended_forward.1} parent=1 // loop_footer
      %s24 = sadd.s32 1, %s20
    $region7: #{eeg_extended_forward.1} parent=1 // loop_footer_branch
      %19 = sbr.rel target = $region3
    $region8: #{eeg_extended_forward.1} parent=1 // loop_exit
      _
    %8459 = vsyncpa [#allocation3], 1
    %s8460 = scalar_lea.sflag [#allocation3], 1
    %8461 = vsyncpa %s8460, 1

</llo_original>
